<compile_context>
chip_gen: v7x
topology: tpu7x:2x2x1
jax: 0.10.0
libtpu: 0.0.40
codegen_flags: <defaults>
</compile_context>

<pallas_src>
import numpy as np
import jax
import jax.numpy as jnp
from jax.experimental import pallas as pl
from jax.experimental.pallas import tpu as pltpu

NUM_CLASSES = 7
NUM_E2E = 3
CONV_SIZE = 64
HIDDEN_SIZE = 48
EPS = 1e-5

# conv2 tap decomposition (kernel=4, stride=2, pad=1) split by input parity:
# input index i1 = 2*o2 - 1 + k  ==>  parity(i1) = (k + 1) % 2, q = o2 + dq[k]
_TAP_PARITY = (1, 0, 1, 0)
_TAP_DQ = (-1, 0, 0, 1)


# ---------------------------------------------------------------------------
# Pallas kernels
# ---------------------------------------------------------------------------
def _bn_rows(y, gamma, beta):
    """BatchNorm over rows (all spatial*batch positions) per channel column."""
    m = jnp.mean(y, axis=0, keepdims=True)
    v = jnp.mean(jnp.square(y - m), axis=0, keepdims=True)
    return (y - m) * jax.lax.rsqrt(v + EPS) * gamma + beta


def make_conv_kernel(N, H2, W2):
    """Fused conv block: conv1(im2col matmul)+ReLU+BN2d(64) ->
    conv2 (16 constant row shifts + masks -> one K=1024 matmul)+ReLU+BN2d(48).

    p1_ref  : (4*N*H2*W2, 48)  conv1 im2col patches, parity-ordered rows (bf16)
    w1_ref  : (48, 64)         conv1 weight matrix (bf16)
    w2_ref  : (1024, 48)       conv2 weight matrix, tap-major rows (bf16)
    mask_ref: (N*H2*W2, 16)    constant 0/1 edge masks, one column per tap (f32)
    o_ref   : (N*H2*W2, 48)    normalized conv2 output (bf16)
    """
    B = N * H2 * W2  # conv2 output rows per parity block == total conv2 pixels

    def conv_kernel(p1_ref, w1_ref, g1_ref, b1_ref,
                    w2_ref, g2_ref, b2_ref, mask_ref, o_ref):
        # conv1 as a single matmul, f32 accumulation on the MXU.
        y1 = jnp.dot(p1_ref[...], w1_ref[...], preferred_element_type=jnp.float32)
        y1 = jnp.maximum(y1, 0.0)                                  # ReLU(inplace)
        y1 = _bn_rows(y1, g1_ref[...], b1_ref[...])                # (4B, 64) f32

        mask = mask_ref[...]                                       # (B, 16) f32

        # conv2: every tap is a constant row shift of one parity block of y1,
        # zero-filled at the ends and masked at the spatial/image boundaries.
        wins = []
        for kh in range(4):
            ph, dh = _TAP_PARITY[kh], _TAP_DQ[kh]
            for kw in range(4):
                pw, dw = _TAP_PARITY[kw], _TAP_DQ[kw]
                t = kh * 4 + kw
                s = dh * W2 + dw
                base = (ph * 2 + pw) * B
                blk = y1[base:base + B, :]                         # (B, 64)
                if s > 0:
                    sh = jnp.concatenate(
                        [blk[s:, :], jnp.zeros((s, blk.shape[1]), blk.dtype)],
                        axis=0)
                elif s < 0:
                    sh = jnp.concatenate(
                        [jnp.zeros((-s, blk.shape[1]), blk.dtype), blk[:B + s, :]],
                        axis=0)
                else:
                    sh = blk
                if dh == 0 and dw == 0:
                    wins.append(sh)                                # mask == all ones
                else:
                    wins.append(sh * mask[:, t:t + 1])
        # One MXU matmul with K = 16*64 = 1024 instead of 16 K=64 matmuls.
        patch = jnp.concatenate(wins, axis=1).astype(jnp.bfloat16)  # (B, 1024)
        y2 = jnp.dot(patch, w2_ref[...], preferred_element_type=jnp.float32)
        y2 = jnp.maximum(y2, 0.0)                                  # ReLU(inplace)
        y2 = _bn_rows(y2, g2_ref[...], b2_ref[...])
        o_ref[...] = y2.astype(o_ref.dtype)

    return conv_kernel


def head_kernel(x_ref, r_ref, w0x_ref, w0r_ref, b0_ref, wl2_ref, bl2_ref,
                wh_ref, bh_ref, gd_ref, btd_ref, ge_ref, bte_ref, o_ref):
    """linear0 (flatten + ruler concat folded into two matmuls) -> linear2
    -> merged linearDiog/linearDect -> two BatchNorm1d(1) (batch stats),
    emitted as one lane-merged (N, 9) output."""
    h0 = (jnp.dot(x_ref[...], w0x_ref[...], preferred_element_type=jnp.float32)
          + jnp.dot(r_ref[...], w0r_ref[...], preferred_element_type=jnp.float32)
          + b0_ref[...])
    h2 = jnp.dot(h0, wl2_ref[...], preferred_element_type=jnp.float32) + bl2_ref[...]
    out = jnp.dot(h2, wh_ref[...], preferred_element_type=jnp.float32) + bh_ref[...]

    diag = out[:, :NUM_CLASSES]
    dect = out[:, NUM_CLASSES:NUM_CLASSES + 2]

    # BatchNorm1d(1) on a (N, 1, L) view: normalize over all N*L elements.
    md = jnp.mean(diag, axis=(0, 1), keepdims=True)
    vd = jnp.mean(jnp.square(diag - md), axis=(0, 1), keepdims=True)
    diag = (diag - md) * jax.lax.rsqrt(vd + EPS) * gd_ref[...] + btd_ref[...]

    me = jnp.mean(dect, axis=(0, 1), keepdims=True)
    ve = jnp.mean(jnp.square(dect - me), axis=(0, 1), keepdims=True)
    dect = (dect - me) * jax.lax.rsqrt(ve + EPS) * ge_ref[...] + bte_ref[...]

    o_ref[...] = jnp.concatenate([diag, dect], axis=1)


# ---------------------------------------------------------------------------
# pallas_call wrappers (whole problem fits in ~2 MiB of VMEM -> grid=(1,))
# ---------------------------------------------------------------------------
def _full_spec(shape):
    return pl.BlockSpec(shape, lambda i: (0,) * len(shape))


_COMPILER_PARAMS = pltpu.CompilerParams(
    dimension_semantics=("arbitrary",),
    # Actual residency is ~2 MiB; 16 MiB leaves ample headroom on v7x (64 MiB
    # physical VMEM) as well as v5e/v6e (128 MiB).
    vmem_limit_bytes=16 * 1024 * 1024,
)


def conv_stack(p1, mask, prep, N, H2, W2):
    B = N * H2 * W2
    args = (p1, prep["w1"], prep["bn1_g"], prep["bn1_b"],
            prep["w2"], prep["bn2_g"], prep["bn2_b"], mask)
    return pl.pallas_call(
        make_conv_kernel(N, H2, W2),
        out_shape=jax.ShapeDtypeStruct((B, HIDDEN_SIZE), jnp.bfloat16),
        grid=(1,),
        in_specs=[_full_spec(a.shape) for a in args],
        out_specs=_full_spec((B, HIDDEN_SIZE)),
        compiler_params=_COMPILER_PARAMS,
    )(*args)


def head(flat, ruler, prep):
    N = flat.shape[0]
    args = (flat, ruler, prep["w0x"], prep["w0r"], prep["b0"],
            prep["wl2"], prep["bl2"], prep["wh"], prep["bh"],
            prep["gd"], prep["btd"], prep["ge"], prep["bte"])
    return pl.pallas_call(
        head_kernel,
        out_shape=jax.ShapeDtypeStruct((N, NUM_CLASSES + 2), jnp.float32),
        grid=(1,),
        in_specs=[_full_spec(a.shape) for a in args],
        out_specs=_full_spec((N, NUM_CLASSES + 2)),
        compiler_params=_COMPILER_PARAMS,
    )(*args)


# ---------------------------------------------------------------------------
# Tiny plain-JAX glue: parity-ordered im2col of the *input image only*
# ---------------------------------------------------------------------------
def build_conv1_patches(x_nchw):
    """im2col for conv1 (k=4, s=2, p=1) with rows pre-ordered as
    (row-parity, col-parity, n, q_row, q_col) so conv2's stride-2 window gather
    becomes constant contiguous row shifts inside the kernel."""
    N, C0, H, W = x_nchw.shape
    H1, W1 = H // 2, W // 2
    H2, W2 = H1 // 2, W1 // 2
    xp = jnp.pad(x_nchw, ((0, 0), (0, 0), (1, 1), (1, 1)))
    taps = [xp[:, :, kh:kh + 2 * H1:2, kw:kw + 2 * W1:2]
            for kh in range(4) for kw in range(4)]         # each (N, C0, H1, W1)
    p = jnp.stack(taps, axis=2)                            # (N, C0, 16, H1, W1)
    p = p.reshape(N, C0, 16, H2, 2, W2, 2)                 # oh1=(qh,ph), ow1=(qw,pw)
    p = jnp.transpose(p, (4, 6, 0, 3, 5, 2, 1))            # (ph, pw, n, qh, qw, tap, c)
    return p.reshape(4 * N * H2 * W2, 16 * C0)


# ---------------------------------------------------------------------------
# One-time (outside-jit, batch-independent) parameter / constant preparation
# ---------------------------------------------------------------------------
def build_tap_mask(H2, W2):
    """Per-image constant 0/1 validity mask (H2*W2, 16): tap t is valid at
    output (oh, ow) iff the shifted source pixel exists (zero padding else)."""
    m = np.zeros((H2 * W2, 16), np.float32)
    for kh in range(4):
        dh = _TAP_DQ[kh]
        for kw in range(4):
            dw = _TAP_DQ[kw]
            col = kh * 4 + kw
            for oh in range(H2):
                for ow in range(W2):
                    if 0 <= oh + dh < H2 and 0 <= ow + dw < W2:
                        m[oh * W2 + ow, col] = 1.0
    return jnp.asarray(m)


def conv_weight_to_mat(w_oihw):
    # (Cout, Cin, kh, kw) -> ((kh*kw*Cin), Cout), tap-major / channel-minor rows
    Cout, Cin, kh, kw = w_oihw.shape
    return jnp.transpose(w_oihw, (2, 3, 1, 0)).reshape(kh * kw * Cin, Cout)


def prepare_params(params, H, W):
    """Reshape / split / permute weights once, outside the hot path.
    Batch-size independent."""
    H2, W2 = H // 4, W // 4
    nspatial = H2 * W2                                    # 72
    nflat = HIDDEN_SIZE * nspatial                        # 3456

    # linear0 weight (stored as (in, out)): split [flat | ruler] rows, then
    # permute the flat rows from PyTorch's channel-major order (c*HW + s) to
    # the kernel's spatial-major flatten (s*C + c) -> no runtime transpose.
    w0 = params["w0"]
    w0x = w0[:nflat].reshape(HIDDEN_SIZE, nspatial, -1)
    w0x = jnp.transpose(w0x, (1, 0, 2)).reshape(nflat, -1)

    return {
        "w1": conv_weight_to_mat(params["conv1_w"]).astype(jnp.bfloat16),
        "bn1_g": params["bn1_g"], "bn1_b": params["bn1_b"],
        "w2": conv_weight_to_mat(params["conv2_w"]).astype(jnp.bfloat16),   # (1024, 48)
        "bn2_g": params["bn2_g"], "bn2_b": params["bn2_b"],
        "tap_mask": build_tap_mask(H2, W2),                                 # (72, 16)
        "w0x": w0x.astype(jnp.bfloat16),
        "w0r": w0[nflat:].astype(jnp.bfloat16),
        "b0": params["b0"],
        "wl2": params["wl2"], "bl2": params["bl2"],
        "wh": jnp.concatenate([params["wd"], params["we"]], axis=1),        # (12, 9)
        "bh": jnp.concatenate([params["bd"], params["be"]], axis=1),        # (1, 9)
        "gd": params["gd"], "btd": params["btd"],
        "ge": params["ge"], "bte": params["bte"],
    }


# ---------------------------------------------------------------------------
# Full forward
# ---------------------------------------------------------------------------
def cnn_forward(x_nchw, ruler, prep):
    N, _, H, W = x_nchw.shape
    H2, W2 = H // 4, W // 4
    p1 = build_conv1_patches(x_nchw.astype(jnp.bfloat16))          # (4N*72, 48)
    mask = jnp.tile(prep["tap_mask"], (N, 1))                      # (N*72, 16)

    y2 = conv_stack(p1, mask, prep, N, H2, W2)                     # (N*72, 48) bf16

    # Spatial-major flatten; PyTorch's channel-major order is already baked
    # into w0x, so this reshape is a free contiguous view (no transpose).
    flat = y2.reshape(N, H2 * W2 * HIDDEN_SIZE)                    # (N, 3456)
    ruler = ruler.reshape(-1, 36).astype(jnp.bfloat16)

    out = head(flat, ruler, prep)                                  # (N, 9) f32
    return out[:, :NUM_CLASSES], out[:, NUM_CLASSES:]


# ---------------------------------------------------------------------------
# Pure-JAX f32 reference (mirrors the PyTorch forward in training mode)
# ---------------------------------------------------------------------------
def reference_forward(x, ruler, params):
    def bn2d(y, g, b):
        m = y.mean(axis=(0, 2, 3), keepdims=True)
        v = jnp.square(y - m).mean(axis=(0, 2, 3), keepdims=True)
        return (y - m) * jax.lax.rsqrt(v + EPS) * g.reshape(1, -1, 1, 1) \
            + b.reshape(1, -1, 1, 1)

    def bn1d(v, g, b):
        m = v.mean()
        va = jnp.square(v - m).mean()
        return (v - m) * jax.lax.rsqrt(va + EPS) * g[0, 0] + b[0, 0]

    y = jax.lax.conv_general_dilated(
        x, params["conv1_w"], (2, 2), ((1, 1), (1, 1)),
        dimension_numbers=("NCHW", "OIHW", "NCHW"))
    y = bn2d(jnp.maximum(y, 0.0), params["bn1_g"], params["bn1_b"])
    y = jax.lax.conv_general_dilated(
        y, params["conv2_w"], (2, 2), ((1, 1), (1, 1)),
        dimension_numbers=("NCHW", "OIHW", "NCHW"))
    y = bn2d(jnp.maximum(y, 0.0), params["bn2_g"], params["bn2_b"])
    flat = y.reshape(y.shape[0], -1)                               # channel-major
    xcat = jnp.concatenate([flat, ruler.reshape(-1, 36)], axis=1)
    h0 = xcat @ params["w0"] + params["b0"]
    h2 = h0 @ params["wl2"] + params["bl2"]
    diag = h2 @ params["wd"] + params["bd"]
    dect = h2 @ params["we"] + params["be"]
    return (bn1d(diag, params["gd"], params["btd"]),
            bn1d(dect, params["ge"], params["bte"]))


# ---------------------------------------------------------------------------
def make_params(key):
    ks = jax.random.split(key, 12)
    in0 = 72 * HIDDEN_SIZE + 36           # 3492
    h2 = HIDDEN_SIZE // 2                 # 24
    h4 = HIDDEN_SIZE // 4                 # 12
    return {
        "conv1_w": jax.random.normal(ks[0], (CONV_SIZE, NUM_E2E, 4, 4), jnp.float32) * 0.1,
        "conv2_w": jax.random.normal(ks[1], (HIDDEN_SIZE, CONV_SIZE, 4, 4), jnp.float32) * 0.05,
        "bn1_g": jnp.ones((1, CONV_SIZE), jnp.float32),
        "bn1_b": jnp.zeros((1, CONV_SIZE), jnp.float32),
        "bn2_g": jnp.ones((1, HIDDEN_SIZE), jnp.float32),
        "bn2_b": jnp.zeros((1, HIDDEN_SIZE), jnp.float32),
        "w0": jax.random.normal(ks[2], (in0, h2), jnp.float32) * 0.02,   # linear0 W^T
        "b0": jax.random.normal(ks[3], (1, h2), jnp.float32) * 0.02,
        "wl2": jax.random.normal(ks[4], (h2, h4), jnp.float32) * 0.1,
        "bl2": jax.random.normal(ks[5], (1, h4), jnp.float32) * 0.1,
        "wd": jax.random.normal(ks[6], (h4, NUM_CLASSES), jnp.float32) * 0.1,
        "bd": jax.random.normal(ks[7], (1, NUM_CLASSES), jnp.float32) * 0.1,
        "we": jax.random.normal(ks[8], (h4, 2), jnp.float32) * 0.1,
        "be": jax.random.normal(ks[9], (1, 2), jnp.float32) * 0.1,
        "gd": jnp.ones((1, 1), jnp.float32),   # BatchNorm1d(1) gamma/beta
        "btd": jnp.zeros((1, 1), jnp.float32),
        "ge": jnp.ones((1, 1), jnp.float32),
        "bte": jnp.zeros((1, 1), jnp.float32),
    }
    # NOTE: linear1 exists in __init__ but is never used in forward() -> omitted.


if __name__ == "__main__":
    key = jax.random.PRNGKey(0)
    kx, kr, kp = jax.random.split(key, 3)

    # Input spatial size must satisfy (H/4)*(W/4) == 72 (linear0 expects 72*48+36).
    N, H, W = 2, 24, 48
    x = jax.random.normal(kx, (N, NUM_E2E, H, W), jnp.float32)   # NCHW like PyTorch
    ruler = jax.random.normal(kr, (N, 36), jnp.float32)

    params = make_params(kp)
    prep = prepare_params(params, H, W)       # one-time, batch-independent prep

    fwd = jax.jit(cnn_forward)
    out_type, out_anomaly = fwd(x, ruler, prep)
    jax.block_until_ready((out_type, out_anomaly))

    assert out_type.shape == (N, NUM_CLASSES) and out_anomaly.shape == (N, 2)
    assert bool(jnp.isfinite(out_type).all()) and bool(jnp.isfinite(out_anomaly).all())

    # Validate against a plain-JAX f32 reference (loose tol: bf16 matmul operands).
    ref_type, ref_anom = reference_forward(x, ruler, params)
    assert bool(jnp.allclose(out_type, ref_type, atol=0.15)), \
        float(jnp.abs(out_type - ref_type).max())
    assert bool(jnp.allclose(out_anomaly, ref_anom, atol=0.15)), \
        float(jnp.abs(out_anomaly - ref_anom).max())

    print("KERNEL_OK")
</pallas_src>

<mosaic_0001>
module attributes {stable_mosaic.version = 11 : i64} {
  func.func @conv_kernel(%arg0: i32, %arg1: memref<576x48xbf16, #tpu.memory_space<vmem>>, %arg2: memref<48x64xbf16, #tpu.memory_space<vmem>>, %arg3: memref<1x64xf32, #tpu.memory_space<vmem>>, %arg4: memref<1x64xf32, #tpu.memory_space<vmem>>, %arg5: memref<1024x48xbf16, #tpu.memory_space<vmem>>, %arg6: memref<1x48xf32, #tpu.memory_space<vmem>>, %arg7: memref<1x48xf32, #tpu.memory_space<vmem>>, %arg8: memref<144x16xf32, #tpu.memory_space<vmem>>, %arg9: memref<144x48xbf16, #tpu.memory_space<vmem>>) attributes {dimension_semantics = [#tpu.dimension_semantics<arbitrary>], iteration_bounds = array<i64: 1>, scalar_prefetch = 0 : i64, scratch_operands = 0 : i64, tpu.core_type = #tpu.core_type<tc>, window_params = [{pipeline_mode = #tpu.pipeline_mode<synchronous>, transform_indices = @transform_0, window_bounds = array<i64: 576, 48>}, {pipeline_mode = #tpu.pipeline_mode<synchronous>, transform_indices = @transform_1, window_bounds = array<i64: 48, 64>}, {pipeline_mode = #tpu.pipeline_mode<synchronous>, transform_indices = @transform_2, window_bounds = array<i64: 1, 64>}, {pipeline_mode = #tpu.pipeline_mode<synchronous>, transform_indices = @transform_3, window_bounds = array<i64: 1, 64>}, {pipeline_mode = #tpu.pipeline_mode<synchronous>, transform_indices = @transform_4, window_bounds = array<i64: 1024, 48>}, {pipeline_mode = #tpu.pipeline_mode<synchronous>, transform_indices = @transform_5, window_bounds = array<i64: 1, 48>}, {pipeline_mode = #tpu.pipeline_mode<synchronous>, transform_indices = @transform_6, window_bounds = array<i64: 1, 48>}, {pipeline_mode = #tpu.pipeline_mode<synchronous>, transform_indices = @transform_7, window_bounds = array<i64: 144, 16>}, {pipeline_mode = #tpu.pipeline_mode<synchronous>, transform_indices = @transform_8, window_bounds = array<i64: 144, 48>}]} {
    %c0 = arith.constant 0 : index
    %c0_0 = arith.constant 0 : index
    %0 = vector.load %arg1[%c0, %c0_0] : memref<576x48xbf16, #tpu.memory_space<vmem>>, vector<576x48xbf16>
    %c0_1 = arith.constant 0 : index
    %c0_2 = arith.constant 0 : index
    %1 = vector.load %arg2[%c0_1, %c0_2] : memref<48x64xbf16, #tpu.memory_space<vmem>>, vector<48x64xbf16>
    %cst = arith.constant dense<0.000000e+00> : vector<576x64xf32>
    %2 = tpu.matmul %0, %1, %cst {dimension_numbers = #tpu.dot_dimension_numbers<[1], [0], [0], [1], [0, 0, 1, 1], [], []>} : vector<576x48xbf16>, vector<48x64xbf16>, vector<576x64xf32> -> vector<576x64xf32>
    %cst_3 = arith.constant 0.000000e+00 : f32
    %3 = vector.broadcast %cst_3 : f32 to vector<576x64xf32>
    %4 = arith.maximumf %2, %3 : vector<576x64xf32>
    %c0_4 = arith.constant 0 : index
    %c0_5 = arith.constant 0 : index
    %5 = vector.load %arg3[%c0_4, %c0_5] : memref<1x64xf32, #tpu.memory_space<vmem>>, vector<1x64xf32>
    %c0_6 = arith.constant 0 : index
    %c0_7 = arith.constant 0 : index
    %6 = vector.load %arg4[%c0_6, %c0_7] : memref<1x64xf32, #tpu.memory_space<vmem>>, vector<1x64xf32>
    %cst_8 = arith.constant dense<0.000000e+00> : vector<64xf32>
    %7 = vector.multi_reduction <add>, %4, %cst_8 [0] : vector<576x64xf32> to vector<64xf32>
    %8 = vector.shape_cast %7 : vector<64xf32> to vector<1x64xf32>
    %cst_9 = arith.constant 5.760000e+02 : f32
    %9 = vector.broadcast %cst_9 : f32 to vector<1x64xf32>
    %10 = arith.divf %8, %9 : vector<1x64xf32>
    %11 = vector.broadcast %10 : vector<1x64xf32> to vector<576x64xf32>
    %12 = arith.subf %4, %11 : vector<576x64xf32>
    %13 = arith.mulf %12, %12 : vector<576x64xf32>
    %cst_10 = arith.constant dense<0.000000e+00> : vector<64xf32>
    %14 = vector.multi_reduction <add>, %13, %cst_10 [0] : vector<576x64xf32> to vector<64xf32>
    %15 = vector.shape_cast %14 : vector<64xf32> to vector<1x64xf32>
    %cst_11 = arith.constant 5.760000e+02 : f32
    %16 = vector.broadcast %cst_11 : f32 to vector<1x64xf32>
    %17 = arith.divf %15, %16 : vector<1x64xf32>
    %18 = vector.broadcast %10 : vector<1x64xf32> to vector<576x64xf32>
    %19 = arith.subf %4, %18 : vector<576x64xf32>
    %cst_12 = arith.constant 9.99999974E-6 : f32
    %20 = vector.broadcast %cst_12 : f32 to vector<1x64xf32>
    %21 = arith.addf %17, %20 : vector<1x64xf32>
    %22 = math.rsqrt %21 : vector<1x64xf32>
    %23 = vector.broadcast %22 : vector<1x64xf32> to vector<576x64xf32>
    %24 = arith.mulf %19, %23 : vector<576x64xf32>
    %25 = vector.broadcast %5 : vector<1x64xf32> to vector<576x64xf32>
    %26 = arith.mulf %24, %25 : vector<576x64xf32>
    %27 = vector.broadcast %6 : vector<1x64xf32> to vector<576x64xf32>
    %28 = arith.addf %26, %27 : vector<576x64xf32>
    %c0_13 = arith.constant 0 : index
    %c0_14 = arith.constant 0 : index
    %29 = vector.load %arg8[%c0_13, %c0_14] : memref<144x16xf32, #tpu.memory_space<vmem>>, vector<144x16xf32>
    %30 = vector.extract_strided_slice %28 {offsets = [432, 0], sizes = [144, 64], strides = [1, 1]} : vector<576x64xf32> to vector<144x64xf32>
    %cst_15 = arith.constant 0.000000e+00 : f32
    %31 = vector.broadcast %cst_15 : f32 to vector<13x64xf32>
    %32 = vector.extract_strided_slice %30 {offsets = [0, 0], sizes = [131, 64], strides = [1, 1]} : vector<144x64xf32> to vector<131x64xf32>
    %33 = tpu.concatenate %31, %32 in 0 : vector<13x64xf32>, vector<131x64xf32> -> vector<144x64xf32>
    %34 = vector.extract_strided_slice %29 {offsets = [0, 0], sizes = [144, 1], strides = [1, 1]} : vector<144x16xf32> to vector<144x1xf32>
    %35 = vector.broadcast %34 : vector<144x1xf32> to vector<144x64xf32>
    %36 = arith.mulf %33, %35 : vector<144x64xf32>
    %37 = vector.extract_strided_slice %28 {offsets = [288, 0], sizes = [144, 64], strides = [1, 1]} : vector<576x64xf32> to vector<144x64xf32>
    %cst_16 = arith.constant 0.000000e+00 : f32
    %38 = vector.broadcast %cst_16 : f32 to vector<12x64xf32>
    %39 = vector.extract_strided_slice %37 {offsets = [0, 0], sizes = [132, 64], strides = [1, 1]} : vector<144x64xf32> to vector<132x64xf32>
    %40 = tpu.concatenate %38, %39 in 0 : vector<12x64xf32>, vector<132x64xf32> -> vector<144x64xf32>
    %41 = vector.extract_strided_slice %29 {offsets = [0, 1], sizes = [144, 1], strides = [1, 1]} : vector<144x16xf32> to vector<144x1xf32>
    %42 = vector.broadcast %41 : vector<144x1xf32> to vector<144x64xf32>
    %43 = arith.mulf %40, %42 : vector<144x64xf32>
    %44 = vector.extract_strided_slice %28 {offsets = [432, 0], sizes = [144, 64], strides = [1, 1]} : vector<576x64xf32> to vector<144x64xf32>
    %cst_17 = arith.constant 0.000000e+00 : f32
    %45 = vector.broadcast %cst_17 : f32 to vector<12x64xf32>
    %46 = vector.extract_strided_slice %44 {offsets = [0, 0], sizes = [132, 64], strides = [1, 1]} : vector<144x64xf32> to vector<132x64xf32>
    %47 = tpu.concatenate %45, %46 in 0 : vector<12x64xf32>, vector<132x64xf32> -> vector<144x64xf32>
    %48 = vector.extract_strided_slice %29 {offsets = [0, 2], sizes = [144, 1], strides = [1, 1]} : vector<144x16xf32> to vector<144x1xf32>
    %49 = vector.broadcast %48 : vector<144x1xf32> to vector<144x64xf32>
    %50 = arith.mulf %47, %49 : vector<144x64xf32>
    %51 = vector.extract_strided_slice %28 {offsets = [288, 0], sizes = [144, 64], strides = [1, 1]} : vector<576x64xf32> to vector<144x64xf32>
    %cst_18 = arith.constant 0.000000e+00 : f32
    %52 = vector.broadcast %cst_18 : f32 to vector<11x64xf32>
    %53 = vector.extract_strided_slice %51 {offsets = [0, 0], sizes = [133, 64], strides = [1, 1]} : vector<144x64xf32> to vector<133x64xf32>
    %54 = tpu.concatenate %52, %53 in 0 : vector<11x64xf32>, vector<133x64xf32> -> vector<144x64xf32>
    %55 = vector.extract_strided_slice %29 {offsets = [0, 3], sizes = [144, 1], strides = [1, 1]} : vector<144x16xf32> to vector<144x1xf32>
    %56 = vector.broadcast %55 : vector<144x1xf32> to vector<144x64xf32>
    %57 = arith.mulf %54, %56 : vector<144x64xf32>
    %58 = vector.extract_strided_slice %28 {offsets = [144, 0], sizes = [144, 64], strides = [1, 1]} : vector<576x64xf32> to vector<144x64xf32>
    %cst_19 = arith.constant 0.000000e+00 : f32
    %59 = vector.broadcast %cst_19 : f32 to vector<1x64xf32>
    %60 = vector.extract_strided_slice %58 {offsets = [0, 0], sizes = [143, 64], strides = [1, 1]} : vector<144x64xf32> to vector<143x64xf32>
    %61 = tpu.concatenate %59, %60 in 0 : vector<1x64xf32>, vector<143x64xf32> -> vector<144x64xf32>
    %62 = vector.extract_strided_slice %29 {offsets = [0, 4], sizes = [144, 1], strides = [1, 1]} : vector<144x16xf32> to vector<144x1xf32>
    %63 = vector.broadcast %62 : vector<144x1xf32> to vector<144x64xf32>
    %64 = arith.mulf %61, %63 : vector<144x64xf32>
    %65 = vector.extract_strided_slice %28 {offsets = [0, 0], sizes = [144, 64], strides = [1, 1]} : vector<576x64xf32> to vector<144x64xf32>
    %66 = vector.extract_strided_slice %28 {offsets = [144, 0], sizes = [144, 64], strides = [1, 1]} : vector<576x64xf32> to vector<144x64xf32>
    %67 = vector.extract_strided_slice %28 {offsets = [0, 0], sizes = [144, 64], strides = [1, 1]} : vector<576x64xf32> to vector<144x64xf32>
    %68 = vector.extract_strided_slice %67 {offsets = [1, 0], sizes = [143, 64], strides = [1, 1]} : vector<144x64xf32> to vector<143x64xf32>
    %cst_20 = arith.constant 0.000000e+00 : f32
    %69 = vector.broadcast %cst_20 : f32 to vector<1x64xf32>
    %70 = tpu.concatenate %68, %69 in 0 : vector<143x64xf32>, vector<1x64xf32> -> vector<144x64xf32>
    %71 = vector.extract_strided_slice %29 {offsets = [0, 7], sizes = [144, 1], strides = [1, 1]} : vector<144x16xf32> to vector<144x1xf32>
    %72 = vector.broadcast %71 : vector<144x1xf32> to vector<144x64xf32>
    %73 = arith.mulf %70, %72 : vector<144x64xf32>
    %74 = vector.extract_strided_slice %28 {offsets = [432, 0], sizes = [144, 64], strides = [1, 1]} : vector<576x64xf32> to vector<144x64xf32>
    %cst_21 = arith.constant 0.000000e+00 : f32
    %75 = vector.broadcast %cst_21 : f32 to vector<1x64xf32>
    %76 = vector.extract_strided_slice %74 {offsets = [0, 0], sizes = [143, 64], strides = [1, 1]} : vector<144x64xf32> to vector<143x64xf32>
    %77 = tpu.concatenate %75, %76 in 0 : vector<1x64xf32>, vector<143x64xf32> -> vector<144x64xf32>
    %78 = vector.extract_strided_slice %29 {offsets = [0, 8], sizes = [144, 1], strides = [1, 1]} : vector<144x16xf32> to vector<144x1xf32>
    %79 = vector.broadcast %78 : vector<144x1xf32> to vector<144x64xf32>
    %80 = arith.mulf %77, %79 : vector<144x64xf32>
    %81 = vector.extract_strided_slice %28 {offsets = [288, 0], sizes = [144, 64], strides = [1, 1]} : vector<576x64xf32> to vector<144x64xf32>
    %82 = vector.extract_strided_slice %28 {offsets = [432, 0], sizes = [144, 64], strides = [1, 1]} : vector<576x64xf32> to vector<144x64xf32>
    %83 = vector.extract_strided_slice %28 {offsets = [288, 0], sizes = [144, 64], strides = [1, 1]} : vector<576x64xf32> to vector<144x64xf32>
    %84 = vector.extract_strided_slice %83 {offsets = [1, 0], sizes = [143, 64], strides = [1, 1]} : vector<144x64xf32> to vector<143x64xf32>
    %cst_22 = arith.constant 0.000000e+00 : f32
    %85 = vector.broadcast %cst_22 : f32 to vector<1x64xf32>
    %86 = tpu.concatenate %84, %85 in 0 : vector<143x64xf32>, vector<1x64xf32> -> vector<144x64xf32>
    %87 = vector.extract_strided_slice %29 {offsets = [0, 11], sizes = [144, 1], strides = [1, 1]} : vector<144x16xf32> to vector<144x1xf32>
    %88 = vector.broadcast %87 : vector<144x1xf32> to vector<144x64xf32>
    %89 = arith.mulf %86, %88 : vector<144x64xf32>
    %90 = vector.extract_strided_slice %28 {offsets = [144, 0], sizes = [144, 64], strides = [1, 1]} : vector<576x64xf32> to vector<144x64xf32>
    %91 = vector.extract_strided_slice %90 {offsets = [11, 0], sizes = [133, 64], strides = [1, 1]} : vector<144x64xf32> to vector<133x64xf32>
    %cst_23 = arith.constant 0.000000e+00 : f32
    %92 = vector.broadcast %cst_23 : f32 to vector<11x64xf32>
    %93 = tpu.concatenate %91, %92 in 0 : vector<133x64xf32>, vector<11x64xf32> -> vector<144x64xf32>
    %94 = vector.extract_strided_slice %29 {offsets = [0, 12], sizes = [144, 1], strides = [1, 1]} : vector<144x16xf32> to vector<144x1xf32>
    %95 = vector.broadcast %94 : vector<144x1xf32> to vector<144x64xf32>
    %96 = arith.mulf %93, %95 : vector<144x64xf32>
    %97 = vector.extract_strided_slice %28 {offsets = [0, 0], sizes = [144, 64], strides = [1, 1]} : vector<576x64xf32> to vector<144x64xf32>
    %98 = vector.extract_strided_slice %97 {offsets = [12, 0], sizes = [132, 64], strides = [1, 1]} : vector<144x64xf32> to vector<132x64xf32>
    %cst_24 = arith.constant 0.000000e+00 : f32
    %99 = vector.broadcast %cst_24 : f32 to vector<12x64xf32>
    %100 = tpu.concatenate %98, %99 in 0 : vector<132x64xf32>, vector<12x64xf32> -> vector<144x64xf32>
    %101 = vector.extract_strided_slice %29 {offsets = [0, 13], sizes = [144, 1], strides = [1, 1]} : vector<144x16xf32> to vector<144x1xf32>
    %102 = vector.broadcast %101 : vector<144x1xf32> to vector<144x64xf32>
    %103 = arith.mulf %100, %102 : vector<144x64xf32>
    %104 = vector.extract_strided_slice %28 {offsets = [144, 0], sizes = [144, 64], strides = [1, 1]} : vector<576x64xf32> to vector<144x64xf32>
    %105 = vector.extract_strided_slice %104 {offsets = [12, 0], sizes = [132, 64], strides = [1, 1]} : vector<144x64xf32> to vector<132x64xf32>
    %cst_25 = arith.constant 0.000000e+00 : f32
    %106 = vector.broadcast %cst_25 : f32 to vector<12x64xf32>
    %107 = tpu.concatenate %105, %106 in 0 : vector<132x64xf32>, vector<12x64xf32> -> vector<144x64xf32>
    %108 = vector.extract_strided_slice %29 {offsets = [0, 14], sizes = [144, 1], strides = [1, 1]} : vector<144x16xf32> to vector<144x1xf32>
    %109 = vector.broadcast %108 : vector<144x1xf32> to vector<144x64xf32>
    %110 = arith.mulf %107, %109 : vector<144x64xf32>
    %111 = vector.extract_strided_slice %28 {offsets = [0, 0], sizes = [144, 64], strides = [1, 1]} : vector<576x64xf32> to vector<144x64xf32>
    %112 = vector.extract_strided_slice %111 {offsets = [13, 0], sizes = [131, 64], strides = [1, 1]} : vector<144x64xf32> to vector<131x64xf32>
    %cst_26 = arith.constant 0.000000e+00 : f32
    %113 = vector.broadcast %cst_26 : f32 to vector<13x64xf32>
    %114 = tpu.concatenate %112, %113 in 0 : vector<131x64xf32>, vector<13x64xf32> -> vector<144x64xf32>
    %115 = vector.extract_strided_slice %29 {offsets = [0, 15], sizes = [144, 1], strides = [1, 1]} : vector<144x16xf32> to vector<144x1xf32>
    %116 = vector.broadcast %115 : vector<144x1xf32> to vector<144x64xf32>
    %117 = arith.mulf %114, %116 : vector<144x64xf32>
    %118 = tpu.concatenate %36, %43, %50, %57, %64, %65, %66, %73, %80, %81, %82, %89, %96, %103, %110, %117 in 1 : vector<144x64xf32>, vector<144x64xf32>, vector<144x64xf32>, vector<144x64xf32>, vector<144x64xf32>, vector<144x64xf32>, vector<144x64xf32>, vector<144x64xf32>, vector<144x64xf32>, vector<144x64xf32>, vector<144x64xf32>, vector<144x64xf32>, vector<144x64xf32>, vector<144x64xf32>, vector<144x64xf32>, vector<144x64xf32> -> vector<144x1024xf32>
    %119 = arith.truncf %118 : vector<144x1024xf32> to vector<144x1024xbf16>
    %c0_27 = arith.constant 0 : index
    %c0_28 = arith.constant 0 : index
    %120 = vector.load %arg5[%c0_27, %c0_28] : memref<1024x48xbf16, #tpu.memory_space<vmem>>, vector<1024x48xbf16>
    %cst_29 = arith.constant dense<0.000000e+00> : vector<144x48xf32>
    %121 = tpu.matmul %119, %120, %cst_29 {dimension_numbers = #tpu.dot_dimension_numbers<[1], [0], [0], [1], [0, 0, 1, 1], [], []>} : vector<144x1024xbf16>, vector<1024x48xbf16>, vector<144x48xf32> -> vector<144x48xf32>
    %cst_30 = arith.constant 0.000000e+00 : f32
    %122 = vector.broadcast %cst_30 : f32 to vector<144x48xf32>
    %123 = arith.maximumf %121, %122 : vector<144x48xf32>
    %c0_31 = arith.constant 0 : index
    %c0_32 = arith.constant 0 : index
    %124 = vector.load %arg6[%c0_31, %c0_32] : memref<1x48xf32, #tpu.memory_space<vmem>>, vector<1x48xf32>
    %c0_33 = arith.constant 0 : index
    %c0_34 = arith.constant 0 : index
    %125 = vector.load %arg7[%c0_33, %c0_34] : memref<1x48xf32, #tpu.memory_space<vmem>>, vector<1x48xf32>
    %cst_35 = arith.constant dense<0.000000e+00> : vector<48xf32>
    %126 = vector.multi_reduction <add>, %123, %cst_35 [0] : vector<144x48xf32> to vector<48xf32>
    %127 = vector.shape_cast %126 : vector<48xf32> to vector<1x48xf32>
    %cst_36 = arith.constant 1.440000e+02 : f32
    %128 = vector.broadcast %cst_36 : f32 to vector<1x48xf32>
    %129 = arith.divf %127, %128 : vector<1x48xf32>
    %130 = vector.broadcast %129 : vector<1x48xf32> to vector<144x48xf32>
    %131 = arith.subf %123, %130 : vector<144x48xf32>
    %132 = arith.mulf %131, %131 : vector<144x48xf32>
    %cst_37 = arith.constant dense<0.000000e+00> : vector<48xf32>
    %133 = vector.multi_reduction <add>, %132, %cst_37 [0] : vector<144x48xf32> to vector<48xf32>
    %134 = vector.shape_cast %133 : vector<48xf32> to vector<1x48xf32>
    %cst_38 = arith.constant 1.440000e+02 : f32
    %135 = vector.broadcast %cst_38 : f32 to vector<1x48xf32>
    %136 = arith.divf %134, %135 : vector<1x48xf32>
    %137 = vector.broadcast %129 : vector<1x48xf32> to vector<144x48xf32>
    %138 = arith.subf %123, %137 : vector<144x48xf32>
    %cst_39 = arith.constant 9.99999974E-6 : f32
    %139 = vector.broadcast %cst_39 : f32 to vector<1x48xf32>
    %140 = arith.addf %136, %139 : vector<1x48xf32>
    %141 = math.rsqrt %140 : vector<1x48xf32>
    %142 = vector.broadcast %141 : vector<1x48xf32> to vector<144x48xf32>
    %143 = arith.mulf %138, %142 : vector<144x48xf32>
    %144 = vector.broadcast %124 : vector<1x48xf32> to vector<144x48xf32>
    %145 = arith.mulf %143, %144 : vector<144x48xf32>
    %146 = vector.broadcast %125 : vector<1x48xf32> to vector<144x48xf32>
    %147 = arith.addf %145, %146 : vector<144x48xf32>
    %148 = arith.truncf %147 : vector<144x48xf32> to vector<144x48xbf16>
    %c0_40 = arith.constant 0 : index
    %c0_41 = arith.constant 0 : index
    %149 = vector.load %arg9[%c0_40, %c0_41] : memref<144x48xbf16, #tpu.memory_space<vmem>>, vector<144x48xbf16>
    tpu.vector_store %arg9[%c0_40, %c0_41], %148 {strides = array<i32>} : memref<144x48xbf16, #tpu.memory_space<vmem>>, vector<144x48xbf16>,
    return
  }
  func.func @transform_0(%arg0: i32) -> (i32, i32) {
    %c0_i32 = arith.constant 0 : i32
    %c0_i32_0 = arith.constant 0 : i32
    %c0_i32_1 = arith.constant 0 : i32
    return %c0_i32, %c0_i32_0 : i32, i32
  }
  func.func @transform_1(%arg0: i32) -> (i32, i32) {
    %c0_i32 = arith.constant 0 : i32
    %c0_i32_0 = arith.constant 0 : i32
    %c0_i32_1 = arith.constant 0 : i32
    return %c0_i32, %c0_i32_0 : i32, i32
  }
  func.func @transform_2(%arg0: i32) -> (i32, i32) {
    %c0_i32 = arith.constant 0 : i32
    %c0_i32_0 = arith.constant 0 : i32
    %c0_i32_1 = arith.constant 0 : i32
    return %c0_i32, %c0_i32_0 : i32, i32
  }
  func.func @transform_3(%arg0: i32) -> (i32, i32) {
    %c0_i32 = arith.constant 0 : i32
    %c0_i32_0 = arith.constant 0 : i32
    %c0_i32_1 = arith.constant 0 : i32
    return %c0_i32, %c0_i32_0 : i32, i32
  }
  func.func @transform_4(%arg0: i32) -> (i32, i32) {
    %c0_i32 = arith.constant 0 : i32
    %c0_i32_0 = arith.constant 0 : i32
    %c0_i32_1 = arith.constant 0 : i32
    return %c0_i32, %c0_i32_0 : i32, i32
  }
  func.func @transform_5(%arg0: i32) -> (i32, i32) {
    %c0_i32 = arith.constant 0 : i32
    %c0_i32_0 = arith.constant 0 : i32
    %c0_i32_1 = arith.constant 0 : i32
    return %c0_i32, %c0_i32_0 : i32, i32
  }
  func.func @transform_6(%arg0: i32) -> (i32, i32) {
    %c0_i32 = arith.constant 0 : i32
    %c0_i32_0 = arith.constant 0 : i32
    %c0_i32_1 = arith.constant 0 : i32
    return %c0_i32, %c0_i32_0 : i32, i32
  }
  func.func @transform_7(%arg0: i32) -> (i32, i32) {
    %c0_i32 = arith.constant 0 : i32
    %c0_i32_0 = arith.constant 0 : i32
    %c0_i32_1 = arith.constant 0 : i32
    return %c0_i32, %c0_i32_0 : i32, i32
  }
  func.func @transform_8(%arg0: i32) -> (i32, i32) {
    %c0_i32 = arith.constant 0 : i32
    %c0_i32_0 = arith.constant 0 : i32
    %c0_i32_1 = arith.constant 0 : i32
    return %c0_i32, %c0_i32_0 : i32, i32
  }
}

module attributes {stable_mosaic.version = 11 : i64} {
  func.func @head_kernel(%arg0: i32, %arg1: memref<2x3456xbf16, #tpu.memory_space<vmem>>, %arg2: memref<2x36xbf16, #tpu.memory_space<vmem>>, %arg3: memref<3456x24xbf16, #tpu.memory_space<vmem>>, %arg4: memref<36x24xbf16, #tpu.memory_space<vmem>>, %arg5: memref<1x24xf32, #tpu.memory_space<vmem>>, %arg6: memref<24x12xf32, #tpu.memory_space<vmem>>, %arg7: memref<1x12xf32, #tpu.memory_space<vmem>>, %arg8: memref<12x9xf32, #tpu.memory_space<vmem>>, %arg9: memref<1x9xf32, #tpu.memory_space<vmem>>, %arg10: memref<1x1xf32, #tpu.memory_space<vmem>>, %arg11: memref<1x1xf32, #tpu.memory_space<vmem>>, %arg12: memref<1x1xf32, #tpu.memory_space<vmem>>, %arg13: memref<1x1xf32, #tpu.memory_space<vmem>>, %arg14: memref<2x9xf32, #tpu.memory_space<vmem>>) attributes {dimension_semantics = [#tpu.dimension_semantics<arbitrary>], iteration_bounds = array<i64: 1>, scalar_prefetch = 0 : i64, scratch_operands = 0 : i64, tpu.core_type = #tpu.core_type<tc>, window_params = [{pipeline_mode = #tpu.pipeline_mode<synchronous>, transform_indices = @transform_0, window_bounds = array<i64: 2, 3456>}, {pipeline_mode = #tpu.pipeline_mode<synchronous>, transform_indices = @transform_1, window_bounds = array<i64: 2, 36>}, {pipeline_mode = #tpu.pipeline_mode<synchronous>, transform_indices = @transform_2, window_bounds = array<i64: 3456, 24>}, {pipeline_mode = #tpu.pipeline_mode<synchronous>, transform_indices = @transform_3, window_bounds = array<i64: 36, 24>}, {pipeline_mode = #tpu.pipeline_mode<synchronous>, transform_indices = @transform_4, window_bounds = array<i64: 1, 24>}, {pipeline_mode = #tpu.pipeline_mode<synchronous>, transform_indices = @transform_5, window_bounds = array<i64: 24, 12>}, {pipeline_mode = #tpu.pipeline_mode<synchronous>, transform_indices = @transform_6, window_bounds = array<i64: 1, 12>}, {pipeline_mode = #tpu.pipeline_mode<synchronous>, transform_indices = @transform_7, window_bounds = array<i64: 12, 9>}, {pipeline_mode = #tpu.pipeline_mode<synchronous>, transform_indices = @transform_8, window_bounds = array<i64: 1, 9>}, {pipeline_mode = #tpu.pipeline_mode<synchronous>, transform_indices = @transform_9, window_bounds = array<i64: 1, 1>}, {pipeline_mode = #tpu.pipeline_mode<synchronous>, transform_indices = @transform_10, window_bounds = array<i64: 1, 1>}, {pipeline_mode = #tpu.pipeline_mode<synchronous>, transform_indices = @transform_11, window_bounds = array<i64: 1, 1>}, {pipeline_mode = #tpu.pipeline_mode<synchronous>, transform_indices = @transform_12, window_bounds = array<i64: 1, 1>}, {pipeline_mode = #tpu.pipeline_mode<synchronous>, transform_indices = @transform_13, window_bounds = array<i64: 2, 9>}]} {
    %c0 = arith.constant 0 : index
    %c0_0 = arith.constant 0 : index
    %0 = vector.load %arg1[%c0, %c0_0] : memref<2x3456xbf16, #tpu.memory_space<vmem>>, vector<2x3456xbf16>
    %c0_1 = arith.constant 0 : index
    %c0_2 = arith.constant 0 : index
    %1 = vector.load %arg3[%c0_1, %c0_2] : memref<3456x24xbf16, #tpu.memory_space<vmem>>, vector<3456x24xbf16>
    %cst = arith.constant dense<0.000000e+00> : vector<2x24xf32>
    %2 = tpu.matmul %0, %1, %cst {dimension_numbers = #tpu.dot_dimension_numbers<[1], [0], [0], [1], [0, 0, 1, 1], [], []>} : vector<2x3456xbf16>, vector<3456x24xbf16>, vector<2x24xf32> -> vector<2x24xf32>
    %c0_3 = arith.constant 0 : index
    %c0_4 = arith.constant 0 : index
    %3 = vector.load %arg2[%c0_3, %c0_4] : memref<2x36xbf16, #tpu.memory_space<vmem>>, vector<2x36xbf16>
    %c0_5 = arith.constant 0 : index
    %c0_6 = arith.constant 0 : index
    %4 = vector.load %arg4[%c0_5, %c0_6] : memref<36x24xbf16, #tpu.memory_space<vmem>>, vector<36x24xbf16>
    %cst_7 = arith.constant dense<0.000000e+00> : vector<2x24xf32>
    %5 = tpu.matmul %3, %4, %cst_7 {dimension_numbers = #tpu.dot_dimension_numbers<[1], [0], [0], [1], [0, 0, 1, 1], [], []>} : vector<2x36xbf16>, vector<36x24xbf16>, vector<2x24xf32> -> vector<2x24xf32>
    %6 = arith.addf %2, %5 : vector<2x24xf32>
    %c0_8 = arith.constant 0 : index
    %c0_9 = arith.constant 0 : index
    %7 = vector.load %arg5[%c0_8, %c0_9] : memref<1x24xf32, #tpu.memory_space<vmem>>, vector<1x24xf32>
    %8 = vector.broadcast %7 : vector<1x24xf32> to vector<2x24xf32>
    %9 = arith.addf %6, %8 : vector<2x24xf32>
    %c0_10 = arith.constant 0 : index
    %c0_11 = arith.constant 0 : index
    %10 = vector.load %arg6[%c0_10, %c0_11] : memref<24x12xf32, #tpu.memory_space<vmem>>, vector<24x12xf32>
    %cst_12 = arith.constant dense<0.000000e+00> : vector<2x12xf32>
    %11 = tpu.matmul %9, %10, %cst_12 {dimension_numbers = #tpu.dot_dimension_numbers<[1], [0], [0], [1], [0, 0, 1, 1], [], []>} : vector<2x24xf32>, vector<24x12xf32>, vector<2x12xf32> -> vector<2x12xf32>
    %c0_13 = arith.constant 0 : index
    %c0_14 = arith.constant 0 : index
    %12 = vector.load %arg7[%c0_13, %c0_14] : memref<1x12xf32, #tpu.memory_space<vmem>>, vector<1x12xf32>
    %13 = vector.broadcast %12 : vector<1x12xf32> to vector<2x12xf32>
    %14 = arith.addf %11, %13 : vector<2x12xf32>
    %c0_15 = arith.constant 0 : index
    %c0_16 = arith.constant 0 : index
    %15 = vector.load %arg8[%c0_15, %c0_16] : memref<12x9xf32, #tpu.memory_space<vmem>>, vector<12x9xf32>
    %cst_17 = arith.constant dense<0.000000e+00> : vector<2x9xf32>
    %16 = tpu.matmul %14, %15, %cst_17 {dimension_numbers = #tpu.dot_dimension_numbers<[1], [0], [0], [1], [0, 0, 1, 1], [], []>} : vector<2x12xf32>, vector<12x9xf32>, vector<2x9xf32> -> vector<2x9xf32>
    %c0_18 = arith.constant 0 : index
    %c0_19 = arith.constant 0 : index
    %17 = vector.load %arg9[%c0_18, %c0_19] : memref<1x9xf32, #tpu.memory_space<vmem>>, vector<1x9xf32>
    %18 = vector.broadcast %17 : vector<1x9xf32> to vector<2x9xf32>
    %19 = arith.addf %16, %18 : vector<2x9xf32>
    %20 = vector.extract_strided_slice %19 {offsets = [0, 0], sizes = [2, 7], strides = [1, 1]} : vector<2x9xf32> to vector<2x7xf32>
    %21 = vector.extract_strided_slice %19 {offsets = [0, 7], sizes = [2, 2], strides = [1, 1]} : vector<2x9xf32> to vector<2x2xf32>
    %22 = vector.shape_cast %20 : vector<2x7xf32> to vector<1x2x7xf32>
    %cst_20 = arith.constant dense<0.000000e+00> : vector<1xf32>
    %23 = vector.multi_reduction <add>, %22, %cst_20 [1, 2] : vector<1x2x7xf32> to vector<1xf32>
    %24 = vector.shape_cast %23 : vector<1xf32> to vector<1x1x1xf32>
    %25 = vector.extract %24[0, 0, 0] : f32 from vector<1x1x1xf32>
    %26 = vector.broadcast %25 : f32 to vector<1x1xf32>
    %cst_21 = arith.constant 1.400000e+01 : f32
    %27 = vector.broadcast %cst_21 : f32 to vector<1x1xf32>
    %28 = arith.divf %26, %27 : vector<1x1xf32>
    %29 = vector.broadcast %28 : vector<1x1xf32> to vector<2x7xf32>
    %30 = arith.subf %20, %29 : vector<2x7xf32>
    %31 = arith.mulf %30, %30 : vector<2x7xf32>
    %32 = vector.shape_cast %31 : vector<2x7xf32> to vector<1x2x7xf32>
    %cst_22 = arith.constant dense<0.000000e+00> : vector<1xf32>
    %33 = vector.multi_reduction <add>, %32, %cst_22 [1, 2] : vector<1x2x7xf32> to vector<1xf32>
    %34 = vector.shape_cast %33 : vector<1xf32> to vector<1x1x1xf32>
    %35 = vector.extract %34[0, 0, 0] : f32 from vector<1x1x1xf32>
    %36 = vector.broadcast %35 : f32 to vector<1x1xf32>
    %cst_23 = arith.constant 1.400000e+01 : f32
    %37 = vector.broadcast %cst_23 : f32 to vector<1x1xf32>
    %38 = arith.divf %36, %37 : vector<1x1xf32>
    %39 = vector.broadcast %28 : vector<1x1xf32> to vector<2x7xf32>
    %40 = arith.subf %20, %39 : vector<2x7xf32>
    %cst_24 = arith.constant 9.99999974E-6 : f32
    %41 = vector.broadcast %cst_24 : f32 to vector<1x1xf32>
    %42 = arith.addf %38, %41 : vector<1x1xf32>
    %43 = math.rsqrt %42 : vector<1x1xf32>
    %44 = vector.broadcast %43 : vector<1x1xf32> to vector<2x7xf32>
    %45 = arith.mulf %40, %44 : vector<2x7xf32>
    %c0_25 = arith.constant 0 : index
    %c0_26 = arith.constant 0 : index
    %46 = vector.load %arg10[%c0_25, %c0_26] : memref<1x1xf32, #tpu.memory_space<vmem>>, vector<1x1xf32>
    %47 = vector.broadcast %46 : vector<1x1xf32> to vector<2x7xf32>
    %48 = arith.mulf %45, %47 : vector<2x7xf32>
    %c0_27 = arith.constant 0 : index
    %c0_28 = arith.constant 0 : index
    %49 = vector.load %arg11[%c0_27, %c0_28] : memref<1x1xf32, #tpu.memory_space<vmem>>, vector<1x1xf32>
    %50 = vector.broadcast %49 : vector<1x1xf32> to vector<2x7xf32>
    %51 = arith.addf %48, %50 : vector<2x7xf32>
    %52 = vector.shape_cast %21 : vector<2x2xf32> to vector<1x2x2xf32>
    %cst_29 = arith.constant dense<0.000000e+00> : vector<1xf32>
    %53 = vector.multi_reduction <add>, %52, %cst_29 [1, 2] : vector<1x2x2xf32> to vector<1xf32>
    %54 = vector.shape_cast %53 : vector<1xf32> to vector<1x1x1xf32>
    %55 = vector.extract %54[0, 0, 0] : f32 from vector<1x1x1xf32>
    %56 = vector.broadcast %55 : f32 to vector<1x1xf32>
    %cst_30 = arith.constant 4.000000e+00 : f32
    %57 = vector.broadcast %cst_30 : f32 to vector<1x1xf32>
    %58 = arith.divf %56, %57 : vector<1x1xf32>
    %59 = vector.broadcast %58 : vector<1x1xf32> to vector<2x2xf32>
    %60 = arith.subf %21, %59 : vector<2x2xf32>
    %61 = arith.mulf %60, %60 : vector<2x2xf32>
    %62 = vector.shape_cast %61 : vector<2x2xf32> to vector<1x2x2xf32>
    %cst_31 = arith.constant dense<0.000000e+00> : vector<1xf32>
    %63 = vector.multi_reduction <add>, %62, %cst_31 [1, 2] : vector<1x2x2xf32> to vector<1xf32>
    %64 = vector.shape_cast %63 : vector<1xf32> to vector<1x1x1xf32>
    %65 = vector.extract %64[0, 0, 0] : f32 from vector<1x1x1xf32>
    %66 = vector.broadcast %65 : f32 to vector<1x1xf32>
    %cst_32 = arith.constant 4.000000e+00 : f32
    %67 = vector.broadcast %cst_32 : f32 to vector<1x1xf32>
    %68 = arith.divf %66, %67 : vector<1x1xf32>
    %69 = vector.broadcast %58 : vector<1x1xf32> to vector<2x2xf32>
    %70 = arith.subf %21, %69 : vector<2x2xf32>
    %cst_33 = arith.constant 9.99999974E-6 : f32
    %71 = vector.broadcast %cst_33 : f32 to vector<1x1xf32>
    %72 = arith.addf %68, %71 : vector<1x1xf32>
    %73 = math.rsqrt %72 : vector<1x1xf32>
    %74 = vector.broadcast %73 : vector<1x1xf32> to vector<2x2xf32>
    %75 = arith.mulf %70, %74 : vector<2x2xf32>
    %c0_34 = arith.constant 0 : index
    %c0_35 = arith.constant 0 : index
    %76 = vector.load %arg12[%c0_34, %c0_35] : memref<1x1xf32, #tpu.memory_space<vmem>>, vector<1x1xf32>
    %77 = vector.broadcast %76 : vector<1x1xf32> to vector<2x2xf32>
    %78 = arith.mulf %75, %77 : vector<2x2xf32>
    %c0_36 = arith.constant 0 : index
    %c0_37 = arith.constant 0 : index
    %79 = vector.load %arg13[%c0_36, %c0_37] : memref<1x1xf32, #tpu.memory_space<vmem>>, vector<1x1xf32>
    %80 = vector.broadcast %79 : vector<1x1xf32> to vector<2x2xf32>
    %81 = arith.addf %78, %80 : vector<2x2xf32>
    %82 = tpu.concatenate %51, %81 in 1 : vector<2x7xf32>, vector<2x2xf32> -> vector<2x9xf32>
    %c0_38 = arith.constant 0 : index
    %c0_39 = arith.constant 0 : index
    %83 = vector.load %arg14[%c0_38, %c0_39] : memref<2x9xf32, #tpu.memory_space<vmem>>, vector<2x9xf32>
    tpu.vector_store %arg14[%c0_38, %c0_39], %82 {strides = array<i32>} : memref<2x9xf32, #tpu.memory_space<vmem>>, vector<2x9xf32>,
    return
  }
  func.func @transform_0(%arg0: i32) -> (i32, i32) {
    %c0_i32 = arith.constant 0 : i32
    %c0_i32_0 = arith.constant 0 : i32
    %c0_i32_1 = arith.constant 0 : i32
    return %c0_i32, %c0_i32_0 : i32, i32
  }
  func.func @transform_1(%arg0: i32) -> (i32, i32) {
    %c0_i32 = arith.constant 0 : i32
    %c0_i32_0 = arith.constant 0 : i32
    %c0_i32_1 = arith.constant 0 : i32
    return %c0_i32, %c0_i32_0 : i32, i32
  }
  func.func @transform_2(%arg0: i32) -> (i32, i32) {
    %c0_i32 = arith.constant 0 : i32
    %c0_i32_0 = arith.constant 0 : i32
    %c0_i32_1 = arith.constant 0 : i32
    return %c0_i32, %c0_i32_0 : i32, i32
  }
  func.func @transform_3(%arg0: i32) -> (i32, i32) {
    %c0_i32 = arith.constant 0 : i32
    %c0_i32_0 = arith.constant 0 : i32
    %c0_i32_1 = arith.constant 0 : i32
    return %c0_i32, %c0_i32_0 : i32, i32
  }
  func.func @transform_4(%arg0: i32) -> (i32, i32) {
    %c0_i32 = arith.constant 0 : i32
    %c0_i32_0 = arith.constant 0 : i32
    %c0_i32_1 = arith.constant 0 : i32
    return %c0_i32, %c0_i32_0 : i32, i32
  }
  func.func @transform_5(%arg0: i32) -> (i32, i32) {
    %c0_i32 = arith.constant 0 : i32
    %c0_i32_0 = arith.constant 0 : i32
    %c0_i32_1 = arith.constant 0 : i32
    return %c0_i32, %c0_i32_0 : i32, i32
  }
  func.func @transform_6(%arg0: i32) -> (i32, i32) {
    %c0_i32 = arith.constant 0 : i32
    %c0_i32_0 = arith.constant 0 : i32
    %c0_i32_1 = arith.constant 0 : i32
    return %c0_i32, %c0_i32_0 : i32, i32
  }
  func.func @transform_7(%arg0: i32) -> (i32, i32) {
    %c0_i32 = arith.constant 0 : i32
    %c0_i32_0 = arith.constant 0 : i32
    %c0_i32_1 = arith.constant 0 : i32
    return %c0_i32, %c0_i32_0 : i32, i32
  }
  func.func @transform_8(%arg0: i32) -> (i32, i32) {
    %c0_i32 = arith.constant 0 : i32
    %c0_i32_0 = arith.constant 0 : i32
    %c0_i32_1 = arith.constant 0 : i32
    return %c0_i32, %c0_i32_0 : i32, i32
  }
  func.func @transform_9(%arg0: i32) -> (i32, i32) {
    %c0_i32 = arith.constant 0 : i32
    %c0_i32_0 = arith.constant 0 : i32
    %c0_i32_1 = arith.constant 0 : i32
    return %c0_i32, %c0_i32_0 : i32, i32
  }
  func.func @transform_10(%arg0: i32) -> (i32, i32) {
    %c0_i32 = arith.constant 0 : i32
    %c0_i32_0 = arith.constant 0 : i32
    %c0_i32_1 = arith.constant 0 : i32
    return %c0_i32, %c0_i32_0 : i32, i32
  }
  func.func @transform_11(%arg0: i32) -> (i32, i32) {
    %c0_i32 = arith.constant 0 : i32
    %c0_i32_0 = arith.constant 0 : i32
    %c0_i32_1 = arith.constant 0 : i32
    return %c0_i32, %c0_i32_0 : i32, i32
  }
  func.func @transform_12(%arg0: i32) -> (i32, i32) {
    %c0_i32 = arith.constant 0 : i32
    %c0_i32_0 = arith.constant 0 : i32
    %c0_i32_1 = arith.constant 0 : i32
    return %c0_i32, %c0_i32_0 : i32, i32
  }
  func.func @transform_13(%arg0: i32) -> (i32, i32) {
    %c0_i32 = arith.constant 0 : i32
    %c0_i32_0 = arith.constant 0 : i32
    %c0_i32_1 = arith.constant 0 : i32
    return %c0_i32, %c0_i32_0 : i32, i32
  }
}

</mosaic_0001>

<llo_original>
// kernel: cnn_forward.2
$region0: #{cnn_forward.2}
  #allocation0 [shape = 'u32[]', space=smem, size = 0x4, offset = 0x4, fixed_abs, tag = 'smem constant byte address 0x4 - core index']
  #allocation1 [shape = 'u32[144,128]{1,0:T(1,128)}', space=vmem, size = 0x12000, scoped, tag = 'internal scratch']
  %s0 = inlined_call_operand.vmem [shape: bf16[576,48], index: 0, kind: input, shape index: {}]
  %s1 = inlined_call_operand.vmem [shape: bf16[48,64], index: 1, kind: input, shape index: {}]
  %s2 = inlined_call_operand.vmem [shape: f32[1,64], index: 2, kind: input, shape index: {}]
  %s3 = inlined_call_operand.vmem [shape: f32[1,64], index: 3, kind: input, shape index: {}]
  %s4 = inlined_call_operand.vmem [shape: bf16[1024,48], index: 4, kind: input, shape index: {}]
  %s5 = inlined_call_operand.vmem [shape: f32[1,48], index: 5, kind: input, shape index: {}]
  %s6 = inlined_call_operand.vmem [shape: f32[1,48], index: 6, kind: input, shape index: {}]
  %s7 = inlined_call_operand.vmem [shape: f32[144,16], index: 7, kind: input, shape index: {}]
  %s8 = inlined_call_operand.vmem [shape: bf16[144,48], index: 8, kind: output, shape index: {}]
  %s9 = sld [smem:[#allocation0]]
  $region42: #{cnn_forward.2} parent=0
    _
  %s11 = ssub.s32 1, %s9
  %s12 = scalar_select 0, %s11, %s9
  // Predicated region
  $region2: #{cnn_forward.2} parent=0 // pred_check
    _
  $region3: #{cnn_forward.2} parent=0 // pred_check_branch
    %14 = sbr.rel (0) target = $region5
  $region4: #{cnn_forward.2} parent=0 // pred_region
    _
  $region5: #{cnn_forward.2} parent=0 // pred_fallthru
    _
  // Predicated region
  $region6: #{cnn_forward.2} parent=0 // pred_check
    _
  $region7: #{cnn_forward.2} parent=0 // pred_check_branch
    %16 = sbr.rel (0) target = $region9
  $region8: #{cnn_forward.2} parent=0 // pred_region
    _
  $region9: #{cnn_forward.2} parent=0 // pred_fallthru
    _
  // Predicated region
  $region10: #{cnn_forward.2} parent=0 // pred_check
    _
  $region11: #{cnn_forward.2} parent=0 // pred_check_branch
    %18 = sbr.rel (0) target = $region13
  $region12: #{cnn_forward.2} parent=0 // pred_region
    _
  $region13: #{cnn_forward.2} parent=0 // pred_fallthru
    _
  // Predicated region
  $region14: #{cnn_forward.2} parent=0 // pred_check
    _
  $region15: #{cnn_forward.2} parent=0 // pred_check_branch
    %20 = sbr.rel (0) target = $region17
  $region16: #{cnn_forward.2} parent=0 // pred_region
    _
  $region17: #{cnn_forward.2} parent=0 // pred_fallthru
    _
  // Predicated region
  $region18: #{cnn_forward.2} parent=0 // pred_check
    _
  $region19: #{cnn_forward.2} parent=0 // pred_check_branch
    %22 = sbr.rel (0) target = $region21
  $region20: #{cnn_forward.2} parent=0 // pred_region
    _
  $region21: #{cnn_forward.2} parent=0 // pred_fallthru
    _
  // Predicated region
  $region22: #{cnn_forward.2} parent=0 // pred_check
    _
  $region23: #{cnn_forward.2} parent=0 // pred_check_branch
    %24 = sbr.rel (0) target = $region25
  $region24: #{cnn_forward.2} parent=0 // pred_region
    _
  $region25: #{cnn_forward.2} parent=0 // pred_fallthru
    _
  // Predicated region
  $region26: #{cnn_forward.2} parent=0 // pred_check
    _
  $region27: #{cnn_forward.2} parent=0 // pred_check_branch
    %26 = sbr.rel (0) target = $region29
  $region28: #{cnn_forward.2} parent=0 // pred_region
    _
  $region29: #{cnn_forward.2} parent=0 // pred_fallthru
    _
  // Predicated region
  $region30: #{cnn_forward.2} parent=0 // pred_check
    _
  $region31: #{cnn_forward.2} parent=0 // pred_check_branch
    %28 = sbr.rel (0) target = $region33
  $region32: #{cnn_forward.2} parent=0 // pred_region
    _
  $region33: #{cnn_forward.2} parent=0 // pred_fallthru
    _
  %v30 = vld [vmem:[%s0] sm:$0xf]
  %v31 = vld [vmem:[%s0 + $0x4] sm:$0xf]
  %v32 = vld [vmem:[%s0 + $0x8] sm:$0xf]
  %v33 = vld [vmem:[%s0 + $0xc] sm:$0xf]
  %v34 = vld [vmem:[%s0 + $0x10] sm:$0xf]
  %v35 = vld [vmem:[%s0 + $0x14] sm:$0xf]
  %v36 = vld [vmem:[%s0 + $0x18] sm:$0xf]
  %v37 = vld [vmem:[%s0 + $0x1c] sm:$0xf]
  %v38 = vld [vmem:[%s0 + $0x20] sm:$0xf]
  %v39 = vld [vmem:[%s0 + $0x24] sm:$0xf]
  %v40 = vld [vmem:[%s0 + $0x28] sm:$0xf]
  %v41 = vld [vmem:[%s0 + $0x2c] sm:$0xf]
  %v42 = vld [vmem:[%s0 + $0x30] sm:$0xf]
  %v43 = vld [vmem:[%s0 + $0x34] sm:$0xf]
  %v44 = vld [vmem:[%s0 + $0x38] sm:$0xf]
  %v45 = vld [vmem:[%s0 + $0x3c] sm:$0xf]
  %v46 = vld [vmem:[%s0 + $0x40] sm:$0xf]
  %v47 = vld [vmem:[%s0 + $0x44] sm:$0xf]
  %v48 = vld [vmem:[%s0 + $0x48] sm:$0xf]
  %v49 = vld [vmem:[%s0 + $0x4c] sm:$0xf]
  %v50 = vld [vmem:[%s0 + $0x50] sm:$0xf]
  %v51 = vld [vmem:[%s0 + $0x54] sm:$0xf]
  %v52 = vld [vmem:[%s0 + $0x58] sm:$0xf]
  %v53 = vld [vmem:[%s0 + $0x5c] sm:$0xf]
  %v54 = vld [vmem:[%s0 + $0x60] sm:$0xf]
  %v55 = vld [vmem:[%s0 + $0x64] sm:$0xf]
  %v56 = vld [vmem:[%s0 + $0x68] sm:$0xf]
  %v57 = vld [vmem:[%s0 + $0x6c] sm:$0xf]
  %v58 = vld [vmem:[%s0 + $0x70] sm:$0xf]
  %v59 = vld [vmem:[%s0 + $0x74] sm:$0xf]
  %v60 = vld [vmem:[%s0 + $0x78] sm:$0xf]
  %v61 = vld [vmem:[%s0 + $0x7c] sm:$0xf]
  %v62 = vld [vmem:[%s0 + $0x80] sm:$0xf]
  %v63 = vld [vmem:[%s0 + $0x84] sm:$0xf]
  %v64 = vld [vmem:[%s0 + $0x88] sm:$0xf]
  %v65 = vld [vmem:[%s0 + $0x8c] sm:$0xf]
  %v66 = vld [vmem:[%s0 + $0x90] sm:$0xf]
  %v67 = vld [vmem:[%s0 + $0x94] sm:$0xf]
  %v68 = vld [vmem:[%s0 + $0x98] sm:$0xf]
  %v69 = vld [vmem:[%s0 + $0x9c] sm:$0xf]
  %v70 = vld [vmem:[%s0 + $0xa0] sm:$0xf]
  %v71 = vld [vmem:[%s0 + $0xa4] sm:$0xf]
  %v72 = vld [vmem:[%s0 + $0xa8] sm:$0xf]
  %v73 = vld [vmem:[%s0 + $0xac] sm:$0xf]
  %v74 = vld [vmem:[%s0 + $0xb0] sm:$0xf]
  %v75 = vld [vmem:[%s0 + $0xb4] sm:$0xf]
  %v76 = vld [vmem:[%s0 + $0xb8] sm:$0xf]
  %v77 = vld [vmem:[%s0 + $0xbc] sm:$0xf]
  %v78 = vld [vmem:[%s0 + $0xc0] sm:$0xf]
  %v79 = vld [vmem:[%s0 + $0xc4] sm:$0xf]
  %v80 = vld [vmem:[%s0 + $0xc8] sm:$0xf]
  %v81 = vld [vmem:[%s0 + $0xcc] sm:$0xf]
  %v82 = vld [vmem:[%s0 + $0xd0] sm:$0xf]
  %v83 = vld [vmem:[%s0 + $0xd4] sm:$0xf]
  %v84 = vld [vmem:[%s0 + $0xd8] sm:$0xf]
  %v85 = vld [vmem:[%s0 + $0xdc] sm:$0xf]
  %v86 = vld [vmem:[%s0 + $0xe0] sm:$0xf]
  %v87 = vld [vmem:[%s0 + $0xe4] sm:$0xf]
  %v88 = vld [vmem:[%s0 + $0xe8] sm:$0xf]
  %v89 = vld [vmem:[%s0 + $0xec] sm:$0xf]
  %v90 = vld [vmem:[%s0 + $0xf0] sm:$0xf]
  %v91 = vld [vmem:[%s0 + $0xf4] sm:$0xf]
  %v92 = vld [vmem:[%s0 + $0xf8] sm:$0xf]
  %v93 = vld [vmem:[%s0 + $0xfc] sm:$0xf]
  %v94 = vld [vmem:[%s0 + $0x100] sm:$0xf]
  %v95 = vld [vmem:[%s0 + $0x104] sm:$0xf]
  %v96 = vld [vmem:[%s0 + $0x108] sm:$0xf]
  %v97 = vld [vmem:[%s0 + $0x10c] sm:$0xf]
  %v98 = vld [vmem:[%s0 + $0x110] sm:$0xf]
  %v99 = vld [vmem:[%s0 + $0x114] sm:$0xf]
  %v100 = vld [vmem:[%s0 + $0x118] sm:$0xf]
  %v101 = vld [vmem:[%s0 + $0x11c] sm:$0xf]
  %v102 = vld [vmem:[%s1] sm:$0xf]
  %v103 = vld [vmem:[%s1 + $0x4] sm:$0xf]
  %v104 = vld [vmem:[%s1 + $0x8] sm:$0xf]
  %v105 = vld [vmem:[%s1 + $0xc] sm:$0xf]
  %v106 = vld [vmem:[%s1 + $0x10] sm:$0xf]
  %v107 = vld [vmem:[%s1 + $0x14] sm:$0xf]
  %v180 = vunpack.c.l.b16 %v30
  %v181 = vunpack.c.l.b16 %v31
  %v182 = vunpack.c.l.b16 %v32
  %v183 = vunpack.c.l.b16 %v33
  %v184 = vunpack.c.l.b16 %v34
  %v185 = vunpack.c.l.b16 %v35
  %v186 = vunpack.c.l.b16 %v36
  %v187 = vunpack.c.l.b16 %v37
  %v188 = vunpack.c.l.b16 %v38
  %v189 = vunpack.c.l.b16 %v39
  %v190 = vunpack.c.l.b16 %v40
  %v191 = vunpack.c.l.b16 %v41
  %v192 = vunpack.c.l.b16 %v42
  %v193 = vunpack.c.l.b16 %v43
  %v194 = vunpack.c.l.b16 %v44
  %v195 = vunpack.c.l.b16 %v45
  %v196 = vunpack.c.l.b16 %v46
  %v197 = vunpack.c.l.b16 %v47
  %v198 = vunpack.c.l.b16 %v48
  %v199 = vunpack.c.l.b16 %v49
  %v200 = vunpack.c.l.b16 %v50
  %v201 = vunpack.c.l.b16 %v51
  %v202 = vunpack.c.l.b16 %v52
  %v203 = vunpack.c.l.b16 %v53
  %v204 = vunpack.c.l.b16 %v54
  %v205 = vunpack.c.l.b16 %v55
  %v206 = vunpack.c.l.b16 %v56
  %v207 = vunpack.c.l.b16 %v57
  %v208 = vunpack.c.l.b16 %v58
  %v209 = vunpack.c.l.b16 %v59
  %v210 = vunpack.c.l.b16 %v60
  %v211 = vunpack.c.l.b16 %v61
  %v212 = vunpack.c.l.b16 %v62
  %v213 = vunpack.c.l.b16 %v63
  %v214 = vunpack.c.l.b16 %v64
  %v215 = vunpack.c.l.b16 %v65
  %v216 = vunpack.c.l.b16 %v66
  %v217 = vunpack.c.l.b16 %v67
  %v218 = vunpack.c.l.b16 %v68
  %v219 = vunpack.c.l.b16 %v69
  %v220 = vunpack.c.l.b16 %v70
  %v221 = vunpack.c.l.b16 %v71
  %v222 = vunpack.c.l.b16 %v72
  %v223 = vunpack.c.l.b16 %v73
  %v224 = vunpack.c.l.b16 %v74
  %v225 = vunpack.c.l.b16 %v75
  %v226 = vunpack.c.l.b16 %v76
  %v227 = vunpack.c.l.b16 %v77
  %v228 = vunpack.c.l.b16 %v78
  %v229 = vunpack.c.l.b16 %v79
  %v230 = vunpack.c.l.b16 %v80
  %v231 = vunpack.c.l.b16 %v81
  %v232 = vunpack.c.l.b16 %v82
  %v233 = vunpack.c.l.b16 %v83
  %v234 = vunpack.c.l.b16 %v84
  %v235 = vunpack.c.l.b16 %v85
  %v236 = vunpack.c.l.b16 %v86
  %v237 = vunpack.c.l.b16 %v87
  %v238 = vunpack.c.l.b16 %v88
  %v239 = vunpack.c.l.b16 %v89
  %v240 = vunpack.c.l.b16 %v90
  %v241 = vunpack.c.l.b16 %v91
  %v242 = vunpack.c.l.b16 %v92
  %v243 = vunpack.c.l.b16 %v93
  %v244 = vunpack.c.l.b16 %v94
  %v245 = vunpack.c.l.b16 %v95
  %v246 = vunpack.c.l.b16 %v96
  %v247 = vunpack.c.l.b16 %v97
  %v248 = vunpack.c.l.b16 %v98
  %v249 = vunpack.c.l.b16 %v99
  %v250 = vunpack.c.l.b16 %v100
  %v251 = vunpack.c.l.b16 %v101
  %v252 = vpack.c.b16 %v181, %v180
  %v253 = vpack.c.b16 %v183, %v182
  %v254 = vpack.c.b16 %v185, %v184
  %v255 = vpack.c.b16 %v187, %v186
  %v256 = vpack.c.b16 %v189, %v188
  %v257 = vpack.c.b16 %v191, %v190
  %v258 = vpack.c.b16 %v193, %v192
  %v259 = vpack.c.b16 %v195, %v194
  %v260 = vpack.c.b16 %v197, %v196
  %v261 = vpack.c.b16 %v199, %v198
  %v262 = vpack.c.b16 %v201, %v200
  %v263 = vpack.c.b16 %v203, %v202
  %v264 = vpack.c.b16 %v205, %v204
  %v265 = vpack.c.b16 %v207, %v206
  %v266 = vpack.c.b16 %v209, %v208
  %v267 = vpack.c.b16 %v211, %v210
  %v268 = vpack.c.b16 %v213, %v212
  %v269 = vpack.c.b16 %v215, %v214
  %v270 = vpack.c.b16 %v217, %v216
  %v271 = vpack.c.b16 %v219, %v218
  %v272 = vpack.c.b16 %v221, %v220
  %v273 = vpack.c.b16 %v223, %v222
  %v274 = vpack.c.b16 %v225, %v224
  %v275 = vpack.c.b16 %v227, %v226
  %v276 = vpack.c.b16 %v229, %v228
  %v277 = vpack.c.b16 %v231, %v230
  %v278 = vpack.c.b16 %v233, %v232
  %v279 = vpack.c.b16 %v235, %v234
  %v280 = vpack.c.b16 %v237, %v236
  %v281 = vpack.c.b16 %v239, %v238
  %v282 = vpack.c.b16 %v241, %v240
  %v283 = vpack.c.b16 %v243, %v242
  %v284 = vpack.c.b16 %v245, %v244
  %v285 = vpack.c.b16 %v247, %v246
  %v286 = vpack.c.b16 %v249, %v248
  %v287 = vpack.c.b16 %v251, %v250
  %v294 = vunpack.c.l.b16 %v102
  %v295 = vunpack.c.l.b16 %v103
  %v296 = vunpack.c.l.b16 %v104
  %v297 = vunpack.c.l.b16 %v105
  %v298 = vunpack.c.l.b16 %v106
  %v299 = vunpack.c.l.b16 %v107
  %v300 = vpack.c.b16 %v295, %v294
  %v301 = vpack.c.b16 %v297, %v296
  %v302 = vpack.c.b16 %v299, %v298
  %vm306 = vcmask 392192
  %v308 = vsel %vm306, %v252, 0
  %v311 = vsel %vm306, %v253, 0
  %v314 = vsel %vm306, %v254, 0
  %v317 = vsel %vm306, %v255, 0
  %v320 = vsel %vm306, %v256, 0
  %v323 = vsel %vm306, %v257, 0
  %v326 = vsel %vm306, %v258, 0
  %v329 = vsel %vm306, %v259, 0
  %v332 = vsel %vm306, %v260, 0
  %v335 = vsel %vm306, %v261, 0
  %v338 = vsel %vm306, %v262, 0
  %v341 = vsel %vm306, %v263, 0
  %v344 = vsel %vm306, %v264, 0
  %v347 = vsel %vm306, %v265, 0
  %v350 = vsel %vm306, %v266, 0
  %v353 = vsel %vm306, %v267, 0
  %v356 = vsel %vm306, %v268, 0
  %v359 = vsel %vm306, %v269, 0
  %v362 = vsel %vm306, %v270, 0
  %v365 = vsel %vm306, %v271, 0
  %v368 = vsel %vm306, %v272, 0
  %v371 = vsel %vm306, %v273, 0
  %v374 = vsel %vm306, %v274, 0
  %v377 = vsel %vm306, %v275, 0
  %v380 = vsel %vm306, %v276, 0
  %v383 = vsel %vm306, %v277, 0
  %v386 = vsel %vm306, %v278, 0
  %v389 = vsel %vm306, %v279, 0
  %v392 = vsel %vm306, %v280, 0
  %v395 = vsel %vm306, %v281, 0
  %v398 = vsel %vm306, %v282, 0
  %v401 = vsel %vm306, %v283, 0
  %v404 = vsel %vm306, %v284, 0
  %v407 = vsel %vm306, %v285, 0
  %v410 = vsel %vm306, %v286, 0
  %v413 = vsel %vm306, %v287, 0
  %415 = vmatprep.subr.bf16.mxu0 0
  %416 = vmatpush1.bf16.msra.mxu0 %v300
  %417 = vmatprep.subr.bf16.mxu0 0
  %418 = vmatpush1.bf16.msra.mxu0 %v301
  %419 = vmatprep.subr.bf16.mxu0 0
  %420 = vmatpush1.bf16.msra.mxu0 %v302
  %421 = vmatprep.subr.bf16.mxu0 0
  %422 = vmatpush1.bf16.msra.mxu0 0
  %423 = vmatprep.subr.bf16.mxu0 0
  %424 = vmatpush1.bf16.msra.mxu0 0
  %425 = vmatprep.subr.bf16.mxu0 0
  %426 = vmatpush1.bf16.msra.mxu0 0
  %427 = vmatprep.subr.bf16.mxu0 0
  %428 = vmatpush1.bf16.msra.mxu0 0
  %429 = vmatprep.subr.bf16.mxu0 0
  %430 = vmatpush1.bf16.msra.mxu0 0
  %431 = vmatprep.subr.bf16.mxu0 0
  %432 = vmatpush1.bf16.msra.mxu0 0
  %433 = vmatprep.subr.bf16.mxu0 0
  %434 = vmatpush1.bf16.msra.mxu0 0
  %435 = vmatprep.subr.bf16.mxu0 0
  %436 = vmatpush1.bf16.msra.mxu0 0
  %437 = vmatprep.subr.bf16.mxu0 0
  %438 = vmatpush1.bf16.msra.mxu0 0
  %439 = vmatprep.subr.bf16.mxu0 0
  %440 = vmatpush1.bf16.msra.mxu0 0
  %441 = vmatprep.subr.bf16.mxu0 0
  %442 = vmatpush1.bf16.msra.mxu0 0
  %443 = vmatprep.subr.bf16.mxu0 0
  %444 = vmatpush1.bf16.msra.mxu0 0
  %445 = vmatprep.subr.bf16.mxu0 0
  %446 = vmatpush1.bf16.msra.mxu0 0
  %447 = vmatprep.mubr.bf16.mxu0 0
  %448 = vmatmul.mubr.bf16.gmra.mrb[0].mxu0 %v308
  %v449 = vpop.f32.mrb[0].mxu0
  %v450 = vadd.f32 0.0, %v449
  %v451 = vpop.f32.mrb[0].mxu0
  %v452 = vpop.f32.mrb[0].mxu0
  %v453 = vadd.f32 0.0, %v452
  %v454 = vpop.f32.mrb[0].mxu0
  %455 = vmatprep.mubr.bf16.mxu0 0
  %456 = vmatmul.mubr.bf16.gmra.mrb[0].mxu0 %v311
  %v457 = vpop.f32.mrb[0].mxu0
  %v458 = vadd.f32 0.0, %v457
  %v459 = vpop.f32.mrb[0].mxu0
  %v460 = vpop.f32.mrb[0].mxu0
  %v461 = vadd.f32 0.0, %v460
  %v462 = vpop.f32.mrb[0].mxu0
  %463 = vmatprep.mubr.bf16.mxu0 0
  %464 = vmatmul.mubr.bf16.gmra.mrb[0].mxu0 %v314
  %v465 = vpop.f32.mrb[0].mxu0
  %v466 = vadd.f32 0.0, %v465
  %v467 = vpop.f32.mrb[0].mxu0
  %v468 = vpop.f32.mrb[0].mxu0
  %v469 = vadd.f32 0.0, %v468
  %v470 = vpop.f32.mrb[0].mxu0
  %471 = vmatprep.mubr.bf16.mxu0 0
  %472 = vmatmul.mubr.bf16.gmra.mrb[0].mxu0 %v317
  %v473 = vpop.f32.mrb[0].mxu0
  %v474 = vadd.f32 0.0, %v473
  %v475 = vpop.f32.mrb[0].mxu0
  %v476 = vpop.f32.mrb[0].mxu0
  %v477 = vadd.f32 0.0, %v476
  %v478 = vpop.f32.mrb[0].mxu0
  %479 = vmatprep.mubr.bf16.mxu0 0
  %480 = vmatmul.mubr.bf16.gmra.mrb[0].mxu0 %v320
  %v481 = vpop.f32.mrb[0].mxu0
  %v482 = vadd.f32 0.0, %v481
  %v483 = vpop.f32.mrb[0].mxu0
  %v484 = vpop.f32.mrb[0].mxu0
  %v485 = vadd.f32 0.0, %v484
  %v486 = vpop.f32.mrb[0].mxu0
  %487 = vmatprep.mubr.bf16.mxu0 0
  %488 = vmatmul.mubr.bf16.gmra.mrb[0].mxu0 %v323
  %v489 = vpop.f32.mrb[0].mxu0
  %v490 = vadd.f32 0.0, %v489
  %v491 = vpop.f32.mrb[0].mxu0
  %v492 = vpop.f32.mrb[0].mxu0
  %v493 = vadd.f32 0.0, %v492
  %v494 = vpop.f32.mrb[0].mxu0
  %495 = vmatprep.mubr.bf16.mxu0 0
  %496 = vmatmul.mubr.bf16.gmra.mrb[0].mxu0 %v326
  %v497 = vpop.f32.mrb[0].mxu0
  %v498 = vadd.f32 0.0, %v497
  %v499 = vpop.f32.mrb[0].mxu0
  %v500 = vpop.f32.mrb[0].mxu0
  %v501 = vadd.f32 0.0, %v500
  %v502 = vpop.f32.mrb[0].mxu0
  %503 = vmatprep.mubr.bf16.mxu0 0
  %504 = vmatmul.mubr.bf16.gmra.mrb[0].mxu0 %v329
  %v505 = vpop.f32.mrb[0].mxu0
  %v506 = vadd.f32 0.0, %v505
  %v507 = vpop.f32.mrb[0].mxu0
  %v508 = vpop.f32.mrb[0].mxu0
  %v509 = vadd.f32 0.0, %v508
  %v510 = vpop.f32.mrb[0].mxu0
  %511 = vmatprep.mubr.bf16.mxu0 0
  %512 = vmatmul.mubr.bf16.gmra.mrb[0].mxu0 %v332
  %v513 = vpop.f32.mrb[0].mxu0
  %v514 = vadd.f32 0.0, %v513
  %v515 = vpop.f32.mrb[0].mxu0
  %v516 = vpop.f32.mrb[0].mxu0
  %v517 = vadd.f32 0.0, %v516
  %v518 = vpop.f32.mrb[0].mxu0
  %519 = vmatprep.mubr.bf16.mxu0 0
  %520 = vmatmul.mubr.bf16.gmra.mrb[0].mxu0 %v335
  %v521 = vpop.f32.mrb[0].mxu0
  %v522 = vadd.f32 0.0, %v521
  %v523 = vpop.f32.mrb[0].mxu0
  %v524 = vpop.f32.mrb[0].mxu0
  %v525 = vadd.f32 0.0, %v524
  %v526 = vpop.f32.mrb[0].mxu0
  %527 = vmatprep.mubr.bf16.mxu0 0
  %528 = vmatmul.mubr.bf16.gmra.mrb[0].mxu0 %v338
  %v529 = vpop.f32.mrb[0].mxu0
  %v530 = vadd.f32 0.0, %v529
  %v531 = vpop.f32.mrb[0].mxu0
  %v532 = vpop.f32.mrb[0].mxu0
  %v533 = vadd.f32 0.0, %v532
  %v534 = vpop.f32.mrb[0].mxu0
  %535 = vmatprep.mubr.bf16.mxu0 0
  %536 = vmatmul.mubr.bf16.gmra.mrb[0].mxu0 %v341
  %v537 = vpop.f32.mrb[0].mxu0
  %v538 = vadd.f32 0.0, %v537
  %v539 = vpop.f32.mrb[0].mxu0
  %v540 = vpop.f32.mrb[0].mxu0
  %v541 = vadd.f32 0.0, %v540
  %v542 = vpop.f32.mrb[0].mxu0
  %543 = vmatprep.mubr.bf16.mxu0 0
  %544 = vmatmul.mubr.bf16.gmra.mrb[0].mxu0 %v344
  %v545 = vpop.f32.mrb[0].mxu0
  %v546 = vadd.f32 0.0, %v545
  %v547 = vpop.f32.mrb[0].mxu0
  %v548 = vpop.f32.mrb[0].mxu0
  %v549 = vadd.f32 0.0, %v548
  %v550 = vpop.f32.mrb[0].mxu0
  %551 = vmatprep.mubr.bf16.mxu0 0
  %552 = vmatmul.mubr.bf16.gmra.mrb[0].mxu0 %v347
  %v553 = vpop.f32.mrb[0].mxu0
  %v554 = vadd.f32 0.0, %v553
  %v555 = vpop.f32.mrb[0].mxu0
  %v556 = vpop.f32.mrb[0].mxu0
  %v557 = vadd.f32 0.0, %v556
  %v558 = vpop.f32.mrb[0].mxu0
  %559 = vmatprep.mubr.bf16.mxu0 0
  %560 = vmatmul.mubr.bf16.gmra.mrb[0].mxu0 %v350
  %v561 = vpop.f32.mrb[0].mxu0
  %v562 = vadd.f32 0.0, %v561
  %v563 = vpop.f32.mrb[0].mxu0
  %v564 = vpop.f32.mrb[0].mxu0
  %v565 = vadd.f32 0.0, %v564
  %v566 = vpop.f32.mrb[0].mxu0
  %567 = vmatprep.mubr.bf16.mxu0 0
  %568 = vmatmul.mubr.bf16.gmra.mrb[0].mxu0 %v353
  %v569 = vpop.f32.mrb[0].mxu0
  %v570 = vadd.f32 0.0, %v569
  %v571 = vpop.f32.mrb[0].mxu0
  %v572 = vpop.f32.mrb[0].mxu0
  %v573 = vadd.f32 0.0, %v572
  %v574 = vpop.f32.mrb[0].mxu0
  %575 = vmatprep.mubr.bf16.mxu0 0
  %576 = vmatmul.mubr.bf16.gmra.mrb[0].mxu0 %v356
  %v577 = vpop.f32.mrb[0].mxu0
  %v578 = vadd.f32 0.0, %v577
  %v579 = vpop.f32.mrb[0].mxu0
  %v580 = vpop.f32.mrb[0].mxu0
  %v581 = vadd.f32 0.0, %v580
  %v582 = vpop.f32.mrb[0].mxu0
  %583 = vmatprep.mubr.bf16.mxu0 0
  %584 = vmatmul.mubr.bf16.gmra.mrb[0].mxu0 %v359
  %v585 = vpop.f32.mrb[0].mxu0
  %v586 = vadd.f32 0.0, %v585
  %v587 = vpop.f32.mrb[0].mxu0
  %v588 = vpop.f32.mrb[0].mxu0
  %v589 = vadd.f32 0.0, %v588
  %v590 = vpop.f32.mrb[0].mxu0
  %591 = vmatprep.mubr.bf16.mxu0 0
  %592 = vmatmul.mubr.bf16.gmra.mrb[0].mxu0 %v362
  %v593 = vpop.f32.mrb[0].mxu0
  %v594 = vadd.f32 0.0, %v593
  %v595 = vpop.f32.mrb[0].mxu0
  %v596 = vpop.f32.mrb[0].mxu0
  %v597 = vadd.f32 0.0, %v596
  %v598 = vpop.f32.mrb[0].mxu0
  %599 = vmatprep.mubr.bf16.mxu0 0
  %600 = vmatmul.mubr.bf16.gmra.mrb[0].mxu0 %v365
  %v601 = vpop.f32.mrb[0].mxu0
  %v602 = vadd.f32 0.0, %v601
  %v603 = vpop.f32.mrb[0].mxu0
  %v604 = vpop.f32.mrb[0].mxu0
  %v605 = vadd.f32 0.0, %v604
  %v606 = vpop.f32.mrb[0].mxu0
  %607 = vmatprep.mubr.bf16.mxu0 0
  %608 = vmatmul.mubr.bf16.gmra.mrb[0].mxu0 %v368
  %v609 = vpop.f32.mrb[0].mxu0
  %v610 = vadd.f32 0.0, %v609
  %v611 = vpop.f32.mrb[0].mxu0
  %v612 = vpop.f32.mrb[0].mxu0
  %v613 = vadd.f32 0.0, %v612
  %v614 = vpop.f32.mrb[0].mxu0
  %615 = vmatprep.mubr.bf16.mxu0 0
  %616 = vmatmul.mubr.bf16.gmra.mrb[0].mxu0 %v371
  %v617 = vpop.f32.mrb[0].mxu0
  %v618 = vadd.f32 0.0, %v617
  %v619 = vpop.f32.mrb[0].mxu0
  %v620 = vpop.f32.mrb[0].mxu0
  %v621 = vadd.f32 0.0, %v620
  %v622 = vpop.f32.mrb[0].mxu0
  %623 = vmatprep.mubr.bf16.mxu0 0
  %624 = vmatmul.mubr.bf16.gmra.mrb[0].mxu0 %v374
  %v625 = vpop.f32.mrb[0].mxu0
  %v626 = vadd.f32 0.0, %v625
  %v627 = vpop.f32.mrb[0].mxu0
  %v628 = vpop.f32.mrb[0].mxu0
  %v629 = vadd.f32 0.0, %v628
  %v630 = vpop.f32.mrb[0].mxu0
  %631 = vmatprep.mubr.bf16.mxu0 0
  %632 = vmatmul.mubr.bf16.gmra.mrb[0].mxu0 %v377
  %v633 = vpop.f32.mrb[0].mxu0
  %v634 = vadd.f32 0.0, %v633
  %v635 = vpop.f32.mrb[0].mxu0
  %v636 = vpop.f32.mrb[0].mxu0
  %v637 = vadd.f32 0.0, %v636
  %v638 = vpop.f32.mrb[0].mxu0
  %639 = vmatprep.mubr.bf16.mxu0 0
  %640 = vmatmul.mubr.bf16.gmra.mrb[0].mxu0 %v380
  %v641 = vpop.f32.mrb[0].mxu0
  %v642 = vadd.f32 0.0, %v641
  %v643 = vpop.f32.mrb[0].mxu0
  %v644 = vpop.f32.mrb[0].mxu0
  %v645 = vadd.f32 0.0, %v644
  %v646 = vpop.f32.mrb[0].mxu0
  %647 = vmatprep.mubr.bf16.mxu0 0
  %648 = vmatmul.mubr.bf16.gmra.mrb[0].mxu0 %v383
  %v649 = vpop.f32.mrb[0].mxu0
  %v650 = vadd.f32 0.0, %v649
  %v651 = vpop.f32.mrb[0].mxu0
  %v652 = vpop.f32.mrb[0].mxu0
  %v653 = vadd.f32 0.0, %v652
  %v654 = vpop.f32.mrb[0].mxu0
  %655 = vmatprep.mubr.bf16.mxu0 0
  %656 = vmatmul.mubr.bf16.gmra.mrb[0].mxu0 %v386
  %v657 = vpop.f32.mrb[0].mxu0
  %v658 = vadd.f32 0.0, %v657
  %v659 = vpop.f32.mrb[0].mxu0
  %v660 = vpop.f32.mrb[0].mxu0
  %v661 = vadd.f32 0.0, %v660
  %v662 = vpop.f32.mrb[0].mxu0
  %663 = vmatprep.mubr.bf16.mxu0 0
  %664 = vmatmul.mubr.bf16.gmra.mrb[0].mxu0 %v389
  %v665 = vpop.f32.mrb[0].mxu0
  %v666 = vadd.f32 0.0, %v665
  %v667 = vpop.f32.mrb[0].mxu0
  %v668 = vpop.f32.mrb[0].mxu0
  %v669 = vadd.f32 0.0, %v668
  %v670 = vpop.f32.mrb[0].mxu0
  %671 = vmatprep.mubr.bf16.mxu0 0
  %672 = vmatmul.mubr.bf16.gmra.mrb[0].mxu0 %v392
  %v673 = vpop.f32.mrb[0].mxu0
  %v674 = vadd.f32 0.0, %v673
  %v675 = vpop.f32.mrb[0].mxu0
  %v676 = vpop.f32.mrb[0].mxu0
  %v677 = vadd.f32 0.0, %v676
  %v678 = vpop.f32.mrb[0].mxu0
  %679 = vmatprep.mubr.bf16.mxu0 0
  %680 = vmatmul.mubr.bf16.gmra.mrb[0].mxu0 %v395
  %v681 = vpop.f32.mrb[0].mxu0
  %v682 = vadd.f32 0.0, %v681
  %v683 = vpop.f32.mrb[0].mxu0
  %v684 = vpop.f32.mrb[0].mxu0
  %v685 = vadd.f32 0.0, %v684
  %v686 = vpop.f32.mrb[0].mxu0
  %687 = vmatprep.mubr.bf16.mxu0 0
  %688 = vmatmul.mubr.bf16.gmra.mrb[0].mxu0 %v398
  %v689 = vpop.f32.mrb[0].mxu0
  %v690 = vadd.f32 0.0, %v689
  %v691 = vpop.f32.mrb[0].mxu0
  %v692 = vpop.f32.mrb[0].mxu0
  %v693 = vadd.f32 0.0, %v692
  %v694 = vpop.f32.mrb[0].mxu0
  %695 = vmatprep.mubr.bf16.mxu0 0
  %696 = vmatmul.mubr.bf16.gmra.mrb[0].mxu0 %v401
  %v697 = vpop.f32.mrb[0].mxu0
  %v698 = vadd.f32 0.0, %v697
  %v699 = vpop.f32.mrb[0].mxu0
  %v700 = vpop.f32.mrb[0].mxu0
  %v701 = vadd.f32 0.0, %v700
  %v702 = vpop.f32.mrb[0].mxu0
  %703 = vmatprep.mubr.bf16.mxu0 0
  %704 = vmatmul.mubr.bf16.gmra.mrb[0].mxu0 %v404
  %v705 = vpop.f32.mrb[0].mxu0
  %v706 = vadd.f32 0.0, %v705
  %v707 = vpop.f32.mrb[0].mxu0
  %v708 = vpop.f32.mrb[0].mxu0
  %v709 = vadd.f32 0.0, %v708
  %v710 = vpop.f32.mrb[0].mxu0
  %711 = vmatprep.mubr.bf16.mxu0 0
  %712 = vmatmul.mubr.bf16.gmra.mrb[0].mxu0 %v407
  %v713 = vpop.f32.mrb[0].mxu0
  %v714 = vadd.f32 0.0, %v713
  %v715 = vpop.f32.mrb[0].mxu0
  %v716 = vpop.f32.mrb[0].mxu0
  %v717 = vadd.f32 0.0, %v716
  %v718 = vpop.f32.mrb[0].mxu0
  %719 = vmatprep.mubr.bf16.mxu0 0
  %720 = vmatmul.mubr.bf16.gmra.mrb[0].mxu0 %v410
  %v721 = vpop.f32.mrb[0].mxu0
  %v722 = vadd.f32 0.0, %v721
  %v723 = vpop.f32.mrb[0].mxu0
  %v724 = vpop.f32.mrb[0].mxu0
  %v725 = vadd.f32 0.0, %v724
  %v726 = vpop.f32.mrb[0].mxu0
  %727 = vmatprep.mubr.bf16.mxu0 0
  %728 = vmatmul.mubr.bf16.gmra.mrb[0].mxu0 %v413
  %v729 = vpop.f32.mrb[0].mxu0
  %v730 = vadd.f32 0.0, %v729
  %v731 = vpop.f32.mrb[0].mxu0
  %v732 = vpop.f32.mrb[0].mxu0
  %v733 = vadd.f32 0.0, %v732
  %v734 = vpop.f32.mrb[0].mxu0
  %735 = vdwg.mxu0
  %v736 = vmax.f32 %v450, 0.0
  %v737 = vmax.f32 %v453, 0.0
  %v738 = vmax.f32 %v458, 0.0
  %v739 = vmax.f32 %v461, 0.0
  %v740 = vmax.f32 %v466, 0.0
  %v741 = vmax.f32 %v469, 0.0
  %v742 = vmax.f32 %v474, 0.0
  %v743 = vmax.f32 %v477, 0.0
  %v744 = vmax.f32 %v482, 0.0
  %v745 = vmax.f32 %v485, 0.0
  %v746 = vmax.f32 %v490, 0.0
  %v747 = vmax.f32 %v493, 0.0
  %v748 = vmax.f32 %v498, 0.0
  %v749 = vmax.f32 %v501, 0.0
  %v750 = vmax.f32 %v506, 0.0
  %v751 = vmax.f32 %v509, 0.0
  %v752 = vmax.f32 %v514, 0.0
  %v753 = vmax.f32 %v517, 0.0
  %v754 = vmax.f32 %v522, 0.0
  %v755 = vmax.f32 %v525, 0.0
  %v756 = vmax.f32 %v530, 0.0
  %v757 = vmax.f32 %v533, 0.0
  %v758 = vmax.f32 %v538, 0.0
  %v759 = vmax.f32 %v541, 0.0
  %v760 = vmax.f32 %v546, 0.0
  %v761 = vmax.f32 %v549, 0.0
  %v762 = vmax.f32 %v554, 0.0
  %v763 = vmax.f32 %v557, 0.0
  %v764 = vmax.f32 %v562, 0.0
  %v765 = vmax.f32 %v565, 0.0
  %v766 = vmax.f32 %v570, 0.0
  %v767 = vmax.f32 %v573, 0.0
  %v768 = vmax.f32 %v578, 0.0
  %v769 = vmax.f32 %v581, 0.0
  %v770 = vmax.f32 %v586, 0.0
  %v771 = vmax.f32 %v589, 0.0
  %v772 = vmax.f32 %v594, 0.0
  %v773 = vmax.f32 %v597, 0.0
  %v774 = vmax.f32 %v602, 0.0
  %v775 = vmax.f32 %v605, 0.0
  %v776 = vmax.f32 %v610, 0.0
  %v777 = vmax.f32 %v613, 0.0
  %v778 = vmax.f32 %v618, 0.0
  %v779 = vmax.f32 %v621, 0.0
  %v780 = vmax.f32 %v626, 0.0
  %v781 = vmax.f32 %v629, 0.0
  %v782 = vmax.f32 %v634, 0.0
  %v783 = vmax.f32 %v637, 0.0
  %v784 = vmax.f32 %v642, 0.0
  %v785 = vmax.f32 %v645, 0.0
  %v786 = vmax.f32 %v650, 0.0
  %v787 = vmax.f32 %v653, 0.0
  %v788 = vmax.f32 %v658, 0.0
  %v789 = vmax.f32 %v661, 0.0
  %v790 = vmax.f32 %v666, 0.0
  %v791 = vmax.f32 %v669, 0.0
  %v792 = vmax.f32 %v674, 0.0
  %v793 = vmax.f32 %v677, 0.0
  %v794 = vmax.f32 %v682, 0.0
  %v795 = vmax.f32 %v685, 0.0
  %v796 = vmax.f32 %v690, 0.0
  %v797 = vmax.f32 %v693, 0.0
  %v798 = vmax.f32 %v698, 0.0
  %v799 = vmax.f32 %v701, 0.0
  %v800 = vmax.f32 %v706, 0.0
  %v801 = vmax.f32 %v709, 0.0
  %v802 = vmax.f32 %v714, 0.0
  %v803 = vmax.f32 %v717, 0.0
  %v804 = vmax.f32 %v722, 0.0
  %v805 = vmax.f32 %v725, 0.0
  %v806 = vmax.f32 %v730, 0.0
  %v807 = vmax.f32 %v733, 0.0
  %v808 = vld [vmem:[%s2] sm:$0x1]
  %v809 = vld [vmem:[%s3] sm:$0x1]
  %vm810 = vcmask 523264
  %v811 = vsel %vm810, %v736, 0.0
  %v812 = vsel %vm810, %v737, 0.0
  %v813 = vadd.f32 %v811, %v812
  %v814 = vsel %vm810, %v738, 0.0
  %v815 = vadd.f32 %v813, %v814
  %v816 = vsel %vm810, %v739, 0.0
  %v817 = vadd.f32 %v815, %v816
  %v818 = vsel %vm810, %v740, 0.0
  %v819 = vadd.f32 %v817, %v818
  %v820 = vsel %vm810, %v741, 0.0
  %v821 = vadd.f32 %v819, %v820
  %v822 = vsel %vm810, %v742, 0.0
  %v823 = vadd.f32 %v821, %v822
  %v824 = vsel %vm810, %v743, 0.0
  %v825 = vadd.f32 %v823, %v824
  %v826 = vsel %vm810, %v744, 0.0
  %v827 = vadd.f32 %v825, %v826
  %v828 = vsel %vm810, %v745, 0.0
  %v829 = vadd.f32 %v827, %v828
  %v830 = vsel %vm810, %v746, 0.0
  %v831 = vadd.f32 %v829, %v830
  %v832 = vsel %vm810, %v747, 0.0
  %v833 = vadd.f32 %v831, %v832
  %v834 = vsel %vm810, %v748, 0.0
  %v835 = vadd.f32 %v833, %v834
  %v836 = vsel %vm810, %v749, 0.0
  %v837 = vadd.f32 %v835, %v836
  %v838 = vsel %vm810, %v750, 0.0
  %v839 = vadd.f32 %v837, %v838
  %v840 = vsel %vm810, %v751, 0.0
  %v841 = vadd.f32 %v839, %v840
  %v842 = vsel %vm810, %v752, 0.0
  %v843 = vadd.f32 %v841, %v842
  %v844 = vsel %vm810, %v753, 0.0
  %v845 = vadd.f32 %v843, %v844
  %v846 = vsel %vm810, %v754, 0.0
  %v847 = vadd.f32 %v845, %v846
  %v848 = vsel %vm810, %v755, 0.0
  %v849 = vadd.f32 %v847, %v848
  %v850 = vsel %vm810, %v756, 0.0
  %v851 = vadd.f32 %v849, %v850
  %v852 = vsel %vm810, %v757, 0.0
  %v853 = vadd.f32 %v851, %v852
  %v854 = vsel %vm810, %v758, 0.0
  %v855 = vadd.f32 %v853, %v854
  %v856 = vsel %vm810, %v759, 0.0
  %v857 = vadd.f32 %v855, %v856
  %v858 = vsel %vm810, %v760, 0.0
  %v859 = vadd.f32 %v857, %v858
  %v860 = vsel %vm810, %v761, 0.0
  %v861 = vadd.f32 %v859, %v860
  %v862 = vsel %vm810, %v762, 0.0
  %v863 = vadd.f32 %v861, %v862
  %v864 = vsel %vm810, %v763, 0.0
  %v865 = vadd.f32 %v863, %v864
  %v866 = vsel %vm810, %v764, 0.0
  %v867 = vadd.f32 %v865, %v866
  %v868 = vsel %vm810, %v765, 0.0
  %v869 = vadd.f32 %v867, %v868
  %v870 = vsel %vm810, %v766, 0.0
  %v871 = vadd.f32 %v869, %v870
  %v872 = vsel %vm810, %v767, 0.0
  %v873 = vadd.f32 %v871, %v872
  %v874 = vsel %vm810, %v768, 0.0
  %v875 = vadd.f32 %v873, %v874
  %v876 = vsel %vm810, %v769, 0.0
  %v877 = vadd.f32 %v875, %v876
  %v878 = vsel %vm810, %v770, 0.0
  %v879 = vadd.f32 %v877, %v878
  %v880 = vsel %vm810, %v771, 0.0
  %v881 = vadd.f32 %v879, %v880
  %v882 = vsel %vm810, %v772, 0.0
  %v883 = vadd.f32 %v881, %v882
  %v884 = vsel %vm810, %v773, 0.0
  %v885 = vadd.f32 %v883, %v884
  %v886 = vsel %vm810, %v774, 0.0
  %v887 = vadd.f32 %v885, %v886
  %v888 = vsel %vm810, %v775, 0.0
  %v889 = vadd.f32 %v887, %v888
  %v890 = vsel %vm810, %v776, 0.0
  %v891 = vadd.f32 %v889, %v890
  %v892 = vsel %vm810, %v777, 0.0
  %v893 = vadd.f32 %v891, %v892
  %v894 = vsel %vm810, %v778, 0.0
  %v895 = vadd.f32 %v893, %v894
  %v896 = vsel %vm810, %v779, 0.0
  %v897 = vadd.f32 %v895, %v896
  %v898 = vsel %vm810, %v780, 0.0
  %v899 = vadd.f32 %v897, %v898
  %v900 = vsel %vm810, %v781, 0.0
  %v901 = vadd.f32 %v899, %v900
  %v902 = vsel %vm810, %v782, 0.0
  %v903 = vadd.f32 %v901, %v902
  %v904 = vsel %vm810, %v783, 0.0
  %v905 = vadd.f32 %v903, %v904
  %v906 = vsel %vm810, %v784, 0.0
  %v907 = vadd.f32 %v905, %v906
  %v908 = vsel %vm810, %v785, 0.0
  %v909 = vadd.f32 %v907, %v908
  %v910 = vsel %vm810, %v786, 0.0
  %v911 = vadd.f32 %v909, %v910
  %v912 = vsel %vm810, %v787, 0.0
  %v913 = vadd.f32 %v911, %v912
  %v914 = vsel %vm810, %v788, 0.0
  %v915 = vadd.f32 %v913, %v914
  %v916 = vsel %vm810, %v789, 0.0
  %v917 = vadd.f32 %v915, %v916
  %v918 = vsel %vm810, %v790, 0.0
  %v919 = vadd.f32 %v917, %v918
  %v920 = vsel %vm810, %v791, 0.0
  %v921 = vadd.f32 %v919, %v920
  %v922 = vsel %vm810, %v792, 0.0
  %v923 = vadd.f32 %v921, %v922
  %v924 = vsel %vm810, %v793, 0.0
  %v925 = vadd.f32 %v923, %v924
  %v926 = vsel %vm810, %v794, 0.0
  %v927 = vadd.f32 %v925, %v926
  %v928 = vsel %vm810, %v795, 0.0
  %v929 = vadd.f32 %v927, %v928
  %v930 = vsel %vm810, %v796, 0.0
  %v931 = vadd.f32 %v929, %v930
  %v932 = vsel %vm810, %v797, 0.0
  %v933 = vadd.f32 %v931, %v932
  %v934 = vsel %vm810, %v798, 0.0
  %v935 = vadd.f32 %v933, %v934
  %v936 = vsel %vm810, %v799, 0.0
  %v937 = vadd.f32 %v935, %v936
  %v938 = vsel %vm810, %v800, 0.0
  %v939 = vadd.f32 %v937, %v938
  %v940 = vsel %vm810, %v801, 0.0
  %v941 = vadd.f32 %v939, %v940
  %v942 = vsel %vm810, %v802, 0.0
  %v943 = vadd.f32 %v941, %v942
  %v944 = vsel %vm810, %v803, 0.0
  %v945 = vadd.f32 %v943, %v944
  %v946 = vsel %vm810, %v804, 0.0
  %v947 = vadd.f32 %v945, %v946
  %v948 = vsel %vm810, %v805, 0.0
  %v949 = vadd.f32 %v947, %v948
  %v950 = vsel %vm810, %v806, 0.0
  %v951 = vadd.f32 %v949, %v950
  %v952 = vsel %vm810, %v807, 0.0
  %v953 = vadd.f32 %v951, %v952
  %v954 = vrot.slane %v953, 4
  %v955 = vadd.f32 %v953, %v954
  %v956 = vrot.slane %v955, 2
  %v957 = vadd.f32 %v955, %v956
  %v958 = vrot.slane %v957, 1
  %v959 = vadd.f32 %v957, %v958
  %v960 = vrcp.pop 576.0
  %v961 = vmul.f32 %v959, %v960
  %v962 = vsub.f32 %v736, %v961
  %v963 = vsub.f32 %v737, %v961
  %v964 = vsub.f32 %v738, %v961
  %v965 = vsub.f32 %v739, %v961
  %v966 = vsub.f32 %v740, %v961
  %v967 = vsub.f32 %v741, %v961
  %v968 = vsub.f32 %v742, %v961
  %v969 = vsub.f32 %v743, %v961
  %v970 = vsub.f32 %v744, %v961
  %v971 = vsub.f32 %v745, %v961
  %v972 = vsub.f32 %v746, %v961
  %v973 = vsub.f32 %v747, %v961
  %v974 = vsub.f32 %v748, %v961
  %v975 = vsub.f32 %v749, %v961
  %v976 = vsub.f32 %v750, %v961
  %v977 = vsub.f32 %v751, %v961
  %v978 = vsub.f32 %v752, %v961
  %v979 = vsub.f32 %v753, %v961
  %v980 = vsub.f32 %v754, %v961
  %v981 = vsub.f32 %v755, %v961
  %v982 = vsub.f32 %v756, %v961
  %v983 = vsub.f32 %v757, %v961
  %v984 = vsub.f32 %v758, %v961
  %v985 = vsub.f32 %v759, %v961
  %v986 = vsub.f32 %v760, %v961
  %v987 = vsub.f32 %v761, %v961
  %v988 = vsub.f32 %v762, %v961
  %v989 = vsub.f32 %v763, %v961
  %v990 = vsub.f32 %v764, %v961
  %v991 = vsub.f32 %v765, %v961
  %v992 = vsub.f32 %v766, %v961
  %v993 = vsub.f32 %v767, %v961
  %v994 = vsub.f32 %v768, %v961
  %v995 = vsub.f32 %v769, %v961
  %v996 = vsub.f32 %v770, %v961
  %v997 = vsub.f32 %v771, %v961
  %v998 = vsub.f32 %v772, %v961
  %v999 = vsub.f32 %v773, %v961
  %v1000 = vsub.f32 %v774, %v961
  %v1001 = vsub.f32 %v775, %v961
  %v1002 = vsub.f32 %v776, %v961
  %v1003 = vsub.f32 %v777, %v961
  %v1004 = vsub.f32 %v778, %v961
  %v1005 = vsub.f32 %v779, %v961
  %v1006 = vsub.f32 %v780, %v961
  %v1007 = vsub.f32 %v781, %v961
  %v1008 = vsub.f32 %v782, %v961
  %v1009 = vsub.f32 %v783, %v961
  %v1010 = vsub.f32 %v784, %v961
  %v1011 = vsub.f32 %v785, %v961
  %v1012 = vsub.f32 %v786, %v961
  %v1013 = vsub.f32 %v787, %v961
  %v1014 = vsub.f32 %v788, %v961
  %v1015 = vsub.f32 %v789, %v961
  %v1016 = vsub.f32 %v790, %v961
  %v1017 = vsub.f32 %v791, %v961
  %v1018 = vsub.f32 %v792, %v961
  %v1019 = vsub.f32 %v793, %v961
  %v1020 = vsub.f32 %v794, %v961
  %v1021 = vsub.f32 %v795, %v961
  %v1022 = vsub.f32 %v796, %v961
  %v1023 = vsub.f32 %v797, %v961
  %v1024 = vsub.f32 %v798, %v961
  %v1025 = vsub.f32 %v799, %v961
  %v1026 = vsub.f32 %v800, %v961
  %v1027 = vsub.f32 %v801, %v961
  %v1028 = vsub.f32 %v802, %v961
  %v1029 = vsub.f32 %v803, %v961
  %v1030 = vsub.f32 %v804, %v961
  %v1031 = vsub.f32 %v805, %v961
  %v1032 = vsub.f32 %v806, %v961
  %v1033 = vsub.f32 %v807, %v961
  %v1034 = vmul.f32 %v962, %v962
  %v1035 = vmul.f32 %v963, %v963
  %v1036 = vmul.f32 %v964, %v964
  %v1037 = vmul.f32 %v965, %v965
  %v1038 = vmul.f32 %v966, %v966
  %v1039 = vmul.f32 %v967, %v967
  %v1040 = vmul.f32 %v968, %v968
  %v1041 = vmul.f32 %v969, %v969
  %v1042 = vmul.f32 %v970, %v970
  %v1043 = vmul.f32 %v971, %v971
  %v1044 = vmul.f32 %v972, %v972
  %v1045 = vmul.f32 %v973, %v973
  %v1046 = vmul.f32 %v974, %v974
  %v1047 = vmul.f32 %v975, %v975
  %v1048 = vmul.f32 %v976, %v976
  %v1049 = vmul.f32 %v977, %v977
  %v1050 = vmul.f32 %v978, %v978
  %v1051 = vmul.f32 %v979, %v979
  %v1052 = vmul.f32 %v980, %v980
  %v1053 = vmul.f32 %v981, %v981
  %v1054 = vmul.f32 %v982, %v982
  %v1055 = vmul.f32 %v983, %v983
  %v1056 = vmul.f32 %v984, %v984
  %v1057 = vmul.f32 %v985, %v985
  %v1058 = vmul.f32 %v986, %v986
  %v1059 = vmul.f32 %v987, %v987
  %v1060 = vmul.f32 %v988, %v988
  %v1061 = vmul.f32 %v989, %v989
  %v1062 = vmul.f32 %v990, %v990
  %v1063 = vmul.f32 %v991, %v991
  %v1064 = vmul.f32 %v992, %v992
  %v1065 = vmul.f32 %v993, %v993
  %v1066 = vmul.f32 %v994, %v994
  %v1067 = vmul.f32 %v995, %v995
  %v1068 = vmul.f32 %v996, %v996
  %v1069 = vmul.f32 %v997, %v997
  %v1070 = vmul.f32 %v998, %v998
  %v1071 = vmul.f32 %v999, %v999
  %v1072 = vmul.f32 %v1000, %v1000
  %v1073 = vmul.f32 %v1001, %v1001
  %v1074 = vmul.f32 %v1002, %v1002
  %v1075 = vmul.f32 %v1003, %v1003
  %v1076 = vmul.f32 %v1004, %v1004
  %v1077 = vmul.f32 %v1005, %v1005
  %v1078 = vmul.f32 %v1006, %v1006
  %v1079 = vmul.f32 %v1007, %v1007
  %v1080 = vmul.f32 %v1008, %v1008
  %v1081 = vmul.f32 %v1009, %v1009
  %v1082 = vmul.f32 %v1010, %v1010
  %v1083 = vmul.f32 %v1011, %v1011
  %v1084 = vmul.f32 %v1012, %v1012
  %v1085 = vmul.f32 %v1013, %v1013
  %v1086 = vmul.f32 %v1014, %v1014
  %v1087 = vmul.f32 %v1015, %v1015
  %v1088 = vmul.f32 %v1016, %v1016
  %v1089 = vmul.f32 %v1017, %v1017
  %v1090 = vmul.f32 %v1018, %v1018
  %v1091 = vmul.f32 %v1019, %v1019
  %v1092 = vmul.f32 %v1020, %v1020
  %v1093 = vmul.f32 %v1021, %v1021
  %v1094 = vmul.f32 %v1022, %v1022
  %v1095 = vmul.f32 %v1023, %v1023
  %v1096 = vmul.f32 %v1024, %v1024
  %v1097 = vmul.f32 %v1025, %v1025
  %v1098 = vmul.f32 %v1026, %v1026
  %v1099 = vmul.f32 %v1027, %v1027
  %v1100 = vmul.f32 %v1028, %v1028
  %v1101 = vmul.f32 %v1029, %v1029
  %v1102 = vmul.f32 %v1030, %v1030
  %v1103 = vmul.f32 %v1031, %v1031
  %v1104 = vmul.f32 %v1032, %v1032
  %v1105 = vmul.f32 %v1033, %v1033
  %v1106 = vsel %vm810, %v1034, 0.0
  %v1107 = vsel %vm810, %v1035, 0.0
  %v1108 = vadd.f32 %v1106, %v1107
  %v1109 = vsel %vm810, %v1036, 0.0
  %v1110 = vadd.f32 %v1108, %v1109
  %v1111 = vsel %vm810, %v1037, 0.0
  %v1112 = vadd.f32 %v1110, %v1111
  %v1113 = vsel %vm810, %v1038, 0.0
  %v1114 = vadd.f32 %v1112, %v1113
  %v1115 = vsel %vm810, %v1039, 0.0
  %v1116 = vadd.f32 %v1114, %v1115
  %v1117 = vsel %vm810, %v1040, 0.0
  %v1118 = vadd.f32 %v1116, %v1117
  %v1119 = vsel %vm810, %v1041, 0.0
  %v1120 = vadd.f32 %v1118, %v1119
  %v1121 = vsel %vm810, %v1042, 0.0
  %v1122 = vadd.f32 %v1120, %v1121
  %v1123 = vsel %vm810, %v1043, 0.0
  %v1124 = vadd.f32 %v1122, %v1123
  %v1125 = vsel %vm810, %v1044, 0.0
  %v1126 = vadd.f32 %v1124, %v1125
  %v1127 = vsel %vm810, %v1045, 0.0
  %v1128 = vadd.f32 %v1126, %v1127
  %v1129 = vsel %vm810, %v1046, 0.0
  %v1130 = vadd.f32 %v1128, %v1129
  %v1131 = vsel %vm810, %v1047, 0.0
  %v1132 = vadd.f32 %v1130, %v1131
  %v1133 = vsel %vm810, %v1048, 0.0
  %v1134 = vadd.f32 %v1132, %v1133
  %v1135 = vsel %vm810, %v1049, 0.0
  %v1136 = vadd.f32 %v1134, %v1135
  %v1137 = vsel %vm810, %v1050, 0.0
  %v1138 = vadd.f32 %v1136, %v1137
  %v1139 = vsel %vm810, %v1051, 0.0
  %v1140 = vadd.f32 %v1138, %v1139
  %v1141 = vsel %vm810, %v1052, 0.0
  %v1142 = vadd.f32 %v1140, %v1141
  %v1143 = vsel %vm810, %v1053, 0.0
  %v1144 = vadd.f32 %v1142, %v1143
  %v1145 = vsel %vm810, %v1054, 0.0
  %v1146 = vadd.f32 %v1144, %v1145
  %v1147 = vsel %vm810, %v1055, 0.0
  %v1148 = vadd.f32 %v1146, %v1147
  %v1149 = vsel %vm810, %v1056, 0.0
  %v1150 = vadd.f32 %v1148, %v1149
  %v1151 = vsel %vm810, %v1057, 0.0
  %v1152 = vadd.f32 %v1150, %v1151
  %v1153 = vsel %vm810, %v1058, 0.0
  %v1154 = vadd.f32 %v1152, %v1153
  %v1155 = vsel %vm810, %v1059, 0.0
  %v1156 = vadd.f32 %v1154, %v1155
  %v1157 = vsel %vm810, %v1060, 0.0
  %v1158 = vadd.f32 %v1156, %v1157
  %v1159 = vsel %vm810, %v1061, 0.0
  %v1160 = vadd.f32 %v1158, %v1159
  %v1161 = vsel %vm810, %v1062, 0.0
  %v1162 = vadd.f32 %v1160, %v1161
  %v1163 = vsel %vm810, %v1063, 0.0
  %v1164 = vadd.f32 %v1162, %v1163
  %v1165 = vsel %vm810, %v1064, 0.0
  %v1166 = vadd.f32 %v1164, %v1165
  %v1167 = vsel %vm810, %v1065, 0.0
  %v1168 = vadd.f32 %v1166, %v1167
  %v1169 = vsel %vm810, %v1066, 0.0
  %v1170 = vadd.f32 %v1168, %v1169
  %v1171 = vsel %vm810, %v1067, 0.0
  %v1172 = vadd.f32 %v1170, %v1171
  %v1173 = vsel %vm810, %v1068, 0.0
  %v1174 = vadd.f32 %v1172, %v1173
  %v1175 = vsel %vm810, %v1069, 0.0
  %v1176 = vadd.f32 %v1174, %v1175
  %v1177 = vsel %vm810, %v1070, 0.0
  %v1178 = vadd.f32 %v1176, %v1177
  %v1179 = vsel %vm810, %v1071, 0.0
  %v1180 = vadd.f32 %v1178, %v1179
  %v1181 = vsel %vm810, %v1072, 0.0
  %v1182 = vadd.f32 %v1180, %v1181
  %v1183 = vsel %vm810, %v1073, 0.0
  %v1184 = vadd.f32 %v1182, %v1183
  %v1185 = vsel %vm810, %v1074, 0.0
  %v1186 = vadd.f32 %v1184, %v1185
  %v1187 = vsel %vm810, %v1075, 0.0
  %v1188 = vadd.f32 %v1186, %v1187
  %v1189 = vsel %vm810, %v1076, 0.0
  %v1190 = vadd.f32 %v1188, %v1189
  %v1191 = vsel %vm810, %v1077, 0.0
  %v1192 = vadd.f32 %v1190, %v1191
  %v1193 = vsel %vm810, %v1078, 0.0
  %v1194 = vadd.f32 %v1192, %v1193
  %v1195 = vsel %vm810, %v1079, 0.0
  %v1196 = vadd.f32 %v1194, %v1195
  %v1197 = vsel %vm810, %v1080, 0.0
  %v1198 = vadd.f32 %v1196, %v1197
  %v1199 = vsel %vm810, %v1081, 0.0
  %v1200 = vadd.f32 %v1198, %v1199
  %v1201 = vsel %vm810, %v1082, 0.0
  %v1202 = vadd.f32 %v1200, %v1201
  %v1203 = vsel %vm810, %v1083, 0.0
  %v1204 = vadd.f32 %v1202, %v1203
  %v1205 = vsel %vm810, %v1084, 0.0
  %v1206 = vadd.f32 %v1204, %v1205
  %v1207 = vsel %vm810, %v1085, 0.0
  %v1208 = vadd.f32 %v1206, %v1207
  %v1209 = vsel %vm810, %v1086, 0.0
  %v1210 = vadd.f32 %v1208, %v1209
  %v1211 = vsel %vm810, %v1087, 0.0
  %v1212 = vadd.f32 %v1210, %v1211
  %v1213 = vsel %vm810, %v1088, 0.0
  %v1214 = vadd.f32 %v1212, %v1213
  %v1215 = vsel %vm810, %v1089, 0.0
  %v1216 = vadd.f32 %v1214, %v1215
  %v1217 = vsel %vm810, %v1090, 0.0
  %v1218 = vadd.f32 %v1216, %v1217
  %v1219 = vsel %vm810, %v1091, 0.0
  %v1220 = vadd.f32 %v1218, %v1219
  %v1221 = vsel %vm810, %v1092, 0.0
  %v1222 = vadd.f32 %v1220, %v1221
  %v1223 = vsel %vm810, %v1093, 0.0
  %v1224 = vadd.f32 %v1222, %v1223
  %v1225 = vsel %vm810, %v1094, 0.0
  %v1226 = vadd.f32 %v1224, %v1225
  %v1227 = vsel %vm810, %v1095, 0.0
  %v1228 = vadd.f32 %v1226, %v1227
  %v1229 = vsel %vm810, %v1096, 0.0
  %v1230 = vadd.f32 %v1228, %v1229
  %v1231 = vsel %vm810, %v1097, 0.0
  %v1232 = vadd.f32 %v1230, %v1231
  %v1233 = vsel %vm810, %v1098, 0.0
  %v1234 = vadd.f32 %v1232, %v1233
  %v1235 = vsel %vm810, %v1099, 0.0
  %v1236 = vadd.f32 %v1234, %v1235
  %v1237 = vsel %vm810, %v1100, 0.0
  %v1238 = vadd.f32 %v1236, %v1237
  %v1239 = vsel %vm810, %v1101, 0.0
  %v1240 = vadd.f32 %v1238, %v1239
  %v1241 = vsel %vm810, %v1102, 0.0
  %v1242 = vadd.f32 %v1240, %v1241
  %v1243 = vsel %vm810, %v1103, 0.0
  %v1244 = vadd.f32 %v1242, %v1243
  %v1245 = vsel %vm810, %v1104, 0.0
  %v1246 = vadd.f32 %v1244, %v1245
  %v1247 = vsel %vm810, %v1105, 0.0
  %v1248 = vadd.f32 %v1246, %v1247
  %v1249 = vrot.slane %v1248, 4
  %v1250 = vadd.f32 %v1248, %v1249
  %v1251 = vrot.slane %v1250, 2
  %v1252 = vadd.f32 %v1250, %v1251
  %v1253 = vrot.slane %v1252, 1
  %v1254 = vadd.f32 %v1252, %v1253
  %v1255 = vmul.f32 %v1254, %v960
  %v1256 = vadd.f32 %v1255, 1e-05
  %v1257 = vrsqrt.pop %v1256
  %v1258 = vmul.f32 %v962, %v1257
  %v1259 = vmul.f32 %v963, %v1257
  %v1260 = vmul.f32 %v964, %v1257
  %v1261 = vmul.f32 %v965, %v1257
  %v1262 = vmul.f32 %v966, %v1257
  %v1263 = vmul.f32 %v967, %v1257
  %v1264 = vmul.f32 %v968, %v1257
  %v1265 = vmul.f32 %v969, %v1257
  %v1266 = vmul.f32 %v970, %v1257
  %v1267 = vmul.f32 %v971, %v1257
  %v1268 = vmul.f32 %v972, %v1257
  %v1269 = vmul.f32 %v973, %v1257
  %v1270 = vmul.f32 %v974, %v1257
  %v1271 = vmul.f32 %v975, %v1257
  %v1272 = vmul.f32 %v976, %v1257
  %v1273 = vmul.f32 %v977, %v1257
  %v1274 = vmul.f32 %v978, %v1257
  %v1275 = vmul.f32 %v979, %v1257
  %v1276 = vmul.f32 %v980, %v1257
  %v1277 = vmul.f32 %v981, %v1257
  %v1278 = vmul.f32 %v982, %v1257
  %v1279 = vmul.f32 %v983, %v1257
  %v1280 = vmul.f32 %v984, %v1257
  %v1281 = vmul.f32 %v985, %v1257
  %v1282 = vmul.f32 %v986, %v1257
  %v1283 = vmul.f32 %v987, %v1257
  %v1284 = vmul.f32 %v988, %v1257
  %v1285 = vmul.f32 %v989, %v1257
  %v1286 = vmul.f32 %v990, %v1257
  %v1287 = vmul.f32 %v991, %v1257
  %v1288 = vmul.f32 %v992, %v1257
  %v1289 = vmul.f32 %v993, %v1257
  %v1290 = vmul.f32 %v994, %v1257
  %v1291 = vmul.f32 %v995, %v1257
  %v1292 = vmul.f32 %v996, %v1257
  %v1293 = vmul.f32 %v997, %v1257
  %v1294 = vmul.f32 %v998, %v1257
  %v1295 = vmul.f32 %v999, %v1257
  %v1296 = vmul.f32 %v1000, %v1257
  %v1297 = vmul.f32 %v1001, %v1257
  %v1298 = vmul.f32 %v1002, %v1257
  %v1299 = vmul.f32 %v1003, %v1257
  %v1300 = vmul.f32 %v1004, %v1257
  %v1301 = vmul.f32 %v1005, %v1257
  %v1302 = vmul.f32 %v1006, %v1257
  %v1303 = vmul.f32 %v1007, %v1257
  %v1304 = vmul.f32 %v1008, %v1257
  %v1305 = vmul.f32 %v1009, %v1257
  %v1306 = vmul.f32 %v1010, %v1257
  %v1307 = vmul.f32 %v1011, %v1257
  %v1308 = vmul.f32 %v1012, %v1257
  %v1309 = vmul.f32 %v1013, %v1257
  %v1310 = vmul.f32 %v1014, %v1257
  %v1311 = vmul.f32 %v1015, %v1257
  %v1312 = vmul.f32 %v1016, %v1257
  %v1313 = vmul.f32 %v1017, %v1257
  %v1314 = vmul.f32 %v1018, %v1257
  %v1315 = vmul.f32 %v1019, %v1257
  %v1316 = vmul.f32 %v1020, %v1257
  %v1317 = vmul.f32 %v1021, %v1257
  %v1318 = vmul.f32 %v1022, %v1257
  %v1319 = vmul.f32 %v1023, %v1257
  %v1320 = vmul.f32 %v1024, %v1257
  %v1321 = vmul.f32 %v1025, %v1257
  %v1322 = vmul.f32 %v1026, %v1257
  %v1323 = vmul.f32 %v1027, %v1257
  %v1324 = vmul.f32 %v1028, %v1257
  %v1325 = vmul.f32 %v1029, %v1257
  %v1326 = vmul.f32 %v1030, %v1257
  %v1327 = vmul.f32 %v1031, %v1257
  %v1328 = vmul.f32 %v1032, %v1257
  %v1329 = vmul.f32 %v1033, %v1257
  %v1331 = vlaneseq
  %v1332 = vshrl.u32 %v1331, 7
  %v1333 = vsub.s32 0, %v1332
  %v1334 = vrot.slane %v808, %v1333
  %v1336 = vmul.f32 %v1258, %v1334
  %v1337 = vmul.f32 %v1259, %v1334
  %v1338 = vmul.f32 %v1260, %v1334
  %v1339 = vmul.f32 %v1261, %v1334
  %v1340 = vmul.f32 %v1262, %v1334
  %v1341 = vmul.f32 %v1263, %v1334
  %v1342 = vmul.f32 %v1264, %v1334
  %v1343 = vmul.f32 %v1265, %v1334
  %v1344 = vmul.f32 %v1266, %v1334
  %v1345 = vmul.f32 %v1267, %v1334
  %v1346 = vmul.f32 %v1268, %v1334
  %v1347 = vmul.f32 %v1269, %v1334
  %v1348 = vmul.f32 %v1270, %v1334
  %v1349 = vmul.f32 %v1271, %v1334
  %v1350 = vmul.f32 %v1272, %v1334
  %v1351 = vmul.f32 %v1273, %v1334
  %v1352 = vmul.f32 %v1274, %v1334
  %v1353 = vmul.f32 %v1275, %v1334
  %v1354 = vmul.f32 %v1276, %v1334
  %v1355 = vmul.f32 %v1277, %v1334
  %v1356 = vmul.f32 %v1278, %v1334
  %v1357 = vmul.f32 %v1279, %v1334
  %v1358 = vmul.f32 %v1280, %v1334
  %v1359 = vmul.f32 %v1281, %v1334
  %v1360 = vmul.f32 %v1282, %v1334
  %v1361 = vmul.f32 %v1283, %v1334
  %v1362 = vmul.f32 %v1284, %v1334
  %v1363 = vmul.f32 %v1285, %v1334
  %v1364 = vmul.f32 %v1286, %v1334
  %v1365 = vmul.f32 %v1287, %v1334
  %v1366 = vmul.f32 %v1288, %v1334
  %v1367 = vmul.f32 %v1289, %v1334
  %v1368 = vmul.f32 %v1290, %v1334
  %v1369 = vmul.f32 %v1291, %v1334
  %v1370 = vmul.f32 %v1292, %v1334
  %v1371 = vmul.f32 %v1293, %v1334
  %v1372 = vmul.f32 %v1294, %v1334
  %v1373 = vmul.f32 %v1295, %v1334
  %v1374 = vmul.f32 %v1296, %v1334
  %v1375 = vmul.f32 %v1297, %v1334
  %v1376 = vmul.f32 %v1298, %v1334
  %v1377 = vmul.f32 %v1299, %v1334
  %v1378 = vmul.f32 %v1300, %v1334
  %v1379 = vmul.f32 %v1301, %v1334
  %v1380 = vmul.f32 %v1302, %v1334
  %v1381 = vmul.f32 %v1303, %v1334
  %v1382 = vmul.f32 %v1304, %v1334
  %v1383 = vmul.f32 %v1305, %v1334
  %v1384 = vmul.f32 %v1306, %v1334
  %v1385 = vmul.f32 %v1307, %v1334
  %v1386 = vmul.f32 %v1308, %v1334
  %v1387 = vmul.f32 %v1309, %v1334
  %v1388 = vmul.f32 %v1310, %v1334
  %v1389 = vmul.f32 %v1311, %v1334
  %v1390 = vmul.f32 %v1312, %v1334
  %v1391 = vmul.f32 %v1313, %v1334
  %v1392 = vmul.f32 %v1314, %v1334
  %v1393 = vmul.f32 %v1315, %v1334
  %v1394 = vmul.f32 %v1316, %v1334
  %v1395 = vmul.f32 %v1317, %v1334
  %v1396 = vmul.f32 %v1318, %v1334
  %v1397 = vmul.f32 %v1319, %v1334
  %v1398 = vmul.f32 %v1320, %v1334
  %v1399 = vmul.f32 %v1321, %v1334
  %v1400 = vmul.f32 %v1322, %v1334
  %v1401 = vmul.f32 %v1323, %v1334
  %v1402 = vmul.f32 %v1324, %v1334
  %v1403 = vmul.f32 %v1325, %v1334
  %v1404 = vmul.f32 %v1326, %v1334
  %v1405 = vmul.f32 %v1327, %v1334
  %v1406 = vmul.f32 %v1328, %v1334
  %v1407 = vmul.f32 %v1329, %v1334
  %v1409 = vlaneseq
  %v1410 = vshrl.u32 %v1409, 7
  %v1411 = vsub.s32 0, %v1410
  %v1412 = vrot.slane %v809, %v1411
  %v1414 = vadd.f32 %v1336, %v1412
  %v1415 = vadd.f32 %v1337, %v1412
  %v1416 = vadd.f32 %v1338, %v1412
  %v1417 = vadd.f32 %v1339, %v1412
  %v1418 = vadd.f32 %v1340, %v1412
  %v1419 = vadd.f32 %v1341, %v1412
  %v1420 = vadd.f32 %v1342, %v1412
  %v1421 = vadd.f32 %v1343, %v1412
  %v1422 = vadd.f32 %v1344, %v1412
  %v1423 = vadd.f32 %v1345, %v1412
  %v1424 = vadd.f32 %v1346, %v1412
  %v1425 = vadd.f32 %v1347, %v1412
  %v1426 = vadd.f32 %v1348, %v1412
  %v1427 = vadd.f32 %v1349, %v1412
  %v1428 = vadd.f32 %v1350, %v1412
  %v1429 = vadd.f32 %v1351, %v1412
  %v1430 = vadd.f32 %v1352, %v1412
  %v1431 = vadd.f32 %v1353, %v1412
  %v1432 = vadd.f32 %v1354, %v1412
  %v1433 = vadd.f32 %v1355, %v1412
  %v1434 = vadd.f32 %v1356, %v1412
  %v1435 = vadd.f32 %v1357, %v1412
  %v1436 = vadd.f32 %v1358, %v1412
  %v1437 = vadd.f32 %v1359, %v1412
  %v1438 = vadd.f32 %v1360, %v1412
  %v1439 = vadd.f32 %v1361, %v1412
  %v1440 = vadd.f32 %v1362, %v1412
  %v1441 = vadd.f32 %v1363, %v1412
  %v1442 = vadd.f32 %v1364, %v1412
  %v1443 = vadd.f32 %v1365, %v1412
  %v1444 = vadd.f32 %v1366, %v1412
  %v1445 = vadd.f32 %v1367, %v1412
  %v1446 = vadd.f32 %v1368, %v1412
  %v1447 = vadd.f32 %v1369, %v1412
  %v1448 = vadd.f32 %v1370, %v1412
  %v1449 = vadd.f32 %v1371, %v1412
  %v1450 = vadd.f32 %v1372, %v1412
  %v1451 = vadd.f32 %v1373, %v1412
  %v1452 = vadd.f32 %v1374, %v1412
  %v1453 = vadd.f32 %v1375, %v1412
  %v1454 = vadd.f32 %v1376, %v1412
  %v1455 = vadd.f32 %v1377, %v1412
  %v1456 = vadd.f32 %v1378, %v1412
  %v1457 = vadd.f32 %v1379, %v1412
  %v1458 = vadd.f32 %v1380, %v1412
  %v1459 = vadd.f32 %v1381, %v1412
  %v1460 = vadd.f32 %v1382, %v1412
  %v1461 = vadd.f32 %v1383, %v1412
  %v1462 = vadd.f32 %v1384, %v1412
  %v1463 = vadd.f32 %v1385, %v1412
  %v1464 = vadd.f32 %v1386, %v1412
  %v1465 = vadd.f32 %v1387, %v1412
  %v1466 = vadd.f32 %v1388, %v1412
  %v1467 = vadd.f32 %v1389, %v1412
  %v1468 = vadd.f32 %v1390, %v1412
  %v1469 = vadd.f32 %v1391, %v1412
  %v1470 = vadd.f32 %v1392, %v1412
  %v1471 = vadd.f32 %v1393, %v1412
  %v1472 = vadd.f32 %v1394, %v1412
  %v1473 = vadd.f32 %v1395, %v1412
  %v1474 = vadd.f32 %v1396, %v1412
  %v1475 = vadd.f32 %v1397, %v1412
  %v1476 = vadd.f32 %v1398, %v1412
  %v1477 = vadd.f32 %v1399, %v1412
  %v1478 = vadd.f32 %v1400, %v1412
  %v1479 = vadd.f32 %v1401, %v1412
  %v1480 = vadd.f32 %v1402, %v1412
  %v1481 = vadd.f32 %v1403, %v1412
  %v1482 = vadd.f32 %v1404, %v1412
  %v1483 = vadd.f32 %v1405, %v1412
  %v1484 = vadd.f32 %v1406, %v1412
  %v1485 = vadd.f32 %v1407, %v1412
  %v1486 = vld [vmem:[%s7] sm:$0xff]
  %v1487 = vld [vmem:[%s7 + $0x8] sm:$0xff]
  %v1488 = vld [vmem:[%s7 + $0x10] sm:$0xff]
  %v1489 = vld [vmem:[%s7 + $0x18] sm:$0xff]
  %v1490 = vld [vmem:[%s7 + $0x20] sm:$0xff]
  %v1491 = vld [vmem:[%s7 + $0x28] sm:$0xff]
  %v1492 = vld [vmem:[%s7 + $0x30] sm:$0xff]
  %v1493 = vld [vmem:[%s7 + $0x38] sm:$0xff]
  %v1494 = vld [vmem:[%s7 + $0x40] sm:$0xff]
  %v1495 = vld [vmem:[%s7 + $0x48] sm:$0xff]
  %v1496 = vld [vmem:[%s7 + $0x50] sm:$0xff]
  %v1497 = vld [vmem:[%s7 + $0x58] sm:$0xff]
  %v1498 = vld [vmem:[%s7 + $0x60] sm:$0xff]
  %v1499 = vld [vmem:[%s7 + $0x68] sm:$0xff]
  %v1500 = vld [vmem:[%s7 + $0x70] sm:$0xff]
  %v1501 = vld [vmem:[%s7 + $0x78] sm:$0xff]
  %v1502 = vld [vmem:[%s7 + $0x80] sm:$0xff]
  %v1503 = vld [vmem:[%s7 + $0x88] sm:$0xff]
  %vm1521 = vcmask 1044480
  %v1522 = vrot.slane %v1468, 3
  %v1523 = vrot.slane %v1469, 3
  %v1524 = vsel %vm1521, %v1522, %v1523
  %v1525 = vrot.slane %v1470, 3
  %v1526 = vsel %vm1521, %v1523, %v1525
  %v1527 = vrot.slane %v1471, 3
  %v1528 = vsel %vm1521, %v1525, %v1527
  %v1529 = vrot.slane %v1472, 3
  %v1530 = vsel %vm1521, %v1527, %v1529
  %v1531 = vrot.slane %v1473, 3
  %v1532 = vsel %vm1521, %v1529, %v1531
  %v1533 = vrot.slane %v1474, 3
  %v1534 = vsel %vm1521, %v1531, %v1533
  %v1535 = vrot.slane %v1475, 3
  %v1536 = vsel %vm1521, %v1533, %v1535
  %v1537 = vrot.slane %v1476, 3
  %v1538 = vsel %vm1521, %v1535, %v1537
  %v1539 = vrot.slane %v1477, 3
  %v1540 = vsel %vm1521, %v1537, %v1539
  %v1541 = vrot.slane %v1478, 3
  %v1542 = vsel %vm1521, %v1539, %v1541
  %v1543 = vrot.slane %v1479, 3
  %v1544 = vsel %vm1521, %v1541, %v1543
  %v1545 = vrot.slane %v1480, 3
  %v1546 = vsel %vm1521, %v1543, %v1545
  %v1547 = vrot.slane %v1481, 3
  %v1548 = vsel %vm1521, %v1545, %v1547
  %v1549 = vrot.slane %v1482, 3
  %v1550 = vsel %vm1521, %v1547, %v1549
  %v1551 = vrot.slane %v1483, 3
  %v1552 = vsel %vm1521, %v1549, %v1551
  %v1553 = vrot.slane %v1484, 3
  %v1554 = vsel %vm1521, %v1551, %v1553
  %v1572 = vsel %vm1521, 0.0, %v1522
  %1574 = vset.pattern.permute.xlu0 0
  %1575 = vperm.xlu0 %1574, %v1486
  %v1576 = vpop.permute.xlu0 %1575
  %1579 = vset.pattern.permute.xlu0 0
  %1580 = vperm.xlu0 %1579, %v1487
  %v1581 = vpop.permute.xlu0 %1580
  %1584 = vset.pattern.permute.xlu0 0
  %1585 = vperm.xlu0 %1584, %v1488
  %v1586 = vpop.permute.xlu0 %1585
  %1589 = vset.pattern.permute.xlu0 0
  %1590 = vperm.xlu0 %1589, %v1489
  %v1591 = vpop.permute.xlu0 %1590
  %1594 = vset.pattern.permute.xlu0 0
  %1595 = vperm.xlu0 %1594, %v1490
  %v1596 = vpop.permute.xlu0 %1595
  %1599 = vset.pattern.permute.xlu0 0
  %1600 = vperm.xlu0 %1599, %v1491
  %v1601 = vpop.permute.xlu0 %1600
  %1604 = vset.pattern.permute.xlu0 0
  %1605 = vperm.xlu0 %1604, %v1492
  %v1606 = vpop.permute.xlu0 %1605
  %1609 = vset.pattern.permute.xlu0 0
  %1610 = vperm.xlu0 %1609, %v1493
  %v1611 = vpop.permute.xlu0 %1610
  %1614 = vset.pattern.permute.xlu0 0
  %1615 = vperm.xlu0 %1614, %v1494
  %v1616 = vpop.permute.xlu0 %1615
  %1619 = vset.pattern.permute.xlu0 0
  %1620 = vperm.xlu0 %1619, %v1495
  %v1621 = vpop.permute.xlu0 %1620
  %1624 = vset.pattern.permute.xlu0 0
  %1625 = vperm.xlu0 %1624, %v1496
  %v1626 = vpop.permute.xlu0 %1625
  %1629 = vset.pattern.permute.xlu0 0
  %1630 = vperm.xlu0 %1629, %v1497
  %v1631 = vpop.permute.xlu0 %1630
  %1634 = vset.pattern.permute.xlu0 0
  %1635 = vperm.xlu0 %1634, %v1498
  %v1636 = vpop.permute.xlu0 %1635
  %1639 = vset.pattern.permute.xlu0 0
  %1640 = vperm.xlu0 %1639, %v1499
  %v1641 = vpop.permute.xlu0 %1640
  %1644 = vset.pattern.permute.xlu0 0
  %1645 = vperm.xlu0 %1644, %v1500
  %v1646 = vpop.permute.xlu0 %1645
  %1649 = vset.pattern.permute.xlu0 0
  %1650 = vperm.xlu0 %1649, %v1501
  %v1651 = vpop.permute.xlu0 %1650
  %1654 = vset.pattern.permute.xlu0 0
  %1655 = vperm.xlu0 %1654, %v1502
  %v1656 = vpop.permute.xlu0 %1655
  %1659 = vset.pattern.permute.xlu0 0
  %1660 = vperm.xlu0 %1659, %v1503
  %v1661 = vpop.permute.xlu0 %1660
  %v1663 = vmul.f32 %v1576, 0.0
  %v1664 = vmul.f32 %v1572, %v1581
  %v1665 = vmul.f32 %v1524, %v1586
  %v1666 = vmul.f32 %v1526, %v1591
  %v1667 = vmul.f32 %v1528, %v1596
  %v1668 = vmul.f32 %v1530, %v1601
  %v1669 = vmul.f32 %v1532, %v1606
  %v1670 = vmul.f32 %v1534, %v1611
  %v1671 = vmul.f32 %v1536, %v1616
  %v1672 = vmul.f32 %v1538, %v1621
  %v1673 = vmul.f32 %v1540, %v1626
  %v1674 = vmul.f32 %v1542, %v1631
  %v1675 = vmul.f32 %v1544, %v1636
  %v1676 = vmul.f32 %v1546, %v1641
  %v1677 = vmul.f32 %v1548, %v1646
  %v1678 = vmul.f32 %v1550, %v1651
  %v1679 = vmul.f32 %v1552, %v1656
  %v1680 = vmul.f32 %v1554, %v1661
  %vm1698 = vcmask 1043456
  %v1699 = vrot.slane %v1450, 4
  %v1700 = vrot.slane %v1451, 4
  %v1701 = vsel %vm1698, %v1699, %v1700
  %v1702 = vrot.slane %v1452, 4
  %v1703 = vsel %vm1698, %v1700, %v1702
  %v1704 = vrot.slane %v1453, 4
  %v1705 = vsel %vm1698, %v1702, %v1704
  %v1706 = vrot.slane %v1454, 4
  %v1707 = vsel %vm1698, %v1704, %v1706
  %v1708 = vrot.slane %v1455, 4
  %v1709 = vsel %vm1698, %v1706, %v1708
  %v1710 = vrot.slane %v1456, 4
  %v1711 = vsel %vm1698, %v1708, %v1710
  %v1712 = vrot.slane %v1457, 4
  %v1713 = vsel %vm1698, %v1710, %v1712
  %v1714 = vrot.slane %v1458, 4
  %v1715 = vsel %vm1698, %v1712, %v1714
  %v1716 = vrot.slane %v1459, 4
  %v1717 = vsel %vm1698, %v1714, %v1716
  %v1718 = vrot.slane %v1460, 4
  %v1719 = vsel %vm1698, %v1716, %v1718
  %v1720 = vrot.slane %v1461, 4
  %v1721 = vsel %vm1698, %v1718, %v1720
  %v1722 = vrot.slane %v1462, 4
  %v1723 = vsel %vm1698, %v1720, %v1722
  %v1724 = vrot.slane %v1463, 4
  %v1725 = vsel %vm1698, %v1722, %v1724
  %v1726 = vrot.slane %v1464, 4
  %v1727 = vsel %vm1698, %v1724, %v1726
  %v1728 = vrot.slane %v1465, 4
  %v1729 = vsel %vm1698, %v1726, %v1728
  %v1730 = vrot.slane %v1466, 4
  %v1731 = vsel %vm1698, %v1728, %v1730
  %v1749 = vsel %vm1698, 0.0, %v1699
  %1750 = vset.pattern.permute.xlu0 1
  %1751 = vperm.xlu0 %1750, %v1486
  %v1752 = vpop.permute.xlu0 %1751
  %1754 = vset.pattern.permute.xlu0 1
  %1755 = vperm.xlu0 %1754, %v1487
  %v1756 = vpop.permute.xlu0 %1755
  %1758 = vset.pattern.permute.xlu0 1
  %1759 = vperm.xlu0 %1758, %v1488
  %v1760 = vpop.permute.xlu0 %1759
  %1762 = vset.pattern.permute.xlu0 1
  %1763 = vperm.xlu0 %1762, %v1489
  %v1764 = vpop.permute.xlu0 %1763
  %1766 = vset.pattern.permute.xlu0 1
  %1767 = vperm.xlu0 %1766, %v1490
  %v1768 = vpop.permute.xlu0 %1767
  %1770 = vset.pattern.permute.xlu0 1
  %1771 = vperm.xlu0 %1770, %v1491
  %v1772 = vpop.permute.xlu0 %1771
  %1774 = vset.pattern.permute.xlu0 1
  %1775 = vperm.xlu0 %1774, %v1492
  %v1776 = vpop.permute.xlu0 %1775
  %1778 = vset.pattern.permute.xlu0 1
  %1779 = vperm.xlu0 %1778, %v1493
  %v1780 = vpop.permute.xlu0 %1779
  %1782 = vset.pattern.permute.xlu0 1
  %1783 = vperm.xlu0 %1782, %v1494
  %v1784 = vpop.permute.xlu0 %1783
  %1786 = vset.pattern.permute.xlu0 1
  %1787 = vperm.xlu0 %1786, %v1495
  %v1788 = vpop.permute.xlu0 %1787
  %1790 = vset.pattern.permute.xlu0 1
  %1791 = vperm.xlu0 %1790, %v1496
  %v1792 = vpop.permute.xlu0 %1791
  %1794 = vset.pattern.permute.xlu0 1
  %1795 = vperm.xlu0 %1794, %v1497
  %v1796 = vpop.permute.xlu0 %1795
  %1798 = vset.pattern.permute.xlu0 1
  %1799 = vperm.xlu0 %1798, %v1498
  %v1800 = vpop.permute.xlu0 %1799
  %1802 = vset.pattern.permute.xlu0 1
  %1803 = vperm.xlu0 %1802, %v1499
  %v1804 = vpop.permute.xlu0 %1803
  %1806 = vset.pattern.permute.xlu0 1
  %1807 = vperm.xlu0 %1806, %v1500
  %v1808 = vpop.permute.xlu0 %1807
  %1810 = vset.pattern.permute.xlu0 1
  %1811 = vperm.xlu0 %1810, %v1501
  %v1812 = vpop.permute.xlu0 %1811
  %1814 = vset.pattern.permute.xlu0 1
  %1815 = vperm.xlu0 %1814, %v1502
  %v1816 = vpop.permute.xlu0 %1815
  %1818 = vset.pattern.permute.xlu0 1
  %1819 = vperm.xlu0 %1818, %v1503
  %v1820 = vpop.permute.xlu0 %1819
  %v1822 = vmul.f32 %v1752, 0.0
  %v1823 = vmul.f32 %v1749, %v1756
  %v1824 = vmul.f32 %v1701, %v1760
  %v1825 = vmul.f32 %v1703, %v1764
  %v1826 = vmul.f32 %v1705, %v1768
  %v1827 = vmul.f32 %v1707, %v1772
  %v1828 = vmul.f32 %v1709, %v1776
  %v1829 = vmul.f32 %v1711, %v1780
  %v1830 = vmul.f32 %v1713, %v1784
  %v1831 = vmul.f32 %v1715, %v1788
  %v1832 = vmul.f32 %v1717, %v1792
  %v1833 = vmul.f32 %v1719, %v1796
  %v1834 = vmul.f32 %v1721, %v1800
  %v1835 = vmul.f32 %v1723, %v1804
  %v1836 = vmul.f32 %v1725, %v1808
  %v1837 = vmul.f32 %v1727, %v1812
  %v1838 = vmul.f32 %v1729, %v1816
  %v1839 = vmul.f32 %v1731, %v1820
  %v1840 = vrot.slane %v1468, 4
  %v1841 = vrot.slane %v1469, 4
  %v1842 = vsel %vm1698, %v1840, %v1841
  %v1843 = vrot.slane %v1470, 4
  %v1844 = vsel %vm1698, %v1841, %v1843
  %v1845 = vrot.slane %v1471, 4
  %v1846 = vsel %vm1698, %v1843, %v1845
  %v1847 = vrot.slane %v1472, 4
  %v1848 = vsel %vm1698, %v1845, %v1847
  %v1849 = vrot.slane %v1473, 4
  %v1850 = vsel %vm1698, %v1847, %v1849
  %v1851 = vrot.slane %v1474, 4
  %v1852 = vsel %vm1698, %v1849, %v1851
  %v1853 = vrot.slane %v1475, 4
  %v1854 = vsel %vm1698, %v1851, %v1853
  %v1855 = vrot.slane %v1476, 4
  %v1856 = vsel %vm1698, %v1853, %v1855
  %v1857 = vrot.slane %v1477, 4
  %v1858 = vsel %vm1698, %v1855, %v1857
  %v1859 = vrot.slane %v1478, 4
  %v1860 = vsel %vm1698, %v1857, %v1859
  %v1861 = vrot.slane %v1479, 4
  %v1862 = vsel %vm1698, %v1859, %v1861
  %v1863 = vrot.slane %v1480, 4
  %v1864 = vsel %vm1698, %v1861, %v1863
  %v1865 = vrot.slane %v1481, 4
  %v1866 = vsel %vm1698, %v1863, %v1865
  %v1867 = vrot.slane %v1482, 4
  %v1868 = vsel %vm1698, %v1865, %v1867
  %v1869 = vrot.slane %v1483, 4
  %v1870 = vsel %vm1698, %v1867, %v1869
  %v1871 = vrot.slane %v1484, 4
  %v1872 = vsel %vm1698, %v1869, %v1871
  %v1890 = vsel %vm1698, 0.0, %v1840
  %1891 = vset.pattern.permute.xlu0 2
  %1892 = vperm.xlu0 %1891, %v1486
  %v1893 = vpop.permute.xlu0 %1892
  %1895 = vset.pattern.permute.xlu0 2
  %1896 = vperm.xlu0 %1895, %v1487
  %v1897 = vpop.permute.xlu0 %1896
  %1899 = vset.pattern.permute.xlu0 2
  %1900 = vperm.xlu0 %1899, %v1488
  %v1901 = vpop.permute.xlu0 %1900
  %1903 = vset.pattern.permute.xlu0 2
  %1904 = vperm.xlu0 %1903, %v1489
  %v1905 = vpop.permute.xlu0 %1904
  %1907 = vset.pattern.permute.xlu0 2
  %1908 = vperm.xlu0 %1907, %v1490
  %v1909 = vpop.permute.xlu0 %1908
  %1911 = vset.pattern.permute.xlu0 2
  %1912 = vperm.xlu0 %1911, %v1491
  %v1913 = vpop.permute.xlu0 %1912
  %1915 = vset.pattern.permute.xlu0 2
  %1916 = vperm.xlu0 %1915, %v1492
  %v1917 = vpop.permute.xlu0 %1916
  %1919 = vset.pattern.permute.xlu0 2
  %1920 = vperm.xlu0 %1919, %v1493
  %v1921 = vpop.permute.xlu0 %1920
  %1923 = vset.pattern.permute.xlu0 2
  %1924 = vperm.xlu0 %1923, %v1494
  %v1925 = vpop.permute.xlu0 %1924
  %1927 = vset.pattern.permute.xlu0 2
  %1928 = vperm.xlu0 %1927, %v1495
  %v1929 = vpop.permute.xlu0 %1928
  %1931 = vset.pattern.permute.xlu0 2
  %1932 = vperm.xlu0 %1931, %v1496
  %v1933 = vpop.permute.xlu0 %1932
  %1935 = vset.pattern.permute.xlu0 2
  %1936 = vperm.xlu0 %1935, %v1497
  %v1937 = vpop.permute.xlu0 %1936
  %1939 = vset.pattern.permute.xlu0 2
  %1940 = vperm.xlu0 %1939, %v1498
  %v1941 = vpop.permute.xlu0 %1940
  %1943 = vset.pattern.permute.xlu0 2
  %1944 = vperm.xlu0 %1943, %v1499
  %v1945 = vpop.permute.xlu0 %1944
  %1947 = vset.pattern.permute.xlu0 2
  %1948 = vperm.xlu0 %1947, %v1500
  %v1949 = vpop.permute.xlu0 %1948
  %1951 = vset.pattern.permute.xlu0 2
  %1952 = vperm.xlu0 %1951, %v1501
  %v1953 = vpop.permute.xlu0 %1952
  %1955 = vset.pattern.permute.xlu0 2
  %1956 = vperm.xlu0 %1955, %v1502
  %v1957 = vpop.permute.xlu0 %1956
  %1959 = vset.pattern.permute.xlu0 2
  %1960 = vperm.xlu0 %1959, %v1503
  %v1961 = vpop.permute.xlu0 %1960
  %v1963 = vmul.f32 %v1893, 0.0
  %v1964 = vmul.f32 %v1890, %v1897
  %v1965 = vmul.f32 %v1842, %v1901
  %v1966 = vmul.f32 %v1844, %v1905
  %v1967 = vmul.f32 %v1846, %v1909
  %v1968 = vmul.f32 %v1848, %v1913
  %v1969 = vmul.f32 %v1850, %v1917
  %v1970 = vmul.f32 %v1852, %v1921
  %v1971 = vmul.f32 %v1854, %v1925
  %v1972 = vmul.f32 %v1856, %v1929
  %v1973 = vmul.f32 %v1858, %v1933
  %v1974 = vmul.f32 %v1860, %v1937
  %v1975 = vmul.f32 %v1862, %v1941
  %v1976 = vmul.f32 %v1864, %v1945
  %v1977 = vmul.f32 %v1866, %v1949
  %v1978 = vmul.f32 %v1868, %v1953
  %v1979 = vmul.f32 %v1870, %v1957
  %v1980 = vmul.f32 %v1872, %v1961
  %vm1981 = vcmask 1042432
  %v1982 = vrot.slane %v1450, 5
  %v1983 = vrot.slane %v1451, 5
  %v1984 = vsel %vm1981, %v1982, %v1983
  %v1985 = vrot.slane %v1452, 5
  %v1986 = vsel %vm1981, %v1983, %v1985
  %v1987 = vrot.slane %v1453, 5
  %v1988 = vsel %vm1981, %v1985, %v1987
  %v1989 = vrot.slane %v1454, 5
  %v1990 = vsel %vm1981, %v1987, %v1989
  %v1991 = vrot.slane %v1455, 5
  %v1992 = vsel %vm1981, %v1989, %v1991
  %v1993 = vrot.slane %v1456, 5
  %v1994 = vsel %vm1981, %v1991, %v1993
  %v1995 = vrot.slane %v1457, 5
  %v1996 = vsel %vm1981, %v1993, %v1995
  %v1997 = vrot.slane %v1458, 5
  %v1998 = vsel %vm1981, %v1995, %v1997
  %v1999 = vrot.slane %v1459, 5
  %v2000 = vsel %vm1981, %v1997, %v1999
  %v2001 = vrot.slane %v1460, 5
  %v2002 = vsel %vm1981, %v1999, %v2001
  %v2003 = vrot.slane %v1461, 5
  %v2004 = vsel %vm1981, %v2001, %v2003
  %v2005 = vrot.slane %v1462, 5
  %v2006 = vsel %vm1981, %v2003, %v2005
  %v2007 = vrot.slane %v1463, 5
  %v2008 = vsel %vm1981, %v2005, %v2007
  %v2009 = vrot.slane %v1464, 5
  %v2010 = vsel %vm1981, %v2007, %v2009
  %v2011 = vrot.slane %v1465, 5
  %v2012 = vsel %vm1981, %v2009, %v2011
  %v2013 = vrot.slane %v1466, 5
  %v2014 = vsel %vm1981, %v2011, %v2013
  %v2032 = vsel %vm1981, 0.0, %v1982
  %2033 = vset.pattern.permute.xlu0 3
  %2034 = vperm.xlu0 %2033, %v1486
  %v2035 = vpop.permute.xlu0 %2034
  %2037 = vset.pattern.permute.xlu0 3
  %2038 = vperm.xlu0 %2037, %v1487
  %v2039 = vpop.permute.xlu0 %2038
  %2041 = vset.pattern.permute.xlu0 3
  %2042 = vperm.xlu0 %2041, %v1488
  %v2043 = vpop.permute.xlu0 %2042
  %2045 = vset.pattern.permute.xlu0 3
  %2046 = vperm.xlu0 %2045, %v1489
  %v2047 = vpop.permute.xlu0 %2046
  %2049 = vset.pattern.permute.xlu0 3
  %2050 = vperm.xlu0 %2049, %v1490
  %v2051 = vpop.permute.xlu0 %2050
  %2053 = vset.pattern.permute.xlu0 3
  %2054 = vperm.xlu0 %2053, %v1491
  %v2055 = vpop.permute.xlu0 %2054
  %2057 = vset.pattern.permute.xlu0 3
  %2058 = vperm.xlu0 %2057, %v1492
  %v2059 = vpop.permute.xlu0 %2058
  %2061 = vset.pattern.permute.xlu0 3
  %2062 = vperm.xlu0 %2061, %v1493
  %v2063 = vpop.permute.xlu0 %2062
  %2065 = vset.pattern.permute.xlu0 3
  %2066 = vperm.xlu0 %2065, %v1494
  %v2067 = vpop.permute.xlu0 %2066
  %2069 = vset.pattern.permute.xlu0 3
  %2070 = vperm.xlu0 %2069, %v1495
  %v2071 = vpop.permute.xlu0 %2070
  %2073 = vset.pattern.permute.xlu0 3
  %2074 = vperm.xlu0 %2073, %v1496
  %v2075 = vpop.permute.xlu0 %2074
  %2077 = vset.pattern.permute.xlu0 3
  %2078 = vperm.xlu0 %2077, %v1497
  %v2079 = vpop.permute.xlu0 %2078
  %2081 = vset.pattern.permute.xlu0 3
  %2082 = vperm.xlu0 %2081, %v1498
  %v2083 = vpop.permute.xlu0 %2082
  %2085 = vset.pattern.permute.xlu0 3
  %2086 = vperm.xlu0 %2085, %v1499
  %v2087 = vpop.permute.xlu0 %2086
  %2089 = vset.pattern.permute.xlu0 3
  %2090 = vperm.xlu0 %2089, %v1500
  %v2091 = vpop.permute.xlu0 %2090
  %2093 = vset.pattern.permute.xlu0 3
  %2094 = vperm.xlu0 %2093, %v1501
  %v2095 = vpop.permute.xlu0 %2094
  %2097 = vset.pattern.permute.xlu0 3
  %2098 = vperm.xlu0 %2097, %v1502
  %v2099 = vpop.permute.xlu0 %2098
  %2101 = vset.pattern.permute.xlu0 3
  %2102 = vperm.xlu0 %2101, %v1503
  %v2103 = vpop.permute.xlu0 %2102
  %v2105 = vmul.f32 %v2035, 0.0
  %v2106 = vmul.f32 %v2032, %v2039
  %v2107 = vmul.f32 %v1984, %v2043
  %v2108 = vmul.f32 %v1986, %v2047
  %v2109 = vmul.f32 %v1988, %v2051
  %v2110 = vmul.f32 %v1990, %v2055
  %v2111 = vmul.f32 %v1992, %v2059
  %v2112 = vmul.f32 %v1994, %v2063
  %v2113 = vmul.f32 %v1996, %v2067
  %v2114 = vmul.f32 %v1998, %v2071
  %v2115 = vmul.f32 %v2000, %v2075
  %v2116 = vmul.f32 %v2002, %v2079
  %v2117 = vmul.f32 %v2004, %v2083
  %v2118 = vmul.f32 %v2006, %v2087
  %v2119 = vmul.f32 %v2008, %v2091
  %v2120 = vmul.f32 %v2010, %v2095
  %v2121 = vmul.f32 %v2012, %v2099
  %v2122 = vmul.f32 %v2014, %v2103
  %vm2141 = vcmask 1040384
  %v2142 = vrot.slane %v1432, 7
  %v2143 = vrot.slane %v1433, 7
  %v2144 = vsel %vm2141, %v2142, %v2143
  %v2145 = vrot.slane %v1434, 7
  %v2146 = vsel %vm2141, %v2143, %v2145
  %v2147 = vrot.slane %v1435, 7
  %v2148 = vsel %vm2141, %v2145, %v2147
  %v2149 = vrot.slane %v1436, 7
  %v2150 = vsel %vm2141, %v2147, %v2149
  %v2151 = vrot.slane %v1437, 7
  %v2152 = vsel %vm2141, %v2149, %v2151
  %v2153 = vrot.slane %v1438, 7
  %v2154 = vsel %vm2141, %v2151, %v2153
  %v2155 = vrot.slane %v1439, 7
  %v2156 = vsel %vm2141, %v2153, %v2155
  %v2157 = vrot.slane %v1440, 7
  %v2158 = vsel %vm2141, %v2155, %v2157
  %v2159 = vrot.slane %v1441, 7
  %v2160 = vsel %vm2141, %v2157, %v2159
  %v2161 = vrot.slane %v1442, 7
  %v2162 = vsel %vm2141, %v2159, %v2161
  %v2163 = vrot.slane %v1443, 7
  %v2164 = vsel %vm2141, %v2161, %v2163
  %v2165 = vrot.slane %v1444, 7
  %v2166 = vsel %vm2141, %v2163, %v2165
  %v2167 = vrot.slane %v1445, 7
  %v2168 = vsel %vm2141, %v2165, %v2167
  %v2169 = vrot.slane %v1446, 7
  %v2170 = vsel %vm2141, %v2167, %v2169
  %v2171 = vrot.slane %v1447, 7
  %v2172 = vsel %vm2141, %v2169, %v2171
  %v2173 = vrot.slane %v1448, 7
  %v2174 = vsel %vm2141, %v2171, %v2173
  %v2175 = vrot.slane %v1449, 7
  %v2176 = vsel %vm2141, %v2173, %v2175
  %v2195 = vsel %vm2141, 0.0, %v2142
  %2196 = vset.pattern.permute.xlu0 4
  %2197 = vperm.xlu0 %2196, %v1486
  %v2198 = vpop.permute.xlu0 %2197
  %2200 = vset.pattern.permute.xlu0 4
  %2201 = vperm.xlu0 %2200, %v1487
  %v2202 = vpop.permute.xlu0 %2201
  %2204 = vset.pattern.permute.xlu0 4
  %2205 = vperm.xlu0 %2204, %v1488
  %v2206 = vpop.permute.xlu0 %2205
  %2208 = vset.pattern.permute.xlu0 4
  %2209 = vperm.xlu0 %2208, %v1489
  %v2210 = vpop.permute.xlu0 %2209
  %2212 = vset.pattern.permute.xlu0 4
  %2213 = vperm.xlu0 %2212, %v1490
  %v2214 = vpop.permute.xlu0 %2213
  %2216 = vset.pattern.permute.xlu0 4
  %2217 = vperm.xlu0 %2216, %v1491
  %v2218 = vpop.permute.xlu0 %2217
  %2220 = vset.pattern.permute.xlu0 4
  %2221 = vperm.xlu0 %2220, %v1492
  %v2222 = vpop.permute.xlu0 %2221
  %2224 = vset.pattern.permute.xlu0 4
  %2225 = vperm.xlu0 %2224, %v1493
  %v2226 = vpop.permute.xlu0 %2225
  %2228 = vset.pattern.permute.xlu0 4
  %2229 = vperm.xlu0 %2228, %v1494
  %v2230 = vpop.permute.xlu0 %2229
  %2232 = vset.pattern.permute.xlu0 4
  %2233 = vperm.xlu0 %2232, %v1495
  %v2234 = vpop.permute.xlu0 %2233
  %2236 = vset.pattern.permute.xlu0 4
  %2237 = vperm.xlu0 %2236, %v1496
  %v2238 = vpop.permute.xlu0 %2237
  %2240 = vset.pattern.permute.xlu0 4
  %2241 = vperm.xlu0 %2240, %v1497
  %v2242 = vpop.permute.xlu0 %2241
  %2244 = vset.pattern.permute.xlu0 4
  %2245 = vperm.xlu0 %2244, %v1498
  %v2246 = vpop.permute.xlu0 %2245
  %2248 = vset.pattern.permute.xlu0 4
  %2249 = vperm.xlu0 %2248, %v1499
  %v2250 = vpop.permute.xlu0 %2249
  %2252 = vset.pattern.permute.xlu0 4
  %2253 = vperm.xlu0 %2252, %v1500
  %v2254 = vpop.permute.xlu0 %2253
  %2256 = vset.pattern.permute.xlu0 4
  %2257 = vperm.xlu0 %2256, %v1501
  %v2258 = vpop.permute.xlu0 %2257
  %2260 = vset.pattern.permute.xlu0 4
  %2261 = vperm.xlu0 %2260, %v1502
  %v2262 = vpop.permute.xlu0 %2261
  %2264 = vset.pattern.permute.xlu0 4
  %2265 = vperm.xlu0 %2264, %v1503
  %v2266 = vpop.permute.xlu0 %2265
  %v2268 = vmul.f32 %v2195, %v2198
  %v2269 = vmul.f32 %v2144, %v2202
  %v2270 = vmul.f32 %v2146, %v2206
  %v2271 = vmul.f32 %v2148, %v2210
  %v2272 = vmul.f32 %v2150, %v2214
  %v2273 = vmul.f32 %v2152, %v2218
  %v2274 = vmul.f32 %v2154, %v2222
  %v2275 = vmul.f32 %v2156, %v2226
  %v2276 = vmul.f32 %v2158, %v2230
  %v2277 = vmul.f32 %v2160, %v2234
  %v2278 = vmul.f32 %v2162, %v2238
  %v2279 = vmul.f32 %v2164, %v2242
  %v2280 = vmul.f32 %v2166, %v2246
  %v2281 = vmul.f32 %v2168, %v2250
  %v2282 = vmul.f32 %v2170, %v2254
  %v2283 = vmul.f32 %v2172, %v2258
  %v2284 = vmul.f32 %v2174, %v2262
  %v2285 = vmul.f32 %v2176, %v2266
  %vm2304 = vcmask 1046528
  %v2305 = vrot.slane %v1414, 1
  %v2306 = vrot.slane %v1415, 1
  %v2307 = vsel %vm2304, %v2305, %v2306
  %v2308 = vrot.slane %v1416, 1
  %v2309 = vsel %vm2304, %v2306, %v2308
  %v2310 = vrot.slane %v1417, 1
  %v2311 = vsel %vm2304, %v2308, %v2310
  %v2312 = vrot.slane %v1418, 1
  %v2313 = vsel %vm2304, %v2310, %v2312
  %v2314 = vrot.slane %v1419, 1
  %v2315 = vsel %vm2304, %v2312, %v2314
  %v2316 = vrot.slane %v1420, 1
  %v2317 = vsel %vm2304, %v2314, %v2316
  %v2318 = vrot.slane %v1421, 1
  %v2319 = vsel %vm2304, %v2316, %v2318
  %v2320 = vrot.slane %v1422, 1
  %v2321 = vsel %vm2304, %v2318, %v2320
  %v2322 = vrot.slane %v1423, 1
  %v2323 = vsel %vm2304, %v2320, %v2322
  %v2324 = vrot.slane %v1424, 1
  %v2325 = vsel %vm2304, %v2322, %v2324
  %v2326 = vrot.slane %v1425, 1
  %v2327 = vsel %vm2304, %v2324, %v2326
  %v2328 = vrot.slane %v1426, 1
  %v2329 = vsel %vm2304, %v2326, %v2328
  %v2330 = vrot.slane %v1427, 1
  %v2331 = vsel %vm2304, %v2328, %v2330
  %v2332 = vrot.slane %v1428, 1
  %v2333 = vsel %vm2304, %v2330, %v2332
  %v2334 = vrot.slane %v1429, 1
  %v2335 = vsel %vm2304, %v2332, %v2334
  %v2336 = vrot.slane %v1430, 1
  %v2337 = vsel %vm2304, %v2334, %v2336
  %v2338 = vrot.slane %v1431, 1
  %v2339 = vsel %vm2304, %v2336, %v2338
  %v2358 = vsel %vm2304, %v2338, 0.0
  %2359 = vset.pattern.permute.xlu0 7
  %2360 = vperm.xlu0 %2359, %v1486
  %v2361 = vpop.permute.xlu0 %2360
  %2363 = vset.pattern.permute.xlu0 7
  %2364 = vperm.xlu0 %2363, %v1487
  %v2365 = vpop.permute.xlu0 %2364
  %2367 = vset.pattern.permute.xlu0 7
  %2368 = vperm.xlu0 %2367, %v1488
  %v2369 = vpop.permute.xlu0 %2368
  %2371 = vset.pattern.permute.xlu0 7
  %2372 = vperm.xlu0 %2371, %v1489
  %v2373 = vpop.permute.xlu0 %2372
  %2375 = vset.pattern.permute.xlu0 7
  %2376 = vperm.xlu0 %2375, %v1490
  %v2377 = vpop.permute.xlu0 %2376
  %2379 = vset.pattern.permute.xlu0 7
  %2380 = vperm.xlu0 %2379, %v1491
  %v2381 = vpop.permute.xlu0 %2380
  %2383 = vset.pattern.permute.xlu0 7
  %2384 = vperm.xlu0 %2383, %v1492
  %v2385 = vpop.permute.xlu0 %2384
  %2387 = vset.pattern.permute.xlu0 7
  %2388 = vperm.xlu0 %2387, %v1493
  %v2389 = vpop.permute.xlu0 %2388
  %2391 = vset.pattern.permute.xlu0 7
  %2392 = vperm.xlu0 %2391, %v1494
  %v2393 = vpop.permute.xlu0 %2392
  %2395 = vset.pattern.permute.xlu0 7
  %2396 = vperm.xlu0 %2395, %v1495
  %v2397 = vpop.permute.xlu0 %2396
  %2399 = vset.pattern.permute.xlu0 7
  %2400 = vperm.xlu0 %2399, %v1496
  %v2401 = vpop.permute.xlu0 %2400
  %2403 = vset.pattern.permute.xlu0 7
  %2404 = vperm.xlu0 %2403, %v1497
  %v2405 = vpop.permute.xlu0 %2404
  %2407 = vset.pattern.permute.xlu0 7
  %2408 = vperm.xlu0 %2407, %v1498
  %v2409 = vpop.permute.xlu0 %2408
  %2411 = vset.pattern.permute.xlu0 7
  %2412 = vperm.xlu0 %2411, %v1499
  %v2413 = vpop.permute.xlu0 %2412
  %2415 = vset.pattern.permute.xlu0 7
  %2416 = vperm.xlu0 %2415, %v1500
  %v2417 = vpop.permute.xlu0 %2416
  %2419 = vset.pattern.permute.xlu0 7
  %2420 = vperm.xlu0 %2419, %v1501
  %v2421 = vpop.permute.xlu0 %2420
  %2423 = vset.pattern.permute.xlu0 7
  %2424 = vperm.xlu0 %2423, %v1502
  %v2425 = vpop.permute.xlu0 %2424
  %2427 = vset.pattern.permute.xlu0 7
  %2428 = vperm.xlu0 %2427, %v1503
  %v2429 = vpop.permute.xlu0 %2428
  %v2431 = vmul.f32 %v2307, %v2361
  %v2432 = vmul.f32 %v2309, %v2365
  %v2433 = vmul.f32 %v2311, %v2369
  %v2434 = vmul.f32 %v2313, %v2373
  %v2435 = vmul.f32 %v2315, %v2377
  %v2436 = vmul.f32 %v2317, %v2381
  %v2437 = vmul.f32 %v2319, %v2385
  %v2438 = vmul.f32 %v2321, %v2389
  %v2439 = vmul.f32 %v2323, %v2393
  %v2440 = vmul.f32 %v2325, %v2397
  %v2441 = vmul.f32 %v2327, %v2401
  %v2442 = vmul.f32 %v2329, %v2405
  %v2443 = vmul.f32 %v2331, %v2409
  %v2444 = vmul.f32 %v2333, %v2413
  %v2445 = vmul.f32 %v2335, %v2417
  %v2446 = vmul.f32 %v2337, %v2421
  %v2447 = vmul.f32 %v2339, %v2425
  %v2448 = vmul.f32 %v2358, %v2429
  %v2450 = vrot.slane %v1468, 7
  %v2451 = vrot.slane %v1469, 7
  %v2452 = vsel %vm2141, %v2450, %v2451
  %v2453 = vrot.slane %v1470, 7
  %v2454 = vsel %vm2141, %v2451, %v2453
  %v2455 = vrot.slane %v1471, 7
  %v2456 = vsel %vm2141, %v2453, %v2455
  %v2457 = vrot.slane %v1472, 7
  %v2458 = vsel %vm2141, %v2455, %v2457
  %v2459 = vrot.slane %v1473, 7
  %v2460 = vsel %vm2141, %v2457, %v2459
  %v2461 = vrot.slane %v1474, 7
  %v2462 = vsel %vm2141, %v2459, %v2461
  %v2463 = vrot.slane %v1475, 7
  %v2464 = vsel %vm2141, %v2461, %v2463
  %v2465 = vrot.slane %v1476, 7
  %v2466 = vsel %vm2141, %v2463, %v2465
  %v2467 = vrot.slane %v1477, 7
  %v2468 = vsel %vm2141, %v2465, %v2467
  %v2469 = vrot.slane %v1478, 7
  %v2470 = vsel %vm2141, %v2467, %v2469
  %v2471 = vrot.slane %v1479, 7
  %v2472 = vsel %vm2141, %v2469, %v2471
  %v2473 = vrot.slane %v1480, 7
  %v2474 = vsel %vm2141, %v2471, %v2473
  %v2475 = vrot.slane %v1481, 7
  %v2476 = vsel %vm2141, %v2473, %v2475
  %v2477 = vrot.slane %v1482, 7
  %v2478 = vsel %vm2141, %v2475, %v2477
  %v2479 = vrot.slane %v1483, 7
  %v2480 = vsel %vm2141, %v2477, %v2479
  %v2481 = vrot.slane %v1484, 7
  %v2482 = vsel %vm2141, %v2479, %v2481
  %v2483 = vrot.slane %v1485, 7
  %v2484 = vsel %vm2141, %v2481, %v2483
  %v2503 = vsel %vm2141, 0.0, %v2450
  %2504 = vset.pattern.permute.xlu0 8
  %2505 = vperm.xlu0 %2504, %v1486
  %v2506 = vpop.permute.xlu0 %2505
  %2508 = vset.pattern.permute.xlu0 8
  %2509 = vperm.xlu0 %2508, %v1487
  %v2510 = vpop.permute.xlu0 %2509
  %2512 = vset.pattern.permute.xlu0 8
  %2513 = vperm.xlu0 %2512, %v1488
  %v2514 = vpop.permute.xlu0 %2513
  %2516 = vset.pattern.permute.xlu0 8
  %2517 = vperm.xlu0 %2516, %v1489
  %v2518 = vpop.permute.xlu0 %2517
  %2520 = vset.pattern.permute.xlu0 8
  %2521 = vperm.xlu0 %2520, %v1490
  %v2522 = vpop.permute.xlu0 %2521
  %2524 = vset.pattern.permute.xlu0 8
  %2525 = vperm.xlu0 %2524, %v1491
  %v2526 = vpop.permute.xlu0 %2525
  %2528 = vset.pattern.permute.xlu0 8
  %2529 = vperm.xlu0 %2528, %v1492
  %v2530 = vpop.permute.xlu0 %2529
  %2532 = vset.pattern.permute.xlu0 8
  %2533 = vperm.xlu0 %2532, %v1493
  %v2534 = vpop.permute.xlu0 %2533
  %2536 = vset.pattern.permute.xlu0 8
  %2537 = vperm.xlu0 %2536, %v1494
  %v2538 = vpop.permute.xlu0 %2537
  %2540 = vset.pattern.permute.xlu0 8
  %2541 = vperm.xlu0 %2540, %v1495
  %v2542 = vpop.permute.xlu0 %2541
  %2544 = vset.pattern.permute.xlu0 8
  %2545 = vperm.xlu0 %2544, %v1496
  %v2546 = vpop.permute.xlu0 %2545
  %2548 = vset.pattern.permute.xlu0 8
  %2549 = vperm.xlu0 %2548, %v1497
  %v2550 = vpop.permute.xlu0 %2549
  %2552 = vset.pattern.permute.xlu0 8
  %2553 = vperm.xlu0 %2552, %v1498
  %v2554 = vpop.permute.xlu0 %2553
  %2556 = vset.pattern.permute.xlu0 8
  %2557 = vperm.xlu0 %2556, %v1499
  %v2558 = vpop.permute.xlu0 %2557
  %2560 = vset.pattern.permute.xlu0 8
  %2561 = vperm.xlu0 %2560, %v1500
  %v2562 = vpop.permute.xlu0 %2561
  %2564 = vset.pattern.permute.xlu0 8
  %2565 = vperm.xlu0 %2564, %v1501
  %v2566 = vpop.permute.xlu0 %2565
  %2568 = vset.pattern.permute.xlu0 8
  %2569 = vperm.xlu0 %2568, %v1502
  %v2570 = vpop.permute.xlu0 %2569
  %2572 = vset.pattern.permute.xlu0 8
  %2573 = vperm.xlu0 %2572, %v1503
  %v2574 = vpop.permute.xlu0 %2573
  %v2576 = vmul.f32 %v2503, %v2506
  %v2577 = vmul.f32 %v2452, %v2510
  %v2578 = vmul.f32 %v2454, %v2514
  %v2579 = vmul.f32 %v2456, %v2518
  %v2580 = vmul.f32 %v2458, %v2522
  %v2581 = vmul.f32 %v2460, %v2526
  %v2582 = vmul.f32 %v2462, %v2530
  %v2583 = vmul.f32 %v2464, %v2534
  %v2584 = vmul.f32 %v2466, %v2538
  %v2585 = vmul.f32 %v2468, %v2542
  %v2586 = vmul.f32 %v2470, %v2546
  %v2587 = vmul.f32 %v2472, %v2550
  %v2588 = vmul.f32 %v2474, %v2554
  %v2589 = vmul.f32 %v2476, %v2558
  %v2590 = vmul.f32 %v2478, %v2562
  %v2591 = vmul.f32 %v2480, %v2566
  %v2592 = vmul.f32 %v2482, %v2570
  %v2593 = vmul.f32 %v2484, %v2574
  %v2595 = vrot.slane %v1450, 1
  %v2596 = vrot.slane %v1451, 1
  %v2597 = vsel %vm2304, %v2595, %v2596
  %v2598 = vrot.slane %v1452, 1
  %v2599 = vsel %vm2304, %v2596, %v2598
  %v2600 = vrot.slane %v1453, 1
  %v2601 = vsel %vm2304, %v2598, %v2600
  %v2602 = vrot.slane %v1454, 1
  %v2603 = vsel %vm2304, %v2600, %v2602
  %v2604 = vrot.slane %v1455, 1
  %v2605 = vsel %vm2304, %v2602, %v2604
  %v2606 = vrot.slane %v1456, 1
  %v2607 = vsel %vm2304, %v2604, %v2606
  %v2608 = vrot.slane %v1457, 1
  %v2609 = vsel %vm2304, %v2606, %v2608
  %v2610 = vrot.slane %v1458, 1
  %v2611 = vsel %vm2304, %v2608, %v2610
  %v2612 = vrot.slane %v1459, 1
  %v2613 = vsel %vm2304, %v2610, %v2612
  %v2614 = vrot.slane %v1460, 1
  %v2615 = vsel %vm2304, %v2612, %v2614
  %v2616 = vrot.slane %v1461, 1
  %v2617 = vsel %vm2304, %v2614, %v2616
  %v2618 = vrot.slane %v1462, 1
  %v2619 = vsel %vm2304, %v2616, %v2618
  %v2620 = vrot.slane %v1463, 1
  %v2621 = vsel %vm2304, %v2618, %v2620
  %v2622 = vrot.slane %v1464, 1
  %v2623 = vsel %vm2304, %v2620, %v2622
  %v2624 = vrot.slane %v1465, 1
  %v2625 = vsel %vm2304, %v2622, %v2624
  %v2626 = vrot.slane %v1466, 1
  %v2627 = vsel %vm2304, %v2624, %v2626
  %v2628 = vrot.slane %v1467, 1
  %v2629 = vsel %vm2304, %v2626, %v2628
  %v2648 = vsel %vm2304, %v2628, 0.0
  %2649 = vset.pattern.permute.xlu0 11
  %2650 = vperm.xlu0 %2649, %v1486
  %v2651 = vpop.permute.xlu0 %2650
  %2653 = vset.pattern.permute.xlu0 11
  %2654 = vperm.xlu0 %2653, %v1487
  %v2655 = vpop.permute.xlu0 %2654
  %2657 = vset.pattern.permute.xlu0 11
  %2658 = vperm.xlu0 %2657, %v1488
  %v2659 = vpop.permute.xlu0 %2658
  %2661 = vset.pattern.permute.xlu0 11
  %2662 = vperm.xlu0 %2661, %v1489
  %v2663 = vpop.permute.xlu0 %2662
  %2665 = vset.pattern.permute.xlu0 11
  %2666 = vperm.xlu0 %2665, %v1490
  %v2667 = vpop.permute.xlu0 %2666
  %2669 = vset.pattern.permute.xlu0 11
  %2670 = vperm.xlu0 %2669, %v1491
  %v2671 = vpop.permute.xlu0 %2670
  %2673 = vset.pattern.permute.xlu0 11
  %2674 = vperm.xlu0 %2673, %v1492
  %v2675 = vpop.permute.xlu0 %2674
  %2677 = vset.pattern.permute.xlu0 11
  %2678 = vperm.xlu0 %2677, %v1493
  %v2679 = vpop.permute.xlu0 %2678
  %2681 = vset.pattern.permute.xlu0 11
  %2682 = vperm.xlu0 %2681, %v1494
  %v2683 = vpop.permute.xlu0 %2682
  %2685 = vset.pattern.permute.xlu0 11
  %2686 = vperm.xlu0 %2685, %v1495
  %v2687 = vpop.permute.xlu0 %2686
  %2689 = vset.pattern.permute.xlu0 11
  %2690 = vperm.xlu0 %2689, %v1496
  %v2691 = vpop.permute.xlu0 %2690
  %2693 = vset.pattern.permute.xlu0 11
  %2694 = vperm.xlu0 %2693, %v1497
  %v2695 = vpop.permute.xlu0 %2694
  %2697 = vset.pattern.permute.xlu0 11
  %2698 = vperm.xlu0 %2697, %v1498
  %v2699 = vpop.permute.xlu0 %2698
  %2701 = vset.pattern.permute.xlu0 11
  %2702 = vperm.xlu0 %2701, %v1499
  %v2703 = vpop.permute.xlu0 %2702
  %2705 = vset.pattern.permute.xlu0 11
  %2706 = vperm.xlu0 %2705, %v1500
  %v2707 = vpop.permute.xlu0 %2706
  %2709 = vset.pattern.permute.xlu0 11
  %2710 = vperm.xlu0 %2709, %v1501
  %v2711 = vpop.permute.xlu0 %2710
  %2713 = vset.pattern.permute.xlu0 11
  %2714 = vperm.xlu0 %2713, %v1502
  %v2715 = vpop.permute.xlu0 %2714
  %2717 = vset.pattern.permute.xlu0 11
  %2718 = vperm.xlu0 %2717, %v1503
  %v2719 = vpop.permute.xlu0 %2718
  %v2721 = vmul.f32 %v2597, %v2651
  %v2722 = vmul.f32 %v2599, %v2655
  %v2723 = vmul.f32 %v2601, %v2659
  %v2724 = vmul.f32 %v2603, %v2663
  %v2725 = vmul.f32 %v2605, %v2667
  %v2726 = vmul.f32 %v2607, %v2671
  %v2727 = vmul.f32 %v2609, %v2675
  %v2728 = vmul.f32 %v2611, %v2679
  %v2729 = vmul.f32 %v2613, %v2683
  %v2730 = vmul.f32 %v2615, %v2687
  %v2731 = vmul.f32 %v2617, %v2691
  %v2732 = vmul.f32 %v2619, %v2695
  %v2733 = vmul.f32 %v2621, %v2699
  %v2734 = vmul.f32 %v2623, %v2703
  %v2735 = vmul.f32 %v2625, %v2707
  %v2736 = vmul.f32 %v2627, %v2711
  %v2737 = vmul.f32 %v2629, %v2715
  %v2738 = vmul.f32 %v2648, %v2719
  %v2739 = vrot.slane %v1433, 3
  %v2740 = vrot.slane %v1434, 3
  %v2741 = vsel %vm1521, %v2739, %v2740
  %v2742 = vrot.slane %v1435, 3
  %v2743 = vsel %vm1521, %v2740, %v2742
  %v2744 = vrot.slane %v1436, 3
  %v2745 = vsel %vm1521, %v2742, %v2744
  %v2746 = vrot.slane %v1437, 3
  %v2747 = vsel %vm1521, %v2744, %v2746
  %v2748 = vrot.slane %v1438, 3
  %v2749 = vsel %vm1521, %v2746, %v2748
  %v2750 = vrot.slane %v1439, 3
  %v2751 = vsel %vm1521, %v2748, %v2750
  %v2752 = vrot.slane %v1440, 3
  %v2753 = vsel %vm1521, %v2750, %v2752
  %v2754 = vrot.slane %v1441, 3
  %v2755 = vsel %vm1521, %v2752, %v2754
  %v2756 = vrot.slane %v1442, 3
  %v2757 = vsel %vm1521, %v2754, %v2756
  %v2758 = vrot.slane %v1443, 3
  %v2759 = vsel %vm1521, %v2756, %v2758
  %v2760 = vrot.slane %v1444, 3
  %v2761 = vsel %vm1521, %v2758, %v2760
  %v2762 = vrot.slane %v1445, 3
  %v2763 = vsel %vm1521, %v2760, %v2762
  %v2764 = vrot.slane %v1446, 3
  %v2765 = vsel %vm1521, %v2762, %v2764
  %v2766 = vrot.slane %v1447, 3
  %v2767 = vsel %vm1521, %v2764, %v2766
  %v2768 = vrot.slane %v1448, 3
  %v2769 = vsel %vm1521, %v2766, %v2768
  %v2770 = vrot.slane %v1449, 3
  %v2771 = vsel %vm1521, %v2768, %v2770
  %v2789 = vsel %vm1521, %v2770, 0.0
  %2790 = vset.pattern.permute.xlu0 12
  %2791 = vperm.xlu0 %2790, %v1486
  %v2792 = vpop.permute.xlu0 %2791
  %2794 = vset.pattern.permute.xlu0 12
  %2795 = vperm.xlu0 %2794, %v1487
  %v2796 = vpop.permute.xlu0 %2795
  %2798 = vset.pattern.permute.xlu0 12
  %2799 = vperm.xlu0 %2798, %v1488
  %v2800 = vpop.permute.xlu0 %2799
  %2802 = vset.pattern.permute.xlu0 12
  %2803 = vperm.xlu0 %2802, %v1489
  %v2804 = vpop.permute.xlu0 %2803
  %2806 = vset.pattern.permute.xlu0 12
  %2807 = vperm.xlu0 %2806, %v1490
  %v2808 = vpop.permute.xlu0 %2807
  %2810 = vset.pattern.permute.xlu0 12
  %2811 = vperm.xlu0 %2810, %v1491
  %v2812 = vpop.permute.xlu0 %2811
  %2814 = vset.pattern.permute.xlu0 12
  %2815 = vperm.xlu0 %2814, %v1492
  %v2816 = vpop.permute.xlu0 %2815
  %2818 = vset.pattern.permute.xlu0 12
  %2819 = vperm.xlu0 %2818, %v1493
  %v2820 = vpop.permute.xlu0 %2819
  %2822 = vset.pattern.permute.xlu0 12
  %2823 = vperm.xlu0 %2822, %v1494
  %v2824 = vpop.permute.xlu0 %2823
  %2826 = vset.pattern.permute.xlu0 12
  %2827 = vperm.xlu0 %2826, %v1495
  %v2828 = vpop.permute.xlu0 %2827
  %2830 = vset.pattern.permute.xlu0 12
  %2831 = vperm.xlu0 %2830, %v1496
  %v2832 = vpop.permute.xlu0 %2831
  %2834 = vset.pattern.permute.xlu0 12
  %2835 = vperm.xlu0 %2834, %v1497
  %v2836 = vpop.permute.xlu0 %2835
  %2838 = vset.pattern.permute.xlu0 12
  %2839 = vperm.xlu0 %2838, %v1498
  %v2840 = vpop.permute.xlu0 %2839
  %2842 = vset.pattern.permute.xlu0 12
  %2843 = vperm.xlu0 %2842, %v1499
  %v2844 = vpop.permute.xlu0 %2843
  %2846 = vset.pattern.permute.xlu0 12
  %2847 = vperm.xlu0 %2846, %v1500
  %v2848 = vpop.permute.xlu0 %2847
  %2850 = vset.pattern.permute.xlu0 12
  %2851 = vperm.xlu0 %2850, %v1501
  %v2852 = vpop.permute.xlu0 %2851
  %2854 = vset.pattern.permute.xlu0 12
  %2855 = vperm.xlu0 %2854, %v1502
  %v2856 = vpop.permute.xlu0 %2855
  %2858 = vset.pattern.permute.xlu0 12
  %2859 = vperm.xlu0 %2858, %v1503
  %v2860 = vpop.permute.xlu0 %2859
  %v2862 = vmul.f32 %v2741, %v2792
  %v2863 = vmul.f32 %v2743, %v2796
  %v2864 = vmul.f32 %v2745, %v2800
  %v2865 = vmul.f32 %v2747, %v2804
  %v2866 = vmul.f32 %v2749, %v2808
  %v2867 = vmul.f32 %v2751, %v2812
  %v2868 = vmul.f32 %v2753, %v2816
  %v2869 = vmul.f32 %v2755, %v2820
  %v2870 = vmul.f32 %v2757, %v2824
  %v2871 = vmul.f32 %v2759, %v2828
  %v2872 = vmul.f32 %v2761, %v2832
  %v2873 = vmul.f32 %v2763, %v2836
  %v2874 = vmul.f32 %v2765, %v2840
  %v2875 = vmul.f32 %v2767, %v2844
  %v2876 = vmul.f32 %v2769, %v2848
  %v2877 = vmul.f32 %v2771, %v2852
  %v2878 = vmul.f32 %v2789, %v2856
  %v2879 = vmul.f32 %v2860, 0.0
  %v2880 = vrot.slane %v1415, 4
  %v2881 = vrot.slane %v1416, 4
  %v2882 = vsel %vm1698, %v2880, %v2881
  %v2883 = vrot.slane %v1417, 4
  %v2884 = vsel %vm1698, %v2881, %v2883
  %v2885 = vrot.slane %v1418, 4
  %v2886 = vsel %vm1698, %v2883, %v2885
  %v2887 = vrot.slane %v1419, 4
  %v2888 = vsel %vm1698, %v2885, %v2887
  %v2889 = vrot.slane %v1420, 4
  %v2890 = vsel %vm1698, %v2887, %v2889
  %v2891 = vrot.slane %v1421, 4
  %v2892 = vsel %vm1698, %v2889, %v2891
  %v2893 = vrot.slane %v1422, 4
  %v2894 = vsel %vm1698, %v2891, %v2893
  %v2895 = vrot.slane %v1423, 4
  %v2896 = vsel %vm1698, %v2893, %v2895
  %v2897 = vrot.slane %v1424, 4
  %v2898 = vsel %vm1698, %v2895, %v2897
  %v2899 = vrot.slane %v1425, 4
  %v2900 = vsel %vm1698, %v2897, %v2899
  %v2901 = vrot.slane %v1426, 4
  %v2902 = vsel %vm1698, %v2899, %v2901
  %v2903 = vrot.slane %v1427, 4
  %v2904 = vsel %vm1698, %v2901, %v2903
  %v2905 = vrot.slane %v1428, 4
  %v2906 = vsel %vm1698, %v2903, %v2905
  %v2907 = vrot.slane %v1429, 4
  %v2908 = vsel %vm1698, %v2905, %v2907
  %v2909 = vrot.slane %v1430, 4
  %v2910 = vsel %vm1698, %v2907, %v2909
  %v2911 = vrot.slane %v1431, 4
  %v2912 = vsel %vm1698, %v2909, %v2911
  %v2930 = vsel %vm1698, %v2911, 0.0
  %2931 = vset.pattern.permute.xlu0 13
  %2932 = vperm.xlu0 %2931, %v1486
  %v2933 = vpop.permute.xlu0 %2932
  %2935 = vset.pattern.permute.xlu0 13
  %2936 = vperm.xlu0 %2935, %v1487
  %v2937 = vpop.permute.xlu0 %2936
  %2939 = vset.pattern.permute.xlu0 13
  %2940 = vperm.xlu0 %2939, %v1488
  %v2941 = vpop.permute.xlu0 %2940
  %2943 = vset.pattern.permute.xlu0 13
  %2944 = vperm.xlu0 %2943, %v1489
  %v2945 = vpop.permute.xlu0 %2944
  %2947 = vset.pattern.permute.xlu0 13
  %2948 = vperm.xlu0 %2947, %v1490
  %v2949 = vpop.permute.xlu0 %2948
  %2951 = vset.pattern.permute.xlu0 13
  %2952 = vperm.xlu0 %2951, %v1491
  %v2953 = vpop.permute.xlu0 %2952
  %2955 = vset.pattern.permute.xlu0 13
  %2956 = vperm.xlu0 %2955, %v1492
  %v2957 = vpop.permute.xlu0 %2956
  %2959 = vset.pattern.permute.xlu0 13
  %2960 = vperm.xlu0 %2959, %v1493
  %v2961 = vpop.permute.xlu0 %2960
  %2963 = vset.pattern.permute.xlu0 13
  %2964 = vperm.xlu0 %2963, %v1494
  %v2965 = vpop.permute.xlu0 %2964
  %2967 = vset.pattern.permute.xlu0 13
  %2968 = vperm.xlu0 %2967, %v1495
  %v2969 = vpop.permute.xlu0 %2968
  %2971 = vset.pattern.permute.xlu0 13
  %2972 = vperm.xlu0 %2971, %v1496
  %v2973 = vpop.permute.xlu0 %2972
  %2975 = vset.pattern.permute.xlu0 13
  %2976 = vperm.xlu0 %2975, %v1497
  %v2977 = vpop.permute.xlu0 %2976
  %2979 = vset.pattern.permute.xlu0 13
  %2980 = vperm.xlu0 %2979, %v1498
  %v2981 = vpop.permute.xlu0 %2980
  %2983 = vset.pattern.permute.xlu0 13
  %2984 = vperm.xlu0 %2983, %v1499
  %v2985 = vpop.permute.xlu0 %2984
  %2987 = vset.pattern.permute.xlu0 13
  %2988 = vperm.xlu0 %2987, %v1500
  %v2989 = vpop.permute.xlu0 %2988
  %2991 = vset.pattern.permute.xlu0 13
  %2992 = vperm.xlu0 %2991, %v1501
  %v2993 = vpop.permute.xlu0 %2992
  %2995 = vset.pattern.permute.xlu0 13
  %2996 = vperm.xlu0 %2995, %v1502
  %v2997 = vpop.permute.xlu0 %2996
  %2999 = vset.pattern.permute.xlu0 13
  %3000 = vperm.xlu0 %2999, %v1503
  %v3001 = vpop.permute.xlu0 %3000
  %v3003 = vmul.f32 %v2882, %v2933
  %v3004 = vmul.f32 %v2884, %v2937
  %v3005 = vmul.f32 %v2886, %v2941
  %v3006 = vmul.f32 %v2888, %v2945
  %v3007 = vmul.f32 %v2890, %v2949
  %v3008 = vmul.f32 %v2892, %v2953
  %v3009 = vmul.f32 %v2894, %v2957
  %v3010 = vmul.f32 %v2896, %v2961
  %v3011 = vmul.f32 %v2898, %v2965
  %v3012 = vmul.f32 %v2900, %v2969
  %v3013 = vmul.f32 %v2902, %v2973
  %v3014 = vmul.f32 %v2904, %v2977
  %v3015 = vmul.f32 %v2906, %v2981
  %v3016 = vmul.f32 %v2908, %v2985
  %v3017 = vmul.f32 %v2910, %v2989
  %v3018 = vmul.f32 %v2912, %v2993
  %v3019 = vmul.f32 %v2930, %v2997
  %v3020 = vmul.f32 %v3001, 0.0
  %v3021 = vrot.slane %v1433, 4
  %v3022 = vrot.slane %v1434, 4
  %v3023 = vsel %vm1698, %v3021, %v3022
  %v3024 = vrot.slane %v1435, 4
  %v3025 = vsel %vm1698, %v3022, %v3024
  %v3026 = vrot.slane %v1436, 4
  %v3027 = vsel %vm1698, %v3024, %v3026
  %v3028 = vrot.slane %v1437, 4
  %v3029 = vsel %vm1698, %v3026, %v3028
  %v3030 = vrot.slane %v1438, 4
  %v3031 = vsel %vm1698, %v3028, %v3030
  %v3032 = vrot.slane %v1439, 4
  %v3033 = vsel %vm1698, %v3030, %v3032
  %v3034 = vrot.slane %v1440, 4
  %v3035 = vsel %vm1698, %v3032, %v3034
  %v3036 = vrot.slane %v1441, 4
  %v3037 = vsel %vm1698, %v3034, %v3036
  %v3038 = vrot.slane %v1442, 4
  %v3039 = vsel %vm1698, %v3036, %v3038
  %v3040 = vrot.slane %v1443, 4
  %v3041 = vsel %vm1698, %v3038, %v3040
  %v3042 = vrot.slane %v1444, 4
  %v3043 = vsel %vm1698, %v3040, %v3042
  %v3044 = vrot.slane %v1445, 4
  %v3045 = vsel %vm1698, %v3042, %v3044
  %v3046 = vrot.slane %v1446, 4
  %v3047 = vsel %vm1698, %v3044, %v3046
  %v3048 = vrot.slane %v1447, 4
  %v3049 = vsel %vm1698, %v3046, %v3048
  %v3050 = vrot.slane %v1448, 4
  %v3051 = vsel %vm1698, %v3048, %v3050
  %v3052 = vrot.slane %v1449, 4
  %v3053 = vsel %vm1698, %v3050, %v3052
  %v3071 = vsel %vm1698, %v3052, 0.0
  %3072 = vset.pattern.permute.xlu0 14
  %3073 = vperm.xlu0 %3072, %v1486
  %v3074 = vpop.permute.xlu0 %3073
  %3076 = vset.pattern.permute.xlu0 14
  %3077 = vperm.xlu0 %3076, %v1487
  %v3078 = vpop.permute.xlu0 %3077
  %3080 = vset.pattern.permute.xlu0 14
  %3081 = vperm.xlu0 %3080, %v1488
  %v3082 = vpop.permute.xlu0 %3081
  %3084 = vset.pattern.permute.xlu0 14
  %3085 = vperm.xlu0 %3084, %v1489
  %v3086 = vpop.permute.xlu0 %3085
  %3088 = vset.pattern.permute.xlu0 14
  %3089 = vperm.xlu0 %3088, %v1490
  %v3090 = vpop.permute.xlu0 %3089
  %3092 = vset.pattern.permute.xlu0 14
  %3093 = vperm.xlu0 %3092, %v1491
  %v3094 = vpop.permute.xlu0 %3093
  %3096 = vset.pattern.permute.xlu0 14
  %3097 = vperm.xlu0 %3096, %v1492
  %v3098 = vpop.permute.xlu0 %3097
  %3100 = vset.pattern.permute.xlu0 14
  %3101 = vperm.xlu0 %3100, %v1493
  %v3102 = vpop.permute.xlu0 %3101
  %3104 = vset.pattern.permute.xlu0 14
  %3105 = vperm.xlu0 %3104, %v1494
  %v3106 = vpop.permute.xlu0 %3105
  %3108 = vset.pattern.permute.xlu0 14
  %3109 = vperm.xlu0 %3108, %v1495
  %v3110 = vpop.permute.xlu0 %3109
  %3112 = vset.pattern.permute.xlu0 14
  %3113 = vperm.xlu0 %3112, %v1496
  %v3114 = vpop.permute.xlu0 %3113
  %3116 = vset.pattern.permute.xlu0 14
  %3117 = vperm.xlu0 %3116, %v1497
  %v3118 = vpop.permute.xlu0 %3117
  %3120 = vset.pattern.permute.xlu0 14
  %3121 = vperm.xlu0 %3120, %v1498
  %v3122 = vpop.permute.xlu0 %3121
  %3124 = vset.pattern.permute.xlu0 14
  %3125 = vperm.xlu0 %3124, %v1499
  %v3126 = vpop.permute.xlu0 %3125
  %3128 = vset.pattern.permute.xlu0 14
  %3129 = vperm.xlu0 %3128, %v1500
  %v3130 = vpop.permute.xlu0 %3129
  %3132 = vset.pattern.permute.xlu0 14
  %3133 = vperm.xlu0 %3132, %v1501
  %v3134 = vpop.permute.xlu0 %3133
  %3136 = vset.pattern.permute.xlu0 14
  %3137 = vperm.xlu0 %3136, %v1502
  %v3138 = vpop.permute.xlu0 %3137
  %3140 = vset.pattern.permute.xlu0 14
  %3141 = vperm.xlu0 %3140, %v1503
  %v3142 = vpop.permute.xlu0 %3141
  %v3144 = vmul.f32 %v3023, %v3074
  %v3145 = vmul.f32 %v3025, %v3078
  %v3146 = vmul.f32 %v3027, %v3082
  %v3147 = vmul.f32 %v3029, %v3086
  %v3148 = vmul.f32 %v3031, %v3090
  %v3149 = vmul.f32 %v3033, %v3094
  %v3150 = vmul.f32 %v3035, %v3098
  %v3151 = vmul.f32 %v3037, %v3102
  %v3152 = vmul.f32 %v3039, %v3106
  %v3153 = vmul.f32 %v3041, %v3110
  %v3154 = vmul.f32 %v3043, %v3114
  %v3155 = vmul.f32 %v3045, %v3118
  %v3156 = vmul.f32 %v3047, %v3122
  %v3157 = vmul.f32 %v3049, %v3126
  %v3158 = vmul.f32 %v3051, %v3130
  %v3159 = vmul.f32 %v3053, %v3134
  %v3160 = vmul.f32 %v3071, %v3138
  %v3161 = vmul.f32 %v3142, 0.0
  %v3162 = vrot.slane %v1415, 5
  %v3163 = vrot.slane %v1416, 5
  %v3164 = vsel %vm1981, %v3162, %v3163
  %v3165 = vrot.slane %v1417, 5
  %v3166 = vsel %vm1981, %v3163, %v3165
  %v3167 = vrot.slane %v1418, 5
  %v3168 = vsel %vm1981, %v3165, %v3167
  %v3169 = vrot.slane %v1419, 5
  %v3170 = vsel %vm1981, %v3167, %v3169
  %v3171 = vrot.slane %v1420, 5
  %v3172 = vsel %vm1981, %v3169, %v3171
  %v3173 = vrot.slane %v1421, 5
  %v3174 = vsel %vm1981, %v3171, %v3173
  %v3175 = vrot.slane %v1422, 5
  %v3176 = vsel %vm1981, %v3173, %v3175
  %v3177 = vrot.slane %v1423, 5
  %v3178 = vsel %vm1981, %v3175, %v3177
  %v3179 = vrot.slane %v1424, 5
  %v3180 = vsel %vm1981, %v3177, %v3179
  %v3181 = vrot.slane %v1425, 5
  %v3182 = vsel %vm1981, %v3179, %v3181
  %v3183 = vrot.slane %v1426, 5
  %v3184 = vsel %vm1981, %v3181, %v3183
  %v3185 = vrot.slane %v1427, 5
  %v3186 = vsel %vm1981, %v3183, %v3185
  %v3187 = vrot.slane %v1428, 5
  %v3188 = vsel %vm1981, %v3185, %v3187
  %v3189 = vrot.slane %v1429, 5
  %v3190 = vsel %vm1981, %v3187, %v3189
  %v3191 = vrot.slane %v1430, 5
  %v3192 = vsel %vm1981, %v3189, %v3191
  %v3193 = vrot.slane %v1431, 5
  %v3194 = vsel %vm1981, %v3191, %v3193
  %v3212 = vsel %vm1981, %v3193, 0.0
  %3213 = vset.pattern.permute.xlu0 15
  %3214 = vperm.xlu0 %3213, %v1486
  %v3215 = vpop.permute.xlu0 %3214
  %3217 = vset.pattern.permute.xlu0 15
  %3218 = vperm.xlu0 %3217, %v1487
  %v3219 = vpop.permute.xlu0 %3218
  %3221 = vset.pattern.permute.xlu0 15
  %3222 = vperm.xlu0 %3221, %v1488
  %v3223 = vpop.permute.xlu0 %3222
  %3225 = vset.pattern.permute.xlu0 15
  %3226 = vperm.xlu0 %3225, %v1489
  %v3227 = vpop.permute.xlu0 %3226
  %3229 = vset.pattern.permute.xlu0 15
  %3230 = vperm.xlu0 %3229, %v1490
  %v3231 = vpop.permute.xlu0 %3230
  %3233 = vset.pattern.permute.xlu0 15
  %3234 = vperm.xlu0 %3233, %v1491
  %v3235 = vpop.permute.xlu0 %3234
  %3237 = vset.pattern.permute.xlu0 15
  %3238 = vperm.xlu0 %3237, %v1492
  %v3239 = vpop.permute.xlu0 %3238
  %3241 = vset.pattern.permute.xlu0 15
  %3242 = vperm.xlu0 %3241, %v1493
  %v3243 = vpop.permute.xlu0 %3242
  %3245 = vset.pattern.permute.xlu0 15
  %3246 = vperm.xlu0 %3245, %v1494
  %v3247 = vpop.permute.xlu0 %3246
  %3249 = vset.pattern.permute.xlu0 15
  %3250 = vperm.xlu0 %3249, %v1495
  %v3251 = vpop.permute.xlu0 %3250
  %3253 = vset.pattern.permute.xlu0 15
  %3254 = vperm.xlu0 %3253, %v1496
  %v3255 = vpop.permute.xlu0 %3254
  %3257 = vset.pattern.permute.xlu0 15
  %3258 = vperm.xlu0 %3257, %v1497
  %v3259 = vpop.permute.xlu0 %3258
  %3261 = vset.pattern.permute.xlu0 15
  %3262 = vperm.xlu0 %3261, %v1498
  %v3263 = vpop.permute.xlu0 %3262
  %3265 = vset.pattern.permute.xlu0 15
  %3266 = vperm.xlu0 %3265, %v1499
  %v3267 = vpop.permute.xlu0 %3266
  %3269 = vset.pattern.permute.xlu0 15
  %3270 = vperm.xlu0 %3269, %v1500
  %v3271 = vpop.permute.xlu0 %3270
  %3273 = vset.pattern.permute.xlu0 15
  %3274 = vperm.xlu0 %3273, %v1501
  %v3275 = vpop.permute.xlu0 %3274
  %3277 = vset.pattern.permute.xlu0 15
  %3278 = vperm.xlu0 %3277, %v1502
  %v3279 = vpop.permute.xlu0 %3278
  %3281 = vset.pattern.permute.xlu0 15
  %3282 = vperm.xlu0 %3281, %v1503
  %v3283 = vpop.permute.xlu0 %3282
  %v3285 = vmul.f32 %v3164, %v3215
  %v3286 = vmul.f32 %v3166, %v3219
  %v3287 = vmul.f32 %v3168, %v3223
  %v3288 = vmul.f32 %v3170, %v3227
  %v3289 = vmul.f32 %v3172, %v3231
  %v3290 = vmul.f32 %v3174, %v3235
  %v3291 = vmul.f32 %v3176, %v3239
  %v3292 = vmul.f32 %v3178, %v3243
  %v3293 = vmul.f32 %v3180, %v3247
  %v3294 = vmul.f32 %v3182, %v3251
  %v3295 = vmul.f32 %v3184, %v3255
  %v3296 = vmul.f32 %v3186, %v3259
  %v3297 = vmul.f32 %v3188, %v3263
  %v3298 = vmul.f32 %v3190, %v3267
  %v3299 = vmul.f32 %v3192, %v3271
  %v3300 = vmul.f32 %v3194, %v3275
  %v3301 = vmul.f32 %v3212, %v3279
  %v3302 = vmul.f32 %v3283, 0.0
  %3321 = vrot.lane.b32.xlu0 %v1822, 64
  %v3322 = vpop.permute.xlu0 %3321
  %3323 = vrot.lane.b32.xlu0 %v1823, 64
  %v3324 = vpop.permute.xlu0 %3323
  %3325 = vrot.lane.b32.xlu0 %v1824, 64
  %v3326 = vpop.permute.xlu0 %3325
  %3327 = vrot.lane.b32.xlu0 %v1825, 64
  %v3328 = vpop.permute.xlu0 %3327
  %3329 = vrot.lane.b32.xlu0 %v1826, 64
  %v3330 = vpop.permute.xlu0 %3329
  %3331 = vrot.lane.b32.xlu0 %v1827, 64
  %v3332 = vpop.permute.xlu0 %3331
  %3333 = vrot.lane.b32.xlu0 %v1828, 64
  %v3334 = vpop.permute.xlu0 %3333
  %3335 = vrot.lane.b32.xlu0 %v1829, 64
  %v3336 = vpop.permute.xlu0 %3335
  %3337 = vrot.lane.b32.xlu0 %v1830, 64
  %v3338 = vpop.permute.xlu0 %3337
  %3339 = vrot.lane.b32.xlu0 %v1831, 64
  %v3340 = vpop.permute.xlu0 %3339
  %3341 = vrot.lane.b32.xlu0 %v1832, 64
  %v3342 = vpop.permute.xlu0 %3341
  %3343 = vrot.lane.b32.xlu0 %v1833, 64
  %v3344 = vpop.permute.xlu0 %3343
  %3345 = vrot.lane.b32.xlu0 %v1834, 64
  %v3346 = vpop.permute.xlu0 %3345
  %3347 = vrot.lane.b32.xlu0 %v1835, 64
  %v3348 = vpop.permute.xlu0 %3347
  %3349 = vrot.lane.b32.xlu0 %v1836, 64
  %v3350 = vpop.permute.xlu0 %3349
  %3351 = vrot.lane.b32.xlu0 %v1837, 64
  %v3352 = vpop.permute.xlu0 %3351
  %3353 = vrot.lane.b32.xlu0 %v1838, 64
  %v3354 = vpop.permute.xlu0 %3353
  %3355 = vrot.lane.b32.xlu0 %v1839, 64
  %v3356 = vpop.permute.xlu0 %3355
  %3393 = vrot.lane.b32.xlu0 %v2105, 64
  %v3394 = vpop.permute.xlu0 %3393
  %3395 = vrot.lane.b32.xlu0 %v2106, 64
  %v3396 = vpop.permute.xlu0 %3395
  %3397 = vrot.lane.b32.xlu0 %v2107, 64
  %v3398 = vpop.permute.xlu0 %3397
  %3399 = vrot.lane.b32.xlu0 %v2108, 64
  %v3400 = vpop.permute.xlu0 %3399
  %3401 = vrot.lane.b32.xlu0 %v2109, 64
  %v3402 = vpop.permute.xlu0 %3401
  %3403 = vrot.lane.b32.xlu0 %v2110, 64
  %v3404 = vpop.permute.xlu0 %3403
  %3405 = vrot.lane.b32.xlu0 %v2111, 64
  %v3406 = vpop.permute.xlu0 %3405
  %3407 = vrot.lane.b32.xlu0 %v2112, 64
  %v3408 = vpop.permute.xlu0 %3407
  %3409 = vrot.lane.b32.xlu0 %v2113, 64
  %v3410 = vpop.permute.xlu0 %3409
  %3411 = vrot.lane.b32.xlu0 %v2114, 64
  %v3412 = vpop.permute.xlu0 %3411
  %3413 = vrot.lane.b32.xlu0 %v2115, 64
  %v3414 = vpop.permute.xlu0 %3413
  %3415 = vrot.lane.b32.xlu0 %v2116, 64
  %v3416 = vpop.permute.xlu0 %3415
  %3417 = vrot.lane.b32.xlu0 %v2117, 64
  %v3418 = vpop.permute.xlu0 %3417
  %3419 = vrot.lane.b32.xlu0 %v2118, 64
  %v3420 = vpop.permute.xlu0 %3419
  %3421 = vrot.lane.b32.xlu0 %v2119, 64
  %v3422 = vpop.permute.xlu0 %3421
  %3423 = vrot.lane.b32.xlu0 %v2120, 64
  %v3424 = vpop.permute.xlu0 %3423
  %3425 = vrot.lane.b32.xlu0 %v2121, 64
  %v3426 = vpop.permute.xlu0 %3425
  %3427 = vrot.lane.b32.xlu0 %v2122, 64
  %v3428 = vpop.permute.xlu0 %3427
  %3447 = vrot.lane.b32.xlu0 %v1414, 64
  %v3448 = vpop.permute.xlu0 %3447
  %3449 = vrot.lane.b32.xlu0 %v1415, 64
  %v3450 = vpop.permute.xlu0 %3449
  %3451 = vrot.lane.b32.xlu0 %v1416, 64
  %v3452 = vpop.permute.xlu0 %3451
  %3453 = vrot.lane.b32.xlu0 %v1417, 64
  %v3454 = vpop.permute.xlu0 %3453
  %3455 = vrot.lane.b32.xlu0 %v1418, 64
  %v3456 = vpop.permute.xlu0 %3455
  %3457 = vrot.lane.b32.xlu0 %v1419, 64
  %v3458 = vpop.permute.xlu0 %3457
  %3459 = vrot.lane.b32.xlu0 %v1420, 64
  %v3460 = vpop.permute.xlu0 %3459
  %3461 = vrot.lane.b32.xlu0 %v1421, 64
  %v3462 = vpop.permute.xlu0 %3461
  %3463 = vrot.lane.b32.xlu0 %v1422, 64
  %v3464 = vpop.permute.xlu0 %3463
  %3465 = vrot.lane.b32.xlu0 %v1423, 64
  %v3466 = vpop.permute.xlu0 %3465
  %3467 = vrot.lane.b32.xlu0 %v1424, 64
  %v3468 = vpop.permute.xlu0 %3467
  %3469 = vrot.lane.b32.xlu0 %v1425, 64
  %v3470 = vpop.permute.xlu0 %3469
  %3471 = vrot.lane.b32.xlu0 %v1426, 64
  %v3472 = vpop.permute.xlu0 %3471
  %3473 = vrot.lane.b32.xlu0 %v1427, 64
  %v3474 = vpop.permute.xlu0 %3473
  %3475 = vrot.lane.b32.xlu0 %v1428, 64
  %v3476 = vpop.permute.xlu0 %3475
  %3477 = vrot.lane.b32.xlu0 %v1429, 64
  %v3478 = vpop.permute.xlu0 %3477
  %3479 = vrot.lane.b32.xlu0 %v1430, 64
  %v3480 = vpop.permute.xlu0 %3479
  %3481 = vrot.lane.b32.xlu0 %v1431, 64
  %v3482 = vpop.permute.xlu0 %3481
  %3519 = vrot.lane.b32.xlu0 %v2431, 64
  %v3520 = vpop.permute.xlu0 %3519
  %3521 = vrot.lane.b32.xlu0 %v2432, 64
  %v3522 = vpop.permute.xlu0 %3521
  %3523 = vrot.lane.b32.xlu0 %v2433, 64
  %v3524 = vpop.permute.xlu0 %3523
  %3525 = vrot.lane.b32.xlu0 %v2434, 64
  %v3526 = vpop.permute.xlu0 %3525
  %3527 = vrot.lane.b32.xlu0 %v2435, 64
  %v3528 = vpop.permute.xlu0 %3527
  %3529 = vrot.lane.b32.xlu0 %v2436, 64
  %v3530 = vpop.permute.xlu0 %3529
  %3531 = vrot.lane.b32.xlu0 %v2437, 64
  %v3532 = vpop.permute.xlu0 %3531
  %3533 = vrot.lane.b32.xlu0 %v2438, 64
  %v3534 = vpop.permute.xlu0 %3533
  %3535 = vrot.lane.b32.xlu0 %v2439, 64
  %v3536 = vpop.permute.xlu0 %3535
  %3537 = vrot.lane.b32.xlu0 %v2440, 64
  %v3538 = vpop.permute.xlu0 %3537
  %3539 = vrot.lane.b32.xlu0 %v2441, 64
  %v3540 = vpop.permute.xlu0 %3539
  %3541 = vrot.lane.b32.xlu0 %v2442, 64
  %v3542 = vpop.permute.xlu0 %3541
  %3543 = vrot.lane.b32.xlu0 %v2443, 64
  %v3544 = vpop.permute.xlu0 %3543
  %3545 = vrot.lane.b32.xlu0 %v2444, 64
  %v3546 = vpop.permute.xlu0 %3545
  %3547 = vrot.lane.b32.xlu0 %v2445, 64
  %v3548 = vpop.permute.xlu0 %3547
  %3549 = vrot.lane.b32.xlu0 %v2446, 64
  %v3550 = vpop.permute.xlu0 %3549
  %3551 = vrot.lane.b32.xlu0 %v2447, 64
  %v3552 = vpop.permute.xlu0 %3551
  %3553 = vrot.lane.b32.xlu0 %v2448, 64
  %v3554 = vpop.permute.xlu0 %3553
  %3573 = vrot.lane.b32.xlu0 %v1450, 64
  %v3574 = vpop.permute.xlu0 %3573
  %3575 = vrot.lane.b32.xlu0 %v1451, 64
  %v3576 = vpop.permute.xlu0 %3575
  %3577 = vrot.lane.b32.xlu0 %v1452, 64
  %v3578 = vpop.permute.xlu0 %3577
  %3579 = vrot.lane.b32.xlu0 %v1453, 64
  %v3580 = vpop.permute.xlu0 %3579
  %3581 = vrot.lane.b32.xlu0 %v1454, 64
  %v3582 = vpop.permute.xlu0 %3581
  %3583 = vrot.lane.b32.xlu0 %v1455, 64
  %v3584 = vpop.permute.xlu0 %3583
  %3585 = vrot.lane.b32.xlu0 %v1456, 64
  %v3586 = vpop.permute.xlu0 %3585
  %3587 = vrot.lane.b32.xlu0 %v1457, 64
  %v3588 = vpop.permute.xlu0 %3587
  %3589 = vrot.lane.b32.xlu0 %v1458, 64
  %v3590 = vpop.permute.xlu0 %3589
  %3591 = vrot.lane.b32.xlu0 %v1459, 64
  %v3592 = vpop.permute.xlu0 %3591
  %3593 = vrot.lane.b32.xlu0 %v1460, 64
  %v3594 = vpop.permute.xlu0 %3593
  %3595 = vrot.lane.b32.xlu0 %v1461, 64
  %v3596 = vpop.permute.xlu0 %3595
  %3597 = vrot.lane.b32.xlu0 %v1462, 64
  %v3598 = vpop.permute.xlu0 %3597
  %3599 = vrot.lane.b32.xlu0 %v1463, 64
  %v3600 = vpop.permute.xlu0 %3599
  %3601 = vrot.lane.b32.xlu0 %v1464, 64
  %v3602 = vpop.permute.xlu0 %3601
  %3603 = vrot.lane.b32.xlu0 %v1465, 64
  %v3604 = vpop.permute.xlu0 %3603
  %3605 = vrot.lane.b32.xlu0 %v1466, 64
  %v3606 = vpop.permute.xlu0 %3605
  %3607 = vrot.lane.b32.xlu0 %v1467, 64
  %v3608 = vpop.permute.xlu0 %3607
  %3645 = vrot.lane.b32.xlu0 %v2721, 64
  %v3646 = vpop.permute.xlu0 %3645
  %3647 = vrot.lane.b32.xlu0 %v2722, 64
  %v3648 = vpop.permute.xlu0 %3647
  %3649 = vrot.lane.b32.xlu0 %v2723, 64
  %v3650 = vpop.permute.xlu0 %3649
  %3651 = vrot.lane.b32.xlu0 %v2724, 64
  %v3652 = vpop.permute.xlu0 %3651
  %3653 = vrot.lane.b32.xlu0 %v2725, 64
  %v3654 = vpop.permute.xlu0 %3653
  %3655 = vrot.lane.b32.xlu0 %v2726, 64
  %v3656 = vpop.permute.xlu0 %3655
  %3657 = vrot.lane.b32.xlu0 %v2727, 64
  %v3658 = vpop.permute.xlu0 %3657
  %3659 = vrot.lane.b32.xlu0 %v2728, 64
  %v3660 = vpop.permute.xlu0 %3659
  %3661 = vrot.lane.b32.xlu0 %v2729, 64
  %v3662 = vpop.permute.xlu0 %3661
  %3663 = vrot.lane.b32.xlu0 %v2730, 64
  %v3664 = vpop.permute.xlu0 %3663
  %3665 = vrot.lane.b32.xlu0 %v2731, 64
  %v3666 = vpop.permute.xlu0 %3665
  %3667 = vrot.lane.b32.xlu0 %v2732, 64
  %v3668 = vpop.permute.xlu0 %3667
  %3669 = vrot.lane.b32.xlu0 %v2733, 64
  %v3670 = vpop.permute.xlu0 %3669
  %3671 = vrot.lane.b32.xlu0 %v2734, 64
  %v3672 = vpop.permute.xlu0 %3671
  %3673 = vrot.lane.b32.xlu0 %v2735, 64
  %v3674 = vpop.permute.xlu0 %3673
  %3675 = vrot.lane.b32.xlu0 %v2736, 64
  %v3676 = vpop.permute.xlu0 %3675
  %3677 = vrot.lane.b32.xlu0 %v2737, 64
  %v3678 = vpop.permute.xlu0 %3677
  %3679 = vrot.lane.b32.xlu0 %v2738, 64
  %v3680 = vpop.permute.xlu0 %3679
  %3717 = vrot.lane.b32.xlu0 %v3003, 64
  %v3718 = vpop.permute.xlu0 %3717
  %3719 = vrot.lane.b32.xlu0 %v3004, 64
  %v3720 = vpop.permute.xlu0 %3719
  %3721 = vrot.lane.b32.xlu0 %v3005, 64
  %v3722 = vpop.permute.xlu0 %3721
  %3723 = vrot.lane.b32.xlu0 %v3006, 64
  %v3724 = vpop.permute.xlu0 %3723
  %3725 = vrot.lane.b32.xlu0 %v3007, 64
  %v3726 = vpop.permute.xlu0 %3725
  %3727 = vrot.lane.b32.xlu0 %v3008, 64
  %v3728 = vpop.permute.xlu0 %3727
  %3729 = vrot.lane.b32.xlu0 %v3009, 64
  %v3730 = vpop.permute.xlu0 %3729
  %3731 = vrot.lane.b32.xlu0 %v3010, 64
  %v3732 = vpop.permute.xlu0 %3731
  %3733 = vrot.lane.b32.xlu0 %v3011, 64
  %v3734 = vpop.permute.xlu0 %3733
  %3735 = vrot.lane.b32.xlu0 %v3012, 64
  %v3736 = vpop.permute.xlu0 %3735
  %3737 = vrot.lane.b32.xlu0 %v3013, 64
  %v3738 = vpop.permute.xlu0 %3737
  %3739 = vrot.lane.b32.xlu0 %v3014, 64
  %v3740 = vpop.permute.xlu0 %3739
  %3741 = vrot.lane.b32.xlu0 %v3015, 64
  %v3742 = vpop.permute.xlu0 %3741
  %3743 = vrot.lane.b32.xlu0 %v3016, 64
  %v3744 = vpop.permute.xlu0 %3743
  %3745 = vrot.lane.b32.xlu0 %v3017, 64
  %v3746 = vpop.permute.xlu0 %3745
  %3747 = vrot.lane.b32.xlu0 %v3018, 64
  %v3748 = vpop.permute.xlu0 %3747
  %3749 = vrot.lane.b32.xlu0 %v3019, 64
  %v3750 = vpop.permute.xlu0 %3749
  %3751 = vrot.lane.b32.xlu0 %v3020, 64
  %v3752 = vpop.permute.xlu0 %3751
  %3789 = vrot.lane.b32.xlu0 %v3285, 64
  %v3790 = vpop.permute.xlu0 %3789
  %3791 = vrot.lane.b32.xlu0 %v3286, 64
  %v3792 = vpop.permute.xlu0 %3791
  %3793 = vrot.lane.b32.xlu0 %v3287, 64
  %v3794 = vpop.permute.xlu0 %3793
  %3795 = vrot.lane.b32.xlu0 %v3288, 64
  %v3796 = vpop.permute.xlu0 %3795
  %3797 = vrot.lane.b32.xlu0 %v3289, 64
  %v3798 = vpop.permute.xlu0 %3797
  %3799 = vrot.lane.b32.xlu0 %v3290, 64
  %v3800 = vpop.permute.xlu0 %3799
  %3801 = vrot.lane.b32.xlu0 %v3291, 64
  %v3802 = vpop.permute.xlu0 %3801
  %3803 = vrot.lane.b32.xlu0 %v3292, 64
  %v3804 = vpop.permute.xlu0 %3803
  %3805 = vrot.lane.b32.xlu0 %v3293, 64
  %v3806 = vpop.permute.xlu0 %3805
  %3807 = vrot.lane.b32.xlu0 %v3294, 64
  %v3808 = vpop.permute.xlu0 %3807
  %3809 = vrot.lane.b32.xlu0 %v3295, 64
  %v3810 = vpop.permute.xlu0 %3809
  %3811 = vrot.lane.b32.xlu0 %v3296, 64
  %v3812 = vpop.permute.xlu0 %3811
  %3813 = vrot.lane.b32.xlu0 %v3297, 64
  %v3814 = vpop.permute.xlu0 %3813
  %3815 = vrot.lane.b32.xlu0 %v3298, 64
  %v3816 = vpop.permute.xlu0 %3815
  %3817 = vrot.lane.b32.xlu0 %v3299, 64
  %v3818 = vpop.permute.xlu0 %3817
  %3819 = vrot.lane.b32.xlu0 %v3300, 64
  %v3820 = vpop.permute.xlu0 %3819
  %3821 = vrot.lane.b32.xlu0 %v3301, 64
  %v3822 = vpop.permute.xlu0 %3821
  %3823 = vrot.lane.b32.xlu0 %v3302, 64
  %v3824 = vpop.permute.xlu0 %3823
  %v3843 = vsel %vm810, %v1663, %v3322
  %v3844 = vsel %vm810, %v1664, %v3324
  %v3845 = vsel %vm810, %v1665, %v3326
  %v3846 = vsel %vm810, %v1666, %v3328
  %v3847 = vsel %vm810, %v1667, %v3330
  %v3848 = vsel %vm810, %v1668, %v3332
  %v3849 = vsel %vm810, %v1669, %v3334
  %v3850 = vsel %vm810, %v1670, %v3336
  %v3851 = vsel %vm810, %v1671, %v3338
  %v3852 = vsel %vm810, %v1672, %v3340
  %v3853 = vsel %vm810, %v1673, %v3342
  %v3854 = vsel %vm810, %v1674, %v3344
  %v3855 = vsel %vm810, %v1675, %v3346
  %v3856 = vsel %vm810, %v1676, %v3348
  %v3857 = vsel %vm810, %v1677, %v3350
  %v3858 = vsel %vm810, %v1678, %v3352
  %v3859 = vsel %vm810, %v1679, %v3354
  %v3860 = vsel %vm810, %v1680, %v3356
  %v3861 = vsel %vm810, %v1963, %v3394
  %v3862 = vsel %vm810, %v1964, %v3396
  %v3863 = vsel %vm810, %v1965, %v3398
  %v3864 = vsel %vm810, %v1966, %v3400
  %v3865 = vsel %vm810, %v1967, %v3402
  %v3866 = vsel %vm810, %v1968, %v3404
  %v3867 = vsel %vm810, %v1969, %v3406
  %v3868 = vsel %vm810, %v1970, %v3408
  %v3869 = vsel %vm810, %v1971, %v3410
  %v3870 = vsel %vm810, %v1972, %v3412
  %v3871 = vsel %vm810, %v1973, %v3414
  %v3872 = vsel %vm810, %v1974, %v3416
  %v3873 = vsel %vm810, %v1975, %v3418
  %v3874 = vsel %vm810, %v1976, %v3420
  %v3875 = vsel %vm810, %v1977, %v3422
  %v3876 = vsel %vm810, %v1978, %v3424
  %v3877 = vsel %vm810, %v1979, %v3426
  %v3878 = vsel %vm810, %v1980, %v3428
  %v3879 = vsel %vm810, %v2268, %v3448
  %v3880 = vsel %vm810, %v2269, %v3450
  %v3881 = vsel %vm810, %v2270, %v3452
  %v3882 = vsel %vm810, %v2271, %v3454
  %v3883 = vsel %vm810, %v2272, %v3456
  %v3884 = vsel %vm810, %v2273, %v3458
  %v3885 = vsel %vm810, %v2274, %v3460
  %v3886 = vsel %vm810, %v2275, %v3462
  %v3887 = vsel %vm810, %v2276, %v3464
  %v3888 = vsel %vm810, %v2277, %v3466
  %v3889 = vsel %vm810, %v2278, %v3468
  %v3890 = vsel %vm810, %v2279, %v3470
  %v3891 = vsel %vm810, %v2280, %v3472
  %v3892 = vsel %vm810, %v2281, %v3474
  %v3893 = vsel %vm810, %v2282, %v3476
  %v3894 = vsel %vm810, %v2283, %v3478
  %v3895 = vsel %vm810, %v2284, %v3480
  %v3896 = vsel %vm810, %v2285, %v3482
  %v3897 = vsel %vm810, %v1432, %v3520
  %v3898 = vsel %vm810, %v1433, %v3522
  %v3899 = vsel %vm810, %v1434, %v3524
  %v3900 = vsel %vm810, %v1435, %v3526
  %v3901 = vsel %vm810, %v1436, %v3528
  %v3902 = vsel %vm810, %v1437, %v3530
  %v3903 = vsel %vm810, %v1438, %v3532
  %v3904 = vsel %vm810, %v1439, %v3534
  %v3905 = vsel %vm810, %v1440, %v3536
  %v3906 = vsel %vm810, %v1441, %v3538
  %v3907 = vsel %vm810, %v1442, %v3540
  %v3908 = vsel %vm810, %v1443, %v3542
  %v3909 = vsel %vm810, %v1444, %v3544
  %v3910 = vsel %vm810, %v1445, %v3546
  %v3911 = vsel %vm810, %v1446, %v3548
  %v3912 = vsel %vm810, %v1447, %v3550
  %v3913 = vsel %vm810, %v1448, %v3552
  %v3914 = vsel %vm810, %v1449, %v3554
  %v3915 = vsel %vm810, %v2576, %v3574
  %v3916 = vsel %vm810, %v2577, %v3576
  %v3917 = vsel %vm810, %v2578, %v3578
  %v3918 = vsel %vm810, %v2579, %v3580
  %v3919 = vsel %vm810, %v2580, %v3582
  %v3920 = vsel %vm810, %v2581, %v3584
  %v3921 = vsel %vm810, %v2582, %v3586
  %v3922 = vsel %vm810, %v2583, %v3588
  %v3923 = vsel %vm810, %v2584, %v3590
  %v3924 = vsel %vm810, %v2585, %v3592
  %v3925 = vsel %vm810, %v2586, %v3594
  %v3926 = vsel %vm810, %v2587, %v3596
  %v3927 = vsel %vm810, %v2588, %v3598
  %v3928 = vsel %vm810, %v2589, %v3600
  %v3929 = vsel %vm810, %v2590, %v3602
  %v3930 = vsel %vm810, %v2591, %v3604
  %v3931 = vsel %vm810, %v2592, %v3606
  %v3932 = vsel %vm810, %v2593, %v3608
  %v3933 = vsel %vm810, %v1468, %v3646
  %v3934 = vsel %vm810, %v1469, %v3648
  %v3935 = vsel %vm810, %v1470, %v3650
  %v3936 = vsel %vm810, %v1471, %v3652
  %v3937 = vsel %vm810, %v1472, %v3654
  %v3938 = vsel %vm810, %v1473, %v3656
  %v3939 = vsel %vm810, %v1474, %v3658
  %v3940 = vsel %vm810, %v1475, %v3660
  %v3941 = vsel %vm810, %v1476, %v3662
  %v3942 = vsel %vm810, %v1477, %v3664
  %v3943 = vsel %vm810, %v1478, %v3666
  %v3944 = vsel %vm810, %v1479, %v3668
  %v3945 = vsel %vm810, %v1480, %v3670
  %v3946 = vsel %vm810, %v1481, %v3672
  %v3947 = vsel %vm810, %v1482, %v3674
  %v3948 = vsel %vm810, %v1483, %v3676
  %v3949 = vsel %vm810, %v1484, %v3678
  %v3950 = vsel %vm810, %v1485, %v3680
  %v3951 = vsel %vm810, %v2862, %v3718
  %v3952 = vsel %vm810, %v2863, %v3720
  %v3953 = vsel %vm810, %v2864, %v3722
  %v3954 = vsel %vm810, %v2865, %v3724
  %v3955 = vsel %vm810, %v2866, %v3726
  %v3956 = vsel %vm810, %v2867, %v3728
  %v3957 = vsel %vm810, %v2868, %v3730
  %v3958 = vsel %vm810, %v2869, %v3732
  %v3959 = vsel %vm810, %v2870, %v3734
  %v3960 = vsel %vm810, %v2871, %v3736
  %v3961 = vsel %vm810, %v2872, %v3738
  %v3962 = vsel %vm810, %v2873, %v3740
  %v3963 = vsel %vm810, %v2874, %v3742
  %v3964 = vsel %vm810, %v2875, %v3744
  %v3965 = vsel %vm810, %v2876, %v3746
  %v3966 = vsel %vm810, %v2877, %v3748
  %v3967 = vsel %vm810, %v2878, %v3750
  %v3968 = vsel %vm810, %v2879, %v3752
  %v3969 = vsel %vm810, %v3144, %v3790
  %v3970 = vsel %vm810, %v3145, %v3792
  %v3971 = vsel %vm810, %v3146, %v3794
  %v3972 = vsel %vm810, %v3147, %v3796
  %v3973 = vsel %vm810, %v3148, %v3798
  %v3974 = vsel %vm810, %v3149, %v3800
  %v3975 = vsel %vm810, %v3150, %v3802
  %v3976 = vsel %vm810, %v3151, %v3804
  %v3977 = vsel %vm810, %v3152, %v3806
  %v3978 = vsel %vm810, %v3153, %v3808
  %v3979 = vsel %vm810, %v3154, %v3810
  %v3980 = vsel %vm810, %v3155, %v3812
  %v3981 = vsel %vm810, %v3156, %v3814
  %v3982 = vsel %vm810, %v3157, %v3816
  %v3983 = vsel %vm810, %v3158, %v3818
  %v3984 = vsel %vm810, %v3159, %v3820
  %v3985 = vsel %vm810, %v3160, %v3822
  %v3986 = vsel %vm810, %v3161, %v3824
  %v3987 = vpack.c.bf16 %v3844, %v3843
  %v3988 = vpack.c.bf16 %v3862, %v3861
  %v3989 = vpack.c.bf16 %v3880, %v3879
  %v3990 = vpack.c.bf16 %v3898, %v3897
  %v3991 = vpack.c.bf16 %v3916, %v3915
  %v3992 = vpack.c.bf16 %v3934, %v3933
  %v3993 = vpack.c.bf16 %v3952, %v3951
  %v3994 = vpack.c.bf16 %v3970, %v3969
  %v3995 = vpack.c.bf16 %v3846, %v3845
  %v3996 = vpack.c.bf16 %v3864, %v3863
  %v3997 = vpack.c.bf16 %v3882, %v3881
  %v3998 = vpack.c.bf16 %v3900, %v3899
  %v3999 = vpack.c.bf16 %v3918, %v3917
  %v4000 = vpack.c.bf16 %v3936, %v3935
  %v4001 = vpack.c.bf16 %v3954, %v3953
  %v4002 = vpack.c.bf16 %v3972, %v3971
  %v4003 = vpack.c.bf16 %v3848, %v3847
  %v4004 = vpack.c.bf16 %v3866, %v3865
  %v4005 = vpack.c.bf16 %v3884, %v3883
  %v4006 = vpack.c.bf16 %v3902, %v3901
  %v4007 = vpack.c.bf16 %v3920, %v3919
  %v4008 = vpack.c.bf16 %v3938, %v3937
  %v4009 = vpack.c.bf16 %v3956, %v3955
  %v4010 = vpack.c.bf16 %v3974, %v3973
  %v4011 = vpack.c.bf16 %v3850, %v3849
  %v4012 = vpack.c.bf16 %v3868, %v3867
  %v4013 = vpack.c.bf16 %v3886, %v3885
  %v4014 = vpack.c.bf16 %v3904, %v3903
  %v4015 = vpack.c.bf16 %v3922, %v3921
  %v4016 = vpack.c.bf16 %v3940, %v3939
  %v4017 = vpack.c.bf16 %v3958, %v3957
  %v4018 = vpack.c.bf16 %v3976, %v3975
  %v4019 = vpack.c.bf16 %v3852, %v3851
  %v4020 = vpack.c.bf16 %v3870, %v3869
  %v4021 = vpack.c.bf16 %v3888, %v3887
  %v4022 = vpack.c.bf16 %v3906, %v3905
  %v4023 = vpack.c.bf16 %v3924, %v3923
  %v4024 = vpack.c.bf16 %v3942, %v3941
  %v4025 = vpack.c.bf16 %v3960, %v3959
  %v4026 = vpack.c.bf16 %v3978, %v3977
  %v4027 = vpack.c.bf16 %v3854, %v3853
  %v4028 = vpack.c.bf16 %v3872, %v3871
  %v4029 = vpack.c.bf16 %v3890, %v3889
  %v4030 = vpack.c.bf16 %v3908, %v3907
  %v4031 = vpack.c.bf16 %v3926, %v3925
  %v4032 = vpack.c.bf16 %v3944, %v3943
  %v4033 = vpack.c.bf16 %v3962, %v3961
  %v4034 = vpack.c.bf16 %v3980, %v3979
  %v4035 = vpack.c.bf16 %v3856, %v3855
  %v4036 = vpack.c.bf16 %v3874, %v3873
  %v4037 = vpack.c.bf16 %v3892, %v3891
  %v4038 = vpack.c.bf16 %v3910, %v3909
  %v4039 = vpack.c.bf16 %v3928, %v3927
  %v4040 = vpack.c.bf16 %v3946, %v3945
  %v4041 = vpack.c.bf16 %v3964, %v3963
  %v4042 = vpack.c.bf16 %v3982, %v3981
  %v4043 = vpack.c.bf16 %v3858, %v3857
  %v4044 = vpack.c.bf16 %v3876, %v3875
  %v4045 = vpack.c.bf16 %v3894, %v3893
  %v4046 = vpack.c.bf16 %v3912, %v3911
  %v4047 = vpack.c.bf16 %v3930, %v3929
  %v4048 = vpack.c.bf16 %v3948, %v3947
  %v4049 = vpack.c.bf16 %v3966, %v3965
  %v4050 = vpack.c.bf16 %v3984, %v3983
  %v4051 = vpack.c.bf16 %v3860, %v3859
  %v4052 = vpack.c.bf16 %v3878, %v3877
  %v4053 = vpack.c.bf16 %v3896, %v3895
  %v4054 = vpack.c.bf16 %v3914, %v3913
  %v4055 = vpack.c.bf16 %v3932, %v3931
  %v4056 = vpack.c.bf16 %v3950, %v3949
  %v4057 = vpack.c.bf16 %v3968, %v3967
  %v4058 = vpack.c.bf16 %v3986, %v3985
  %v4059 = vld [vmem:[%s4] sm:$0xf]
  %v4060 = vld [vmem:[%s4 + $0x4] sm:$0xf]
  %v4061 = vld [vmem:[%s4 + $0x8] sm:$0xf]
  %v4062 = vld [vmem:[%s4 + $0xc] sm:$0xf]
  %v4063 = vld [vmem:[%s4 + $0x10] sm:$0xf]
  %v4064 = vld [vmem:[%s4 + $0x14] sm:$0xf]
  %v4065 = vld [vmem:[%s4 + $0x18] sm:$0xf]
  %v4066 = vld [vmem:[%s4 + $0x1c] sm:$0xf]
  %v4067 = vld [vmem:[%s4 + $0x20] sm:$0xf]
  %v4068 = vld [vmem:[%s4 + $0x24] sm:$0xf]
  %v4069 = vld [vmem:[%s4 + $0x28] sm:$0xf]
  %v4070 = vld [vmem:[%s4 + $0x2c] sm:$0xf]
  %v4071 = vld [vmem:[%s4 + $0x30] sm:$0xf]
  %v4072 = vld [vmem:[%s4 + $0x34] sm:$0xf]
  %v4073 = vld [vmem:[%s4 + $0x38] sm:$0xf]
  %v4074 = vld [vmem:[%s4 + $0x3c] sm:$0xf]
  %v4075 = vld [vmem:[%s4 + $0x40] sm:$0xf]
  %v4076 = vld [vmem:[%s4 + $0x44] sm:$0xf]
  %v4077 = vld [vmem:[%s4 + $0x48] sm:$0xf]
  %v4078 = vld [vmem:[%s4 + $0x4c] sm:$0xf]
  %v4079 = vld [vmem:[%s4 + $0x50] sm:$0xf]
  %v4080 = vld [vmem:[%s4 + $0x54] sm:$0xf]
  %v4081 = vld [vmem:[%s4 + $0x58] sm:$0xf]
  %v4082 = vld [vmem:[%s4 + $0x5c] sm:$0xf]
  %v4083 = vld [vmem:[%s4 + $0x60] sm:$0xf]
  %v4084 = vld [vmem:[%s4 + $0x64] sm:$0xf]
  %v4085 = vld [vmem:[%s4 + $0x68] sm:$0xf]
  %v4086 = vld [vmem:[%s4 + $0x6c] sm:$0xf]
  %v4087 = vld [vmem:[%s4 + $0x70] sm:$0xf]
  %v4088 = vld [vmem:[%s4 + $0x74] sm:$0xf]
  %v4089 = vld [vmem:[%s4 + $0x78] sm:$0xf]
  %v4090 = vld [vmem:[%s4 + $0x7c] sm:$0xf]
  %v4091 = vld [vmem:[%s4 + $0x80] sm:$0xf]
  %v4092 = vld [vmem:[%s4 + $0x84] sm:$0xf]
  %v4093 = vld [vmem:[%s4 + $0x88] sm:$0xf]
  %v4094 = vld [vmem:[%s4 + $0x8c] sm:$0xf]
  %v4095 = vld [vmem:[%s4 + $0x90] sm:$0xf]
  %v4096 = vld [vmem:[%s4 + $0x94] sm:$0xf]
  %v4097 = vld [vmem:[%s4 + $0x98] sm:$0xf]
  %v4098 = vld [vmem:[%s4 + $0x9c] sm:$0xf]
  %v4099 = vld [vmem:[%s4 + $0xa0] sm:$0xf]
  %v4100 = vld [vmem:[%s4 + $0xa4] sm:$0xf]
  %v4101 = vld [vmem:[%s4 + $0xa8] sm:$0xf]
  %v4102 = vld [vmem:[%s4 + $0xac] sm:$0xf]
  %v4103 = vld [vmem:[%s4 + $0xb0] sm:$0xf]
  %v4104 = vld [vmem:[%s4 + $0xb4] sm:$0xf]
  %v4105 = vld [vmem:[%s4 + $0xb8] sm:$0xf]
  %v4106 = vld [vmem:[%s4 + $0xbc] sm:$0xf]
  %v4107 = vld [vmem:[%s4 + $0xc0] sm:$0xf]
  %v4108 = vld [vmem:[%s4 + $0xc4] sm:$0xf]
  %v4109 = vld [vmem:[%s4 + $0xc8] sm:$0xf]
  %v4110 = vld [vmem:[%s4 + $0xcc] sm:$0xf]
  %v4111 = vld [vmem:[%s4 + $0xd0] sm:$0xf]
  %v4112 = vld [vmem:[%s4 + $0xd4] sm:$0xf]
  %v4113 = vld [vmem:[%s4 + $0xd8] sm:$0xf]
  %v4114 = vld [vmem:[%s4 + $0xdc] sm:$0xf]
  %v4115 = vld [vmem:[%s4 + $0xe0] sm:$0xf]
  %v4116 = vld [vmem:[%s4 + $0xe4] sm:$0xf]
  %v4117 = vld [vmem:[%s4 + $0xe8] sm:$0xf]
  %v4118 = vld [vmem:[%s4 + $0xec] sm:$0xf]
  %v4119 = vld [vmem:[%s4 + $0xf0] sm:$0xf]
  %v4120 = vld [vmem:[%s4 + $0xf4] sm:$0xf]
  %v4121 = vld [vmem:[%s4 + $0xf8] sm:$0xf]
  %v4122 = vld [vmem:[%s4 + $0xfc] sm:$0xf]
  %v4123 = vld [vmem:[%s4 + $0x100] sm:$0xf]
  %v4124 = vld [vmem:[%s4 + $0x104] sm:$0xf]
  %v4125 = vld [vmem:[%s4 + $0x108] sm:$0xf]
  %v4126 = vld [vmem:[%s4 + $0x10c] sm:$0xf]
  %v4127 = vld [vmem:[%s4 + $0x110] sm:$0xf]
  %v4128 = vld [vmem:[%s4 + $0x114] sm:$0xf]
  %v4129 = vld [vmem:[%s4 + $0x118] sm:$0xf]
  %v4130 = vld [vmem:[%s4 + $0x11c] sm:$0xf]
  %v4131 = vld [vmem:[%s4 + $0x120] sm:$0xf]
  %v4132 = vld [vmem:[%s4 + $0x124] sm:$0xf]
  %v4133 = vld [vmem:[%s4 + $0x128] sm:$0xf]
  %v4134 = vld [vmem:[%s4 + $0x12c] sm:$0xf]
  %v4135 = vld [vmem:[%s4 + $0x130] sm:$0xf]
  %v4136 = vld [vmem:[%s4 + $0x134] sm:$0xf]
  %v4137 = vld [vmem:[%s4 + $0x138] sm:$0xf]
  %v4138 = vld [vmem:[%s4 + $0x13c] sm:$0xf]
  %v4139 = vld [vmem:[%s4 + $0x140] sm:$0xf]
  %v4140 = vld [vmem:[%s4 + $0x144] sm:$0xf]
  %v4141 = vld [vmem:[%s4 + $0x148] sm:$0xf]
  %v4142 = vld [vmem:[%s4 + $0x14c] sm:$0xf]
  %v4143 = vld [vmem:[%s4 + $0x150] sm:$0xf]
  %v4144 = vld [vmem:[%s4 + $0x154] sm:$0xf]
  %v4145 = vld [vmem:[%s4 + $0x158] sm:$0xf]
  %v4146 = vld [vmem:[%s4 + $0x15c] sm:$0xf]
  %v4147 = vld [vmem:[%s4 + $0x160] sm:$0xf]
  %v4148 = vld [vmem:[%s4 + $0x164] sm:$0xf]
  %v4149 = vld [vmem:[%s4 + $0x168] sm:$0xf]
  %v4150 = vld [vmem:[%s4 + $0x16c] sm:$0xf]
  %v4151 = vld [vmem:[%s4 + $0x170] sm:$0xf]
  %v4152 = vld [vmem:[%s4 + $0x174] sm:$0xf]
  %v4153 = vld [vmem:[%s4 + $0x178] sm:$0xf]
  %v4154 = vld [vmem:[%s4 + $0x17c] sm:$0xf]
  %v4155 = vld [vmem:[%s4 + $0x180] sm:$0xf]
  %v4156 = vld [vmem:[%s4 + $0x184] sm:$0xf]
  %v4157 = vld [vmem:[%s4 + $0x188] sm:$0xf]
  %v4158 = vld [vmem:[%s4 + $0x18c] sm:$0xf]
  %v4159 = vld [vmem:[%s4 + $0x190] sm:$0xf]
  %v4160 = vld [vmem:[%s4 + $0x194] sm:$0xf]
  %v4161 = vld [vmem:[%s4 + $0x198] sm:$0xf]
  %v4162 = vld [vmem:[%s4 + $0x19c] sm:$0xf]
  %v4163 = vld [vmem:[%s4 + $0x1a0] sm:$0xf]
  %v4164 = vld [vmem:[%s4 + $0x1a4] sm:$0xf]
  %v4165 = vld [vmem:[%s4 + $0x1a8] sm:$0xf]
  %v4166 = vld [vmem:[%s4 + $0x1ac] sm:$0xf]
  %v4167 = vld [vmem:[%s4 + $0x1b0] sm:$0xf]
  %v4168 = vld [vmem:[%s4 + $0x1b4] sm:$0xf]
  %v4169 = vld [vmem:[%s4 + $0x1b8] sm:$0xf]
  %v4170 = vld [vmem:[%s4 + $0x1bc] sm:$0xf]
  %v4171 = vld [vmem:[%s4 + $0x1c0] sm:$0xf]
  %v4172 = vld [vmem:[%s4 + $0x1c4] sm:$0xf]
  %v4173 = vld [vmem:[%s4 + $0x1c8] sm:$0xf]
  %v4174 = vld [vmem:[%s4 + $0x1cc] sm:$0xf]
  %v4175 = vld [vmem:[%s4 + $0x1d0] sm:$0xf]
  %v4176 = vld [vmem:[%s4 + $0x1d4] sm:$0xf]
  %v4177 = vld [vmem:[%s4 + $0x1d8] sm:$0xf]
  %v4178 = vld [vmem:[%s4 + $0x1dc] sm:$0xf]
  %v4179 = vld [vmem:[%s4 + $0x1e0] sm:$0xf]
  %v4180 = vld [vmem:[%s4 + $0x1e4] sm:$0xf]
  %v4181 = vld [vmem:[%s4 + $0x1e8] sm:$0xf]
  %v4182 = vld [vmem:[%s4 + $0x1ec] sm:$0xf]
  %v4183 = vld [vmem:[%s4 + $0x1f0] sm:$0xf]
  %v4184 = vld [vmem:[%s4 + $0x1f4] sm:$0xf]
  %v4185 = vld [vmem:[%s4 + $0x1f8] sm:$0xf]
  %v4186 = vld [vmem:[%s4 + $0x1fc] sm:$0xf]
  %v4315 = vunpack.c.l.b16 %v4059
  %v4316 = vunpack.c.l.b16 %v4060
  %v4317 = vunpack.c.l.b16 %v4061
  %v4318 = vunpack.c.l.b16 %v4062
  %v4319 = vunpack.c.l.b16 %v4063
  %v4320 = vunpack.c.l.b16 %v4064
  %v4321 = vunpack.c.l.b16 %v4065
  %v4322 = vunpack.c.l.b16 %v4066
  %v4323 = vunpack.c.l.b16 %v4067
  %v4324 = vunpack.c.l.b16 %v4068
  %v4325 = vunpack.c.l.b16 %v4069
  %v4326 = vunpack.c.l.b16 %v4070
  %v4327 = vunpack.c.l.b16 %v4071
  %v4328 = vunpack.c.l.b16 %v4072
  %v4329 = vunpack.c.l.b16 %v4073
  %v4330 = vunpack.c.l.b16 %v4074
  %v4331 = vunpack.c.l.b16 %v4075
  %v4332 = vunpack.c.l.b16 %v4076
  %v4333 = vunpack.c.l.b16 %v4077
  %v4334 = vunpack.c.l.b16 %v4078
  %v4335 = vunpack.c.l.b16 %v4079
  %v4336 = vunpack.c.l.b16 %v4080
  %v4337 = vunpack.c.l.b16 %v4081
  %v4338 = vunpack.c.l.b16 %v4082
  %v4339 = vunpack.c.l.b16 %v4083
  %v4340 = vunpack.c.l.b16 %v4084
  %v4341 = vunpack.c.l.b16 %v4085
  %v4342 = vunpack.c.l.b16 %v4086
  %v4343 = vunpack.c.l.b16 %v4087
  %v4344 = vunpack.c.l.b16 %v4088
  %v4345 = vunpack.c.l.b16 %v4089
  %v4346 = vunpack.c.l.b16 %v4090
  %v4347 = vunpack.c.l.b16 %v4091
  %v4348 = vunpack.c.l.b16 %v4092
  %v4349 = vunpack.c.l.b16 %v4093
  %v4350 = vunpack.c.l.b16 %v4094
  %v4351 = vunpack.c.l.b16 %v4095
  %v4352 = vunpack.c.l.b16 %v4096
  %v4353 = vunpack.c.l.b16 %v4097
  %v4354 = vunpack.c.l.b16 %v4098
  %v4355 = vunpack.c.l.b16 %v4099
  %v4356 = vunpack.c.l.b16 %v4100
  %v4357 = vunpack.c.l.b16 %v4101
  %v4358 = vunpack.c.l.b16 %v4102
  %v4359 = vunpack.c.l.b16 %v4103
  %v4360 = vunpack.c.l.b16 %v4104
  %v4361 = vunpack.c.l.b16 %v4105
  %v4362 = vunpack.c.l.b16 %v4106
  %v4363 = vunpack.c.l.b16 %v4107
  %v4364 = vunpack.c.l.b16 %v4108
  %v4365 = vunpack.c.l.b16 %v4109
  %v4366 = vunpack.c.l.b16 %v4110
  %v4367 = vunpack.c.l.b16 %v4111
  %v4368 = vunpack.c.l.b16 %v4112
  %v4369 = vunpack.c.l.b16 %v4113
  %v4370 = vunpack.c.l.b16 %v4114
  %v4371 = vunpack.c.l.b16 %v4115
  %v4372 = vunpack.c.l.b16 %v4116
  %v4373 = vunpack.c.l.b16 %v4117
  %v4374 = vunpack.c.l.b16 %v4118
  %v4375 = vunpack.c.l.b16 %v4119
  %v4376 = vunpack.c.l.b16 %v4120
  %v4377 = vunpack.c.l.b16 %v4121
  %v4378 = vunpack.c.l.b16 %v4122
  %v4379 = vunpack.c.l.b16 %v4123
  %v4380 = vunpack.c.l.b16 %v4124
  %v4381 = vunpack.c.l.b16 %v4125
  %v4382 = vunpack.c.l.b16 %v4126
  %v4383 = vunpack.c.l.b16 %v4127
  %v4384 = vunpack.c.l.b16 %v4128
  %v4385 = vunpack.c.l.b16 %v4129
  %v4386 = vunpack.c.l.b16 %v4130
  %v4387 = vunpack.c.l.b16 %v4131
  %v4388 = vunpack.c.l.b16 %v4132
  %v4389 = vunpack.c.l.b16 %v4133
  %v4390 = vunpack.c.l.b16 %v4134
  %v4391 = vunpack.c.l.b16 %v4135
  %v4392 = vunpack.c.l.b16 %v4136
  %v4393 = vunpack.c.l.b16 %v4137
  %v4394 = vunpack.c.l.b16 %v4138
  %v4395 = vunpack.c.l.b16 %v4139
  %v4396 = vunpack.c.l.b16 %v4140
  %v4397 = vunpack.c.l.b16 %v4141
  %v4398 = vunpack.c.l.b16 %v4142
  %v4399 = vunpack.c.l.b16 %v4143
  %v4400 = vunpack.c.l.b16 %v4144
  %v4401 = vunpack.c.l.b16 %v4145
  %v4402 = vunpack.c.l.b16 %v4146
  %v4403 = vunpack.c.l.b16 %v4147
  %v4404 = vunpack.c.l.b16 %v4148
  %v4405 = vunpack.c.l.b16 %v4149
  %v4406 = vunpack.c.l.b16 %v4150
  %v4407 = vunpack.c.l.b16 %v4151
  %v4408 = vunpack.c.l.b16 %v4152
  %v4409 = vunpack.c.l.b16 %v4153
  %v4410 = vunpack.c.l.b16 %v4154
  %v4411 = vunpack.c.l.b16 %v4155
  %v4412 = vunpack.c.l.b16 %v4156
  %v4413 = vunpack.c.l.b16 %v4157
  %v4414 = vunpack.c.l.b16 %v4158
  %v4415 = vunpack.c.l.b16 %v4159
  %v4416 = vunpack.c.l.b16 %v4160
  %v4417 = vunpack.c.l.b16 %v4161
  %v4418 = vunpack.c.l.b16 %v4162
  %v4419 = vunpack.c.l.b16 %v4163
  %v4420 = vunpack.c.l.b16 %v4164
  %v4421 = vunpack.c.l.b16 %v4165
  %v4422 = vunpack.c.l.b16 %v4166
  %v4423 = vunpack.c.l.b16 %v4167
  %v4424 = vunpack.c.l.b16 %v4168
  %v4425 = vunpack.c.l.b16 %v4169
  %v4426 = vunpack.c.l.b16 %v4170
  %v4427 = vunpack.c.l.b16 %v4171
  %v4428 = vunpack.c.l.b16 %v4172
  %v4429 = vunpack.c.l.b16 %v4173
  %v4430 = vunpack.c.l.b16 %v4174
  %v4431 = vunpack.c.l.b16 %v4175
  %v4432 = vunpack.c.l.b16 %v4176
  %v4433 = vunpack.c.l.b16 %v4177
  %v4434 = vunpack.c.l.b16 %v4178
  %v4435 = vunpack.c.l.b16 %v4179
  %v4436 = vunpack.c.l.b16 %v4180
  %v4437 = vunpack.c.l.b16 %v4181
  %v4438 = vunpack.c.l.b16 %v4182
  %v4439 = vunpack.c.l.b16 %v4183
  %v4440 = vunpack.c.l.b16 %v4184
  %v4441 = vunpack.c.l.b16 %v4185
  %v4442 = vunpack.c.l.b16 %v4186
  %v4443 = vpack.c.b16 %v4316, %v4315
  %v4444 = vpack.c.b16 %v4318, %v4317
  %v4445 = vpack.c.b16 %v4320, %v4319
  %v4446 = vpack.c.b16 %v4322, %v4321
  %v4447 = vpack.c.b16 %v4324, %v4323
  %v4448 = vpack.c.b16 %v4326, %v4325
  %v4449 = vpack.c.b16 %v4328, %v4327
  %v4450 = vpack.c.b16 %v4330, %v4329
  %v4451 = vpack.c.b16 %v4332, %v4331
  %v4452 = vpack.c.b16 %v4334, %v4333
  %v4453 = vpack.c.b16 %v4336, %v4335
  %v4454 = vpack.c.b16 %v4338, %v4337
  %v4455 = vpack.c.b16 %v4340, %v4339
  %v4456 = vpack.c.b16 %v4342, %v4341
  %v4457 = vpack.c.b16 %v4344, %v4343
  %v4458 = vpack.c.b16 %v4346, %v4345
  %v4459 = vpack.c.b16 %v4348, %v4347
  %v4460 = vpack.c.b16 %v4350, %v4349
  %v4461 = vpack.c.b16 %v4352, %v4351
  %v4462 = vpack.c.b16 %v4354, %v4353
  %v4463 = vpack.c.b16 %v4356, %v4355
  %v4464 = vpack.c.b16 %v4358, %v4357
  %v4465 = vpack.c.b16 %v4360, %v4359
  %v4466 = vpack.c.b16 %v4362, %v4361
  %v4467 = vpack.c.b16 %v4364, %v4363
  %v4468 = vpack.c.b16 %v4366, %v4365
  %v4469 = vpack.c.b16 %v4368, %v4367
  %v4470 = vpack.c.b16 %v4370, %v4369
  %v4471 = vpack.c.b16 %v4372, %v4371
  %v4472 = vpack.c.b16 %v4374, %v4373
  %v4473 = vpack.c.b16 %v4376, %v4375
  %v4474 = vpack.c.b16 %v4378, %v4377
  %v4475 = vpack.c.b16 %v4380, %v4379
  %v4476 = vpack.c.b16 %v4382, %v4381
  %v4477 = vpack.c.b16 %v4384, %v4383
  %v4478 = vpack.c.b16 %v4386, %v4385
  %v4479 = vpack.c.b16 %v4388, %v4387
  %v4480 = vpack.c.b16 %v4390, %v4389
  %v4481 = vpack.c.b16 %v4392, %v4391
  %v4482 = vpack.c.b16 %v4394, %v4393
  %v4483 = vpack.c.b16 %v4396, %v4395
  %v4484 = vpack.c.b16 %v4398, %v4397
  %v4485 = vpack.c.b16 %v4400, %v4399
  %v4486 = vpack.c.b16 %v4402, %v4401
  %v4487 = vpack.c.b16 %v4404, %v4403
  %v4488 = vpack.c.b16 %v4406, %v4405
  %v4489 = vpack.c.b16 %v4408, %v4407
  %v4490 = vpack.c.b16 %v4410, %v4409
  %v4491 = vpack.c.b16 %v4412, %v4411
  %v4492 = vpack.c.b16 %v4414, %v4413
  %v4493 = vpack.c.b16 %v4416, %v4415
  %v4494 = vpack.c.b16 %v4418, %v4417
  %v4495 = vpack.c.b16 %v4420, %v4419
  %v4496 = vpack.c.b16 %v4422, %v4421
  %v4497 = vpack.c.b16 %v4424, %v4423
  %v4498 = vpack.c.b16 %v4426, %v4425
  %v4499 = vpack.c.b16 %v4428, %v4427
  %v4500 = vpack.c.b16 %v4430, %v4429
  %v4501 = vpack.c.b16 %v4432, %v4431
  %v4502 = vpack.c.b16 %v4434, %v4433
  %v4503 = vpack.c.b16 %v4436, %v4435
  %v4504 = vpack.c.b16 %v4438, %v4437
  %v4505 = vpack.c.b16 %v4440, %v4439
  %v4506 = vpack.c.b16 %v4442, %v4441
  %4571 = vmatprep.subr.bf16.mxu0 0
  %4572 = vmatpush1.bf16.msra.mxu0 %v4443
  %4573 = vmatprep.subr.bf16.mxu0 0
  %4574 = vmatpush1.bf16.msra.mxu0 %v4444
  %4575 = vmatprep.subr.bf16.mxu0 0
  %4576 = vmatpush1.bf16.msra.mxu0 %v4445
  %4577 = vmatprep.subr.bf16.mxu0 0
  %4578 = vmatpush1.bf16.msra.mxu0 %v4446
  %4579 = vmatprep.subr.bf16.mxu0 0
  %4580 = vmatpush1.bf16.msra.mxu0 %v4447
  %4581 = vmatprep.subr.bf16.mxu0 0
  %4582 = vmatpush1.bf16.msra.mxu0 %v4448
  %4583 = vmatprep.subr.bf16.mxu0 0
  %4584 = vmatpush1.bf16.msra.mxu0 %v4449
  %4585 = vmatprep.subr.bf16.mxu0 0
  %4586 = vmatpush1.bf16.msra.mxu0 %v4450
  %4587 = vmatprep.subr.bf16.mxu0 0
  %4588 = vmatpush1.bf16.msra.mxu0 %v4451
  %4589 = vmatprep.subr.bf16.mxu0 0
  %4590 = vmatpush1.bf16.msra.mxu0 %v4452
  %4591 = vmatprep.subr.bf16.mxu0 0
  %4592 = vmatpush1.bf16.msra.mxu0 %v4453
  %4593 = vmatprep.subr.bf16.mxu0 0
  %4594 = vmatpush1.bf16.msra.mxu0 %v4454
  %4595 = vmatprep.subr.bf16.mxu0 0
  %4596 = vmatpush1.bf16.msra.mxu0 %v4455
  %4597 = vmatprep.subr.bf16.mxu0 0
  %4598 = vmatpush1.bf16.msra.mxu0 %v4456
  %4599 = vmatprep.subr.bf16.mxu0 0
  %4600 = vmatpush1.bf16.msra.mxu0 %v4457
  %4601 = vmatprep.subr.bf16.mxu0 0
  %4602 = vmatpush1.bf16.msra.mxu0 %v4458
  %4603 = vmatprep.mubr.bf16.mxu0 %v3988
  %4604 = vmatmul.mubr.bf16.gmra.mrb[0].mxu0 %v3987
  %v4605 = vpop.f32.mrb[0].mxu0
  %v4606 = vadd.f32 0.0, %v4605
  %v4607 = vpop.f32.mrb[0].mxu0
  %v4608 = vpop.f32.mrb[0].mxu0
  %v4609 = vadd.f32 0.0, %v4608
  %v4610 = vpop.f32.mrb[0].mxu0
  %4611 = vmatprep.mubr.bf16.mxu0 %v3996
  %4612 = vmatmul.mubr.bf16.gmra.mrb[0].mxu0 %v3995
  %v4613 = vpop.f32.mrb[0].mxu0
  %v4614 = vadd.f32 0.0, %v4613
  %v4615 = vpop.f32.mrb[0].mxu0
  %v4616 = vpop.f32.mrb[0].mxu0
  %v4617 = vadd.f32 0.0, %v4616
  %v4618 = vpop.f32.mrb[0].mxu0
  %4619 = vmatprep.mubr.bf16.mxu0 %v4004
  %4620 = vmatmul.mubr.bf16.gmra.mrb[0].mxu0 %v4003
  %v4621 = vpop.f32.mrb[0].mxu0
  %v4622 = vadd.f32 0.0, %v4621
  %v4623 = vpop.f32.mrb[0].mxu0
  %v4624 = vpop.f32.mrb[0].mxu0
  %v4625 = vadd.f32 0.0, %v4624
  %v4626 = vpop.f32.mrb[0].mxu0
  %4627 = vmatprep.mubr.bf16.mxu0 %v4012
  %4628 = vmatmul.mubr.bf16.gmra.mrb[0].mxu0 %v4011
  %v4629 = vpop.f32.mrb[0].mxu0
  %v4630 = vadd.f32 0.0, %v4629
  %v4631 = vpop.f32.mrb[0].mxu0
  %v4632 = vpop.f32.mrb[0].mxu0
  %v4633 = vadd.f32 0.0, %v4632
  %v4634 = vpop.f32.mrb[0].mxu0
  %4635 = vmatprep.mubr.bf16.mxu0 %v4020
  %4636 = vmatmul.mubr.bf16.gmra.mrb[0].mxu0 %v4019
  %v4637 = vpop.f32.mrb[0].mxu0
  %v4638 = vadd.f32 0.0, %v4637
  %v4639 = vpop.f32.mrb[0].mxu0
  %v4640 = vpop.f32.mrb[0].mxu0
  %v4641 = vadd.f32 0.0, %v4640
  %v4642 = vpop.f32.mrb[0].mxu0
  %4643 = vmatprep.mubr.bf16.mxu0 %v4028
  %4644 = vmatmul.mubr.bf16.gmra.mrb[0].mxu0 %v4027
  %v4645 = vpop.f32.mrb[0].mxu0
  %v4646 = vadd.f32 0.0, %v4645
  %v4647 = vpop.f32.mrb[0].mxu0
  %v4648 = vpop.f32.mrb[0].mxu0
  %v4649 = vadd.f32 0.0, %v4648
  %v4650 = vpop.f32.mrb[0].mxu0
  %4651 = vmatprep.mubr.bf16.mxu0 %v4036
  %4652 = vmatmul.mubr.bf16.gmra.mrb[0].mxu0 %v4035
  %v4653 = vpop.f32.mrb[0].mxu0
  %v4654 = vadd.f32 0.0, %v4653
  %v4655 = vpop.f32.mrb[0].mxu0
  %v4656 = vpop.f32.mrb[0].mxu0
  %v4657 = vadd.f32 0.0, %v4656
  %v4658 = vpop.f32.mrb[0].mxu0
  %4659 = vmatprep.mubr.bf16.mxu0 %v4044
  %4660 = vmatmul.mubr.bf16.gmra.mrb[0].mxu0 %v4043
  %v4661 = vpop.f32.mrb[0].mxu0
  %v4662 = vadd.f32 0.0, %v4661
  %v4663 = vpop.f32.mrb[0].mxu0
  %v4664 = vpop.f32.mrb[0].mxu0
  %v4665 = vadd.f32 0.0, %v4664
  %v4666 = vpop.f32.mrb[0].mxu0
  %4667 = vmatprep.mubr.bf16.mxu0 %v4052
  %4668 = vmatmul.mubr.bf16.gmra.mrb[0].mxu0 %v4051
  %v4669 = vpop.f32.mrb[0].mxu0
  %v4670 = vadd.f32 0.0, %v4669
  %v4671 = vpop.f32.mrb[0].mxu0
  %v4672 = vpop.f32.mrb[0].mxu0
  %v4673 = vadd.f32 0.0, %v4672
  %v4674 = vpop.f32.mrb[0].mxu0
  %4675 = vdwg.mxu0
  %4676 = vmatprep.subr.bf16.mxu0 0
  %4677 = vmatpush1.bf16.msra.mxu0 %v4459
  %4678 = vmatprep.subr.bf16.mxu0 0
  %4679 = vmatpush1.bf16.msra.mxu0 %v4460
  %4680 = vmatprep.subr.bf16.mxu0 0
  %4681 = vmatpush1.bf16.msra.mxu0 %v4461
  %4682 = vmatprep.subr.bf16.mxu0 0
  %4683 = vmatpush1.bf16.msra.mxu0 %v4462
  %4684 = vmatprep.subr.bf16.mxu0 0
  %4685 = vmatpush1.bf16.msra.mxu0 %v4463
  %4686 = vmatprep.subr.bf16.mxu0 0
  %4687 = vmatpush1.bf16.msra.mxu0 %v4464
  %4688 = vmatprep.subr.bf16.mxu0 0
  %4689 = vmatpush1.bf16.msra.mxu0 %v4465
  %4690 = vmatprep.subr.bf16.mxu0 0
  %4691 = vmatpush1.bf16.msra.mxu0 %v4466
  %4692 = vmatprep.subr.bf16.mxu0 0
  %4693 = vmatpush1.bf16.msra.mxu0 %v4467
  %4694 = vmatprep.subr.bf16.mxu0 0
  %4695 = vmatpush1.bf16.msra.mxu0 %v4468
  %4696 = vmatprep.subr.bf16.mxu0 0
  %4697 = vmatpush1.bf16.msra.mxu0 %v4469
  %4698 = vmatprep.subr.bf16.mxu0 0
  %4699 = vmatpush1.bf16.msra.mxu0 %v4470
  %4700 = vmatprep.subr.bf16.mxu0 0
  %4701 = vmatpush1.bf16.msra.mxu0 %v4471
  %4702 = vmatprep.subr.bf16.mxu0 0
  %4703 = vmatpush1.bf16.msra.mxu0 %v4472
  %4704 = vmatprep.subr.bf16.mxu0 0
  %4705 = vmatpush1.bf16.msra.mxu0 %v4473
  %4706 = vmatprep.subr.bf16.mxu0 0
  %4707 = vmatpush1.bf16.msra.mxu0 %v4474
  %4708 = vmatprep.mubr.bf16.mxu0 %v3990
  %4709 = vmatmul.mubr.bf16.gmra.mrb[0].mxu0 %v3989
  %v4710 = vpop.f32.mrb[0].mxu0
  %v4711 = vadd.f32 %v4606, %v4710
  %v4712 = vpop.f32.mrb[0].mxu0
  %v4713 = vpop.f32.mrb[0].mxu0
  %v4714 = vadd.f32 %v4609, %v4713
  %v4715 = vpop.f32.mrb[0].mxu0
  %4716 = vmatprep.mubr.bf16.mxu0 %v3998
  %4717 = vmatmul.mubr.bf16.gmra.mrb[0].mxu0 %v3997
  %v4718 = vpop.f32.mrb[0].mxu0
  %v4719 = vadd.f32 %v4614, %v4718
  %v4720 = vpop.f32.mrb[0].mxu0
  %v4721 = vpop.f32.mrb[0].mxu0
  %v4722 = vadd.f32 %v4617, %v4721
  %v4723 = vpop.f32.mrb[0].mxu0
  %4724 = vmatprep.mubr.bf16.mxu0 %v4006
  %4725 = vmatmul.mubr.bf16.gmra.mrb[0].mxu0 %v4005
  %v4726 = vpop.f32.mrb[0].mxu0
  %v4727 = vadd.f32 %v4622, %v4726
  %v4728 = vpop.f32.mrb[0].mxu0
  %v4729 = vpop.f32.mrb[0].mxu0
  %v4730 = vadd.f32 %v4625, %v4729
  %v4731 = vpop.f32.mrb[0].mxu0
  %4732 = vmatprep.mubr.bf16.mxu0 %v4014
  %4733 = vmatmul.mubr.bf16.gmra.mrb[0].mxu0 %v4013
  %v4734 = vpop.f32.mrb[0].mxu0
  %v4735 = vadd.f32 %v4630, %v4734
  %v4736 = vpop.f32.mrb[0].mxu0
  %v4737 = vpop.f32.mrb[0].mxu0
  %v4738 = vadd.f32 %v4633, %v4737
  %v4739 = vpop.f32.mrb[0].mxu0
  %4740 = vmatprep.mubr.bf16.mxu0 %v4022
  %4741 = vmatmul.mubr.bf16.gmra.mrb[0].mxu0 %v4021
  %v4742 = vpop.f32.mrb[0].mxu0
  %v4743 = vadd.f32 %v4638, %v4742
  %v4744 = vpop.f32.mrb[0].mxu0
  %v4745 = vpop.f32.mrb[0].mxu0
  %v4746 = vadd.f32 %v4641, %v4745
  %v4747 = vpop.f32.mrb[0].mxu0
  %4748 = vmatprep.mubr.bf16.mxu0 %v4030
  %4749 = vmatmul.mubr.bf16.gmra.mrb[0].mxu0 %v4029
  %v4750 = vpop.f32.mrb[0].mxu0
  %v4751 = vadd.f32 %v4646, %v4750
  %v4752 = vpop.f32.mrb[0].mxu0
  %v4753 = vpop.f32.mrb[0].mxu0
  %v4754 = vadd.f32 %v4649, %v4753
  %v4755 = vpop.f32.mrb[0].mxu0
  %4756 = vmatprep.mubr.bf16.mxu0 %v4038
  %4757 = vmatmul.mubr.bf16.gmra.mrb[0].mxu0 %v4037
  %v4758 = vpop.f32.mrb[0].mxu0
  %v4759 = vadd.f32 %v4654, %v4758
  %v4760 = vpop.f32.mrb[0].mxu0
  %v4761 = vpop.f32.mrb[0].mxu0
  %v4762 = vadd.f32 %v4657, %v4761
  %v4763 = vpop.f32.mrb[0].mxu0
  %4764 = vmatprep.mubr.bf16.mxu0 %v4046
  %4765 = vmatmul.mubr.bf16.gmra.mrb[0].mxu0 %v4045
  %v4766 = vpop.f32.mrb[0].mxu0
  %v4767 = vadd.f32 %v4662, %v4766
  %v4768 = vpop.f32.mrb[0].mxu0
  %v4769 = vpop.f32.mrb[0].mxu0
  %v4770 = vadd.f32 %v4665, %v4769
  %v4771 = vpop.f32.mrb[0].mxu0
  %4772 = vmatprep.mubr.bf16.mxu0 %v4054
  %4773 = vmatmul.mubr.bf16.gmra.mrb[0].mxu0 %v4053
  %v4774 = vpop.f32.mrb[0].mxu0
  %v4775 = vadd.f32 %v4670, %v4774
  %v4776 = vpop.f32.mrb[0].mxu0
  %v4777 = vpop.f32.mrb[0].mxu0
  %v4778 = vadd.f32 %v4673, %v4777
  %v4779 = vpop.f32.mrb[0].mxu0
  %4780 = vdwg.mxu0
  %4781 = vmatprep.subr.bf16.mxu0 0
  %4782 = vmatpush1.bf16.msra.mxu0 %v4475
  %4783 = vmatprep.subr.bf16.mxu0 0
  %4784 = vmatpush1.bf16.msra.mxu0 %v4476
  %4785 = vmatprep.subr.bf16.mxu0 0
  %4786 = vmatpush1.bf16.msra.mxu0 %v4477
  %4787 = vmatprep.subr.bf16.mxu0 0
  %4788 = vmatpush1.bf16.msra.mxu0 %v4478
  %4789 = vmatprep.subr.bf16.mxu0 0
  %4790 = vmatpush1.bf16.msra.mxu0 %v4479
  %4791 = vmatprep.subr.bf16.mxu0 0
  %4792 = vmatpush1.bf16.msra.mxu0 %v4480
  %4793 = vmatprep.subr.bf16.mxu0 0
  %4794 = vmatpush1.bf16.msra.mxu0 %v4481
  %4795 = vmatprep.subr.bf16.mxu0 0
  %4796 = vmatpush1.bf16.msra.mxu0 %v4482
  %4797 = vmatprep.subr.bf16.mxu0 0
  %4798 = vmatpush1.bf16.msra.mxu0 %v4483
  %4799 = vmatprep.subr.bf16.mxu0 0
  %4800 = vmatpush1.bf16.msra.mxu0 %v4484
  %4801 = vmatprep.subr.bf16.mxu0 0
  %4802 = vmatpush1.bf16.msra.mxu0 %v4485
  %4803 = vmatprep.subr.bf16.mxu0 0
  %4804 = vmatpush1.bf16.msra.mxu0 %v4486
  %4805 = vmatprep.subr.bf16.mxu0 0
  %4806 = vmatpush1.bf16.msra.mxu0 %v4487
  %4807 = vmatprep.subr.bf16.mxu0 0
  %4808 = vmatpush1.bf16.msra.mxu0 %v4488
  %4809 = vmatprep.subr.bf16.mxu0 0
  %4810 = vmatpush1.bf16.msra.mxu0 %v4489
  %4811 = vmatprep.subr.bf16.mxu0 0
  %4812 = vmatpush1.bf16.msra.mxu0 %v4490
  %4813 = vmatprep.mubr.bf16.mxu0 %v3992
  %4814 = vmatmul.mubr.bf16.gmra.mrb[0].mxu0 %v3991
  %v4815 = vpop.f32.mrb[0].mxu0
  %v4816 = vadd.f32 %v4711, %v4815
  %v4817 = vpop.f32.mrb[0].mxu0
  %v4818 = vpop.f32.mrb[0].mxu0
  %v4819 = vadd.f32 %v4714, %v4818
  %v4820 = vpop.f32.mrb[0].mxu0
  %4821 = vmatprep.mubr.bf16.mxu0 %v4000
  %4822 = vmatmul.mubr.bf16.gmra.mrb[0].mxu0 %v3999
  %v4823 = vpop.f32.mrb[0].mxu0
  %v4824 = vadd.f32 %v4719, %v4823
  %v4825 = vpop.f32.mrb[0].mxu0
  %v4826 = vpop.f32.mrb[0].mxu0
  %v4827 = vadd.f32 %v4722, %v4826
  %v4828 = vpop.f32.mrb[0].mxu0
  %4829 = vmatprep.mubr.bf16.mxu0 %v4008
  %4830 = vmatmul.mubr.bf16.gmra.mrb[0].mxu0 %v4007
  %v4831 = vpop.f32.mrb[0].mxu0
  %v4832 = vadd.f32 %v4727, %v4831
  %v4833 = vpop.f32.mrb[0].mxu0
  %v4834 = vpop.f32.mrb[0].mxu0
  %v4835 = vadd.f32 %v4730, %v4834
  %v4836 = vpop.f32.mrb[0].mxu0
  %4837 = vmatprep.mubr.bf16.mxu0 %v4016
  %4838 = vmatmul.mubr.bf16.gmra.mrb[0].mxu0 %v4015
  %v4839 = vpop.f32.mrb[0].mxu0
  %v4840 = vadd.f32 %v4735, %v4839
  %v4841 = vpop.f32.mrb[0].mxu0
  %v4842 = vpop.f32.mrb[0].mxu0
  %v4843 = vadd.f32 %v4738, %v4842
  %v4844 = vpop.f32.mrb[0].mxu0
  %4845 = vmatprep.mubr.bf16.mxu0 %v4024
  %4846 = vmatmul.mubr.bf16.gmra.mrb[0].mxu0 %v4023
  %v4847 = vpop.f32.mrb[0].mxu0
  %v4848 = vadd.f32 %v4743, %v4847
  %v4849 = vpop.f32.mrb[0].mxu0
  %v4850 = vpop.f32.mrb[0].mxu0
  %v4851 = vadd.f32 %v4746, %v4850
  %v4852 = vpop.f32.mrb[0].mxu0
  %4853 = vmatprep.mubr.bf16.mxu0 %v4032
  %4854 = vmatmul.mubr.bf16.gmra.mrb[0].mxu0 %v4031
  %v4855 = vpop.f32.mrb[0].mxu0
  %v4856 = vadd.f32 %v4751, %v4855
  %v4857 = vpop.f32.mrb[0].mxu0
  %v4858 = vpop.f32.mrb[0].mxu0
  %v4859 = vadd.f32 %v4754, %v4858
  %v4860 = vpop.f32.mrb[0].mxu0
  %4861 = vmatprep.mubr.bf16.mxu0 %v4040
  %4862 = vmatmul.mubr.bf16.gmra.mrb[0].mxu0 %v4039
  %v4863 = vpop.f32.mrb[0].mxu0
  %v4864 = vadd.f32 %v4759, %v4863
  %v4865 = vpop.f32.mrb[0].mxu0
  %v4866 = vpop.f32.mrb[0].mxu0
  %v4867 = vadd.f32 %v4762, %v4866
  %v4868 = vpop.f32.mrb[0].mxu0
  %4869 = vmatprep.mubr.bf16.mxu0 %v4048
  %4870 = vmatmul.mubr.bf16.gmra.mrb[0].mxu0 %v4047
  %v4871 = vpop.f32.mrb[0].mxu0
  %v4872 = vadd.f32 %v4767, %v4871
  %v4873 = vpop.f32.mrb[0].mxu0
  %v4874 = vpop.f32.mrb[0].mxu0
  %v4875 = vadd.f32 %v4770, %v4874
  %v4876 = vpop.f32.mrb[0].mxu0
  %4877 = vmatprep.mubr.bf16.mxu0 %v4056
  %4878 = vmatmul.mubr.bf16.gmra.mrb[0].mxu0 %v4055
  %v4879 = vpop.f32.mrb[0].mxu0
  %v4880 = vadd.f32 %v4775, %v4879
  %v4881 = vpop.f32.mrb[0].mxu0
  %v4882 = vpop.f32.mrb[0].mxu0
  %v4883 = vadd.f32 %v4778, %v4882
  %v4884 = vpop.f32.mrb[0].mxu0
  %4885 = vdwg.mxu0
  %4886 = vmatprep.subr.bf16.mxu0 0
  %4887 = vmatpush1.bf16.msra.mxu0 %v4491
  %4888 = vmatprep.subr.bf16.mxu0 0
  %4889 = vmatpush1.bf16.msra.mxu0 %v4492
  %4890 = vmatprep.subr.bf16.mxu0 0
  %4891 = vmatpush1.bf16.msra.mxu0 %v4493
  %4892 = vmatprep.subr.bf16.mxu0 0
  %4893 = vmatpush1.bf16.msra.mxu0 %v4494
  %4894 = vmatprep.subr.bf16.mxu0 0
  %4895 = vmatpush1.bf16.msra.mxu0 %v4495
  %4896 = vmatprep.subr.bf16.mxu0 0
  %4897 = vmatpush1.bf16.msra.mxu0 %v4496
  %4898 = vmatprep.subr.bf16.mxu0 0
  %4899 = vmatpush1.bf16.msra.mxu0 %v4497
  %4900 = vmatprep.subr.bf16.mxu0 0
  %4901 = vmatpush1.bf16.msra.mxu0 %v4498
  %4902 = vmatprep.subr.bf16.mxu0 0
  %4903 = vmatpush1.bf16.msra.mxu0 %v4499
  %4904 = vmatprep.subr.bf16.mxu0 0
  %4905 = vmatpush1.bf16.msra.mxu0 %v4500
  %4906 = vmatprep.subr.bf16.mxu0 0
  %4907 = vmatpush1.bf16.msra.mxu0 %v4501
  %4908 = vmatprep.subr.bf16.mxu0 0
  %4909 = vmatpush1.bf16.msra.mxu0 %v4502
  %4910 = vmatprep.subr.bf16.mxu0 0
  %4911 = vmatpush1.bf16.msra.mxu0 %v4503
  %4912 = vmatprep.subr.bf16.mxu0 0
  %4913 = vmatpush1.bf16.msra.mxu0 %v4504
  %4914 = vmatprep.subr.bf16.mxu0 0
  %4915 = vmatpush1.bf16.msra.mxu0 %v4505
  %4916 = vmatprep.subr.bf16.mxu0 0
  %4917 = vmatpush1.bf16.msra.mxu0 %v4506
  %4918 = vmatprep.mubr.bf16.mxu0 %v3994
  %4919 = vmatmul.mubr.bf16.gmra.mrb[0].mxu0 %v3993
  %v4920 = vpop.f32.mrb[0].mxu0
  %v4921 = vadd.f32 %v4816, %v4920
  %v4922 = vpop.f32.mrb[0].mxu0
  %v4923 = vpop.f32.mrb[0].mxu0
  %v4924 = vadd.f32 %v4819, %v4923
  %v4925 = vpop.f32.mrb[0].mxu0
  %4926 = vmatprep.mubr.bf16.mxu0 %v4002
  %4927 = vmatmul.mubr.bf16.gmra.mrb[0].mxu0 %v4001
  %v4928 = vpop.f32.mrb[0].mxu0
  %v4929 = vadd.f32 %v4824, %v4928
  %v4930 = vpop.f32.mrb[0].mxu0
  %v4931 = vpop.f32.mrb[0].mxu0
  %v4932 = vadd.f32 %v4827, %v4931
  %v4933 = vpop.f32.mrb[0].mxu0
  %4934 = vmatprep.mubr.bf16.mxu0 %v4010
  %4935 = vmatmul.mubr.bf16.gmra.mrb[0].mxu0 %v4009
  %v4936 = vpop.f32.mrb[0].mxu0
  %v4937 = vadd.f32 %v4832, %v4936
  %v4938 = vpop.f32.mrb[0].mxu0
  %v4939 = vpop.f32.mrb[0].mxu0
  %v4940 = vadd.f32 %v4835, %v4939
  %v4941 = vpop.f32.mrb[0].mxu0
  %4942 = vmatprep.mubr.bf16.mxu0 %v4018
  %4943 = vmatmul.mubr.bf16.gmra.mrb[0].mxu0 %v4017
  %v4944 = vpop.f32.mrb[0].mxu0
  %v4945 = vadd.f32 %v4840, %v4944
  %v4946 = vpop.f32.mrb[0].mxu0
  %v4947 = vpop.f32.mrb[0].mxu0
  %v4948 = vadd.f32 %v4843, %v4947
  %v4949 = vpop.f32.mrb[0].mxu0
  %4950 = vmatprep.mubr.bf16.mxu0 %v4026
  %4951 = vmatmul.mubr.bf16.gmra.mrb[0].mxu0 %v4025
  %v4952 = vpop.f32.mrb[0].mxu0
  %v4953 = vadd.f32 %v4848, %v4952
  %v4954 = vpop.f32.mrb[0].mxu0
  %v4955 = vpop.f32.mrb[0].mxu0
  %v4956 = vadd.f32 %v4851, %v4955
  %v4957 = vpop.f32.mrb[0].mxu0
  %4958 = vmatprep.mubr.bf16.mxu0 %v4034
  %4959 = vmatmul.mubr.bf16.gmra.mrb[0].mxu0 %v4033
  %v4960 = vpop.f32.mrb[0].mxu0
  %v4961 = vadd.f32 %v4856, %v4960
  %v4962 = vpop.f32.mrb[0].mxu0
  %v4963 = vpop.f32.mrb[0].mxu0
  %v4964 = vadd.f32 %v4859, %v4963
  %v4965 = vpop.f32.mrb[0].mxu0
  %4966 = vmatprep.mubr.bf16.mxu0 %v4042
  %4967 = vmatmul.mubr.bf16.gmra.mrb[0].mxu0 %v4041
  %v4968 = vpop.f32.mrb[0].mxu0
  %v4969 = vadd.f32 %v4864, %v4968
  %v4970 = vpop.f32.mrb[0].mxu0
  %v4971 = vpop.f32.mrb[0].mxu0
  %v4972 = vadd.f32 %v4867, %v4971
  %v4973 = vpop.f32.mrb[0].mxu0
  %4974 = vmatprep.mubr.bf16.mxu0 %v4050
  %4975 = vmatmul.mubr.bf16.gmra.mrb[0].mxu0 %v4049
  %v4976 = vpop.f32.mrb[0].mxu0
  %v4977 = vadd.f32 %v4872, %v4976
  %v4978 = vpop.f32.mrb[0].mxu0
  %v4979 = vpop.f32.mrb[0].mxu0
  %v4980 = vadd.f32 %v4875, %v4979
  %v4981 = vpop.f32.mrb[0].mxu0
  %4982 = vmatprep.mubr.bf16.mxu0 %v4058
  %4983 = vmatmul.mubr.bf16.gmra.mrb[0].mxu0 %v4057
  %v4984 = vpop.f32.mrb[0].mxu0
  %v4985 = vadd.f32 %v4880, %v4984
  %v4986 = vpop.f32.mrb[0].mxu0
  %v4987 = vpop.f32.mrb[0].mxu0
  %v4988 = vadd.f32 %v4883, %v4987
  %v4989 = vpop.f32.mrb[0].mxu0
  %4990 = vdwg.mxu0
  %v4991 = vmax.f32 %v4921, 0.0
  %v4992 = vmax.f32 %v4924, 0.0
  %v4993 = vmax.f32 %v4929, 0.0
  %v4994 = vmax.f32 %v4932, 0.0
  %v4995 = vmax.f32 %v4937, 0.0
  %v4996 = vmax.f32 %v4940, 0.0
  %v4997 = vmax.f32 %v4945, 0.0
  %v4998 = vmax.f32 %v4948, 0.0
  %v4999 = vmax.f32 %v4953, 0.0
  %v5000 = vmax.f32 %v4956, 0.0
  %v5001 = vmax.f32 %v4961, 0.0
  %v5002 = vmax.f32 %v4964, 0.0
  %v5003 = vmax.f32 %v4969, 0.0
  %v5004 = vmax.f32 %v4972, 0.0
  %v5005 = vmax.f32 %v4977, 0.0
  %v5006 = vmax.f32 %v4980, 0.0
  %v5007 = vmax.f32 %v4985, 0.0
  %v5008 = vmax.f32 %v4988, 0.0
  %v5009 = vld [vmem:[%s5] sm:$0x1]
  %v5010 = vld [vmem:[%s6] sm:$0x1]
  %v5011 = vsel %vm306, %v4991, 0.0
  %v5012 = vsel %vm306, %v4992, 0.0
  %v5013 = vadd.f32 %v5011, %v5012
  %v5014 = vsel %vm306, %v4993, 0.0
  %v5015 = vadd.f32 %v5013, %v5014
  %v5016 = vsel %vm306, %v4994, 0.0
  %v5017 = vadd.f32 %v5015, %v5016
  %v5018 = vsel %vm306, %v4995, 0.0
  %v5019 = vadd.f32 %v5017, %v5018
  %v5020 = vsel %vm306, %v4996, 0.0
  %v5021 = vadd.f32 %v5019, %v5020
  %v5022 = vsel %vm306, %v4997, 0.0
  %v5023 = vadd.f32 %v5021, %v5022
  %v5024 = vsel %vm306, %v4998, 0.0
  %v5025 = vadd.f32 %v5023, %v5024
  %v5026 = vsel %vm306, %v4999, 0.0
  %v5027 = vadd.f32 %v5025, %v5026
  %v5028 = vsel %vm306, %v5000, 0.0
  %v5029 = vadd.f32 %v5027, %v5028
  %v5030 = vsel %vm306, %v5001, 0.0
  %v5031 = vadd.f32 %v5029, %v5030
  %v5032 = vsel %vm306, %v5002, 0.0
  %v5033 = vadd.f32 %v5031, %v5032
  %v5034 = vsel %vm306, %v5003, 0.0
  %v5035 = vadd.f32 %v5033, %v5034
  %v5036 = vsel %vm306, %v5004, 0.0
  %v5037 = vadd.f32 %v5035, %v5036
  %v5038 = vsel %vm306, %v5005, 0.0
  %v5039 = vadd.f32 %v5037, %v5038
  %v5040 = vsel %vm306, %v5006, 0.0
  %v5041 = vadd.f32 %v5039, %v5040
  %v5042 = vsel %vm306, %v5007, 0.0
  %v5043 = vadd.f32 %v5041, %v5042
  %v5044 = vsel %vm306, %v5008, 0.0
  %v5045 = vadd.f32 %v5043, %v5044
  %v5046 = vrot.slane %v5045, 4
  %v5047 = vadd.f32 %v5045, %v5046
  %v5048 = vrot.slane %v5047, 2
  %v5049 = vadd.f32 %v5047, %v5048
  %v5050 = vrot.slane %v5049, 1
  %v5051 = vadd.f32 %v5049, %v5050
  %v5052 = vrcp.pop 144.0
  %v5053 = vmul.f32 %v5051, %v5052
  %v5054 = vsub.f32 %v4991, %v5053
  %v5055 = vsub.f32 %v4992, %v5053
  %v5056 = vsub.f32 %v4993, %v5053
  %v5057 = vsub.f32 %v4994, %v5053
  %v5058 = vsub.f32 %v4995, %v5053
  %v5059 = vsub.f32 %v4996, %v5053
  %v5060 = vsub.f32 %v4997, %v5053
  %v5061 = vsub.f32 %v4998, %v5053
  %v5062 = vsub.f32 %v4999, %v5053
  %v5063 = vsub.f32 %v5000, %v5053
  %v5064 = vsub.f32 %v5001, %v5053
  %v5065 = vsub.f32 %v5002, %v5053
  %v5066 = vsub.f32 %v5003, %v5053
  %v5067 = vsub.f32 %v5004, %v5053
  %v5068 = vsub.f32 %v5005, %v5053
  %v5069 = vsub.f32 %v5006, %v5053
  %v5070 = vsub.f32 %v5007, %v5053
  %v5071 = vsub.f32 %v5008, %v5053
  %v5072 = vmul.f32 %v5054, %v5054
  %v5073 = vmul.f32 %v5055, %v5055
  %v5074 = vmul.f32 %v5056, %v5056
  %v5075 = vmul.f32 %v5057, %v5057
  %v5076 = vmul.f32 %v5058, %v5058
  %v5077 = vmul.f32 %v5059, %v5059
  %v5078 = vmul.f32 %v5060, %v5060
  %v5079 = vmul.f32 %v5061, %v5061
  %v5080 = vmul.f32 %v5062, %v5062
  %v5081 = vmul.f32 %v5063, %v5063
  %v5082 = vmul.f32 %v5064, %v5064
  %v5083 = vmul.f32 %v5065, %v5065
  %v5084 = vmul.f32 %v5066, %v5066
  %v5085 = vmul.f32 %v5067, %v5067
  %v5086 = vmul.f32 %v5068, %v5068
  %v5087 = vmul.f32 %v5069, %v5069
  %v5088 = vmul.f32 %v5070, %v5070
  %v5089 = vmul.f32 %v5071, %v5071
  %v5090 = vsel %vm306, %v5072, 0.0
  %v5091 = vsel %vm306, %v5073, 0.0
  %v5092 = vadd.f32 %v5090, %v5091
  %v5093 = vsel %vm306, %v5074, 0.0
  %v5094 = vadd.f32 %v5092, %v5093
  %v5095 = vsel %vm306, %v5075, 0.0
  %v5096 = vadd.f32 %v5094, %v5095
  %v5097 = vsel %vm306, %v5076, 0.0
  %v5098 = vadd.f32 %v5096, %v5097
  %v5099 = vsel %vm306, %v5077, 0.0
  %v5100 = vadd.f32 %v5098, %v5099
  %v5101 = vsel %vm306, %v5078, 0.0
  %v5102 = vadd.f32 %v5100, %v5101
  %v5103 = vsel %vm306, %v5079, 0.0
  %v5104 = vadd.f32 %v5102, %v5103
  %v5105 = vsel %vm306, %v5080, 0.0
  %v5106 = vadd.f32 %v5104, %v5105
  %v5107 = vsel %vm306, %v5081, 0.0
  %v5108 = vadd.f32 %v5106, %v5107
  %v5109 = vsel %vm306, %v5082, 0.0
  %v5110 = vadd.f32 %v5108, %v5109
  %v5111 = vsel %vm306, %v5083, 0.0
  %v5112 = vadd.f32 %v5110, %v5111
  %v5113 = vsel %vm306, %v5084, 0.0
  %v5114 = vadd.f32 %v5112, %v5113
  %v5115 = vsel %vm306, %v5085, 0.0
  %v5116 = vadd.f32 %v5114, %v5115
  %v5117 = vsel %vm306, %v5086, 0.0
  %v5118 = vadd.f32 %v5116, %v5117
  %v5119 = vsel %vm306, %v5087, 0.0
  %v5120 = vadd.f32 %v5118, %v5119
  %v5121 = vsel %vm306, %v5088, 0.0
  %v5122 = vadd.f32 %v5120, %v5121
  %v5123 = vsel %vm306, %v5089, 0.0
  %v5124 = vadd.f32 %v5122, %v5123
  %v5125 = vrot.slane %v5124, 4
  %v5126 = vadd.f32 %v5124, %v5125
  %v5127 = vrot.slane %v5126, 2
  %v5128 = vadd.f32 %v5126, %v5127
  %v5129 = vrot.slane %v5128, 1
  %v5130 = vadd.f32 %v5128, %v5129
  %v5131 = vmul.f32 %v5130, %v5052
  %v5132 = vadd.f32 %v5131, 1e-05
  %v5133 = vrsqrt.pop %v5132
  %v5134 = vmul.f32 %v5054, %v5133
  %v5135 = vmul.f32 %v5055, %v5133
  %v5136 = vmul.f32 %v5056, %v5133
  %v5137 = vmul.f32 %v5057, %v5133
  %v5138 = vmul.f32 %v5058, %v5133
  %v5139 = vmul.f32 %v5059, %v5133
  %v5140 = vmul.f32 %v5060, %v5133
  %v5141 = vmul.f32 %v5061, %v5133
  %v5142 = vmul.f32 %v5062, %v5133
  %v5143 = vmul.f32 %v5063, %v5133
  %v5144 = vmul.f32 %v5064, %v5133
  %v5145 = vmul.f32 %v5065, %v5133
  %v5146 = vmul.f32 %v5066, %v5133
  %v5147 = vmul.f32 %v5067, %v5133
  %v5148 = vmul.f32 %v5068, %v5133
  %v5149 = vmul.f32 %v5069, %v5133
  %v5150 = vmul.f32 %v5070, %v5133
  %v5151 = vmul.f32 %v5071, %v5133
  %v5153 = vlaneseq
  %v5154 = vshrl.u32 %v5153, 7
  %v5155 = vsub.s32 0, %v5154
  %v5156 = vrot.slane %v5009, %v5155
  %v5158 = vmul.f32 %v5134, %v5156
  %v5159 = vmul.f32 %v5135, %v5156
  %v5160 = vmul.f32 %v5136, %v5156
  %v5161 = vmul.f32 %v5137, %v5156
  %v5162 = vmul.f32 %v5138, %v5156
  %v5163 = vmul.f32 %v5139, %v5156
  %v5164 = vmul.f32 %v5140, %v5156
  %v5165 = vmul.f32 %v5141, %v5156
  %v5166 = vmul.f32 %v5142, %v5156
  %v5167 = vmul.f32 %v5143, %v5156
  %v5168 = vmul.f32 %v5144, %v5156
  %v5169 = vmul.f32 %v5145, %v5156
  %v5170 = vmul.f32 %v5146, %v5156
  %v5171 = vmul.f32 %v5147, %v5156
  %v5172 = vmul.f32 %v5148, %v5156
  %v5173 = vmul.f32 %v5149, %v5156
  %v5174 = vmul.f32 %v5150, %v5156
  %v5175 = vmul.f32 %v5151, %v5156
  %v5177 = vlaneseq
  %v5178 = vshrl.u32 %v5177, 7
  %v5179 = vsub.s32 0, %v5178
  %v5180 = vrot.slane %v5010, %v5179
  %v5182 = vadd.f32 %v5158, %v5180
  %v5183 = vadd.f32 %v5159, %v5180
  %v5184 = vadd.f32 %v5160, %v5180
  %v5185 = vadd.f32 %v5161, %v5180
  %v5186 = vadd.f32 %v5162, %v5180
  %v5187 = vadd.f32 %v5163, %v5180
  %v5188 = vadd.f32 %v5164, %v5180
  %v5189 = vadd.f32 %v5165, %v5180
  %v5190 = vadd.f32 %v5166, %v5180
  %v5191 = vadd.f32 %v5167, %v5180
  %v5192 = vadd.f32 %v5168, %v5180
  %v5193 = vadd.f32 %v5169, %v5180
  %v5194 = vadd.f32 %v5170, %v5180
  %v5195 = vadd.f32 %v5171, %v5180
  %v5196 = vadd.f32 %v5172, %v5180
  %v5197 = vadd.f32 %v5173, %v5180
  %v5198 = vadd.f32 %v5174, %v5180
  %v5199 = vadd.f32 %v5175, %v5180
  %v5200 = vpack.c.bf16 %v5183, %v5182
  %v5201 = vpack.c.bf16 %v5185, %v5184
  %v5202 = vpack.c.bf16 %v5187, %v5186
  %v5203 = vpack.c.bf16 %v5189, %v5188
  %v5204 = vpack.c.bf16 %v5191, %v5190
  %v5205 = vpack.c.bf16 %v5193, %v5192
  %v5206 = vpack.c.bf16 %v5195, %v5194
  %v5207 = vpack.c.bf16 %v5197, %v5196
  %v5208 = vpack.c.bf16 %v5199, %v5198
  %v5218 = vunpack.c.l.b16 %v5200
  %v5219 = vunpack.c.h.b16 %v5200
  %v5220 = vunpack.c.l.b16 %v5201
  %v5221 = vunpack.c.h.b16 %v5201
  %v5222 = vunpack.c.l.b16 %v5202
  %v5223 = vunpack.c.h.b16 %v5202
  %v5224 = vunpack.c.l.b16 %v5203
  %v5225 = vunpack.c.h.b16 %v5203
  %v5226 = vunpack.c.l.b16 %v5204
  %v5227 = vunpack.c.h.b16 %v5204
  %v5228 = vunpack.c.l.b16 %v5205
  %v5229 = vunpack.c.h.b16 %v5205
  %v5230 = vunpack.c.l.b16 %v5206
  %v5231 = vunpack.c.h.b16 %v5206
  %v5232 = vunpack.c.l.b16 %v5207
  %v5233 = vunpack.c.h.b16 %v5207
  %v5234 = vunpack.c.l.b16 %v5208
  %v5235 = vunpack.c.h.b16 %v5208
  %v5236 = vpack.c.b16 %v5218, %v5218
  %v5237 = vpack.c.b16 %v5219, %v5219
  %v5238 = vpack.c.b16 %v5220, %v5220
  %v5239 = vpack.c.b16 %v5221, %v5221
  %v5240 = vpack.c.b16 %v5222, %v5222
  %v5241 = vpack.c.b16 %v5223, %v5223
  %v5242 = vpack.c.b16 %v5224, %v5224
  %v5243 = vpack.c.b16 %v5225, %v5225
  %v5244 = vpack.c.b16 %v5226, %v5226
  %v5245 = vpack.c.b16 %v5227, %v5227
  %v5246 = vpack.c.b16 %v5228, %v5228
  %v5247 = vpack.c.b16 %v5229, %v5229
  %v5248 = vpack.c.b16 %v5230, %v5230
  %v5249 = vpack.c.b16 %v5231, %v5231
  %v5250 = vpack.c.b16 %v5232, %v5232
  %v5251 = vpack.c.b16 %v5233, %v5233
  %v5252 = vpack.c.b16 %v5234, %v5234
  %v5253 = vpack.c.b16 %v5235, %v5235
  %vm5272 = vcmask 388096
  %5273 = vst.msk [vmem:[%s8] sm:$0xf] %vm5272, %v5236
  %5274 = vst.msk [vmem:[%s8 + $0x4] sm:$0xf] %vm5272, %v5237
  %5275 = vst.msk [vmem:[%s8 + $0x8] sm:$0xf] %vm5272, %v5238
  %5276 = vst.msk [vmem:[%s8 + $0xc] sm:$0xf] %vm5272, %v5239
  %5277 = vst.msk [vmem:[%s8 + $0x10] sm:$0xf] %vm5272, %v5240
  %5278 = vst.msk [vmem:[%s8 + $0x14] sm:$0xf] %vm5272, %v5241
  %5279 = vst.msk [vmem:[%s8 + $0x18] sm:$0xf] %vm5272, %v5242
  %5280 = vst.msk [vmem:[%s8 + $0x1c] sm:$0xf] %vm5272, %v5243
  %5281 = vst.msk [vmem:[%s8 + $0x20] sm:$0xf] %vm5272, %v5244
  %5282 = vst.msk [vmem:[%s8 + $0x24] sm:$0xf] %vm5272, %v5245
  %5283 = vst.msk [vmem:[%s8 + $0x28] sm:$0xf] %vm5272, %v5246
  %5284 = vst.msk [vmem:[%s8 + $0x2c] sm:$0xf] %vm5272, %v5247
  %5285 = vst.msk [vmem:[%s8 + $0x30] sm:$0xf] %vm5272, %v5248
  %5286 = vst.msk [vmem:[%s8 + $0x34] sm:$0xf] %vm5272, %v5249
  %5287 = vst.msk [vmem:[%s8 + $0x38] sm:$0xf] %vm5272, %v5250
  %5288 = vst.msk [vmem:[%s8 + $0x3c] sm:$0xf] %vm5272, %v5251
  %5289 = vst.msk [vmem:[%s8 + $0x40] sm:$0xf] %vm5272, %v5252
  %5290 = vst.msk [vmem:[%s8 + $0x44] sm:$0xf] %vm5272, %v5253
  // Predicated region
  $region34: #{cnn_forward.2} parent=0 // pred_check
    _
  $region35: #{cnn_forward.2} parent=0 // pred_check_branch
    %5292 = sbr.rel (0) target = $region37
  $region36: #{cnn_forward.2} parent=0 // pred_region
    _
  $region37: #{cnn_forward.2} parent=0 // pred_fallthru
    _
  // Predicated region
  $region38: #{cnn_forward.2} parent=0 // pred_check
    _
  $region39: #{cnn_forward.2} parent=0 // pred_check_branch
    %5294 = sbr.rel (0) target = $region41
  $region40: #{cnn_forward.2} parent=0 // pred_region
    _
  $region41: #{cnn_forward.2} parent=0 // pred_fallthru
    _

// kernel: cnn_forward.3
$region0: #{cnn_forward.3}
  #allocation0 [shape = 'u32[]', space=smem, size = 0x4, offset = 0x4, fixed_abs, tag = 'smem constant byte address 0x4 - core index']
  #allocation1 [shape = 'u32[144,128]{1,0:T(1,128)}', space=vmem, size = 0x12000, scoped, tag = 'internal scratch']
  #allocation2 [shape = 'f32[1,1]{1,0:T(1,128)S(1)}', space=vmem, size = 0x200, scoped, tag = 'scoped memory for cnn_forward.3']
  #allocation3 [shape = 'f32[1,1]{1,0:T(1,128)S(1)}', space=vmem, size = 0x200, scoped, tag = 'scoped memory for cnn_forward.3']
  #allocation4 [shape = 'f32[1,1]{1,0:T(1,128)S(1)}', space=vmem, size = 0x200, scoped, tag = 'scoped memory for cnn_forward.3']
  #allocation5 [shape = 'f32[1,1]{1,0:T(1,128)S(1)}', space=vmem, size = 0x200, scoped, tag = 'scoped memory for cnn_forward.3']
  %s0 = inlined_call_operand.vmem [shape: bf16[2,3456], index: 0, kind: input, shape index: {}]
  %s1 = inlined_call_operand.vmem [shape: bf16[2,36], index: 1, kind: input, shape index: {}]
  %s2 = inlined_call_operand.vmem [shape: bf16[3456,24], index: 2, kind: input, shape index: {}]
  %s3 = inlined_call_operand.vmem [shape: bf16[36,24], index: 3, kind: input, shape index: {}]
  %s4 = inlined_call_operand.vmem [shape: f32[1,24], index: 4, kind: input, shape index: {}]
  %s5 = inlined_call_operand.vmem [shape: f32[24,12], index: 5, kind: input, shape index: {}]
  %s6 = inlined_call_operand.vmem [shape: f32[1,12], index: 6, kind: input, shape index: {}]
  %s7 = inlined_call_operand.vmem [shape: f32[12,9], index: 7, kind: input, shape index: {}]
  %s8 = inlined_call_operand.vmem [shape: f32[1,9], index: 8, kind: input, shape index: {}]
  %s9 = inlined_call_operand.<no memory space> [shape: f32[1,1], index: 9, kind: input, shape index: {}]
  %s10 = inlined_call_operand.<no memory space> [shape: f32[1,1], index: 10, kind: input, shape index: {}]
  %s11 = inlined_call_operand.<no memory space> [shape: f32[1,1], index: 11, kind: input, shape index: {}]
  %s12 = inlined_call_operand.<no memory space> [shape: f32[1,1], index: 12, kind: input, shape index: {}]
  %s13 = inlined_call_operand.vmem [shape: f32[2,9], index: 13, kind: output, shape index: {}]
  %s14 = sld [smem:[#allocation0]]
  $region62: #{cnn_forward.3} parent=0
    _
  %s16 = ssub.s32 1, %s14
  %s17 = scalar_select 0, %s16, %s14
  %v18 = vstv %s9
  %19 = vst [vmem:[#allocation2] sm:$0x1] %v18
  %v20 = vstv %s10
  %21 = vst [vmem:[#allocation3] sm:$0x1] %v20
  %v22 = vstv %s11
  %23 = vst [vmem:[#allocation4] sm:$0x1] %v22
  %v24 = vstv %s12
  %25 = vst [vmem:[#allocation5] sm:$0x1] %v24
  // Predicated region
  $region2: #{cnn_forward.3} parent=0 // pred_check
    _
  $region3: #{cnn_forward.3} parent=0 // pred_check_branch
    %27 = sbr.rel (0) target = $region5
  $region4: #{cnn_forward.3} parent=0 // pred_region
    _
  $region5: #{cnn_forward.3} parent=0 // pred_fallthru
    _
  // Predicated region
  $region6: #{cnn_forward.3} parent=0 // pred_check
    _
  $region7: #{cnn_forward.3} parent=0 // pred_check_branch
    %29 = sbr.rel (0) target = $region9
  $region8: #{cnn_forward.3} parent=0 // pred_region
    _
  $region9: #{cnn_forward.3} parent=0 // pred_fallthru
    _
  // Predicated region
  $region10: #{cnn_forward.3} parent=0 // pred_check
    _
  $region11: #{cnn_forward.3} parent=0 // pred_check_branch
    %31 = sbr.rel (0) target = $region13
  $region12: #{cnn_forward.3} parent=0 // pred_region
    _
  $region13: #{cnn_forward.3} parent=0 // pred_fallthru
    _
  // Predicated region
  $region14: #{cnn_forward.3} parent=0 // pred_check
    _
  $region15: #{cnn_forward.3} parent=0 // pred_check_branch
    %33 = sbr.rel (0) target = $region17
  $region16: #{cnn_forward.3} parent=0 // pred_region
    _
  $region17: #{cnn_forward.3} parent=0 // pred_fallthru
    _
  // Predicated region
  $region18: #{cnn_forward.3} parent=0 // pred_check
    _
  $region19: #{cnn_forward.3} parent=0 // pred_check_branch
    %35 = sbr.rel (0) target = $region21
  $region20: #{cnn_forward.3} parent=0 // pred_region
    _
  $region21: #{cnn_forward.3} parent=0 // pred_fallthru
    _
  // Predicated region
  $region22: #{cnn_forward.3} parent=0 // pred_check
    _
  $region23: #{cnn_forward.3} parent=0 // pred_check_branch
    %37 = sbr.rel (0) target = $region25
  $region24: #{cnn_forward.3} parent=0 // pred_region
    _
  $region25: #{cnn_forward.3} parent=0 // pred_fallthru
    _
  // Predicated region
  $region26: #{cnn_forward.3} parent=0 // pred_check
    _
  $region27: #{cnn_forward.3} parent=0 // pred_check_branch
    %39 = sbr.rel (0) target = $region29
  $region28: #{cnn_forward.3} parent=0 // pred_region
    _
  $region29: #{cnn_forward.3} parent=0 // pred_fallthru
    _
  // Predicated region
  $region30: #{cnn_forward.3} parent=0 // pred_check
    _
  $region31: #{cnn_forward.3} parent=0 // pred_check_branch
    %41 = sbr.rel (0) target = $region33
  $region32: #{cnn_forward.3} parent=0 // pred_region
    _
  $region33: #{cnn_forward.3} parent=0 // pred_fallthru
    _
  // Predicated region
  $region34: #{cnn_forward.3} parent=0 // pred_check
    _
  $region35: #{cnn_forward.3} parent=0 // pred_check_branch
    %43 = sbr.rel (0) target = $region37
  $region36: #{cnn_forward.3} parent=0 // pred_region
    _
  $region37: #{cnn_forward.3} parent=0 // pred_fallthru
    _
  // Predicated region
  $region38: #{cnn_forward.3} parent=0 // pred_check
    _
  $region39: #{cnn_forward.3} parent=0 // pred_check_branch
    %45 = sbr.rel (0) target = $region41
  $region40: #{cnn_forward.3} parent=0 // pred_region
    _
  $region41: #{cnn_forward.3} parent=0 // pred_fallthru
    _
  // Predicated region
  $region42: #{cnn_forward.3} parent=0 // pred_check
    _
  $region43: #{cnn_forward.3} parent=0 // pred_check_branch
    %47 = sbr.rel (0) target = $region45
  $region44: #{cnn_forward.3} parent=0 // pred_region
    _
  $region45: #{cnn_forward.3} parent=0 // pred_fallthru
    _
  // Predicated region
  $region46: #{cnn_forward.3} parent=0 // pred_check
    _
  $region47: #{cnn_forward.3} parent=0 // pred_check_branch
    %49 = sbr.rel (0) target = $region49
  $region48: #{cnn_forward.3} parent=0 // pred_region
    _
  $region49: #{cnn_forward.3} parent=0 // pred_fallthru
    _
  // Predicated region
  $region50: #{cnn_forward.3} parent=0 // pred_check
    _
  $region51: #{cnn_forward.3} parent=0 // pred_check_branch
    %51 = sbr.rel (0) target = $region53
  $region52: #{cnn_forward.3} parent=0 // pred_region
    _
  $region53: #{cnn_forward.3} parent=0 // pred_fallthru
    _
  %v53 = vld [vmem:[%s0] sm:$0xff]
  %v54 = vld [vmem:[%s0 + $0x8] sm:$0xff]
  %v55 = vld [vmem:[%s0 + $0x10] sm:$0xff]
  %v56 = vld [vmem:[%s0 + $0x18] sm:$0x7]
  %v57 = vld [vmem:[%s2] sm:$0xf]
  %v58 = vld [vmem:[%s2 + $0x4] sm:$0xf]
  %v59 = vld [vmem:[%s2 + $0x8] sm:$0xf]
  %v60 = vld [vmem:[%s2 + $0xc] sm:$0xf]
  %v61 = vld [vmem:[%s2 + $0x10] sm:$0xf]
  %v62 = vld [vmem:[%s2 + $0x14] sm:$0xf]
  %v63 = vld [vmem:[%s2 + $0x18] sm:$0xf]
  %v64 = vld [vmem:[%s2 + $0x1c] sm:$0xf]
  %v65 = vld [vmem:[%s2 + $0x20] sm:$0xf]
  %v66 = vld [vmem:[%s2 + $0x24] sm:$0xf]
  %v67 = vld [vmem:[%s2 + $0x28] sm:$0xf]
  %v68 = vld [vmem:[%s2 + $0x2c] sm:$0xf]
  %v69 = vld [vmem:[%s2 + $0x30] sm:$0xf]
  %v70 = vld [vmem:[%s2 + $0x34] sm:$0xf]
  %v71 = vld [vmem:[%s2 + $0x38] sm:$0xf]
  %v72 = vld [vmem:[%s2 + $0x3c] sm:$0xf]
  %v73 = vld [vmem:[%s2 + $0x40] sm:$0xf]
  %v74 = vld [vmem:[%s2 + $0x44] sm:$0xf]
  %v75 = vld [vmem:[%s2 + $0x48] sm:$0xf]
  %v76 = vld [vmem:[%s2 + $0x4c] sm:$0xf]
  %v77 = vld [vmem:[%s2 + $0x50] sm:$0xf]
  %v78 = vld [vmem:[%s2 + $0x54] sm:$0xf]
  %v79 = vld [vmem:[%s2 + $0x58] sm:$0xf]
  %v80 = vld [vmem:[%s2 + $0x5c] sm:$0xf]
  %v81 = vld [vmem:[%s2 + $0x60] sm:$0xf]
  %v82 = vld [vmem:[%s2 + $0x64] sm:$0xf]
  %v83 = vld [vmem:[%s2 + $0x68] sm:$0xf]
  %v84 = vld [vmem:[%s2 + $0x6c] sm:$0xf]
  %v85 = vld [vmem:[%s2 + $0x70] sm:$0xf]
  %v86 = vld [vmem:[%s2 + $0x74] sm:$0xf]
  %v87 = vld [vmem:[%s2 + $0x78] sm:$0xf]
  %v88 = vld [vmem:[%s2 + $0x7c] sm:$0xf]
  %v89 = vld [vmem:[%s2 + $0x80] sm:$0xf]
  %v90 = vld [vmem:[%s2 + $0x84] sm:$0xf]
  %v91 = vld [vmem:[%s2 + $0x88] sm:$0xf]
  %v92 = vld [vmem:[%s2 + $0x8c] sm:$0xf]
  %v93 = vld [vmem:[%s2 + $0x90] sm:$0xf]
  %v94 = vld [vmem:[%s2 + $0x94] sm:$0xf]
  %v95 = vld [vmem:[%s2 + $0x98] sm:$0xf]
  %v96 = vld [vmem:[%s2 + $0x9c] sm:$0xf]
  %v97 = vld [vmem:[%s2 + $0xa0] sm:$0xf]
  %v98 = vld [vmem:[%s2 + $0xa4] sm:$0xf]
  %v99 = vld [vmem:[%s2 + $0xa8] sm:$0xf]
  %v100 = vld [vmem:[%s2 + $0xac] sm:$0xf]
  %v101 = vld [vmem:[%s2 + $0xb0] sm:$0xf]
  %v102 = vld [vmem:[%s2 + $0xb4] sm:$0xf]
  %v103 = vld [vmem:[%s2 + $0xb8] sm:$0xf]
  %v104 = vld [vmem:[%s2 + $0xbc] sm:$0xf]
  %v105 = vld [vmem:[%s2 + $0xc0] sm:$0xf]
  %v106 = vld [vmem:[%s2 + $0xc4] sm:$0xf]
  %v107 = vld [vmem:[%s2 + $0xc8] sm:$0xf]
  %v108 = vld [vmem:[%s2 + $0xcc] sm:$0xf]
  %v109 = vld [vmem:[%s2 + $0xd0] sm:$0xf]
  %v110 = vld [vmem:[%s2 + $0xd4] sm:$0xf]
  %v111 = vld [vmem:[%s2 + $0xd8] sm:$0xf]
  %v112 = vld [vmem:[%s2 + $0xdc] sm:$0xf]
  %v113 = vld [vmem:[%s2 + $0xe0] sm:$0xf]
  %v114 = vld [vmem:[%s2 + $0xe4] sm:$0xf]
  %v115 = vld [vmem:[%s2 + $0xe8] sm:$0xf]
  %v116 = vld [vmem:[%s2 + $0xec] sm:$0xf]
  %v117 = vld [vmem:[%s2 + $0xf0] sm:$0xf]
  %v118 = vld [vmem:[%s2 + $0xf4] sm:$0xf]
  %v119 = vld [vmem:[%s2 + $0xf8] sm:$0xf]
  %v120 = vld [vmem:[%s2 + $0xfc] sm:$0xf]
  %v121 = vld [vmem:[%s2 + $0x100] sm:$0xf]
  %v122 = vld [vmem:[%s2 + $0x104] sm:$0xf]
  %v123 = vld [vmem:[%s2 + $0x108] sm:$0xf]
  %v124 = vld [vmem:[%s2 + $0x10c] sm:$0xf]
  %v125 = vld [vmem:[%s2 + $0x110] sm:$0xf]
  %v126 = vld [vmem:[%s2 + $0x114] sm:$0xf]
  %v127 = vld [vmem:[%s2 + $0x118] sm:$0xf]
  %v128 = vld [vmem:[%s2 + $0x11c] sm:$0xf]
  %v129 = vld [vmem:[%s2 + $0x120] sm:$0xf]
  %v130 = vld [vmem:[%s2 + $0x124] sm:$0xf]
  %v131 = vld [vmem:[%s2 + $0x128] sm:$0xf]
  %v132 = vld [vmem:[%s2 + $0x12c] sm:$0xf]
  %v133 = vld [vmem:[%s2 + $0x130] sm:$0xf]
  %v134 = vld [vmem:[%s2 + $0x134] sm:$0xf]
  %v135 = vld [vmem:[%s2 + $0x138] sm:$0xf]
  %v136 = vld [vmem:[%s2 + $0x13c] sm:$0xf]
  %v137 = vld [vmem:[%s2 + $0x140] sm:$0xf]
  %v138 = vld [vmem:[%s2 + $0x144] sm:$0xf]
  %v139 = vld [vmem:[%s2 + $0x148] sm:$0xf]
  %v140 = vld [vmem:[%s2 + $0x14c] sm:$0xf]
  %v141 = vld [vmem:[%s2 + $0x150] sm:$0xf]
  %v142 = vld [vmem:[%s2 + $0x154] sm:$0xf]
  %v143 = vld [vmem:[%s2 + $0x158] sm:$0xf]
  %v144 = vld [vmem:[%s2 + $0x15c] sm:$0xf]
  %v145 = vld [vmem:[%s2 + $0x160] sm:$0xf]
  %v146 = vld [vmem:[%s2 + $0x164] sm:$0xf]
  %v147 = vld [vmem:[%s2 + $0x168] sm:$0xf]
  %v148 = vld [vmem:[%s2 + $0x16c] sm:$0xf]
  %v149 = vld [vmem:[%s2 + $0x170] sm:$0xf]
  %v150 = vld [vmem:[%s2 + $0x174] sm:$0xf]
  %v151 = vld [vmem:[%s2 + $0x178] sm:$0xf]
  %v152 = vld [vmem:[%s2 + $0x17c] sm:$0xf]
  %v153 = vld [vmem:[%s2 + $0x180] sm:$0xf]
  %v154 = vld [vmem:[%s2 + $0x184] sm:$0xf]
  %v155 = vld [vmem:[%s2 + $0x188] sm:$0xf]
  %v156 = vld [vmem:[%s2 + $0x18c] sm:$0xf]
  %v157 = vld [vmem:[%s2 + $0x190] sm:$0xf]
  %v158 = vld [vmem:[%s2 + $0x194] sm:$0xf]
  %v159 = vld [vmem:[%s2 + $0x198] sm:$0xf]
  %v160 = vld [vmem:[%s2 + $0x19c] sm:$0xf]
  %v161 = vld [vmem:[%s2 + $0x1a0] sm:$0xf]
  %v162 = vld [vmem:[%s2 + $0x1a4] sm:$0xf]
  %v163 = vld [vmem:[%s2 + $0x1a8] sm:$0xf]
  %v164 = vld [vmem:[%s2 + $0x1ac] sm:$0xf]
  %v165 = vld [vmem:[%s2 + $0x1b0] sm:$0xf]
  %v166 = vld [vmem:[%s2 + $0x1b4] sm:$0xf]
  %v167 = vld [vmem:[%s2 + $0x1b8] sm:$0xf]
  %v168 = vld [vmem:[%s2 + $0x1bc] sm:$0xf]
  %v169 = vld [vmem:[%s2 + $0x1c0] sm:$0xf]
  %v170 = vld [vmem:[%s2 + $0x1c4] sm:$0xf]
  %v171 = vld [vmem:[%s2 + $0x1c8] sm:$0xf]
  %v172 = vld [vmem:[%s2 + $0x1cc] sm:$0xf]
  %v173 = vld [vmem:[%s2 + $0x1d0] sm:$0xf]
  %v174 = vld [vmem:[%s2 + $0x1d4] sm:$0xf]
  %v175 = vld [vmem:[%s2 + $0x1d8] sm:$0xf]
  %v176 = vld [vmem:[%s2 + $0x1dc] sm:$0xf]
  %v177 = vld [vmem:[%s2 + $0x1e0] sm:$0xf]
  %v178 = vld [vmem:[%s2 + $0x1e4] sm:$0xf]
  %v179 = vld [vmem:[%s2 + $0x1e8] sm:$0xf]
  %v180 = vld [vmem:[%s2 + $0x1ec] sm:$0xf]
  %v181 = vld [vmem:[%s2 + $0x1f0] sm:$0xf]
  %v182 = vld [vmem:[%s2 + $0x1f4] sm:$0xf]
  %v183 = vld [vmem:[%s2 + $0x1f8] sm:$0xf]
  %v184 = vld [vmem:[%s2 + $0x1fc] sm:$0xf]
  %v185 = vld [vmem:[%s2 + $0x200] sm:$0xf]
  %v186 = vld [vmem:[%s2 + $0x204] sm:$0xf]
  %v187 = vld [vmem:[%s2 + $0x208] sm:$0xf]
  %v188 = vld [vmem:[%s2 + $0x20c] sm:$0xf]
  %v189 = vld [vmem:[%s2 + $0x210] sm:$0xf]
  %v190 = vld [vmem:[%s2 + $0x214] sm:$0xf]
  %v191 = vld [vmem:[%s2 + $0x218] sm:$0xf]
  %v192 = vld [vmem:[%s2 + $0x21c] sm:$0xf]
  %v193 = vld [vmem:[%s2 + $0x220] sm:$0xf]
  %v194 = vld [vmem:[%s2 + $0x224] sm:$0xf]
  %v195 = vld [vmem:[%s2 + $0x228] sm:$0xf]
  %v196 = vld [vmem:[%s2 + $0x22c] sm:$0xf]
  %v197 = vld [vmem:[%s2 + $0x230] sm:$0xf]
  %v198 = vld [vmem:[%s2 + $0x234] sm:$0xf]
  %v199 = vld [vmem:[%s2 + $0x238] sm:$0xf]
  %v200 = vld [vmem:[%s2 + $0x23c] sm:$0xf]
  %v201 = vld [vmem:[%s2 + $0x240] sm:$0xf]
  %v202 = vld [vmem:[%s2 + $0x244] sm:$0xf]
  %v203 = vld [vmem:[%s2 + $0x248] sm:$0xf]
  %v204 = vld [vmem:[%s2 + $0x24c] sm:$0xf]
  %v205 = vld [vmem:[%s2 + $0x250] sm:$0xf]
  %v206 = vld [vmem:[%s2 + $0x254] sm:$0xf]
  %v207 = vld [vmem:[%s2 + $0x258] sm:$0xf]
  %v208 = vld [vmem:[%s2 + $0x25c] sm:$0xf]
  %v209 = vld [vmem:[%s2 + $0x260] sm:$0xf]
  %v210 = vld [vmem:[%s2 + $0x264] sm:$0xf]
  %v211 = vld [vmem:[%s2 + $0x268] sm:$0xf]
  %v212 = vld [vmem:[%s2 + $0x26c] sm:$0xf]
  %v213 = vld [vmem:[%s2 + $0x270] sm:$0xf]
  %v214 = vld [vmem:[%s2 + $0x274] sm:$0xf]
  %v215 = vld [vmem:[%s2 + $0x278] sm:$0xf]
  %v216 = vld [vmem:[%s2 + $0x27c] sm:$0xf]
  %v217 = vld [vmem:[%s2 + $0x280] sm:$0xf]
  %v218 = vld [vmem:[%s2 + $0x284] sm:$0xf]
  %v219 = vld [vmem:[%s2 + $0x288] sm:$0xf]
  %v220 = vld [vmem:[%s2 + $0x28c] sm:$0xf]
  %v221 = vld [vmem:[%s2 + $0x290] sm:$0xf]
  %v222 = vld [vmem:[%s2 + $0x294] sm:$0xf]
  %v223 = vld [vmem:[%s2 + $0x298] sm:$0xf]
  %v224 = vld [vmem:[%s2 + $0x29c] sm:$0xf]
  %v225 = vld [vmem:[%s2 + $0x2a0] sm:$0xf]
  %v226 = vld [vmem:[%s2 + $0x2a4] sm:$0xf]
  %v227 = vld [vmem:[%s2 + $0x2a8] sm:$0xf]
  %v228 = vld [vmem:[%s2 + $0x2ac] sm:$0xf]
  %v229 = vld [vmem:[%s2 + $0x2b0] sm:$0xf]
  %v230 = vld [vmem:[%s2 + $0x2b4] sm:$0xf]
  %v231 = vld [vmem:[%s2 + $0x2b8] sm:$0xf]
  %v232 = vld [vmem:[%s2 + $0x2bc] sm:$0xf]
  %v233 = vld [vmem:[%s2 + $0x2c0] sm:$0xf]
  %v234 = vld [vmem:[%s2 + $0x2c4] sm:$0xf]
  %v235 = vld [vmem:[%s2 + $0x2c8] sm:$0xf]
  %v236 = vld [vmem:[%s2 + $0x2cc] sm:$0xf]
  %v237 = vld [vmem:[%s2 + $0x2d0] sm:$0xf]
  %v238 = vld [vmem:[%s2 + $0x2d4] sm:$0xf]
  %v239 = vld [vmem:[%s2 + $0x2d8] sm:$0xf]
  %v240 = vld [vmem:[%s2 + $0x2dc] sm:$0xf]
  %v241 = vld [vmem:[%s2 + $0x2e0] sm:$0xf]
  %v242 = vld [vmem:[%s2 + $0x2e4] sm:$0xf]
  %v243 = vld [vmem:[%s2 + $0x2e8] sm:$0xf]
  %v244 = vld [vmem:[%s2 + $0x2ec] sm:$0xf]
  %v245 = vld [vmem:[%s2 + $0x2f0] sm:$0xf]
  %v246 = vld [vmem:[%s2 + $0x2f4] sm:$0xf]
  %v247 = vld [vmem:[%s2 + $0x2f8] sm:$0xf]
  %v248 = vld [vmem:[%s2 + $0x2fc] sm:$0xf]
  %v249 = vld [vmem:[%s2 + $0x300] sm:$0xf]
  %v250 = vld [vmem:[%s2 + $0x304] sm:$0xf]
  %v251 = vld [vmem:[%s2 + $0x308] sm:$0xf]
  %v252 = vld [vmem:[%s2 + $0x30c] sm:$0xf]
  %v253 = vld [vmem:[%s2 + $0x310] sm:$0xf]
  %v254 = vld [vmem:[%s2 + $0x314] sm:$0xf]
  %v255 = vld [vmem:[%s2 + $0x318] sm:$0xf]
  %v256 = vld [vmem:[%s2 + $0x31c] sm:$0xf]
  %v257 = vld [vmem:[%s2 + $0x320] sm:$0xf]
  %v258 = vld [vmem:[%s2 + $0x324] sm:$0xf]
  %v259 = vld [vmem:[%s2 + $0x328] sm:$0xf]
  %v260 = vld [vmem:[%s2 + $0x32c] sm:$0xf]
  %v261 = vld [vmem:[%s2 + $0x330] sm:$0xf]
  %v262 = vld [vmem:[%s2 + $0x334] sm:$0xf]
  %v263 = vld [vmem:[%s2 + $0x338] sm:$0xf]
  %v264 = vld [vmem:[%s2 + $0x33c] sm:$0xf]
  %v265 = vld [vmem:[%s2 + $0x340] sm:$0xf]
  %v266 = vld [vmem:[%s2 + $0x344] sm:$0xf]
  %v267 = vld [vmem:[%s2 + $0x348] sm:$0xf]
  %v268 = vld [vmem:[%s2 + $0x34c] sm:$0xf]
  %v269 = vld [vmem:[%s2 + $0x350] sm:$0xf]
  %v270 = vld [vmem:[%s2 + $0x354] sm:$0xf]
  %v271 = vld [vmem:[%s2 + $0x358] sm:$0xf]
  %v272 = vld [vmem:[%s2 + $0x35c] sm:$0xf]
  %v273 = vld [vmem:[%s2 + $0x360] sm:$0xf]
  %v274 = vld [vmem:[%s2 + $0x364] sm:$0xf]
  %v275 = vld [vmem:[%s2 + $0x368] sm:$0xf]
  %v276 = vld [vmem:[%s2 + $0x36c] sm:$0xf]
  %v277 = vld [vmem:[%s2 + $0x370] sm:$0xf]
  %v278 = vld [vmem:[%s2 + $0x374] sm:$0xf]
  %v279 = vld [vmem:[%s2 + $0x378] sm:$0xf]
  %v280 = vld [vmem:[%s2 + $0x37c] sm:$0xf]
  %v281 = vld [vmem:[%s2 + $0x380] sm:$0xf]
  %v282 = vld [vmem:[%s2 + $0x384] sm:$0xf]
  %v283 = vld [vmem:[%s2 + $0x388] sm:$0xf]
  %v284 = vld [vmem:[%s2 + $0x38c] sm:$0xf]
  %v285 = vld [vmem:[%s2 + $0x390] sm:$0xf]
  %v286 = vld [vmem:[%s2 + $0x394] sm:$0xf]
  %v287 = vld [vmem:[%s2 + $0x398] sm:$0xf]
  %v288 = vld [vmem:[%s2 + $0x39c] sm:$0xf]
  %v289 = vld [vmem:[%s2 + $0x3a0] sm:$0xf]
  %v290 = vld [vmem:[%s2 + $0x3a4] sm:$0xf]
  %v291 = vld [vmem:[%s2 + $0x3a8] sm:$0xf]
  %v292 = vld [vmem:[%s2 + $0x3ac] sm:$0xf]
  %v293 = vld [vmem:[%s2 + $0x3b0] sm:$0xf]
  %v294 = vld [vmem:[%s2 + $0x3b4] sm:$0xf]
  %v295 = vld [vmem:[%s2 + $0x3b8] sm:$0xf]
  %v296 = vld [vmem:[%s2 + $0x3bc] sm:$0xf]
  %v297 = vld [vmem:[%s2 + $0x3c0] sm:$0xf]
  %v298 = vld [vmem:[%s2 + $0x3c4] sm:$0xf]
  %v299 = vld [vmem:[%s2 + $0x3c8] sm:$0xf]
  %v300 = vld [vmem:[%s2 + $0x3cc] sm:$0xf]
  %v301 = vld [vmem:[%s2 + $0x3d0] sm:$0xf]
  %v302 = vld [vmem:[%s2 + $0x3d4] sm:$0xf]
  %v303 = vld [vmem:[%s2 + $0x3d8] sm:$0xf]
  %v304 = vld [vmem:[%s2 + $0x3dc] sm:$0xf]
  %v305 = vld [vmem:[%s2 + $0x3e0] sm:$0xf]
  %v306 = vld [vmem:[%s2 + $0x3e4] sm:$0xf]
  %v307 = vld [vmem:[%s2 + $0x3e8] sm:$0xf]
  %v308 = vld [vmem:[%s2 + $0x3ec] sm:$0xf]
  %v309 = vld [vmem:[%s2 + $0x3f0] sm:$0xf]
  %v310 = vld [vmem:[%s2 + $0x3f4] sm:$0xf]
  %v311 = vld [vmem:[%s2 + $0x3f8] sm:$0xf]
  %v312 = vld [vmem:[%s2 + $0x3fc] sm:$0xf]
  %v313 = vld [vmem:[%s2 + $0x400] sm:$0xf]
  %v314 = vld [vmem:[%s2 + $0x404] sm:$0xf]
  %v315 = vld [vmem:[%s2 + $0x408] sm:$0xf]
  %v316 = vld [vmem:[%s2 + $0x40c] sm:$0xf]
  %v317 = vld [vmem:[%s2 + $0x410] sm:$0xf]
  %v318 = vld [vmem:[%s2 + $0x414] sm:$0xf]
  %v319 = vld [vmem:[%s2 + $0x418] sm:$0xf]
  %v320 = vld [vmem:[%s2 + $0x41c] sm:$0xf]
  %v321 = vld [vmem:[%s2 + $0x420] sm:$0xf]
  %v322 = vld [vmem:[%s2 + $0x424] sm:$0xf]
  %v323 = vld [vmem:[%s2 + $0x428] sm:$0xf]
  %v324 = vld [vmem:[%s2 + $0x42c] sm:$0xf]
  %v325 = vld [vmem:[%s2 + $0x430] sm:$0xf]
  %v326 = vld [vmem:[%s2 + $0x434] sm:$0xf]
  %v327 = vld [vmem:[%s2 + $0x438] sm:$0xf]
  %v328 = vld [vmem:[%s2 + $0x43c] sm:$0xf]
  %v329 = vld [vmem:[%s2 + $0x440] sm:$0xf]
  %v330 = vld [vmem:[%s2 + $0x444] sm:$0xf]
  %v331 = vld [vmem:[%s2 + $0x448] sm:$0xf]
  %v332 = vld [vmem:[%s2 + $0x44c] sm:$0xf]
  %v333 = vld [vmem:[%s2 + $0x450] sm:$0xf]
  %v334 = vld [vmem:[%s2 + $0x454] sm:$0xf]
  %v335 = vld [vmem:[%s2 + $0x458] sm:$0xf]
  %v336 = vld [vmem:[%s2 + $0x45c] sm:$0xf]
  %v337 = vld [vmem:[%s2 + $0x460] sm:$0xf]
  %v338 = vld [vmem:[%s2 + $0x464] sm:$0xf]
  %v339 = vld [vmem:[%s2 + $0x468] sm:$0xf]
  %v340 = vld [vmem:[%s2 + $0x46c] sm:$0xf]
  %v341 = vld [vmem:[%s2 + $0x470] sm:$0xf]
  %v342 = vld [vmem:[%s2 + $0x474] sm:$0xf]
  %v343 = vld [vmem:[%s2 + $0x478] sm:$0xf]
  %v344 = vld [vmem:[%s2 + $0x47c] sm:$0xf]
  %v345 = vld [vmem:[%s2 + $0x480] sm:$0xf]
  %v346 = vld [vmem:[%s2 + $0x484] sm:$0xf]
  %v347 = vld [vmem:[%s2 + $0x488] sm:$0xf]
  %v348 = vld [vmem:[%s2 + $0x48c] sm:$0xf]
  %v349 = vld [vmem:[%s2 + $0x490] sm:$0xf]
  %v350 = vld [vmem:[%s2 + $0x494] sm:$0xf]
  %v351 = vld [vmem:[%s2 + $0x498] sm:$0xf]
  %v352 = vld [vmem:[%s2 + $0x49c] sm:$0xf]
  %v353 = vld [vmem:[%s2 + $0x4a0] sm:$0xf]
  %v354 = vld [vmem:[%s2 + $0x4a4] sm:$0xf]
  %v355 = vld [vmem:[%s2 + $0x4a8] sm:$0xf]
  %v356 = vld [vmem:[%s2 + $0x4ac] sm:$0xf]
  %v357 = vld [vmem:[%s2 + $0x4b0] sm:$0xf]
  %v358 = vld [vmem:[%s2 + $0x4b4] sm:$0xf]
  %v359 = vld [vmem:[%s2 + $0x4b8] sm:$0xf]
  %v360 = vld [vmem:[%s2 + $0x4bc] sm:$0xf]
  %v361 = vld [vmem:[%s2 + $0x4c0] sm:$0xf]
  %v362 = vld [vmem:[%s2 + $0x4c4] sm:$0xf]
  %v363 = vld [vmem:[%s2 + $0x4c8] sm:$0xf]
  %v364 = vld [vmem:[%s2 + $0x4cc] sm:$0xf]
  %v365 = vld [vmem:[%s2 + $0x4d0] sm:$0xf]
  %v366 = vld [vmem:[%s2 + $0x4d4] sm:$0xf]
  %v367 = vld [vmem:[%s2 + $0x4d8] sm:$0xf]
  %v368 = vld [vmem:[%s2 + $0x4dc] sm:$0xf]
  %v369 = vld [vmem:[%s2 + $0x4e0] sm:$0xf]
  %v370 = vld [vmem:[%s2 + $0x4e4] sm:$0xf]
  %v371 = vld [vmem:[%s2 + $0x4e8] sm:$0xf]
  %v372 = vld [vmem:[%s2 + $0x4ec] sm:$0xf]
  %v373 = vld [vmem:[%s2 + $0x4f0] sm:$0xf]
  %v374 = vld [vmem:[%s2 + $0x4f4] sm:$0xf]
  %v375 = vld [vmem:[%s2 + $0x4f8] sm:$0xf]
  %v376 = vld [vmem:[%s2 + $0x4fc] sm:$0xf]
  %v377 = vld [vmem:[%s2 + $0x500] sm:$0xf]
  %v378 = vld [vmem:[%s2 + $0x504] sm:$0xf]
  %v379 = vld [vmem:[%s2 + $0x508] sm:$0xf]
  %v380 = vld [vmem:[%s2 + $0x50c] sm:$0xf]
  %v381 = vld [vmem:[%s2 + $0x510] sm:$0xf]
  %v382 = vld [vmem:[%s2 + $0x514] sm:$0xf]
  %v383 = vld [vmem:[%s2 + $0x518] sm:$0xf]
  %v384 = vld [vmem:[%s2 + $0x51c] sm:$0xf]
  %v385 = vld [vmem:[%s2 + $0x520] sm:$0xf]
  %v386 = vld [vmem:[%s2 + $0x524] sm:$0xf]
  %v387 = vld [vmem:[%s2 + $0x528] sm:$0xf]
  %v388 = vld [vmem:[%s2 + $0x52c] sm:$0xf]
  %v389 = vld [vmem:[%s2 + $0x530] sm:$0xf]
  %v390 = vld [vmem:[%s2 + $0x534] sm:$0xf]
  %v391 = vld [vmem:[%s2 + $0x538] sm:$0xf]
  %v392 = vld [vmem:[%s2 + $0x53c] sm:$0xf]
  %v393 = vld [vmem:[%s2 + $0x540] sm:$0xf]
  %v394 = vld [vmem:[%s2 + $0x544] sm:$0xf]
  %v395 = vld [vmem:[%s2 + $0x548] sm:$0xf]
  %v396 = vld [vmem:[%s2 + $0x54c] sm:$0xf]
  %v397 = vld [vmem:[%s2 + $0x550] sm:$0xf]
  %v398 = vld [vmem:[%s2 + $0x554] sm:$0xf]
  %v399 = vld [vmem:[%s2 + $0x558] sm:$0xf]
  %v400 = vld [vmem:[%s2 + $0x55c] sm:$0xf]
  %v401 = vld [vmem:[%s2 + $0x560] sm:$0xf]
  %v402 = vld [vmem:[%s2 + $0x564] sm:$0xf]
  %v403 = vld [vmem:[%s2 + $0x568] sm:$0xf]
  %v404 = vld [vmem:[%s2 + $0x56c] sm:$0xf]
  %v405 = vld [vmem:[%s2 + $0x570] sm:$0xf]
  %v406 = vld [vmem:[%s2 + $0x574] sm:$0xf]
  %v407 = vld [vmem:[%s2 + $0x578] sm:$0xf]
  %v408 = vld [vmem:[%s2 + $0x57c] sm:$0xf]
  %v409 = vld [vmem:[%s2 + $0x580] sm:$0xf]
  %v410 = vld [vmem:[%s2 + $0x584] sm:$0xf]
  %v411 = vld [vmem:[%s2 + $0x588] sm:$0xf]
  %v412 = vld [vmem:[%s2 + $0x58c] sm:$0xf]
  %v413 = vld [vmem:[%s2 + $0x590] sm:$0xf]
  %v414 = vld [vmem:[%s2 + $0x594] sm:$0xf]
  %v415 = vld [vmem:[%s2 + $0x598] sm:$0xf]
  %v416 = vld [vmem:[%s2 + $0x59c] sm:$0xf]
  %v417 = vld [vmem:[%s2 + $0x5a0] sm:$0xf]
  %v418 = vld [vmem:[%s2 + $0x5a4] sm:$0xf]
  %v419 = vld [vmem:[%s2 + $0x5a8] sm:$0xf]
  %v420 = vld [vmem:[%s2 + $0x5ac] sm:$0xf]
  %v421 = vld [vmem:[%s2 + $0x5b0] sm:$0xf]
  %v422 = vld [vmem:[%s2 + $0x5b4] sm:$0xf]
  %v423 = vld [vmem:[%s2 + $0x5b8] sm:$0xf]
  %v424 = vld [vmem:[%s2 + $0x5bc] sm:$0xf]
  %v425 = vld [vmem:[%s2 + $0x5c0] sm:$0xf]
  %v426 = vld [vmem:[%s2 + $0x5c4] sm:$0xf]
  %v427 = vld [vmem:[%s2 + $0x5c8] sm:$0xf]
  %v428 = vld [vmem:[%s2 + $0x5cc] sm:$0xf]
  %v429 = vld [vmem:[%s2 + $0x5d0] sm:$0xf]
  %v430 = vld [vmem:[%s2 + $0x5d4] sm:$0xf]
  %v431 = vld [vmem:[%s2 + $0x5d8] sm:$0xf]
  %v432 = vld [vmem:[%s2 + $0x5dc] sm:$0xf]
  %v433 = vld [vmem:[%s2 + $0x5e0] sm:$0xf]
  %v434 = vld [vmem:[%s2 + $0x5e4] sm:$0xf]
  %v435 = vld [vmem:[%s2 + $0x5e8] sm:$0xf]
  %v436 = vld [vmem:[%s2 + $0x5ec] sm:$0xf]
  %v437 = vld [vmem:[%s2 + $0x5f0] sm:$0xf]
  %v438 = vld [vmem:[%s2 + $0x5f4] sm:$0xf]
  %v439 = vld [vmem:[%s2 + $0x5f8] sm:$0xf]
  %v440 = vld [vmem:[%s2 + $0x5fc] sm:$0xf]
  %v441 = vld [vmem:[%s2 + $0x600] sm:$0xf]
  %v442 = vld [vmem:[%s2 + $0x604] sm:$0xf]
  %v443 = vld [vmem:[%s2 + $0x608] sm:$0xf]
  %v444 = vld [vmem:[%s2 + $0x60c] sm:$0xf]
  %v445 = vld [vmem:[%s2 + $0x610] sm:$0xf]
  %v446 = vld [vmem:[%s2 + $0x614] sm:$0xf]
  %v447 = vld [vmem:[%s2 + $0x618] sm:$0xf]
  %v448 = vld [vmem:[%s2 + $0x61c] sm:$0xf]
  %v449 = vld [vmem:[%s2 + $0x620] sm:$0xf]
  %v450 = vld [vmem:[%s2 + $0x624] sm:$0xf]
  %v451 = vld [vmem:[%s2 + $0x628] sm:$0xf]
  %v452 = vld [vmem:[%s2 + $0x62c] sm:$0xf]
  %v453 = vld [vmem:[%s2 + $0x630] sm:$0xf]
  %v454 = vld [vmem:[%s2 + $0x634] sm:$0xf]
  %v455 = vld [vmem:[%s2 + $0x638] sm:$0xf]
  %v456 = vld [vmem:[%s2 + $0x63c] sm:$0xf]
  %v457 = vld [vmem:[%s2 + $0x640] sm:$0xf]
  %v458 = vld [vmem:[%s2 + $0x644] sm:$0xf]
  %v459 = vld [vmem:[%s2 + $0x648] sm:$0xf]
  %v460 = vld [vmem:[%s2 + $0x64c] sm:$0xf]
  %v461 = vld [vmem:[%s2 + $0x650] sm:$0xf]
  %v462 = vld [vmem:[%s2 + $0x654] sm:$0xf]
  %v463 = vld [vmem:[%s2 + $0x658] sm:$0xf]
  %v464 = vld [vmem:[%s2 + $0x65c] sm:$0xf]
  %v465 = vld [vmem:[%s2 + $0x660] sm:$0xf]
  %v466 = vld [vmem:[%s2 + $0x664] sm:$0xf]
  %v467 = vld [vmem:[%s2 + $0x668] sm:$0xf]
  %v468 = vld [vmem:[%s2 + $0x66c] sm:$0xf]
  %v469 = vld [vmem:[%s2 + $0x670] sm:$0xf]
  %v470 = vld [vmem:[%s2 + $0x674] sm:$0xf]
  %v471 = vld [vmem:[%s2 + $0x678] sm:$0xf]
  %v472 = vld [vmem:[%s2 + $0x67c] sm:$0xf]
  %v473 = vld [vmem:[%s2 + $0x680] sm:$0xf]
  %v474 = vld [vmem:[%s2 + $0x684] sm:$0xf]
  %v475 = vld [vmem:[%s2 + $0x688] sm:$0xf]
  %v476 = vld [vmem:[%s2 + $0x68c] sm:$0xf]
  %v477 = vld [vmem:[%s2 + $0x690] sm:$0xf]
  %v478 = vld [vmem:[%s2 + $0x694] sm:$0xf]
  %v479 = vld [vmem:[%s2 + $0x698] sm:$0xf]
  %v480 = vld [vmem:[%s2 + $0x69c] sm:$0xf]
  %v481 = vld [vmem:[%s2 + $0x6a0] sm:$0xf]
  %v482 = vld [vmem:[%s2 + $0x6a4] sm:$0xf]
  %v483 = vld [vmem:[%s2 + $0x6a8] sm:$0xf]
  %v484 = vld [vmem:[%s2 + $0x6ac] sm:$0xf]
  %v485 = vld [vmem:[%s2 + $0x6b0] sm:$0xf]
  %v486 = vld [vmem:[%s2 + $0x6b4] sm:$0xf]
  %v487 = vld [vmem:[%s2 + $0x6b8] sm:$0xf]
  %v488 = vld [vmem:[%s2 + $0x6bc] sm:$0xf]
  %v489 = vld [vmem:[%s1] sm:$0x1]
  %v490 = vld [vmem:[%s3] sm:$0xf]
  %v491 = vld [vmem:[%s3 + $0x4] sm:$0xf]
  %v492 = vld [vmem:[%s3 + $0x8] sm:$0xf]
  %v493 = vld [vmem:[%s3 + $0xc] sm:$0xf]
  %v494 = vld [vmem:[%s3 + $0x10] sm:$0x3]
  %v500 = vunpack.c.l.b16 %v490
  %v501 = vunpack.c.l.b16 %v491
  %v502 = vunpack.c.l.b16 %v492
  %v503 = vunpack.c.l.b16 %v493
  %v504 = vunpack.c.l.b16 %v494
  %v505 = vpack.c.b16 %v501, %v500
  %v506 = vpack.c.b16 %v503, %v502
  %v507 = vpack.c.b16 %v504, %v504
  %vm510 = vcmask 293888
  %v512 = vsel %vm510, %v489, 0
  %vm514 = vcmask 1041408
  %v516 = vsel %vm514, %v507, 0
  %518 = vmatprep.subr.bf16.mxu0 0
  %519 = vmatpush1.bf16.msra.mxu0 %v505
  %520 = vmatprep.subr.bf16.mxu0 0
  %521 = vmatpush1.bf16.msra.mxu0 %v506
  %522 = vmatprep.subr.bf16.mxu0 0
  %523 = vmatpush1.bf16.msra.mxu0 %v516
  %524 = vmatprep.subr.bf16.mxu0 0
  %525 = vmatpush1.bf16.msra.mxu0 0
  %526 = vmatprep.subr.bf16.mxu0 0
  %527 = vmatpush1.bf16.msra.mxu0 0
  %528 = vmatprep.subr.bf16.mxu0 0
  %529 = vmatpush1.bf16.msra.mxu0 0
  %530 = vmatprep.subr.bf16.mxu0 0
  %531 = vmatpush1.bf16.msra.mxu0 0
  %532 = vmatprep.subr.bf16.mxu0 0
  %533 = vmatpush1.bf16.msra.mxu0 0
  %534 = vmatprep.subr.bf16.mxu0 0
  %535 = vmatpush1.bf16.msra.mxu0 0
  %536 = vmatprep.subr.bf16.mxu0 0
  %537 = vmatpush1.bf16.msra.mxu0 0
  %538 = vmatprep.subr.bf16.mxu0 0
  %539 = vmatpush1.bf16.msra.mxu0 0
  %540 = vmatprep.subr.bf16.mxu0 0
  %541 = vmatpush1.bf16.msra.mxu0 0
  %542 = vmatprep.subr.bf16.mxu0 0
  %543 = vmatpush1.bf16.msra.mxu0 0
  %544 = vmatprep.subr.bf16.mxu0 0
  %545 = vmatpush1.bf16.msra.mxu0 0
  %546 = vmatprep.subr.bf16.mxu0 0
  %547 = vmatpush1.bf16.msra.mxu0 0
  %548 = vmatprep.subr.bf16.mxu0 0
  %549 = vmatpush1.bf16.msra.mxu0 0
  %550 = vmatprep.mubr.bf16.mxu0 0
  %551 = vmatmul.mubr.bf16.gmra.mrb[0].mxu0 %v512
  %v552 = vpop.f32.mrb[0].mxu0
  %v553 = vadd.f32 0.0, %v552
  %v554 = vpop.f32.mrb[0].mxu0
  %v555 = vpop.f32.mrb[0].mxu0
  %v556 = vpop.f32.mrb[0].mxu0
  %557 = vdwg.mxu0
  %v562 = vcombine.high %v53, %v53
  %v564 = vunpack.c.l.s4 1966171168
  %v565 = vunpack.c.0.s8 %v564
  %v566 = vlaneseq
  %v567 = vshrl.u32 %v566, 7
  %v568 = vsub.s32 %v565, %v567
  %v569 = vrot.slane %v53, %v568
  %v571 = vunpack.c.l.s4 1966171168
  %v572 = vunpack.c.0.s8 %v571
  %v573 = vlaneseq
  %v574 = vshrl.u32 %v573, 7
  %v575 = vsub.s32 %v572, %v574
  %v576 = vrot.slane %v562, %v575
  %v577 = vcombine.high %v569, %v569
  %v578 = vcombine.high %v576, %v576
  %v580 = vunpack.c.l.s4 1966171168
  %v581 = vunpack.c.0.s8 %v580
  %v582 = vlaneseq
  %v583 = vshrl.u32 %v582, 7
  %v584 = vsub.s32 %v581, %v583
  %v585 = vrot.slane %v569, %v584
  %v587 = vunpack.c.l.s4 1966171168
  %v588 = vunpack.c.0.s8 %v587
  %v589 = vlaneseq
  %v590 = vshrl.u32 %v589, 7
  %v591 = vsub.s32 %v588, %v590
  %v592 = vrot.slane %v576, %v591
  %v594 = vunpack.c.l.s4 1966171168
  %v595 = vunpack.c.0.s8 %v594
  %v596 = vlaneseq
  %v597 = vshrl.u32 %v596, 7
  %v598 = vsub.s32 %v595, %v597
  %v599 = vrot.slane %v577, %v598
  %v601 = vunpack.c.l.s4 1966171168
  %v602 = vunpack.c.0.s8 %v601
  %v603 = vlaneseq
  %v604 = vshrl.u32 %v603, 7
  %v605 = vsub.s32 %v602, %v604
  %v606 = vrot.slane %v578, %v605
  %v607 = vcombine.high %v585, %v585
  %v608 = vcombine.high %v592, %v592
  %v609 = vcombine.high %v599, %v599
  %v610 = vcombine.high %v606, %v606
  %v611 = vcombine.high %v54, %v54
  %v613 = vunpack.c.l.s4 1966171168
  %v614 = vunpack.c.0.s8 %v613
  %v615 = vlaneseq
  %v616 = vshrl.u32 %v615, 7
  %v617 = vsub.s32 %v614, %v616
  %v618 = vrot.slane %v54, %v617
  %v620 = vunpack.c.l.s4 1966171168
  %v621 = vunpack.c.0.s8 %v620
  %v622 = vlaneseq
  %v623 = vshrl.u32 %v622, 7
  %v624 = vsub.s32 %v621, %v623
  %v625 = vrot.slane %v611, %v624
  %v626 = vcombine.high %v618, %v618
  %v627 = vcombine.high %v625, %v625
  %v629 = vunpack.c.l.s4 1966171168
  %v630 = vunpack.c.0.s8 %v629
  %v631 = vlaneseq
  %v632 = vshrl.u32 %v631, 7
  %v633 = vsub.s32 %v630, %v632
  %v634 = vrot.slane %v618, %v633
  %v636 = vunpack.c.l.s4 1966171168
  %v637 = vunpack.c.0.s8 %v636
  %v638 = vlaneseq
  %v639 = vshrl.u32 %v638, 7
  %v640 = vsub.s32 %v637, %v639
  %v641 = vrot.slane %v625, %v640
  %v643 = vunpack.c.l.s4 1966171168
  %v644 = vunpack.c.0.s8 %v643
  %v645 = vlaneseq
  %v646 = vshrl.u32 %v645, 7
  %v647 = vsub.s32 %v644, %v646
  %v648 = vrot.slane %v626, %v647
  %v650 = vunpack.c.l.s4 1966171168
  %v651 = vunpack.c.0.s8 %v650
  %v652 = vlaneseq
  %v653 = vshrl.u32 %v652, 7
  %v654 = vsub.s32 %v651, %v653
  %v655 = vrot.slane %v627, %v654
  %v656 = vcombine.high %v634, %v634
  %v657 = vcombine.high %v641, %v641
  %v658 = vcombine.high %v648, %v648
  %v659 = vcombine.high %v655, %v655
  %v660 = vcombine.high %v55, %v55
  %v662 = vunpack.c.l.s4 1966171168
  %v663 = vunpack.c.0.s8 %v662
  %v664 = vlaneseq
  %v665 = vshrl.u32 %v664, 7
  %v666 = vsub.s32 %v663, %v665
  %v667 = vrot.slane %v55, %v666
  %v669 = vunpack.c.l.s4 1966171168
  %v670 = vunpack.c.0.s8 %v669
  %v671 = vlaneseq
  %v672 = vshrl.u32 %v671, 7
  %v673 = vsub.s32 %v670, %v672
  %v674 = vrot.slane %v660, %v673
  %v675 = vcombine.high %v667, %v667
  %v676 = vcombine.high %v674, %v674
  %v678 = vunpack.c.l.s4 1966171168
  %v679 = vunpack.c.0.s8 %v678
  %v680 = vlaneseq
  %v681 = vshrl.u32 %v680, 7
  %v682 = vsub.s32 %v679, %v681
  %v683 = vrot.slane %v667, %v682
  %v685 = vunpack.c.l.s4 1966171168
  %v686 = vunpack.c.0.s8 %v685
  %v687 = vlaneseq
  %v688 = vshrl.u32 %v687, 7
  %v689 = vsub.s32 %v686, %v688
  %v690 = vrot.slane %v674, %v689
  %v692 = vunpack.c.l.s4 1966171168
  %v693 = vunpack.c.0.s8 %v692
  %v694 = vlaneseq
  %v695 = vshrl.u32 %v694, 7
  %v696 = vsub.s32 %v693, %v695
  %v697 = vrot.slane %v675, %v696
  %v699 = vunpack.c.l.s4 1966171168
  %v700 = vunpack.c.0.s8 %v699
  %v701 = vlaneseq
  %v702 = vshrl.u32 %v701, 7
  %v703 = vsub.s32 %v700, %v702
  %v704 = vrot.slane %v676, %v703
  %v705 = vcombine.high %v683, %v683
  %v706 = vcombine.high %v690, %v690
  %v707 = vcombine.high %v697, %v697
  %v708 = vcombine.high %v704, %v704
  %v710 = vunpack.c.l.s4 1966171168
  %v711 = vunpack.c.0.s8 %v710
  %v712 = vlaneseq
  %v713 = vshrl.u32 %v712, 7
  %v714 = vsub.s32 %v711, %v713
  %v715 = vrot.slane %v56, %v714
  %v716 = vcombine.high %v715, %v715
  %v718 = vunpack.c.l.s4 1966171168
  %v719 = vunpack.c.0.s8 %v718
  %v720 = vlaneseq
  %v721 = vshrl.u32 %v720, 7
  %v722 = vsub.s32 %v719, %v721
  %v723 = vrot.slane %v715, %v722
  %v725 = vunpack.c.l.s4 1966171168
  %v726 = vunpack.c.0.s8 %v725
  %v727 = vlaneseq
  %v728 = vshrl.u32 %v727, 7
  %v729 = vsub.s32 %v726, %v728
  %v730 = vrot.slane %v716, %v729
  %v731 = vcombine.high %v723, %v723
  %v1191 = vunpack.c.l.b16 %v57
  %v1192 = vunpack.c.l.b16 %v58
  %v1193 = vunpack.c.l.b16 %v59
  %v1194 = vunpack.c.l.b16 %v60
  %v1195 = vunpack.c.l.b16 %v61
  %v1196 = vunpack.c.l.b16 %v62
  %v1197 = vunpack.c.l.b16 %v63
  %v1198 = vunpack.c.l.b16 %v64
  %v1199 = vunpack.c.l.b16 %v65
  %v1200 = vunpack.c.l.b16 %v66
  %v1201 = vunpack.c.l.b16 %v67
  %v1202 = vunpack.c.l.b16 %v68
  %v1203 = vunpack.c.l.b16 %v69
  %v1204 = vunpack.c.l.b16 %v70
  %v1205 = vunpack.c.l.b16 %v71
  %v1206 = vunpack.c.l.b16 %v72
  %v1207 = vunpack.c.l.b16 %v73
  %v1208 = vunpack.c.l.b16 %v74
  %v1209 = vunpack.c.l.b16 %v75
  %v1210 = vunpack.c.l.b16 %v76
  %v1211 = vunpack.c.l.b16 %v77
  %v1212 = vunpack.c.l.b16 %v78
  %v1213 = vunpack.c.l.b16 %v79
  %v1214 = vunpack.c.l.b16 %v80
  %v1215 = vunpack.c.l.b16 %v81
  %v1216 = vunpack.c.l.b16 %v82
  %v1217 = vunpack.c.l.b16 %v83
  %v1218 = vunpack.c.l.b16 %v84
  %v1219 = vunpack.c.l.b16 %v85
  %v1220 = vunpack.c.l.b16 %v86
  %v1221 = vunpack.c.l.b16 %v87
  %v1222 = vunpack.c.l.b16 %v88
  %v1223 = vunpack.c.l.b16 %v89
  %v1224 = vunpack.c.l.b16 %v90
  %v1225 = vunpack.c.l.b16 %v91
  %v1226 = vunpack.c.l.b16 %v92
  %v1227 = vunpack.c.l.b16 %v93
  %v1228 = vunpack.c.l.b16 %v94
  %v1229 = vunpack.c.l.b16 %v95
  %v1230 = vunpack.c.l.b16 %v96
  %v1231 = vunpack.c.l.b16 %v97
  %v1232 = vunpack.c.l.b16 %v98
  %v1233 = vunpack.c.l.b16 %v99
  %v1234 = vunpack.c.l.b16 %v100
  %v1235 = vunpack.c.l.b16 %v101
  %v1236 = vunpack.c.l.b16 %v102
  %v1237 = vunpack.c.l.b16 %v103
  %v1238 = vunpack.c.l.b16 %v104
  %v1239 = vunpack.c.l.b16 %v105
  %v1240 = vunpack.c.l.b16 %v106
  %v1241 = vunpack.c.l.b16 %v107
  %v1242 = vunpack.c.l.b16 %v108
  %v1243 = vunpack.c.l.b16 %v109
  %v1244 = vunpack.c.l.b16 %v110
  %v1245 = vunpack.c.l.b16 %v111
  %v1246 = vunpack.c.l.b16 %v112
  %v1247 = vunpack.c.l.b16 %v113
  %v1248 = vunpack.c.l.b16 %v114
  %v1249 = vunpack.c.l.b16 %v115
  %v1250 = vunpack.c.l.b16 %v116
  %v1251 = vunpack.c.l.b16 %v117
  %v1252 = vunpack.c.l.b16 %v118
  %v1253 = vunpack.c.l.b16 %v119
  %v1254 = vunpack.c.l.b16 %v120
  %v1255 = vunpack.c.l.b16 %v121
  %v1256 = vunpack.c.l.b16 %v122
  %v1257 = vunpack.c.l.b16 %v123
  %v1258 = vunpack.c.l.b16 %v124
  %v1259 = vunpack.c.l.b16 %v125
  %v1260 = vunpack.c.l.b16 %v126
  %v1261 = vunpack.c.l.b16 %v127
  %v1262 = vunpack.c.l.b16 %v128
  %v1263 = vunpack.c.l.b16 %v129
  %v1264 = vunpack.c.l.b16 %v130
  %v1265 = vunpack.c.l.b16 %v131
  %v1266 = vunpack.c.l.b16 %v132
  %v1267 = vunpack.c.l.b16 %v133
  %v1268 = vunpack.c.l.b16 %v134
  %v1269 = vunpack.c.l.b16 %v135
  %v1270 = vunpack.c.l.b16 %v136
  %v1271 = vunpack.c.l.b16 %v137
  %v1272 = vunpack.c.l.b16 %v138
  %v1273 = vunpack.c.l.b16 %v139
  %v1274 = vunpack.c.l.b16 %v140
  %v1275 = vunpack.c.l.b16 %v141
  %v1276 = vunpack.c.l.b16 %v142
  %v1277 = vunpack.c.l.b16 %v143
  %v1278 = vunpack.c.l.b16 %v144
  %v1279 = vunpack.c.l.b16 %v145
  %v1280 = vunpack.c.l.b16 %v146
  %v1281 = vunpack.c.l.b16 %v147
  %v1282 = vunpack.c.l.b16 %v148
  %v1283 = vunpack.c.l.b16 %v149
  %v1284 = vunpack.c.l.b16 %v150
  %v1285 = vunpack.c.l.b16 %v151
  %v1286 = vunpack.c.l.b16 %v152
  %v1287 = vunpack.c.l.b16 %v153
  %v1288 = vunpack.c.l.b16 %v154
  %v1289 = vunpack.c.l.b16 %v155
  %v1290 = vunpack.c.l.b16 %v156
  %v1291 = vunpack.c.l.b16 %v157
  %v1292 = vunpack.c.l.b16 %v158
  %v1293 = vunpack.c.l.b16 %v159
  %v1294 = vunpack.c.l.b16 %v160
  %v1295 = vunpack.c.l.b16 %v161
  %v1296 = vunpack.c.l.b16 %v162
  %v1297 = vunpack.c.l.b16 %v163
  %v1298 = vunpack.c.l.b16 %v164
  %v1299 = vunpack.c.l.b16 %v165
  %v1300 = vunpack.c.l.b16 %v166
  %v1301 = vunpack.c.l.b16 %v167
  %v1302 = vunpack.c.l.b16 %v168
  %v1303 = vunpack.c.l.b16 %v169
  %v1304 = vunpack.c.l.b16 %v170
  %v1305 = vunpack.c.l.b16 %v171
  %v1306 = vunpack.c.l.b16 %v172
  %v1307 = vunpack.c.l.b16 %v173
  %v1308 = vunpack.c.l.b16 %v174
  %v1309 = vunpack.c.l.b16 %v175
  %v1310 = vunpack.c.l.b16 %v176
  %v1311 = vunpack.c.l.b16 %v177
  %v1312 = vunpack.c.l.b16 %v178
  %v1313 = vunpack.c.l.b16 %v179
  %v1314 = vunpack.c.l.b16 %v180
  %v1315 = vunpack.c.l.b16 %v181
  %v1316 = vunpack.c.l.b16 %v182
  %v1317 = vunpack.c.l.b16 %v183
  %v1318 = vunpack.c.l.b16 %v184
  %v1319 = vunpack.c.l.b16 %v185
  %v1320 = vunpack.c.l.b16 %v186
  %v1321 = vunpack.c.l.b16 %v187
  %v1322 = vunpack.c.l.b16 %v188
  %v1323 = vunpack.c.l.b16 %v189
  %v1324 = vunpack.c.l.b16 %v190
  %v1325 = vunpack.c.l.b16 %v191
  %v1326 = vunpack.c.l.b16 %v192
  %v1327 = vunpack.c.l.b16 %v193
  %v1328 = vunpack.c.l.b16 %v194
  %v1329 = vunpack.c.l.b16 %v195
  %v1330 = vunpack.c.l.b16 %v196
  %v1331 = vunpack.c.l.b16 %v197
  %v1332 = vunpack.c.l.b16 %v198
  %v1333 = vunpack.c.l.b16 %v199
  %v1334 = vunpack.c.l.b16 %v200
  %v1335 = vunpack.c.l.b16 %v201
  %v1336 = vunpack.c.l.b16 %v202
  %v1337 = vunpack.c.l.b16 %v203
  %v1338 = vunpack.c.l.b16 %v204
  %v1339 = vunpack.c.l.b16 %v205
  %v1340 = vunpack.c.l.b16 %v206
  %v1341 = vunpack.c.l.b16 %v207
  %v1342 = vunpack.c.l.b16 %v208
  %v1343 = vunpack.c.l.b16 %v209
  %v1344 = vunpack.c.l.b16 %v210
  %v1345 = vunpack.c.l.b16 %v211
  %v1346 = vunpack.c.l.b16 %v212
  %v1347 = vunpack.c.l.b16 %v213
  %v1348 = vunpack.c.l.b16 %v214
  %v1349 = vunpack.c.l.b16 %v215
  %v1350 = vunpack.c.l.b16 %v216
  %v1351 = vunpack.c.l.b16 %v217
  %v1352 = vunpack.c.l.b16 %v218
  %v1353 = vunpack.c.l.b16 %v219
  %v1354 = vunpack.c.l.b16 %v220
  %v1355 = vunpack.c.l.b16 %v221
  %v1356 = vunpack.c.l.b16 %v222
  %v1357 = vunpack.c.l.b16 %v223
  %v1358 = vunpack.c.l.b16 %v224
  %v1359 = vunpack.c.l.b16 %v225
  %v1360 = vunpack.c.l.b16 %v226
  %v1361 = vunpack.c.l.b16 %v227
  %v1362 = vunpack.c.l.b16 %v228
  %v1363 = vunpack.c.l.b16 %v229
  %v1364 = vunpack.c.l.b16 %v230
  %v1365 = vunpack.c.l.b16 %v231
  %v1366 = vunpack.c.l.b16 %v232
  %v1367 = vunpack.c.l.b16 %v233
  %v1368 = vunpack.c.l.b16 %v234
  %v1369 = vunpack.c.l.b16 %v235
  %v1370 = vunpack.c.l.b16 %v236
  %v1371 = vunpack.c.l.b16 %v237
  %v1372 = vunpack.c.l.b16 %v238
  %v1373 = vunpack.c.l.b16 %v239
  %v1374 = vunpack.c.l.b16 %v240
  %v1375 = vunpack.c.l.b16 %v241
  %v1376 = vunpack.c.l.b16 %v242
  %v1377 = vunpack.c.l.b16 %v243
  %v1378 = vunpack.c.l.b16 %v244
  %v1379 = vunpack.c.l.b16 %v245
  %v1380 = vunpack.c.l.b16 %v246
  %v1381 = vunpack.c.l.b16 %v247
  %v1382 = vunpack.c.l.b16 %v248
  %v1383 = vunpack.c.l.b16 %v249
  %v1384 = vunpack.c.l.b16 %v250
  %v1385 = vunpack.c.l.b16 %v251
  %v1386 = vunpack.c.l.b16 %v252
  %v1387 = vunpack.c.l.b16 %v253
  %v1388 = vunpack.c.l.b16 %v254
  %v1389 = vunpack.c.l.b16 %v255
  %v1390 = vunpack.c.l.b16 %v256
  %v1391 = vunpack.c.l.b16 %v257
  %v1392 = vunpack.c.l.b16 %v258
  %v1393 = vunpack.c.l.b16 %v259
  %v1394 = vunpack.c.l.b16 %v260
  %v1395 = vunpack.c.l.b16 %v261
  %v1396 = vunpack.c.l.b16 %v262
  %v1397 = vunpack.c.l.b16 %v263
  %v1398 = vunpack.c.l.b16 %v264
  %v1399 = vunpack.c.l.b16 %v265
  %v1400 = vunpack.c.l.b16 %v266
  %v1401 = vunpack.c.l.b16 %v267
  %v1402 = vunpack.c.l.b16 %v268
  %v1403 = vunpack.c.l.b16 %v269
  %v1404 = vunpack.c.l.b16 %v270
  %v1405 = vunpack.c.l.b16 %v271
  %v1406 = vunpack.c.l.b16 %v272
  %v1407 = vunpack.c.l.b16 %v273
  %v1408 = vunpack.c.l.b16 %v274
  %v1409 = vunpack.c.l.b16 %v275
  %v1410 = vunpack.c.l.b16 %v276
  %v1411 = vunpack.c.l.b16 %v277
  %v1412 = vunpack.c.l.b16 %v278
  %v1413 = vunpack.c.l.b16 %v279
  %v1414 = vunpack.c.l.b16 %v280
  %v1415 = vunpack.c.l.b16 %v281
  %v1416 = vunpack.c.l.b16 %v282
  %v1417 = vunpack.c.l.b16 %v283
  %v1418 = vunpack.c.l.b16 %v284
  %v1419 = vunpack.c.l.b16 %v285
  %v1420 = vunpack.c.l.b16 %v286
  %v1421 = vunpack.c.l.b16 %v287
  %v1422 = vunpack.c.l.b16 %v288
  %v1423 = vunpack.c.l.b16 %v289
  %v1424 = vunpack.c.l.b16 %v290
  %v1425 = vunpack.c.l.b16 %v291
  %v1426 = vunpack.c.l.b16 %v292
  %v1427 = vunpack.c.l.b16 %v293
  %v1428 = vunpack.c.l.b16 %v294
  %v1429 = vunpack.c.l.b16 %v295
  %v1430 = vunpack.c.l.b16 %v296
  %v1431 = vunpack.c.l.b16 %v297
  %v1432 = vunpack.c.l.b16 %v298
  %v1433 = vunpack.c.l.b16 %v299
  %v1434 = vunpack.c.l.b16 %v300
  %v1435 = vunpack.c.l.b16 %v301
  %v1436 = vunpack.c.l.b16 %v302
  %v1437 = vunpack.c.l.b16 %v303
  %v1438 = vunpack.c.l.b16 %v304
  %v1439 = vunpack.c.l.b16 %v305
  %v1440 = vunpack.c.l.b16 %v306
  %v1441 = vunpack.c.l.b16 %v307
  %v1442 = vunpack.c.l.b16 %v308
  %v1443 = vunpack.c.l.b16 %v309
  %v1444 = vunpack.c.l.b16 %v310
  %v1445 = vunpack.c.l.b16 %v311
  %v1446 = vunpack.c.l.b16 %v312
  %v1447 = vunpack.c.l.b16 %v313
  %v1448 = vunpack.c.l.b16 %v314
  %v1449 = vunpack.c.l.b16 %v315
  %v1450 = vunpack.c.l.b16 %v316
  %v1451 = vunpack.c.l.b16 %v317
  %v1452 = vunpack.c.l.b16 %v318
  %v1453 = vunpack.c.l.b16 %v319
  %v1454 = vunpack.c.l.b16 %v320
  %v1455 = vunpack.c.l.b16 %v321
  %v1456 = vunpack.c.l.b16 %v322
  %v1457 = vunpack.c.l.b16 %v323
  %v1458 = vunpack.c.l.b16 %v324
  %v1459 = vunpack.c.l.b16 %v325
  %v1460 = vunpack.c.l.b16 %v326
  %v1461 = vunpack.c.l.b16 %v327
  %v1462 = vunpack.c.l.b16 %v328
  %v1463 = vunpack.c.l.b16 %v329
  %v1464 = vunpack.c.l.b16 %v330
  %v1465 = vunpack.c.l.b16 %v331
  %v1466 = vunpack.c.l.b16 %v332
  %v1467 = vunpack.c.l.b16 %v333
  %v1468 = vunpack.c.l.b16 %v334
  %v1469 = vunpack.c.l.b16 %v335
  %v1470 = vunpack.c.l.b16 %v336
  %v1471 = vunpack.c.l.b16 %v337
  %v1472 = vunpack.c.l.b16 %v338
  %v1473 = vunpack.c.l.b16 %v339
  %v1474 = vunpack.c.l.b16 %v340
  %v1475 = vunpack.c.l.b16 %v341
  %v1476 = vunpack.c.l.b16 %v342
  %v1477 = vunpack.c.l.b16 %v343
  %v1478 = vunpack.c.l.b16 %v344
  %v1479 = vunpack.c.l.b16 %v345
  %v1480 = vunpack.c.l.b16 %v346
  %v1481 = vunpack.c.l.b16 %v347
  %v1482 = vunpack.c.l.b16 %v348
  %v1483 = vunpack.c.l.b16 %v349
  %v1484 = vunpack.c.l.b16 %v350
  %v1485 = vunpack.c.l.b16 %v351
  %v1486 = vunpack.c.l.b16 %v352
  %v1487 = vunpack.c.l.b16 %v353
  %v1488 = vunpack.c.l.b16 %v354
  %v1489 = vunpack.c.l.b16 %v355
  %v1490 = vunpack.c.l.b16 %v356
  %v1491 = vunpack.c.l.b16 %v357
  %v1492 = vunpack.c.l.b16 %v358
  %v1493 = vunpack.c.l.b16 %v359
  %v1494 = vunpack.c.l.b16 %v360
  %v1495 = vunpack.c.l.b16 %v361
  %v1496 = vunpack.c.l.b16 %v362
  %v1497 = vunpack.c.l.b16 %v363
  %v1498 = vunpack.c.l.b16 %v364
  %v1499 = vunpack.c.l.b16 %v365
  %v1500 = vunpack.c.l.b16 %v366
  %v1501 = vunpack.c.l.b16 %v367
  %v1502 = vunpack.c.l.b16 %v368
  %v1503 = vunpack.c.l.b16 %v369
  %v1504 = vunpack.c.l.b16 %v370
  %v1505 = vunpack.c.l.b16 %v371
  %v1506 = vunpack.c.l.b16 %v372
  %v1507 = vunpack.c.l.b16 %v373
  %v1508 = vunpack.c.l.b16 %v374
  %v1509 = vunpack.c.l.b16 %v375
  %v1510 = vunpack.c.l.b16 %v376
  %v1511 = vunpack.c.l.b16 %v377
  %v1512 = vunpack.c.l.b16 %v378
  %v1513 = vunpack.c.l.b16 %v379
  %v1514 = vunpack.c.l.b16 %v380
  %v1515 = vunpack.c.l.b16 %v381
  %v1516 = vunpack.c.l.b16 %v382
  %v1517 = vunpack.c.l.b16 %v383
  %v1518 = vunpack.c.l.b16 %v384
  %v1519 = vunpack.c.l.b16 %v385
  %v1520 = vunpack.c.l.b16 %v386
  %v1521 = vunpack.c.l.b16 %v387
  %v1522 = vunpack.c.l.b16 %v388
  %v1523 = vunpack.c.l.b16 %v389
  %v1524 = vunpack.c.l.b16 %v390
  %v1525 = vunpack.c.l.b16 %v391
  %v1526 = vunpack.c.l.b16 %v392
  %v1527 = vunpack.c.l.b16 %v393
  %v1528 = vunpack.c.l.b16 %v394
  %v1529 = vunpack.c.l.b16 %v395
  %v1530 = vunpack.c.l.b16 %v396
  %v1531 = vunpack.c.l.b16 %v397
  %v1532 = vunpack.c.l.b16 %v398
  %v1533 = vunpack.c.l.b16 %v399
  %v1534 = vunpack.c.l.b16 %v400
  %v1535 = vunpack.c.l.b16 %v401
  %v1536 = vunpack.c.l.b16 %v402
  %v1537 = vunpack.c.l.b16 %v403
  %v1538 = vunpack.c.l.b16 %v404
  %v1539 = vunpack.c.l.b16 %v405
  %v1540 = vunpack.c.l.b16 %v406
  %v1541 = vunpack.c.l.b16 %v407
  %v1542 = vunpack.c.l.b16 %v408
  %v1543 = vunpack.c.l.b16 %v409
  %v1544 = vunpack.c.l.b16 %v410
  %v1545 = vunpack.c.l.b16 %v411
  %v1546 = vunpack.c.l.b16 %v412
  %v1547 = vunpack.c.l.b16 %v413
  %v1548 = vunpack.c.l.b16 %v414
  %v1549 = vunpack.c.l.b16 %v415
  %v1550 = vunpack.c.l.b16 %v416
  %v1551 = vunpack.c.l.b16 %v417
  %v1552 = vunpack.c.l.b16 %v418
  %v1553 = vunpack.c.l.b16 %v419
  %v1554 = vunpack.c.l.b16 %v420
  %v1555 = vunpack.c.l.b16 %v421
  %v1556 = vunpack.c.l.b16 %v422
  %v1557 = vunpack.c.l.b16 %v423
  %v1558 = vunpack.c.l.b16 %v424
  %v1559 = vunpack.c.l.b16 %v425
  %v1560 = vunpack.c.l.b16 %v426
  %v1561 = vunpack.c.l.b16 %v427
  %v1562 = vunpack.c.l.b16 %v428
  %v1563 = vunpack.c.l.b16 %v429
  %v1564 = vunpack.c.l.b16 %v430
  %v1565 = vunpack.c.l.b16 %v431
  %v1566 = vunpack.c.l.b16 %v432
  %v1567 = vunpack.c.l.b16 %v433
  %v1568 = vunpack.c.l.b16 %v434
  %v1569 = vunpack.c.l.b16 %v435
  %v1570 = vunpack.c.l.b16 %v436
  %v1571 = vunpack.c.l.b16 %v437
  %v1572 = vunpack.c.l.b16 %v438
  %v1573 = vunpack.c.l.b16 %v439
  %v1574 = vunpack.c.l.b16 %v440
  %v1575 = vunpack.c.l.b16 %v441
  %v1576 = vunpack.c.l.b16 %v442
  %v1577 = vunpack.c.l.b16 %v443
  %v1578 = vunpack.c.l.b16 %v444
  %v1579 = vunpack.c.l.b16 %v445
  %v1580 = vunpack.c.l.b16 %v446
  %v1581 = vunpack.c.l.b16 %v447
  %v1582 = vunpack.c.l.b16 %v448
  %v1583 = vunpack.c.l.b16 %v449
  %v1584 = vunpack.c.l.b16 %v450
  %v1585 = vunpack.c.l.b16 %v451
  %v1586 = vunpack.c.l.b16 %v452
  %v1587 = vunpack.c.l.b16 %v453
  %v1588 = vunpack.c.l.b16 %v454
  %v1589 = vunpack.c.l.b16 %v455
  %v1590 = vunpack.c.l.b16 %v456
  %v1591 = vunpack.c.l.b16 %v457
  %v1592 = vunpack.c.l.b16 %v458
  %v1593 = vunpack.c.l.b16 %v459
  %v1594 = vunpack.c.l.b16 %v460
  %v1595 = vunpack.c.l.b16 %v461
  %v1596 = vunpack.c.l.b16 %v462
  %v1597 = vunpack.c.l.b16 %v463
  %v1598 = vunpack.c.l.b16 %v464
  %v1599 = vunpack.c.l.b16 %v465
  %v1600 = vunpack.c.l.b16 %v466
  %v1601 = vunpack.c.l.b16 %v467
  %v1602 = vunpack.c.l.b16 %v468
  %v1603 = vunpack.c.l.b16 %v469
  %v1604 = vunpack.c.l.b16 %v470
  %v1605 = vunpack.c.l.b16 %v471
  %v1606 = vunpack.c.l.b16 %v472
  %v1607 = vunpack.c.l.b16 %v473
  %v1608 = vunpack.c.l.b16 %v474
  %v1609 = vunpack.c.l.b16 %v475
  %v1610 = vunpack.c.l.b16 %v476
  %v1611 = vunpack.c.l.b16 %v477
  %v1612 = vunpack.c.l.b16 %v478
  %v1613 = vunpack.c.l.b16 %v479
  %v1614 = vunpack.c.l.b16 %v480
  %v1615 = vunpack.c.l.b16 %v481
  %v1616 = vunpack.c.l.b16 %v482
  %v1617 = vunpack.c.l.b16 %v483
  %v1618 = vunpack.c.l.b16 %v484
  %v1619 = vunpack.c.l.b16 %v485
  %v1620 = vunpack.c.l.b16 %v486
  %v1621 = vunpack.c.l.b16 %v487
  %v1622 = vunpack.c.l.b16 %v488
  %v1623 = vpack.c.b16 %v1192, %v1191
  %v1624 = vpack.c.b16 %v1194, %v1193
  %v1625 = vpack.c.b16 %v1196, %v1195
  %v1626 = vpack.c.b16 %v1198, %v1197
  %v1627 = vpack.c.b16 %v1200, %v1199
  %v1628 = vpack.c.b16 %v1202, %v1201
  %v1629 = vpack.c.b16 %v1204, %v1203
  %v1630 = vpack.c.b16 %v1206, %v1205
  %v1631 = vpack.c.b16 %v1208, %v1207
  %v1632 = vpack.c.b16 %v1210, %v1209
  %v1633 = vpack.c.b16 %v1212, %v1211
  %v1634 = vpack.c.b16 %v1214, %v1213
  %v1635 = vpack.c.b16 %v1216, %v1215
  %v1636 = vpack.c.b16 %v1218, %v1217
  %v1637 = vpack.c.b16 %v1220, %v1219
  %v1638 = vpack.c.b16 %v1222, %v1221
  %v1639 = vpack.c.b16 %v1224, %v1223
  %v1640 = vpack.c.b16 %v1226, %v1225
  %v1641 = vpack.c.b16 %v1228, %v1227
  %v1642 = vpack.c.b16 %v1230, %v1229
  %v1643 = vpack.c.b16 %v1232, %v1231
  %v1644 = vpack.c.b16 %v1234, %v1233
  %v1645 = vpack.c.b16 %v1236, %v1235
  %v1646 = vpack.c.b16 %v1238, %v1237
  %v1647 = vpack.c.b16 %v1240, %v1239
  %v1648 = vpack.c.b16 %v1242, %v1241
  %v1649 = vpack.c.b16 %v1244, %v1243
  %v1650 = vpack.c.b16 %v1246, %v1245
  %v1651 = vpack.c.b16 %v1248, %v1247
  %v1652 = vpack.c.b16 %v1250, %v1249
  %v1653 = vpack.c.b16 %v1252, %v1251
  %v1654 = vpack.c.b16 %v1254, %v1253
  %v1655 = vpack.c.b16 %v1256, %v1255
  %v1656 = vpack.c.b16 %v1258, %v1257
  %v1657 = vpack.c.b16 %v1260, %v1259
  %v1658 = vpack.c.b16 %v1262, %v1261
  %v1659 = vpack.c.b16 %v1264, %v1263
  %v1660 = vpack.c.b16 %v1266, %v1265
  %v1661 = vpack.c.b16 %v1268, %v1267
  %v1662 = vpack.c.b16 %v1270, %v1269
  %v1663 = vpack.c.b16 %v1272, %v1271
  %v1664 = vpack.c.b16 %v1274, %v1273
  %v1665 = vpack.c.b16 %v1276, %v1275
  %v1666 = vpack.c.b16 %v1278, %v1277
  %v1667 = vpack.c.b16 %v1280, %v1279
  %v1668 = vpack.c.b16 %v1282, %v1281
  %v1669 = vpack.c.b16 %v1284, %v1283
  %v1670 = vpack.c.b16 %v1286, %v1285
  %v1671 = vpack.c.b16 %v1288, %v1287
  %v1672 = vpack.c.b16 %v1290, %v1289
  %v1673 = vpack.c.b16 %v1292, %v1291
  %v1674 = vpack.c.b16 %v1294, %v1293
  %v1675 = vpack.c.b16 %v1296, %v1295
  %v1676 = vpack.c.b16 %v1298, %v1297
  %v1677 = vpack.c.b16 %v1300, %v1299
  %v1678 = vpack.c.b16 %v1302, %v1301
  %v1679 = vpack.c.b16 %v1304, %v1303
  %v1680 = vpack.c.b16 %v1306, %v1305
  %v1681 = vpack.c.b16 %v1308, %v1307
  %v1682 = vpack.c.b16 %v1310, %v1309
  %v1683 = vpack.c.b16 %v1312, %v1311
  %v1684 = vpack.c.b16 %v1314, %v1313
  %v1685 = vpack.c.b16 %v1316, %v1315
  %v1686 = vpack.c.b16 %v1318, %v1317
  %v1687 = vpack.c.b16 %v1320, %v1319
  %v1688 = vpack.c.b16 %v1322, %v1321
  %v1689 = vpack.c.b16 %v1324, %v1323
  %v1690 = vpack.c.b16 %v1326, %v1325
  %v1691 = vpack.c.b16 %v1328, %v1327
  %v1692 = vpack.c.b16 %v1330, %v1329
  %v1693 = vpack.c.b16 %v1332, %v1331
  %v1694 = vpack.c.b16 %v1334, %v1333
  %v1695 = vpack.c.b16 %v1336, %v1335
  %v1696 = vpack.c.b16 %v1338, %v1337
  %v1697 = vpack.c.b16 %v1340, %v1339
  %v1698 = vpack.c.b16 %v1342, %v1341
  %v1699 = vpack.c.b16 %v1344, %v1343
  %v1700 = vpack.c.b16 %v1346, %v1345
  %v1701 = vpack.c.b16 %v1348, %v1347
  %v1702 = vpack.c.b16 %v1350, %v1349
  %v1703 = vpack.c.b16 %v1352, %v1351
  %v1704 = vpack.c.b16 %v1354, %v1353
  %v1705 = vpack.c.b16 %v1356, %v1355
  %v1706 = vpack.c.b16 %v1358, %v1357
  %v1707 = vpack.c.b16 %v1360, %v1359
  %v1708 = vpack.c.b16 %v1362, %v1361
  %v1709 = vpack.c.b16 %v1364, %v1363
  %v1710 = vpack.c.b16 %v1366, %v1365
  %v1711 = vpack.c.b16 %v1368, %v1367
  %v1712 = vpack.c.b16 %v1370, %v1369
  %v1713 = vpack.c.b16 %v1372, %v1371
  %v1714 = vpack.c.b16 %v1374, %v1373
  %v1715 = vpack.c.b16 %v1376, %v1375
  %v1716 = vpack.c.b16 %v1378, %v1377
  %v1717 = vpack.c.b16 %v1380, %v1379
  %v1718 = vpack.c.b16 %v1382, %v1381
  %v1719 = vpack.c.b16 %v1384, %v1383
  %v1720 = vpack.c.b16 %v1386, %v1385
  %v1721 = vpack.c.b16 %v1388, %v1387
  %v1722 = vpack.c.b16 %v1390, %v1389
  %v1723 = vpack.c.b16 %v1392, %v1391
  %v1724 = vpack.c.b16 %v1394, %v1393
  %v1725 = vpack.c.b16 %v1396, %v1395
  %v1726 = vpack.c.b16 %v1398, %v1397
  %v1727 = vpack.c.b16 %v1400, %v1399
  %v1728 = vpack.c.b16 %v1402, %v1401
  %v1729 = vpack.c.b16 %v1404, %v1403
  %v1730 = vpack.c.b16 %v1406, %v1405
  %v1731 = vpack.c.b16 %v1408, %v1407
  %v1732 = vpack.c.b16 %v1410, %v1409
  %v1733 = vpack.c.b16 %v1412, %v1411
  %v1734 = vpack.c.b16 %v1414, %v1413
  %v1735 = vpack.c.b16 %v1416, %v1415
  %v1736 = vpack.c.b16 %v1418, %v1417
  %v1737 = vpack.c.b16 %v1420, %v1419
  %v1738 = vpack.c.b16 %v1422, %v1421
  %v1739 = vpack.c.b16 %v1424, %v1423
  %v1740 = vpack.c.b16 %v1426, %v1425
  %v1741 = vpack.c.b16 %v1428, %v1427
  %v1742 = vpack.c.b16 %v1430, %v1429
  %v1743 = vpack.c.b16 %v1432, %v1431
  %v1744 = vpack.c.b16 %v1434, %v1433
  %v1745 = vpack.c.b16 %v1436, %v1435
  %v1746 = vpack.c.b16 %v1438, %v1437
  %v1747 = vpack.c.b16 %v1440, %v1439
  %v1748 = vpack.c.b16 %v1442, %v1441
  %v1749 = vpack.c.b16 %v1444, %v1443
  %v1750 = vpack.c.b16 %v1446, %v1445
  %v1751 = vpack.c.b16 %v1448, %v1447
  %v1752 = vpack.c.b16 %v1450, %v1449
  %v1753 = vpack.c.b16 %v1452, %v1451
  %v1754 = vpack.c.b16 %v1454, %v1453
  %v1755 = vpack.c.b16 %v1456, %v1455
  %v1756 = vpack.c.b16 %v1458, %v1457
  %v1757 = vpack.c.b16 %v1460, %v1459
  %v1758 = vpack.c.b16 %v1462, %v1461
  %v1759 = vpack.c.b16 %v1464, %v1463
  %v1760 = vpack.c.b16 %v1466, %v1465
  %v1761 = vpack.c.b16 %v1468, %v1467
  %v1762 = vpack.c.b16 %v1470, %v1469
  %v1763 = vpack.c.b16 %v1472, %v1471
  %v1764 = vpack.c.b16 %v1474, %v1473
  %v1765 = vpack.c.b16 %v1476, %v1475
  %v1766 = vpack.c.b16 %v1478, %v1477
  %v1767 = vpack.c.b16 %v1480, %v1479
  %v1768 = vpack.c.b16 %v1482, %v1481
  %v1769 = vpack.c.b16 %v1484, %v1483
  %v1770 = vpack.c.b16 %v1486, %v1485
  %v1771 = vpack.c.b16 %v1488, %v1487
  %v1772 = vpack.c.b16 %v1490, %v1489
  %v1773 = vpack.c.b16 %v1492, %v1491
  %v1774 = vpack.c.b16 %v1494, %v1493
  %v1775 = vpack.c.b16 %v1496, %v1495
  %v1776 = vpack.c.b16 %v1498, %v1497
  %v1777 = vpack.c.b16 %v1500, %v1499
  %v1778 = vpack.c.b16 %v1502, %v1501
  %v1779 = vpack.c.b16 %v1504, %v1503
  %v1780 = vpack.c.b16 %v1506, %v1505
  %v1781 = vpack.c.b16 %v1508, %v1507
  %v1782 = vpack.c.b16 %v1510, %v1509
  %v1783 = vpack.c.b16 %v1512, %v1511
  %v1784 = vpack.c.b16 %v1514, %v1513
  %v1785 = vpack.c.b16 %v1516, %v1515
  %v1786 = vpack.c.b16 %v1518, %v1517
  %v1787 = vpack.c.b16 %v1520, %v1519
  %v1788 = vpack.c.b16 %v1522, %v1521
  %v1789 = vpack.c.b16 %v1524, %v1523
  %v1790 = vpack.c.b16 %v1526, %v1525
  %v1791 = vpack.c.b16 %v1528, %v1527
  %v1792 = vpack.c.b16 %v1530, %v1529
  %v1793 = vpack.c.b16 %v1532, %v1531
  %v1794 = vpack.c.b16 %v1534, %v1533
  %v1795 = vpack.c.b16 %v1536, %v1535
  %v1796 = vpack.c.b16 %v1538, %v1537
  %v1797 = vpack.c.b16 %v1540, %v1539
  %v1798 = vpack.c.b16 %v1542, %v1541
  %v1799 = vpack.c.b16 %v1544, %v1543
  %v1800 = vpack.c.b16 %v1546, %v1545
  %v1801 = vpack.c.b16 %v1548, %v1547
  %v1802 = vpack.c.b16 %v1550, %v1549
  %v1803 = vpack.c.b16 %v1552, %v1551
  %v1804 = vpack.c.b16 %v1554, %v1553
  %v1805 = vpack.c.b16 %v1556, %v1555
  %v1806 = vpack.c.b16 %v1558, %v1557
  %v1807 = vpack.c.b16 %v1560, %v1559
  %v1808 = vpack.c.b16 %v1562, %v1561
  %v1809 = vpack.c.b16 %v1564, %v1563
  %v1810 = vpack.c.b16 %v1566, %v1565
  %v1811 = vpack.c.b16 %v1568, %v1567
  %v1812 = vpack.c.b16 %v1570, %v1569
  %v1813 = vpack.c.b16 %v1572, %v1571
  %v1814 = vpack.c.b16 %v1574, %v1573
  %v1815 = vpack.c.b16 %v1576, %v1575
  %v1816 = vpack.c.b16 %v1578, %v1577
  %v1817 = vpack.c.b16 %v1580, %v1579
  %v1818 = vpack.c.b16 %v1582, %v1581
  %v1819 = vpack.c.b16 %v1584, %v1583
  %v1820 = vpack.c.b16 %v1586, %v1585
  %v1821 = vpack.c.b16 %v1588, %v1587
  %v1822 = vpack.c.b16 %v1590, %v1589
  %v1823 = vpack.c.b16 %v1592, %v1591
  %v1824 = vpack.c.b16 %v1594, %v1593
  %v1825 = vpack.c.b16 %v1596, %v1595
  %v1826 = vpack.c.b16 %v1598, %v1597
  %v1827 = vpack.c.b16 %v1600, %v1599
  %v1828 = vpack.c.b16 %v1602, %v1601
  %v1829 = vpack.c.b16 %v1604, %v1603
  %v1830 = vpack.c.b16 %v1606, %v1605
  %v1831 = vpack.c.b16 %v1608, %v1607
  %v1832 = vpack.c.b16 %v1610, %v1609
  %v1833 = vpack.c.b16 %v1612, %v1611
  %v1834 = vpack.c.b16 %v1614, %v1613
  %v1835 = vpack.c.b16 %v1616, %v1615
  %v1836 = vpack.c.b16 %v1618, %v1617
  %v1837 = vpack.c.b16 %v1620, %v1619
  %v1838 = vpack.c.b16 %v1622, %v1621
  %2055 = vmatprep.subr.bf16.mxu0 0
  %2056 = vmatpush1.bf16.msra.mxu0 %v1623
  %2057 = vmatprep.subr.bf16.mxu0 0
  %2058 = vmatpush1.bf16.msra.mxu0 %v1624
  %2059 = vmatprep.subr.bf16.mxu0 0
  %2060 = vmatpush1.bf16.msra.mxu0 %v1625
  %2061 = vmatprep.subr.bf16.mxu0 0
  %2062 = vmatpush1.bf16.msra.mxu0 %v1626
  %2063 = vmatprep.subr.bf16.mxu0 0
  %2064 = vmatpush1.bf16.msra.mxu0 %v1627
  %2065 = vmatprep.subr.bf16.mxu0 0
  %2066 = vmatpush1.bf16.msra.mxu0 %v1628
  %2067 = vmatprep.subr.bf16.mxu0 0
  %2068 = vmatpush1.bf16.msra.mxu0 %v1629
  %2069 = vmatprep.subr.bf16.mxu0 0
  %2070 = vmatpush1.bf16.msra.mxu0 %v1630
  %2071 = vmatprep.subr.bf16.mxu0 0
  %2072 = vmatpush1.bf16.msra.mxu0 %v1631
  %2073 = vmatprep.subr.bf16.mxu0 0
  %2074 = vmatpush1.bf16.msra.mxu0 %v1632
  %2075 = vmatprep.subr.bf16.mxu0 0
  %2076 = vmatpush1.bf16.msra.mxu0 %v1633
  %2077 = vmatprep.subr.bf16.mxu0 0
  %2078 = vmatpush1.bf16.msra.mxu0 %v1634
  %2079 = vmatprep.subr.bf16.mxu0 0
  %2080 = vmatpush1.bf16.msra.mxu0 %v1635
  %2081 = vmatprep.subr.bf16.mxu0 0
  %2082 = vmatpush1.bf16.msra.mxu0 %v1636
  %2083 = vmatprep.subr.bf16.mxu0 0
  %2084 = vmatpush1.bf16.msra.mxu0 %v1637
  %2085 = vmatprep.subr.bf16.mxu0 0
  %2086 = vmatpush1.bf16.msra.mxu0 %v1638
  %2087 = vmatprep.mubr.bf16.mxu0 %v599
  %2088 = vmatmul.mubr.bf16.gmra.mrb[0].mxu0 %v585
  %v2089 = vpop.f32.mrb[0].mxu0
  %v2090 = vadd.f32 %v553, %v2089
  %v2091 = vpop.f32.mrb[0].mxu0
  %v2092 = vpop.f32.mrb[0].mxu0
  %v2093 = vpop.f32.mrb[0].mxu0
  %2094 = vdwg.mxu0
  %2095 = vmatprep.subr.bf16.mxu0 0
  %2096 = vmatpush1.bf16.msra.mxu0 %v1639
  %2097 = vmatprep.subr.bf16.mxu0 0
  %2098 = vmatpush1.bf16.msra.mxu0 %v1640
  %2099 = vmatprep.subr.bf16.mxu0 0
  %2100 = vmatpush1.bf16.msra.mxu0 %v1641
  %2101 = vmatprep.subr.bf16.mxu0 0
  %2102 = vmatpush1.bf16.msra.mxu0 %v1642
  %2103 = vmatprep.subr.bf16.mxu0 0
  %2104 = vmatpush1.bf16.msra.mxu0 %v1643
  %2105 = vmatprep.subr.bf16.mxu0 0
  %2106 = vmatpush1.bf16.msra.mxu0 %v1644
  %2107 = vmatprep.subr.bf16.mxu0 0
  %2108 = vmatpush1.bf16.msra.mxu0 %v1645
  %2109 = vmatprep.subr.bf16.mxu0 0
  %2110 = vmatpush1.bf16.msra.mxu0 %v1646
  %2111 = vmatprep.subr.bf16.mxu0 0
  %2112 = vmatpush1.bf16.msra.mxu0 %v1647
  %2113 = vmatprep.subr.bf16.mxu0 0
  %2114 = vmatpush1.bf16.msra.mxu0 %v1648
  %2115 = vmatprep.subr.bf16.mxu0 0
  %2116 = vmatpush1.bf16.msra.mxu0 %v1649
  %2117 = vmatprep.subr.bf16.mxu0 0
  %2118 = vmatpush1.bf16.msra.mxu0 %v1650
  %2119 = vmatprep.subr.bf16.mxu0 0
  %2120 = vmatpush1.bf16.msra.mxu0 %v1651
  %2121 = vmatprep.subr.bf16.mxu0 0
  %2122 = vmatpush1.bf16.msra.mxu0 %v1652
  %2123 = vmatprep.subr.bf16.mxu0 0
  %2124 = vmatpush1.bf16.msra.mxu0 %v1653
  %2125 = vmatprep.subr.bf16.mxu0 0
  %2126 = vmatpush1.bf16.msra.mxu0 %v1654
  %2127 = vmatprep.mubr.bf16.mxu0 %v609
  %2128 = vmatmul.mubr.bf16.gmra.mrb[0].mxu0 %v607
  %v2129 = vpop.f32.mrb[0].mxu0
  %v2130 = vadd.f32 %v2090, %v2129
  %v2131 = vpop.f32.mrb[0].mxu0
  %v2132 = vpop.f32.mrb[0].mxu0
  %v2133 = vpop.f32.mrb[0].mxu0
  %2134 = vdwg.mxu0
  %2135 = vmatprep.subr.bf16.mxu0 0
  %2136 = vmatpush1.bf16.msra.mxu0 %v1655
  %2137 = vmatprep.subr.bf16.mxu0 0
  %2138 = vmatpush1.bf16.msra.mxu0 %v1656
  %2139 = vmatprep.subr.bf16.mxu0 0
  %2140 = vmatpush1.bf16.msra.mxu0 %v1657
  %2141 = vmatprep.subr.bf16.mxu0 0
  %2142 = vmatpush1.bf16.msra.mxu0 %v1658
  %2143 = vmatprep.subr.bf16.mxu0 0
  %2144 = vmatpush1.bf16.msra.mxu0 %v1659
  %2145 = vmatprep.subr.bf16.mxu0 0
  %2146 = vmatpush1.bf16.msra.mxu0 %v1660
  %2147 = vmatprep.subr.bf16.mxu0 0
  %2148 = vmatpush1.bf16.msra.mxu0 %v1661
  %2149 = vmatprep.subr.bf16.mxu0 0
  %2150 = vmatpush1.bf16.msra.mxu0 %v1662
  %2151 = vmatprep.subr.bf16.mxu0 0
  %2152 = vmatpush1.bf16.msra.mxu0 %v1663
  %2153 = vmatprep.subr.bf16.mxu0 0
  %2154 = vmatpush1.bf16.msra.mxu0 %v1664
  %2155 = vmatprep.subr.bf16.mxu0 0
  %2156 = vmatpush1.bf16.msra.mxu0 %v1665
  %2157 = vmatprep.subr.bf16.mxu0 0
  %2158 = vmatpush1.bf16.msra.mxu0 %v1666
  %2159 = vmatprep.subr.bf16.mxu0 0
  %2160 = vmatpush1.bf16.msra.mxu0 %v1667
  %2161 = vmatprep.subr.bf16.mxu0 0
  %2162 = vmatpush1.bf16.msra.mxu0 %v1668
  %2163 = vmatprep.subr.bf16.mxu0 0
  %2164 = vmatpush1.bf16.msra.mxu0 %v1669
  %2165 = vmatprep.subr.bf16.mxu0 0
  %2166 = vmatpush1.bf16.msra.mxu0 %v1670
  %2167 = vmatprep.mubr.bf16.mxu0 %v606
  %2168 = vmatmul.mubr.bf16.gmra.mrb[0].mxu0 %v592
  %v2169 = vpop.f32.mrb[0].mxu0
  %v2170 = vadd.f32 %v2130, %v2169
  %v2171 = vpop.f32.mrb[0].mxu0
  %v2172 = vpop.f32.mrb[0].mxu0
  %v2173 = vpop.f32.mrb[0].mxu0
  %2174 = vdwg.mxu0
  %2175 = vmatprep.subr.bf16.mxu0 0
  %2176 = vmatpush1.bf16.msra.mxu0 %v1671
  %2177 = vmatprep.subr.bf16.mxu0 0
  %2178 = vmatpush1.bf16.msra.mxu0 %v1672
  %2179 = vmatprep.subr.bf16.mxu0 0
  %2180 = vmatpush1.bf16.msra.mxu0 %v1673
  %2181 = vmatprep.subr.bf16.mxu0 0
  %2182 = vmatpush1.bf16.msra.mxu0 %v1674
  %2183 = vmatprep.subr.bf16.mxu0 0
  %2184 = vmatpush1.bf16.msra.mxu0 %v1675
  %2185 = vmatprep.subr.bf16.mxu0 0
  %2186 = vmatpush1.bf16.msra.mxu0 %v1676
  %2187 = vmatprep.subr.bf16.mxu0 0
  %2188 = vmatpush1.bf16.msra.mxu0 %v1677
  %2189 = vmatprep.subr.bf16.mxu0 0
  %2190 = vmatpush1.bf16.msra.mxu0 %v1678
  %2191 = vmatprep.subr.bf16.mxu0 0
  %2192 = vmatpush1.bf16.msra.mxu0 %v1679
  %2193 = vmatprep.subr.bf16.mxu0 0
  %2194 = vmatpush1.bf16.msra.mxu0 %v1680
  %2195 = vmatprep.subr.bf16.mxu0 0
  %2196 = vmatpush1.bf16.msra.mxu0 %v1681
  %2197 = vmatprep.subr.bf16.mxu0 0
  %2198 = vmatpush1.bf16.msra.mxu0 %v1682
  %2199 = vmatprep.subr.bf16.mxu0 0
  %2200 = vmatpush1.bf16.msra.mxu0 %v1683
  %2201 = vmatprep.subr.bf16.mxu0 0
  %2202 = vmatpush1.bf16.msra.mxu0 %v1684
  %2203 = vmatprep.subr.bf16.mxu0 0
  %2204 = vmatpush1.bf16.msra.mxu0 %v1685
  %2205 = vmatprep.subr.bf16.mxu0 0
  %2206 = vmatpush1.bf16.msra.mxu0 %v1686
  %2207 = vmatprep.mubr.bf16.mxu0 %v610
  %2208 = vmatmul.mubr.bf16.gmra.mrb[0].mxu0 %v608
  %v2209 = vpop.f32.mrb[0].mxu0
  %v2210 = vadd.f32 %v2170, %v2209
  %v2211 = vpop.f32.mrb[0].mxu0
  %v2212 = vpop.f32.mrb[0].mxu0
  %v2213 = vpop.f32.mrb[0].mxu0
  %2214 = vdwg.mxu0
  %2215 = vmatprep.subr.bf16.mxu0 0
  %2216 = vmatpush1.bf16.msra.mxu0 %v1687
  %2217 = vmatprep.subr.bf16.mxu0 0
  %2218 = vmatpush1.bf16.msra.mxu0 %v1688
  %2219 = vmatprep.subr.bf16.mxu0 0
  %2220 = vmatpush1.bf16.msra.mxu0 %v1689
  %2221 = vmatprep.subr.bf16.mxu0 0
  %2222 = vmatpush1.bf16.msra.mxu0 %v1690
  %2223 = vmatprep.subr.bf16.mxu0 0
  %2224 = vmatpush1.bf16.msra.mxu0 %v1691
  %2225 = vmatprep.subr.bf16.mxu0 0
  %2226 = vmatpush1.bf16.msra.mxu0 %v1692
  %2227 = vmatprep.subr.bf16.mxu0 0
  %2228 = vmatpush1.bf16.msra.mxu0 %v1693
  %2229 = vmatprep.subr.bf16.mxu0 0
  %2230 = vmatpush1.bf16.msra.mxu0 %v1694
  %2231 = vmatprep.subr.bf16.mxu0 0
  %2232 = vmatpush1.bf16.msra.mxu0 %v1695
  %2233 = vmatprep.subr.bf16.mxu0 0
  %2234 = vmatpush1.bf16.msra.mxu0 %v1696
  %2235 = vmatprep.subr.bf16.mxu0 0
  %2236 = vmatpush1.bf16.msra.mxu0 %v1697
  %2237 = vmatprep.subr.bf16.mxu0 0
  %2238 = vmatpush1.bf16.msra.mxu0 %v1698
  %2239 = vmatprep.subr.bf16.mxu0 0
  %2240 = vmatpush1.bf16.msra.mxu0 %v1699
  %2241 = vmatprep.subr.bf16.mxu0 0
  %2242 = vmatpush1.bf16.msra.mxu0 %v1700
  %2243 = vmatprep.subr.bf16.mxu0 0
  %2244 = vmatpush1.bf16.msra.mxu0 %v1701
  %2245 = vmatprep.subr.bf16.mxu0 0
  %2246 = vmatpush1.bf16.msra.mxu0 %v1702
  %2247 = vmatprep.mubr.bf16.mxu0 %v648
  %2248 = vmatmul.mubr.bf16.gmra.mrb[0].mxu0 %v634
  %v2249 = vpop.f32.mrb[0].mxu0
  %v2250 = vadd.f32 %v2210, %v2249
  %v2251 = vpop.f32.mrb[0].mxu0
  %v2252 = vpop.f32.mrb[0].mxu0
  %v2253 = vpop.f32.mrb[0].mxu0
  %2254 = vdwg.mxu0
  %2255 = vmatprep.subr.bf16.mxu0 0
  %2256 = vmatpush1.bf16.msra.mxu0 %v1703
  %2257 = vmatprep.subr.bf16.mxu0 0
  %2258 = vmatpush1.bf16.msra.mxu0 %v1704
  %2259 = vmatprep.subr.bf16.mxu0 0
  %2260 = vmatpush1.bf16.msra.mxu0 %v1705
  %2261 = vmatprep.subr.bf16.mxu0 0
  %2262 = vmatpush1.bf16.msra.mxu0 %v1706
  %2263 = vmatprep.subr.bf16.mxu0 0
  %2264 = vmatpush1.bf16.msra.mxu0 %v1707
  %2265 = vmatprep.subr.bf16.mxu0 0
  %2266 = vmatpush1.bf16.msra.mxu0 %v1708
  %2267 = vmatprep.subr.bf16.mxu0 0
  %2268 = vmatpush1.bf16.msra.mxu0 %v1709
  %2269 = vmatprep.subr.bf16.mxu0 0
  %2270 = vmatpush1.bf16.msra.mxu0 %v1710
  %2271 = vmatprep.subr.bf16.mxu0 0
  %2272 = vmatpush1.bf16.msra.mxu0 %v1711
  %2273 = vmatprep.subr.bf16.mxu0 0
  %2274 = vmatpush1.bf16.msra.mxu0 %v1712
  %2275 = vmatprep.subr.bf16.mxu0 0
  %2276 = vmatpush1.bf16.msra.mxu0 %v1713
  %2277 = vmatprep.subr.bf16.mxu0 0
  %2278 = vmatpush1.bf16.msra.mxu0 %v1714
  %2279 = vmatprep.subr.bf16.mxu0 0
  %2280 = vmatpush1.bf16.msra.mxu0 %v1715
  %2281 = vmatprep.subr.bf16.mxu0 0
  %2282 = vmatpush1.bf16.msra.mxu0 %v1716
  %2283 = vmatprep.subr.bf16.mxu0 0
  %2284 = vmatpush1.bf16.msra.mxu0 %v1717
  %2285 = vmatprep.subr.bf16.mxu0 0
  %2286 = vmatpush1.bf16.msra.mxu0 %v1718
  %2287 = vmatprep.mubr.bf16.mxu0 %v658
  %2288 = vmatmul.mubr.bf16.gmra.mrb[0].mxu0 %v656
  %v2289 = vpop.f32.mrb[0].mxu0
  %v2290 = vadd.f32 %v2250, %v2289
  %v2291 = vpop.f32.mrb[0].mxu0
  %v2292 = vpop.f32.mrb[0].mxu0
  %v2293 = vpop.f32.mrb[0].mxu0
  %2294 = vdwg.mxu0
  %2295 = vmatprep.subr.bf16.mxu0 0
  %2296 = vmatpush1.bf16.msra.mxu0 %v1719
  %2297 = vmatprep.subr.bf16.mxu0 0
  %2298 = vmatpush1.bf16.msra.mxu0 %v1720
  %2299 = vmatprep.subr.bf16.mxu0 0
  %2300 = vmatpush1.bf16.msra.mxu0 %v1721
  %2301 = vmatprep.subr.bf16.mxu0 0
  %2302 = vmatpush1.bf16.msra.mxu0 %v1722
  %2303 = vmatprep.subr.bf16.mxu0 0
  %2304 = vmatpush1.bf16.msra.mxu0 %v1723
  %2305 = vmatprep.subr.bf16.mxu0 0
  %2306 = vmatpush1.bf16.msra.mxu0 %v1724
  %2307 = vmatprep.subr.bf16.mxu0 0
  %2308 = vmatpush1.bf16.msra.mxu0 %v1725
  %2309 = vmatprep.subr.bf16.mxu0 0
  %2310 = vmatpush1.bf16.msra.mxu0 %v1726
  %2311 = vmatprep.subr.bf16.mxu0 0
  %2312 = vmatpush1.bf16.msra.mxu0 %v1727
  %2313 = vmatprep.subr.bf16.mxu0 0
  %2314 = vmatpush1.bf16.msra.mxu0 %v1728
  %2315 = vmatprep.subr.bf16.mxu0 0
  %2316 = vmatpush1.bf16.msra.mxu0 %v1729
  %2317 = vmatprep.subr.bf16.mxu0 0
  %2318 = vmatpush1.bf16.msra.mxu0 %v1730
  %2319 = vmatprep.subr.bf16.mxu0 0
  %2320 = vmatpush1.bf16.msra.mxu0 %v1731
  %2321 = vmatprep.subr.bf16.mxu0 0
  %2322 = vmatpush1.bf16.msra.mxu0 %v1732
  %2323 = vmatprep.subr.bf16.mxu0 0
  %2324 = vmatpush1.bf16.msra.mxu0 %v1733
  %2325 = vmatprep.subr.bf16.mxu0 0
  %2326 = vmatpush1.bf16.msra.mxu0 %v1734
  %2327 = vmatprep.mubr.bf16.mxu0 %v655
  %2328 = vmatmul.mubr.bf16.gmra.mrb[0].mxu0 %v641
  %v2329 = vpop.f32.mrb[0].mxu0
  %v2330 = vadd.f32 %v2290, %v2329
  %v2331 = vpop.f32.mrb[0].mxu0
  %v2332 = vpop.f32.mrb[0].mxu0
  %v2333 = vpop.f32.mrb[0].mxu0
  %2334 = vdwg.mxu0
  %2335 = vmatprep.subr.bf16.mxu0 0
  %2336 = vmatpush1.bf16.msra.mxu0 %v1735
  %2337 = vmatprep.subr.bf16.mxu0 0
  %2338 = vmatpush1.bf16.msra.mxu0 %v1736
  %2339 = vmatprep.subr.bf16.mxu0 0
  %2340 = vmatpush1.bf16.msra.mxu0 %v1737
  %2341 = vmatprep.subr.bf16.mxu0 0
  %2342 = vmatpush1.bf16.msra.mxu0 %v1738
  %2343 = vmatprep.subr.bf16.mxu0 0
  %2344 = vmatpush1.bf16.msra.mxu0 %v1739
  %2345 = vmatprep.subr.bf16.mxu0 0
  %2346 = vmatpush1.bf16.msra.mxu0 %v1740
  %2347 = vmatprep.subr.bf16.mxu0 0
  %2348 = vmatpush1.bf16.msra.mxu0 %v1741
  %2349 = vmatprep.subr.bf16.mxu0 0
  %2350 = vmatpush1.bf16.msra.mxu0 %v1742
  %2351 = vmatprep.subr.bf16.mxu0 0
  %2352 = vmatpush1.bf16.msra.mxu0 %v1743
  %2353 = vmatprep.subr.bf16.mxu0 0
  %2354 = vmatpush1.bf16.msra.mxu0 %v1744
  %2355 = vmatprep.subr.bf16.mxu0 0
  %2356 = vmatpush1.bf16.msra.mxu0 %v1745
  %2357 = vmatprep.subr.bf16.mxu0 0
  %2358 = vmatpush1.bf16.msra.mxu0 %v1746
  %2359 = vmatprep.subr.bf16.mxu0 0
  %2360 = vmatpush1.bf16.msra.mxu0 %v1747
  %2361 = vmatprep.subr.bf16.mxu0 0
  %2362 = vmatpush1.bf16.msra.mxu0 %v1748
  %2363 = vmatprep.subr.bf16.mxu0 0
  %2364 = vmatpush1.bf16.msra.mxu0 %v1749
  %2365 = vmatprep.subr.bf16.mxu0 0
  %2366 = vmatpush1.bf16.msra.mxu0 %v1750
  %2367 = vmatprep.mubr.bf16.mxu0 %v659
  %2368 = vmatmul.mubr.bf16.gmra.mrb[0].mxu0 %v657
  %v2369 = vpop.f32.mrb[0].mxu0
  %v2370 = vadd.f32 %v2330, %v2369
  %v2371 = vpop.f32.mrb[0].mxu0
  %v2372 = vpop.f32.mrb[0].mxu0
  %v2373 = vpop.f32.mrb[0].mxu0
  %2374 = vdwg.mxu0
  %2375 = vmatprep.subr.bf16.mxu0 0
  %2376 = vmatpush1.bf16.msra.mxu0 %v1751
  %2377 = vmatprep.subr.bf16.mxu0 0
  %2378 = vmatpush1.bf16.msra.mxu0 %v1752
  %2379 = vmatprep.subr.bf16.mxu0 0
  %2380 = vmatpush1.bf16.msra.mxu0 %v1753
  %2381 = vmatprep.subr.bf16.mxu0 0
  %2382 = vmatpush1.bf16.msra.mxu0 %v1754
  %2383 = vmatprep.subr.bf16.mxu0 0
  %2384 = vmatpush1.bf16.msra.mxu0 %v1755
  %2385 = vmatprep.subr.bf16.mxu0 0
  %2386 = vmatpush1.bf16.msra.mxu0 %v1756
  %2387 = vmatprep.subr.bf16.mxu0 0
  %2388 = vmatpush1.bf16.msra.mxu0 %v1757
  %2389 = vmatprep.subr.bf16.mxu0 0
  %2390 = vmatpush1.bf16.msra.mxu0 %v1758
  %2391 = vmatprep.subr.bf16.mxu0 0
  %2392 = vmatpush1.bf16.msra.mxu0 %v1759
  %2393 = vmatprep.subr.bf16.mxu0 0
  %2394 = vmatpush1.bf16.msra.mxu0 %v1760
  %2395 = vmatprep.subr.bf16.mxu0 0
  %2396 = vmatpush1.bf16.msra.mxu0 %v1761
  %2397 = vmatprep.subr.bf16.mxu0 0
  %2398 = vmatpush1.bf16.msra.mxu0 %v1762
  %2399 = vmatprep.subr.bf16.mxu0 0
  %2400 = vmatpush1.bf16.msra.mxu0 %v1763
  %2401 = vmatprep.subr.bf16.mxu0 0
  %2402 = vmatpush1.bf16.msra.mxu0 %v1764
  %2403 = vmatprep.subr.bf16.mxu0 0
  %2404 = vmatpush1.bf16.msra.mxu0 %v1765
  %2405 = vmatprep.subr.bf16.mxu0 0
  %2406 = vmatpush1.bf16.msra.mxu0 %v1766
  %2407 = vmatprep.mubr.bf16.mxu0 %v697
  %2408 = vmatmul.mubr.bf16.gmra.mrb[0].mxu0 %v683
  %v2409 = vpop.f32.mrb[0].mxu0
  %v2410 = vadd.f32 %v2370, %v2409
  %v2411 = vpop.f32.mrb[0].mxu0
  %v2412 = vpop.f32.mrb[0].mxu0
  %v2413 = vpop.f32.mrb[0].mxu0
  %2414 = vdwg.mxu0
  %2415 = vmatprep.subr.bf16.mxu0 0
  %2416 = vmatpush1.bf16.msra.mxu0 %v1767
  %2417 = vmatprep.subr.bf16.mxu0 0
  %2418 = vmatpush1.bf16.msra.mxu0 %v1768
  %2419 = vmatprep.subr.bf16.mxu0 0
  %2420 = vmatpush1.bf16.msra.mxu0 %v1769
  %2421 = vmatprep.subr.bf16.mxu0 0
  %2422 = vmatpush1.bf16.msra.mxu0 %v1770
  %2423 = vmatprep.subr.bf16.mxu0 0
  %2424 = vmatpush1.bf16.msra.mxu0 %v1771
  %2425 = vmatprep.subr.bf16.mxu0 0
  %2426 = vmatpush1.bf16.msra.mxu0 %v1772
  %2427 = vmatprep.subr.bf16.mxu0 0
  %2428 = vmatpush1.bf16.msra.mxu0 %v1773
  %2429 = vmatprep.subr.bf16.mxu0 0
  %2430 = vmatpush1.bf16.msra.mxu0 %v1774
  %2431 = vmatprep.subr.bf16.mxu0 0
  %2432 = vmatpush1.bf16.msra.mxu0 %v1775
  %2433 = vmatprep.subr.bf16.mxu0 0
  %2434 = vmatpush1.bf16.msra.mxu0 %v1776
  %2435 = vmatprep.subr.bf16.mxu0 0
  %2436 = vmatpush1.bf16.msra.mxu0 %v1777
  %2437 = vmatprep.subr.bf16.mxu0 0
  %2438 = vmatpush1.bf16.msra.mxu0 %v1778
  %2439 = vmatprep.subr.bf16.mxu0 0
  %2440 = vmatpush1.bf16.msra.mxu0 %v1779
  %2441 = vmatprep.subr.bf16.mxu0 0
  %2442 = vmatpush1.bf16.msra.mxu0 %v1780
  %2443 = vmatprep.subr.bf16.mxu0 0
  %2444 = vmatpush1.bf16.msra.mxu0 %v1781
  %2445 = vmatprep.subr.bf16.mxu0 0
  %2446 = vmatpush1.bf16.msra.mxu0 %v1782
  %2447 = vmatprep.mubr.bf16.mxu0 %v707
  %2448 = vmatmul.mubr.bf16.gmra.mrb[0].mxu0 %v705
  %v2449 = vpop.f32.mrb[0].mxu0
  %v2450 = vadd.f32 %v2410, %v2449
  %v2451 = vpop.f32.mrb[0].mxu0
  %v2452 = vpop.f32.mrb[0].mxu0
  %v2453 = vpop.f32.mrb[0].mxu0
  %2454 = vdwg.mxu0
  %2455 = vmatprep.subr.bf16.mxu0 0
  %2456 = vmatpush1.bf16.msra.mxu0 %v1783
  %2457 = vmatprep.subr.bf16.mxu0 0
  %2458 = vmatpush1.bf16.msra.mxu0 %v1784
  %2459 = vmatprep.subr.bf16.mxu0 0
  %2460 = vmatpush1.bf16.msra.mxu0 %v1785
  %2461 = vmatprep.subr.bf16.mxu0 0
  %2462 = vmatpush1.bf16.msra.mxu0 %v1786
  %2463 = vmatprep.subr.bf16.mxu0 0
  %2464 = vmatpush1.bf16.msra.mxu0 %v1787
  %2465 = vmatprep.subr.bf16.mxu0 0
  %2466 = vmatpush1.bf16.msra.mxu0 %v1788
  %2467 = vmatprep.subr.bf16.mxu0 0
  %2468 = vmatpush1.bf16.msra.mxu0 %v1789
  %2469 = vmatprep.subr.bf16.mxu0 0
  %2470 = vmatpush1.bf16.msra.mxu0 %v1790
  %2471 = vmatprep.subr.bf16.mxu0 0
  %2472 = vmatpush1.bf16.msra.mxu0 %v1791
  %2473 = vmatprep.subr.bf16.mxu0 0
  %2474 = vmatpush1.bf16.msra.mxu0 %v1792
  %2475 = vmatprep.subr.bf16.mxu0 0
  %2476 = vmatpush1.bf16.msra.mxu0 %v1793
  %2477 = vmatprep.subr.bf16.mxu0 0
  %2478 = vmatpush1.bf16.msra.mxu0 %v1794
  %2479 = vmatprep.subr.bf16.mxu0 0
  %2480 = vmatpush1.bf16.msra.mxu0 %v1795
  %2481 = vmatprep.subr.bf16.mxu0 0
  %2482 = vmatpush1.bf16.msra.mxu0 %v1796
  %2483 = vmatprep.subr.bf16.mxu0 0
  %2484 = vmatpush1.bf16.msra.mxu0 %v1797
  %2485 = vmatprep.subr.bf16.mxu0 0
  %2486 = vmatpush1.bf16.msra.mxu0 %v1798
  %2487 = vmatprep.mubr.bf16.mxu0 %v704
  %2488 = vmatmul.mubr.bf16.gmra.mrb[0].mxu0 %v690
  %v2489 = vpop.f32.mrb[0].mxu0
  %v2490 = vadd.f32 %v2450, %v2489
  %v2491 = vpop.f32.mrb[0].mxu0
  %v2492 = vpop.f32.mrb[0].mxu0
  %v2493 = vpop.f32.mrb[0].mxu0
  %2494 = vdwg.mxu0
  %2495 = vmatprep.subr.bf16.mxu0 0
  %2496 = vmatpush1.bf16.msra.mxu0 %v1799
  %2497 = vmatprep.subr.bf16.mxu0 0
  %2498 = vmatpush1.bf16.msra.mxu0 %v1800
  %2499 = vmatprep.subr.bf16.mxu0 0
  %2500 = vmatpush1.bf16.msra.mxu0 %v1801
  %2501 = vmatprep.subr.bf16.mxu0 0
  %2502 = vmatpush1.bf16.msra.mxu0 %v1802
  %2503 = vmatprep.subr.bf16.mxu0 0
  %2504 = vmatpush1.bf16.msra.mxu0 %v1803
  %2505 = vmatprep.subr.bf16.mxu0 0
  %2506 = vmatpush1.bf16.msra.mxu0 %v1804
  %2507 = vmatprep.subr.bf16.mxu0 0
  %2508 = vmatpush1.bf16.msra.mxu0 %v1805
  %2509 = vmatprep.subr.bf16.mxu0 0
  %2510 = vmatpush1.bf16.msra.mxu0 %v1806
  %2511 = vmatprep.subr.bf16.mxu0 0
  %2512 = vmatpush1.bf16.msra.mxu0 %v1807
  %2513 = vmatprep.subr.bf16.mxu0 0
  %2514 = vmatpush1.bf16.msra.mxu0 %v1808
  %2515 = vmatprep.subr.bf16.mxu0 0
  %2516 = vmatpush1.bf16.msra.mxu0 %v1809
  %2517 = vmatprep.subr.bf16.mxu0 0
  %2518 = vmatpush1.bf16.msra.mxu0 %v1810
  %2519 = vmatprep.subr.bf16.mxu0 0
  %2520 = vmatpush1.bf16.msra.mxu0 %v1811
  %2521 = vmatprep.subr.bf16.mxu0 0
  %2522 = vmatpush1.bf16.msra.mxu0 %v1812
  %2523 = vmatprep.subr.bf16.mxu0 0
  %2524 = vmatpush1.bf16.msra.mxu0 %v1813
  %2525 = vmatprep.subr.bf16.mxu0 0
  %2526 = vmatpush1.bf16.msra.mxu0 %v1814
  %2527 = vmatprep.mubr.bf16.mxu0 %v708
  %2528 = vmatmul.mubr.bf16.gmra.mrb[0].mxu0 %v706
  %v2529 = vpop.f32.mrb[0].mxu0
  %v2530 = vadd.f32 %v2490, %v2529
  %v2531 = vpop.f32.mrb[0].mxu0
  %v2532 = vpop.f32.mrb[0].mxu0
  %v2533 = vpop.f32.mrb[0].mxu0
  %2534 = vdwg.mxu0
  %2535 = vmatprep.subr.bf16.mxu0 0
  %2536 = vmatpush1.bf16.msra.mxu0 %v1815
  %2537 = vmatprep.subr.bf16.mxu0 0
  %2538 = vmatpush1.bf16.msra.mxu0 %v1816
  %2539 = vmatprep.subr.bf16.mxu0 0
  %2540 = vmatpush1.bf16.msra.mxu0 %v1817
  %2541 = vmatprep.subr.bf16.mxu0 0
  %2542 = vmatpush1.bf16.msra.mxu0 %v1818
  %2543 = vmatprep.subr.bf16.mxu0 0
  %2544 = vmatpush1.bf16.msra.mxu0 %v1819
  %2545 = vmatprep.subr.bf16.mxu0 0
  %2546 = vmatpush1.bf16.msra.mxu0 %v1820
  %2547 = vmatprep.subr.bf16.mxu0 0
  %2548 = vmatpush1.bf16.msra.mxu0 %v1821
  %2549 = vmatprep.subr.bf16.mxu0 0
  %2550 = vmatpush1.bf16.msra.mxu0 %v1822
  %2551 = vmatprep.subr.bf16.mxu0 0
  %2552 = vmatpush1.bf16.msra.mxu0 %v1823
  %2553 = vmatprep.subr.bf16.mxu0 0
  %2554 = vmatpush1.bf16.msra.mxu0 %v1824
  %2555 = vmatprep.subr.bf16.mxu0 0
  %2556 = vmatpush1.bf16.msra.mxu0 %v1825
  %2557 = vmatprep.subr.bf16.mxu0 0
  %2558 = vmatpush1.bf16.msra.mxu0 %v1826
  %2559 = vmatprep.subr.bf16.mxu0 0
  %2560 = vmatpush1.bf16.msra.mxu0 %v1827
  %2561 = vmatprep.subr.bf16.mxu0 0
  %2562 = vmatpush1.bf16.msra.mxu0 %v1828
  %2563 = vmatprep.subr.bf16.mxu0 0
  %2564 = vmatpush1.bf16.msra.mxu0 %v1829
  %2565 = vmatprep.subr.bf16.mxu0 0
  %2566 = vmatpush1.bf16.msra.mxu0 %v1830
  %2567 = vmatprep.mubr.bf16.mxu0 %v730
  %2568 = vmatmul.mubr.bf16.gmra.mrb[0].mxu0 %v723
  %v2569 = vpop.f32.mrb[0].mxu0
  %v2570 = vadd.f32 %v2530, %v2569
  %v2571 = vpop.f32.mrb[0].mxu0
  %v2572 = vpop.f32.mrb[0].mxu0
  %v2573 = vpop.f32.mrb[0].mxu0
  %2574 = vdwg.mxu0
  %2575 = vmatprep.subr.bf16.mxu0 0
  %2576 = vmatpush1.bf16.msra.mxu0 %v1831
  %2577 = vmatprep.subr.bf16.mxu0 0
  %2578 = vmatpush1.bf16.msra.mxu0 %v1832
  %2579 = vmatprep.subr.bf16.mxu0 0
  %2580 = vmatpush1.bf16.msra.mxu0 %v1833
  %2581 = vmatprep.subr.bf16.mxu0 0
  %2582 = vmatpush1.bf16.msra.mxu0 %v1834
  %2583 = vmatprep.subr.bf16.mxu0 0
  %2584 = vmatpush1.bf16.msra.mxu0 %v1835
  %2585 = vmatprep.subr.bf16.mxu0 0
  %2586 = vmatpush1.bf16.msra.mxu0 %v1836
  %2587 = vmatprep.subr.bf16.mxu0 0
  %2588 = vmatpush1.bf16.msra.mxu0 %v1837
  %2589 = vmatprep.subr.bf16.mxu0 0
  %2590 = vmatpush1.bf16.msra.mxu0 %v1838
  %2591 = vmatprep.subr.bf16.mxu0 0
  %2592 = vmatpush1.bf16.msra.mxu0 0
  %2593 = vmatprep.subr.bf16.mxu0 0
  %2594 = vmatpush1.bf16.msra.mxu0 0
  %2595 = vmatprep.subr.bf16.mxu0 0
  %2596 = vmatpush1.bf16.msra.mxu0 0
  %2597 = vmatprep.subr.bf16.mxu0 0
  %2598 = vmatpush1.bf16.msra.mxu0 0
  %2599 = vmatprep.subr.bf16.mxu0 0
  %2600 = vmatpush1.bf16.msra.mxu0 0
  %2601 = vmatprep.subr.bf16.mxu0 0
  %2602 = vmatpush1.bf16.msra.mxu0 0
  %2603 = vmatprep.subr.bf16.mxu0 0
  %2604 = vmatpush1.bf16.msra.mxu0 0
  %2605 = vmatprep.subr.bf16.mxu0 0
  %2606 = vmatpush1.bf16.msra.mxu0 0
  %2607 = vmatprep.mubr.bf16.mxu0 0
  %2608 = vmatmul.mubr.bf16.gmra.mrb[0].mxu0 %v731
  %v2609 = vpop.f32.mrb[0].mxu0
  %v2610 = vadd.f32 %v2570, %v2609
  %v2611 = vpop.f32.mrb[0].mxu0
  %v2612 = vpop.f32.mrb[0].mxu0
  %v2613 = vpop.f32.mrb[0].mxu0
  %2614 = vdwg.mxu0
  %v2615 = vld [vmem:[%s4] sm:$0x1]
  %v2617 = vlaneseq
  %v2618 = vshrl.u32 %v2617, 7
  %v2619 = vsub.s32 0, %v2618
  %v2620 = vrot.slane %v2615, %v2619
  %v2622 = vadd.f32 %v2610, %v2620
  %v2623 = vld [vmem:[%s5] sm:$0xff]
  %v2624 = vld [vmem:[%s5 + $0x8] sm:$0xff]
  %v2625 = vld [vmem:[%s5 + $0x10] sm:$0xff]
  %v2626 = vld [vmem:[%s6] sm:$0x1]
  %v2628 = vlaneseq
  %v2629 = vshrl.u32 %v2628, 7
  %v2630 = vsub.s32 0, %v2629
  %v2631 = vrot.slane %v2626, %v2630
  %vm2633 = vcmask 195584
  %v2635 = vsel %vm2633, %v2622, 0
  %2637 = vmatprep.subr.mxu0 0.0
  %2638 = vmatpush1.msra.mxu0 %v2623
  %2639 = vmatprep.subr.mxu0 0.0
  %2640 = vmatpush1.msra.mxu0 %v2624
  %2641 = vmatprep.subr.mxu0 0.0
  %2642 = vmatpush1.msra.mxu0 %v2625
  %2643 = vmatprep.subr.mxu0 0.0
  %2644 = vmatpush1.msra.mxu0 0.0
  %2645 = vmatprep.subr.mxu0 0.0
  %2646 = vmatpush1.msra.mxu0 0.0
  %2647 = vmatprep.subr.mxu0 0.0
  %2648 = vmatpush1.msra.mxu0 0.0
  %2649 = vmatprep.subr.mxu0 0.0
  %2650 = vmatpush1.msra.mxu0 0.0
  %2651 = vmatprep.subr.mxu0 0.0
  %2652 = vmatpush1.msra.mxu0 0.0
  %2653 = vmatprep.subr.mxu0 0.0
  %2654 = vmatpush1.msra.mxu0 0.0
  %2655 = vmatprep.subr.mxu0 0.0
  %2656 = vmatpush1.msra.mxu0 0.0
  %2657 = vmatprep.subr.mxu0 0.0
  %2658 = vmatpush1.msra.mxu0 0.0
  %2659 = vmatprep.subr.mxu0 0.0
  %2660 = vmatpush1.msra.mxu0 0.0
  %2661 = vmatprep.subr.mxu0 0.0
  %2662 = vmatpush1.msra.mxu0 0.0
  %2663 = vmatprep.subr.mxu0 0.0
  %2664 = vmatpush1.msra.mxu0 0.0
  %2665 = vmatprep.subr.mxu0 0.0
  %2666 = vmatpush1.msra.mxu0 0.0
  %2667 = vmatprep.subr.mxu0 0.0
  %2668 = vmatpush1.msra.mxu0 0.0
  %2669 = vmatprep.subr.mxu0 0.0
  %2670 = vmatpush1.msra.mxu0 0.0
  %2671 = vmatprep.subr.mxu0 0.0
  %2672 = vmatpush1.msra.mxu0 0.0
  %2673 = vmatprep.subr.mxu0 0.0
  %2674 = vmatpush1.msra.mxu0 0.0
  %2675 = vmatprep.subr.mxu0 0.0
  %2676 = vmatpush1.msra.mxu0 0.0
  %2677 = vmatprep.subr.mxu0 0.0
  %2678 = vmatpush1.msra.mxu0 0.0
  %2679 = vmatprep.subr.mxu0 0.0
  %2680 = vmatpush1.msra.mxu0 0.0
  %2681 = vmatprep.subr.mxu0 0.0
  %2682 = vmatpush1.msra.mxu0 0.0
  %2683 = vmatprep.subr.mxu0 0.0
  %2684 = vmatpush1.msra.mxu0 0.0
  %2685 = vmatprep.subr.mxu0 0.0
  %2686 = vmatpush1.msra.mxu0 0.0
  %2687 = vmatprep.subr.mxu0 0.0
  %2688 = vmatpush1.msra.mxu0 0.0
  %2689 = vmatprep.subr.mxu0 0.0
  %2690 = vmatpush1.msra.mxu0 0.0
  %2691 = vmatprep.subr.mxu0 0.0
  %2692 = vmatpush1.msra.mxu0 0.0
  %2693 = vmatprep.subr.mxu0 0.0
  %2694 = vmatpush1.msra.mxu0 0.0
  %2695 = vmatprep.subr.mxu0 0.0
  %2696 = vmatpush1.msra.mxu0 0.0
  %2697 = vmatprep.subr.mxu0 0.0
  %2698 = vmatpush1.msra.mxu0 0.0
  %2699 = vmatprep.subr.mxu0 0.0
  %2700 = vmatpush1.msra.mxu0 0.0
  %2701 = vmatprep.mubr.f32.mxu0 0.0
  %2702 = vmatmul.mubr.f32.gmra.mrb[0].mxu0 %v2635
  %v2703 = vpop.f32.mrb[0].mxu0
  %v2704 = vadd.f32 %v2631, %v2703
  %v2705 = vpop.f32.mrb[0].mxu0
  %2706 = vdwg.mxu0
  %v2707 = vld [vmem:[%s7] sm:$0xff]
  %v2708 = vld [vmem:[%s7 + $0x8] sm:$0xf]
  %v2709 = vld [vmem:[%s8] sm:$0x1]
  %v2711 = vlaneseq
  %v2712 = vshrl.u32 %v2711, 7
  %v2713 = vsub.s32 0, %v2712
  %v2714 = vrot.slane %v2709, %v2713
  %vm2716 = vcmask 97280
  %v2718 = vsel %vm2716, %v2704, 0
  %vm2720 = vcmask 1043456
  %v2722 = vsel %vm2720, %v2708, 0
  %2724 = vmatprep.subr.mxu0 0.0
  %2725 = vmatpush1.msra.mxu0 %v2707
  %2726 = vmatprep.subr.mxu0 0.0
  %2727 = vmatpush1.msra.mxu0 %v2722
  %2728 = vmatprep.subr.mxu0 0.0
  %2729 = vmatpush1.msra.mxu0 0.0
  %2730 = vmatprep.subr.mxu0 0.0
  %2731 = vmatpush1.msra.mxu0 0.0
  %2732 = vmatprep.subr.mxu0 0.0
  %2733 = vmatpush1.msra.mxu0 0.0
  %2734 = vmatprep.subr.mxu0 0.0
  %2735 = vmatpush1.msra.mxu0 0.0
  %2736 = vmatprep.subr.mxu0 0.0
  %2737 = vmatpush1.msra.mxu0 0.0
  %2738 = vmatprep.subr.mxu0 0.0
  %2739 = vmatpush1.msra.mxu0 0.0
  %2740 = vmatprep.subr.mxu0 0.0
  %2741 = vmatpush1.msra.mxu0 0.0
  %2742 = vmatprep.subr.mxu0 0.0
  %2743 = vmatpush1.msra.mxu0 0.0
  %2744 = vmatprep.subr.mxu0 0.0
  %2745 = vmatpush1.msra.mxu0 0.0
  %2746 = vmatprep.subr.mxu0 0.0
  %2747 = vmatpush1.msra.mxu0 0.0
  %2748 = vmatprep.subr.mxu0 0.0
  %2749 = vmatpush1.msra.mxu0 0.0
  %2750 = vmatprep.subr.mxu0 0.0
  %2751 = vmatpush1.msra.mxu0 0.0
  %2752 = vmatprep.subr.mxu0 0.0
  %2753 = vmatpush1.msra.mxu0 0.0
  %2754 = vmatprep.subr.mxu0 0.0
  %2755 = vmatpush1.msra.mxu0 0.0
  %2756 = vmatprep.subr.mxu0 0.0
  %2757 = vmatpush1.msra.mxu0 0.0
  %2758 = vmatprep.subr.mxu0 0.0
  %2759 = vmatpush1.msra.mxu0 0.0
  %2760 = vmatprep.subr.mxu0 0.0
  %2761 = vmatpush1.msra.mxu0 0.0
  %2762 = vmatprep.subr.mxu0 0.0
  %2763 = vmatpush1.msra.mxu0 0.0
  %2764 = vmatprep.subr.mxu0 0.0
  %2765 = vmatpush1.msra.mxu0 0.0
  %2766 = vmatprep.subr.mxu0 0.0
  %2767 = vmatpush1.msra.mxu0 0.0
  %2768 = vmatprep.subr.mxu0 0.0
  %2769 = vmatpush1.msra.mxu0 0.0
  %2770 = vmatprep.subr.mxu0 0.0
  %2771 = vmatpush1.msra.mxu0 0.0
  %2772 = vmatprep.subr.mxu0 0.0
  %2773 = vmatpush1.msra.mxu0 0.0
  %2774 = vmatprep.subr.mxu0 0.0
  %2775 = vmatpush1.msra.mxu0 0.0
  %2776 = vmatprep.subr.mxu0 0.0
  %2777 = vmatpush1.msra.mxu0 0.0
  %2778 = vmatprep.subr.mxu0 0.0
  %2779 = vmatpush1.msra.mxu0 0.0
  %2780 = vmatprep.subr.mxu0 0.0
  %2781 = vmatpush1.msra.mxu0 0.0
  %2782 = vmatprep.subr.mxu0 0.0
  %2783 = vmatpush1.msra.mxu0 0.0
  %2784 = vmatprep.subr.mxu0 0.0
  %2785 = vmatpush1.msra.mxu0 0.0
  %2786 = vmatprep.subr.mxu0 0.0
  %2787 = vmatpush1.msra.mxu0 0.0
  %2788 = vmatprep.mubr.f32.mxu0 0.0
  %2789 = vmatmul.mubr.f32.gmra.mrb[0].mxu0 %v2718
  %v2790 = vpop.f32.mrb[0].mxu0
  %v2791 = vadd.f32 %v2714, %v2790
  %v2792 = vpop.f32.mrb[0].mxu0
  %2793 = vdwg.mxu0
  %vm2794 = vcmask 50176
  %v2795 = vsel %vm2794, %v2791, 0.0
  %2796 = vadd.xlane.f32.xlu0 %v2795
  %v2797 = vpop.xlane.xlu0 %2796
  %v2798 = vrot.slane %v2797, 4
  %v2799 = vadd.f32 %v2797, %v2798
  %v2800 = vrot.slane %v2799, 2
  %v2801 = vadd.f32 %v2799, %v2800
  %v2802 = vrot.slane %v2801, 1
  %v2803 = vadd.f32 %v2801, %v2802
  %s2804 = vtos %v2803
  %v2805 = vstv %s2804
  %v2806 = vrcp.pop 14.0
  %v2807 = vmul.f32 %v2805, %v2806
  %v2808 = vsub.f32 %v2791, %v2807
  %v2809 = vmul.f32 %v2808, %v2808
  %v2810 = vsel %vm2794, %v2809, 0.0
  %2811 = vadd.xlane.f32.xlu0 %v2810
  %v2812 = vpop.xlane.xlu0 %2811
  %v2813 = vrot.slane %v2812, 4
  %v2814 = vadd.f32 %v2812, %v2813
  %v2815 = vrot.slane %v2814, 2
  %v2816 = vadd.f32 %v2814, %v2815
  %v2817 = vrot.slane %v2816, 1
  %v2818 = vadd.f32 %v2816, %v2817
  %s2819 = vtos %v2818
  %v2820 = vstv %s2819
  %v2821 = vmul.f32 %v2820, %v2806
  %v2822 = vadd.f32 %v2821, 1e-05
  %v2823 = vrsqrt.pop %v2822
  %v2824 = vmul.f32 %v2808, %v2823
  %v2825 = vld [vmem:[#allocation2] sm:$0x1]
  %v2827 = vlaneseq
  %v2828 = vshrl.u32 %v2827, 7
  %v2829 = vsub.s32 0, %v2828
  %v2830 = vrot.slane %v2825, %v2829
  %2831 = vset.pattern.permute.xlu0 0
  %2832 = vperm.xlu0 %2831, %v2830
  %v2833 = vpop.permute.xlu0 %2832
  %v2835 = vmul.f32 %v2824, %v2833
  %v2836 = vld [vmem:[#allocation3] sm:$0x1]
  %v2838 = vlaneseq
  %v2839 = vshrl.u32 %v2838, 7
  %v2840 = vsub.s32 0, %v2839
  %v2841 = vrot.slane %v2836, %v2840
  %2842 = vset.pattern.permute.xlu0 0
  %2843 = vperm.xlu0 %2842, %v2841
  %v2844 = vpop.permute.xlu0 %2843
  %v2846 = vadd.f32 %v2835, %v2844
  %2848 = vrot.lane.b32.xlu0 %v2791, 121
  %v2849 = vpop.permute.xlu0 %2848
  %vm2851 = vcmask 9216
  %v2852 = vsel %vm2851, %v2849, 0.0
  %2853 = vadd.xlane.f32.xlu0 %v2852
  %v2854 = vpop.xlane.xlu0 %2853
  %v2855 = vrot.slane %v2854, 4
  %v2856 = vadd.f32 %v2854, %v2855
  %v2857 = vrot.slane %v2856, 2
  %v2858 = vadd.f32 %v2856, %v2857
  %v2859 = vrot.slane %v2858, 1
  %v2860 = vadd.f32 %v2858, %v2859
  %s2861 = vtos %v2860
  %v2862 = vstv %s2861
  %v2863 = vrcp.pop 4.0
  %v2864 = vmul.f32 %v2862, %v2863
  %v2865 = vsub.f32 %v2791, %v2864
  %v2866 = vmul.f32 %v2865, %v2865
  %2868 = vrot.lane.b32.xlu0 %v2866, 121
  %v2869 = vpop.permute.xlu0 %2868
  %v2871 = vsel %vm2851, %v2869, 0.0
  %2872 = vadd.xlane.f32.xlu0 %v2871
  %v2873 = vpop.xlane.xlu0 %2872
  %v2874 = vrot.slane %v2873, 4
  %v2875 = vadd.f32 %v2873, %v2874
  %v2876 = vrot.slane %v2875, 2
  %v2877 = vadd.f32 %v2875, %v2876
  %v2878 = vrot.slane %v2877, 1
  %v2879 = vadd.f32 %v2877, %v2878
  %s2880 = vtos %v2879
  %v2881 = vstv %s2880
  %v2882 = vmul.f32 %v2881, %v2863
  %v2883 = vadd.f32 %v2882, 1e-05
  %v2884 = vrsqrt.pop %v2883
  %v2885 = vmul.f32 %v2865, %v2884
  %v2886 = vld [vmem:[#allocation4] sm:$0x1]
  %v2888 = vlaneseq
  %v2889 = vshrl.u32 %v2888, 7
  %v2890 = vsub.s32 0, %v2889
  %v2891 = vrot.slane %v2886, %v2890
  %2892 = vset.pattern.permute.xlu0 0
  %2893 = vperm.xlu0 %2892, %v2891
  %v2894 = vpop.permute.xlu0 %2893
  %v2896 = vmul.f32 %v2885, %v2894
  %v2897 = vld [vmem:[#allocation5] sm:$0x1]
  %v2899 = vlaneseq
  %v2900 = vshrl.u32 %v2899, 7
  %v2901 = vsub.s32 0, %v2900
  %v2902 = vrot.slane %v2897, %v2901
  %2903 = vset.pattern.permute.xlu0 0
  %2904 = vperm.xlu0 %2903, %v2902
  %v2905 = vpop.permute.xlu0 %2904
  %v2907 = vadd.f32 %v2896, %v2905
  %vm2908 = vcmask 56320
  %v2909 = vsel %vm2908, %v2846, %v2907
  %vm2910 = vcmask 66560
  %2911 = vst.msk [vmem:[%s13] sm:$0x3] %vm2910, %v2909
  // Predicated region
  $region54: #{cnn_forward.3} parent=0 // pred_check
    _
  $region55: #{cnn_forward.3} parent=0 // pred_check_branch
    %2913 = sbr.rel (0) target = $region57
  $region56: #{cnn_forward.3} parent=0 // pred_region
    _
  $region57: #{cnn_forward.3} parent=0 // pred_fallthru
    _
  // Predicated region
  $region58: #{cnn_forward.3} parent=0 // pred_check
    _
  $region59: #{cnn_forward.3} parent=0 // pred_check_branch
    %2915 = sbr.rel (0) target = $region61
  $region60: #{cnn_forward.3} parent=0 // pred_region
    _
  $region61: #{cnn_forward.3} parent=0 // pred_fallthru
    _

</llo_original>
